<compile_context>
chip_gen: v6e
topology: v6e:2x2x1
jax: 0.10.0
libtpu: 0.0.40
codegen_flags: <defaults>
</compile_context>

<pallas_src>
import math
from functools import partial

import jax
import jax.numpy as jnp
from jax import lax
from jax.experimental import pallas as pl
from jax.experimental.pallas import tpu as pltpu


# ----------------------------- in-kernel helpers -----------------------------

def _layernorm(y, g, beta):
    mean = jnp.mean(y, axis=-1, keepdims=True)
    var = jnp.mean((y - mean) ** 2, axis=-1, keepdims=True)
    return (y - mean) * lax.rsqrt(var + 1e-12) * g + beta


def _attn_ln(x, kvx, keep, wq, bq, wkv, bkv, wo, bo, g, beta, *, B, Lq, Lk, n_head):
    """Masked MHA (all batches & heads) + out-proj + residual + post-LayerNorm.
    x:(B*Lq,D) f32 (residual)   kvx:(B*Lk,D)   keep:(B,Lq,Lk) f32 (1=keep,0=mask)."""
    D = x.shape[-1]
    Dh = D // n_head

    xb = x.astype(jnp.bfloat16)
    if kvx is x:                       # self-attention: reuse the single bf16 cast
        kvb = xb
    elif kvx.dtype == jnp.bfloat16:
        kvb = kvx
    else:
        kvb = kvx.astype(jnp.bfloat16)

    # Projections on the MXU (bf16 in, f32 accumulate); 1/sqrt(Dh) is folded
    # into wq/bq at init time.
    q = jnp.dot(xb, wq, preferred_element_type=jnp.float32) + bq        # (B*Lq, D)
    kv = jnp.dot(kvb, wkv, preferred_element_type=jnp.float32) + bkv    # (B*Lk, 2D)
    k = kv[:, :D]
    v = kv[:, D:]

    neg = (keep - 1.0) * 10000.0       # 0 where kept, -10000 where masked

    rows = []
    for b in range(B):                 # static unroll: B, n_head are small
        qs = slice(b * Lq, (b + 1) * Lq)
        ks = slice(b * Lk, (b + 1) * Lk)
        keep_b = keep[b]
        neg_b = neg[b]
        heads = []
        for h in range(n_head):
            hs = slice(h * Dh, (h + 1) * Dh)
            qh = q[qs, hs].astype(jnp.bfloat16)
            kh = k[ks, hs].astype(jnp.bfloat16)
            vh = v[ks, hs].astype(jnp.bfloat16)
            # q @ k^T without forming a transpose: contract the Dh axis of both.
            s = lax.dot_general(qh, kh, (((1,), (1,)), ((), ())),
                                preferred_element_type=jnp.float32)     # (Lq, Lk)
            s = s * keep_b + neg_b          # == masked_fill(mask == 0, -10000)
            s = s - jnp.max(s, axis=-1, keepdims=True)
            p = jnp.exp(s)
            p = p / jnp.sum(p, axis=-1, keepdims=True)                  # exact softmax
            heads.append(jnp.dot(p.astype(jnp.bfloat16), vh,
                                 preferred_element_type=jnp.float32))   # (Lq, Dh)
        rows.append(jnp.concatenate(heads, axis=-1))                    # (Lq, D)
    o = jnp.concatenate(rows, axis=0)                                   # (B*Lq, D)

    # Single (B*Lq, D) @ (D, D) output projection + bias + residual.
    y = jnp.dot(o.astype(jnp.bfloat16), wo,
                preferred_element_type=jnp.float32) + bo + x
    return _layernorm(y, g, beta)


def _ffn_ln(x, w1, b1, w2, b2, g, beta):
    h = jnp.dot(x.astype(jnp.bfloat16), w1,
                preferred_element_type=jnp.float32) + b1
    h = jnp.maximum(h, 0.0)                                             # ReLU
    y = jnp.dot(h.astype(jnp.bfloat16), w2,
                preferred_element_type=jnp.float32) + b2 + x
    return _layernorm(y, g, beta)


# ------------------------------ fused stack kernels --------------------------

def _encoder_kernel(x0_ref, keep_ref,
                    wq_ref, bq_ref, wkv_ref, bkv_ref, wo_ref, bo_ref,
                    ln1g_ref, ln1b_ref,
                    w1_ref, b1_ref, w2_ref, b2_ref,
                    ln2g_ref, ln2b_ref,
                    o_ref, x_scr, *, B, L, n_head):
    """Whole encoder stack: grid axis = layer (arbitrary, sequential carry)."""
    l = pl.program_id(0)

    @pl.when(l == 0)
    def _():
        x_scr[...] = x0_ref[...]

    x = x_scr[...]                                                      # (B*L, D)
    x = _attn_ln(x, x, keep_ref[...],
                 wq_ref[0], bq_ref[0], wkv_ref[0], bkv_ref[0],
                 wo_ref[0], bo_ref[0], ln1g_ref[0], ln1b_ref[0],
                 B=B, Lq=L, Lk=L, n_head=n_head)
    x = _ffn_ln(x, w1_ref[0], b1_ref[0], w2_ref[0], b2_ref[0],
                ln2g_ref[0], ln2b_ref[0])
    x_scr[...] = x

    @pl.when(l == pl.num_programs(0) - 1)
    def _():
        o_ref[...] = x_scr[...]


def _decoder_kernel(y0_ref, enc_ref, skeep_ref, ckeep_ref,
                    swq_ref, sbq_ref, swkv_ref, sbkv_ref, swo_ref, sbo_ref,
                    ln1g_ref, ln1b_ref,
                    cwq_ref, cbq_ref, cwkv_ref, cbkv_ref, cwo_ref, cbo_ref,
                    ln2g_ref, ln2b_ref,
                    w1_ref, b1_ref, w2_ref, b2_ref,
                    ln3g_ref, ln3b_ref,
                    wlog_ref, blog_ref,
                    logits_ref, y_scr, *, B, Lt, Ls, n_head):
    """Whole decoder stack + final vocabulary projection (lane-padded)."""
    l = pl.program_id(0)

    @pl.when(l == 0)
    def _():
        y_scr[...] = y0_ref[...]

    y = y_scr[...]                                                      # (B*Lt, D)
    enc = enc_ref[...]                                                  # (B*Ls, D)

    y = _attn_ln(y, y, skeep_ref[...],
                 swq_ref[0], sbq_ref[0], swkv_ref[0], sbkv_ref[0],
                 swo_ref[0], sbo_ref[0], ln1g_ref[0], ln1b_ref[0],
                 B=B, Lq=Lt, Lk=Lt, n_head=n_head)
    y = _attn_ln(y, enc, ckeep_ref[...],
                 cwq_ref[0], cbq_ref[0], cwkv_ref[0], cbkv_ref[0],
                 cwo_ref[0], cbo_ref[0], ln2g_ref[0], ln2b_ref[0],
                 B=B, Lq=Lt, Lk=Ls, n_head=n_head)
    y = _ffn_ln(y, w1_ref[0], b1_ref[0], w2_ref[0], b2_ref[0],
                ln3g_ref[0], ln3b_ref[0])
    y_scr[...] = y

    @pl.when(l == pl.num_programs(0) - 1)
    def _():
        logits_ref[...] = (jnp.dot(y_scr[...].astype(jnp.bfloat16), wlog_ref[...],
                                   preferred_element_type=jnp.float32)
                           + blog_ref[...])


# ------------------------------ kernel wrappers -------------------------------

def encoder_forward(x0, keep, p, *, n_head):
    """x0:(B*Ls,D) f32, keep:(B,Ls,Ls) f32 -> (B*Ls,D) f32."""
    BL, D = x0.shape
    B, L, _ = keep.shape
    n_layers = p["wq"].shape[0]
    H = p["w1"].shape[2]
    c2 = lambda l: (0, 0)
    c3 = lambda l: (0, 0, 0)
    per = lambda l: (l, 0, 0)
    kernel = partial(_encoder_kernel, B=B, L=L, n_head=n_head)
    return pl.pallas_call(
        kernel,
        grid=(n_layers,),
        out_shape=jax.ShapeDtypeStruct((BL, D), jnp.float32),
        in_specs=[
            pl.BlockSpec((BL, D), c2),            # embedded input (layer-invariant)
            pl.BlockSpec((B, L, L), c3),          # keep mask     (layer-invariant)
            pl.BlockSpec((1, D, D), per),         # wq   (scale folded)
            pl.BlockSpec((1, 1, D), per),         # bq
            pl.BlockSpec((1, D, 2 * D), per),     # wkv
            pl.BlockSpec((1, 1, 2 * D), per),     # bkv
            pl.BlockSpec((1, D, D), per),         # wo
            pl.BlockSpec((1, 1, D), per),         # bo
            pl.BlockSpec((1, 1, D), per),         # ln1 gamma
            pl.BlockSpec((1, 1, D), per),         # ln1 beta
            pl.BlockSpec((1, D, H), per),         # ffn w1
            pl.BlockSpec((1, 1, H), per),         # ffn b1
            pl.BlockSpec((1, H, D), per),         # ffn w2
            pl.BlockSpec((1, 1, D), per),         # ffn b2
            pl.BlockSpec((1, 1, D), per),         # ln2 gamma
            pl.BlockSpec((1, 1, D), per),         # ln2 beta
        ],
        out_specs=pl.BlockSpec((BL, D), c2),
        scratch_shapes=[pltpu.VMEM((BL, D), jnp.float32)],   # activation carry
        compiler_params=pltpu.CompilerParams(dimension_semantics=("arbitrary",)),
    )(x0, keep,
      p["wq"], p["bq"], p["wkv"], p["bkv"], p["wo"], p["bo"],
      p["ln1_g"], p["ln1_b"],
      p["w1"], p["b1"], p["w2"], p["b2"],
      p["ln2_g"], p["ln2_b"])


def decoder_forward(y0, enc_out, trg_keep, cross_keep, p, out_w, out_b, *, n_head):
    """y0:(B*Lt,D), enc_out:(B*Ls,D) -> logits (B*Lt, Vpad) f32."""
    BLt, D = y0.shape
    BLs = enc_out.shape[0]
    B, Lt, _ = trg_keep.shape
    Ls = cross_keep.shape[2]
    n_layers = p["swq"].shape[0]
    H = p["w1"].shape[2]
    V = out_w.shape[1]                                     # multiple of 128
    c2 = lambda l: (0, 0)
    c3 = lambda l: (0, 0, 0)
    per = lambda l: (l, 0, 0)
    kernel = partial(_decoder_kernel, B=B, Lt=Lt, Ls=Ls, n_head=n_head)
    return pl.pallas_call(
        kernel,
        grid=(n_layers,),
        out_shape=jax.ShapeDtypeStruct((BLt, V), jnp.float32),
        in_specs=[
            pl.BlockSpec((BLt, D), c2),           # embedded target input
            pl.BlockSpec((BLs, D), c2),           # encoder output
            pl.BlockSpec((B, Lt, Lt), c3),        # self-attn keep mask
            pl.BlockSpec((B, Lt, Ls), c3),        # cross-attn keep mask
            pl.BlockSpec((1, D, D), per),         # self wq
            pl.BlockSpec((1, 1, D), per),         # self bq
            pl.BlockSpec((1, D, 2 * D), per),     # self wkv
            pl.BlockSpec((1, 1, 2 * D), per),     # self bkv
            pl.BlockSpec((1, D, D), per),         # self wo
            pl.BlockSpec((1, 1, D), per),         # self bo
            pl.BlockSpec((1, 1, D), per),         # ln1 gamma
            pl.BlockSpec((1, 1, D), per),         # ln1 beta
            pl.BlockSpec((1, D, D), per),         # cross wq
            pl.BlockSpec((1, 1, D), per),         # cross bq
            pl.BlockSpec((1, D, 2 * D), per),     # cross wkv
            pl.BlockSpec((1, 1, 2 * D), per),     # cross bkv
            pl.BlockSpec((1, D, D), per),         # cross wo
            pl.BlockSpec((1, 1, D), per),         # cross bo
            pl.BlockSpec((1, 1, D), per),         # ln2 gamma
            pl.BlockSpec((1, 1, D), per),         # ln2 beta
            pl.BlockSpec((1, D, H), per),         # ffn w1
            pl.BlockSpec((1, 1, H), per),         # ffn b1
            pl.BlockSpec((1, H, D), per),         # ffn w2
            pl.BlockSpec((1, 1, D), per),         # ffn b2
            pl.BlockSpec((1, 1, D), per),         # ln3 gamma
            pl.BlockSpec((1, 1, D), per),         # ln3 beta
            pl.BlockSpec((D, V), c2),             # logits weight (padded, resident)
            pl.BlockSpec((1, V), c2),             # logits bias
        ],
        out_specs=pl.BlockSpec((BLt, V), c2),     # lane-dense (128·k) store
        scratch_shapes=[pltpu.VMEM((BLt, D), jnp.float32)],   # activation carry
        compiler_params=pltpu.CompilerParams(dimension_semantics=("arbitrary",)),
    )(y0, enc_out, trg_keep, cross_keep,
      p["swq"], p["sbq"], p["swkv"], p["sbkv"], p["swo"], p["sbo"],
      p["ln1_g"], p["ln1_b"],
      p["cwq"], p["cbq"], p["cwkv"], p["cbkv"], p["cwo"], p["cbo"],
      p["ln2_g"], p["ln2_b"],
      p["w1"], p["b1"], p["w2"], p["b2"],
      p["ln3_g"], p["ln3_b"],
      out_w, out_b)


# ------------------------------- JAX glue ------------------------------------

def transformer_forward(params, src, trg, *, n_head, src_pad_idx, trg_pad_idx, dec_voc):
    B, Ls = src.shape
    _, Lt = trg.shape
    D = params["enc_emb"].shape[1]

    # keep masks (1 = attend, 0 = masked), same semantics as make_src/trg_mask.
    src_keep = (src != src_pad_idx).astype(jnp.float32)                  # (B, Ls)
    enc_keep = jnp.broadcast_to(src_keep[:, None, :], (B, Ls, Ls))       # key pad mask
    cross_keep = jnp.broadcast_to(src_keep[:, None, :], (B, Lt, Ls))
    trg_keep = ((trg != trg_pad_idx)[:, :, None]
                & jnp.tril(jnp.ones((Lt, Lt), dtype=bool))[None]).astype(jnp.float32)

    # Embedding + sinusoidal positional encoding (dropout = identity), flattened
    # to (B*L, D) so the fused kernels see full-batch matmul rows.
    x0 = (jnp.take(params["enc_emb"], src, axis=0)
          + params["pos_enc"][:Ls][None]).reshape(B * Ls, D)
    enc_out = encoder_forward(x0, enc_keep, params["enc"], n_head=n_head)

    y0 = (jnp.take(params["dec_emb"], trg, axis=0)
          + params["pos_enc"][:Lt][None]).reshape(B * Lt, D)
    logits = decoder_forward(y0, enc_out, trg_keep, cross_keep, params["dec"],
                             params["out_w"], params["out_b"], n_head=n_head)
    return logits.reshape(B, Lt, -1)[..., :dec_voc]       # strip lane padding


# ------------------------------ parameter init --------------------------------

def sinusoidal_encoding(max_len, d_model):
    pos = jnp.arange(max_len, dtype=jnp.float32)[:, None]
    i = jnp.arange(0, d_model, 2, dtype=jnp.float32)
    angle = pos / jnp.power(10000.0, i / d_model)
    enc = jnp.zeros((max_len, d_model), jnp.float32)
    enc = enc.at[:, 0::2].set(jnp.sin(angle))
    enc = enc.at[:, 1::2].set(jnp.cos(angle))
    return enc


def init_params(key, *, enc_voc, dec_voc, d_model, n_head, ffn_hidden, n_layers,
                max_len, pad_idx):
    bf16 = jnp.bfloat16
    keys = iter(jax.random.split(key, 4096))
    scale = 1.0 / math.sqrt(d_model // n_head)             # folded into wq/bq

    def dense(n_in, n_out):
        w = jax.random.normal(next(keys), (n_in, n_out), jnp.float32) * 0.02
        return w, jnp.zeros((n_out,), jnp.float32)

    def attn_layer():
        wq, bq = dense(d_model, d_model)
        wk, bk = dense(d_model, d_model)
        wv, bv = dense(d_model, d_model)
        wo, bo = dense(d_model, d_model)
        return dict(wq=(wq * scale).astype(bf16), bq=(bq * scale).reshape(1, d_model),
                    wkv=jnp.concatenate([wk, wv], axis=1).astype(bf16),
                    bkv=jnp.concatenate([bk, bv]).reshape(1, 2 * d_model),
                    wo=wo.astype(bf16), bo=bo.reshape(1, d_model))

    def ffn_layer():
        w1, b1 = dense(d_model, ffn_hidden)
        w2, b2 = dense(ffn_hidden, d_model)
        return dict(w1=w1.astype(bf16), b1=b1.reshape(1, ffn_hidden),
                    w2=w2.astype(bf16), b2=b2.reshape(1, d_model))

    def ln_layer():
        return jnp.ones((1, d_model), jnp.float32), jnp.zeros((1, d_model), jnp.float32)

    # Encoder layers, stacked on a leading (n_layers, ...) axis.
    enc_layers = []
    for _ in range(n_layers):
        a, f = attn_layer(), ffn_layer()
        g1, be1 = ln_layer()
        g2, be2 = ln_layer()
        enc_layers.append(dict(**a, ln1_g=g1, ln1_b=be1, **f, ln2_g=g2, ln2_b=be2))
    enc = {k: jnp.stack([lyr[k] for lyr in enc_layers], axis=0) for k in enc_layers[0]}

    # Decoder layers (self-attn, cross-attn, ffn), stacked likewise.
    dec_layers = []
    for _ in range(n_layers):
        sa = {"s" + k: v for k, v in attn_layer().items()}
        ca = {"c" + k: v for k, v in attn_layer().items()}
        f = ffn_layer()
        g1, be1 = ln_layer()
        g2, be2 = ln_layer()
        g3, be3 = ln_layer()
        dec_layers.append(dict(**sa, ln1_g=g1, ln1_b=be1,
                               **ca, ln2_g=g2, ln2_b=be2,
                               **f, ln3_g=g3, ln3_b=be3))
    dec = {k: jnp.stack([lyr[k] for lyr in dec_layers], axis=0) for k in dec_layers[0]}

    enc_emb = jax.random.normal(next(keys), (enc_voc, d_model), jnp.float32)
    dec_emb = jax.random.normal(next(keys), (dec_voc, d_model), jnp.float32)
    enc_emb = enc_emb.at[pad_idx].set(0.0)   # nn.Embedding(padding_idx): pad row zero
    dec_emb = dec_emb.at[pad_idx].set(0.0)

    out_w, out_b = dense(d_model, dec_voc)
    # Pad vocab dim to a multiple of 128 for lane-dense (unmasked) stores.
    v_pad = ((dec_voc + 127) // 128) * 128
    out_w_p = jnp.zeros((d_model, v_pad), jnp.float32).at[:, :dec_voc].set(out_w)
    out_b_p = jnp.zeros((1, v_pad), jnp.float32).at[0, :dec_voc].set(out_b)

    return dict(enc_emb=enc_emb, dec_emb=dec_emb,
                pos_enc=sinusoidal_encoding(max_len, d_model),
                enc=enc, dec=dec,
                out_w=out_w_p.astype(bf16), out_b=out_b_p)


# ---------------------------------- main --------------------------------------

if __name__ == "__main__":
    # Small config consistent with the module's constructor.
    src_pad_idx = 1
    trg_pad_idx = 1
    trg_sos_idx = 2          # unused in forward (kept for interface parity)
    enc_voc_size = 50
    dec_voc_size = 60
    d_model = 32
    n_head = 4
    max_len = 16
    ffn_hidden = 64
    n_layers = 2
    # drop_prob ignored (eval-mode forward: dropout == identity)

    B, Ls, Lt = 2, 8, 8

    key = jax.random.PRNGKey(0)
    kp, ks, kt = jax.random.split(key, 3)

    params = init_params(kp, enc_voc=enc_voc_size, dec_voc=dec_voc_size,
                         d_model=d_model, n_head=n_head, ffn_hidden=ffn_hidden,
                         n_layers=n_layers, max_len=max_len, pad_idx=src_pad_idx)

    src = jax.random.randint(ks, (B, Ls), 2, enc_voc_size, dtype=jnp.int32)
    trg = jax.random.randint(kt, (B, Lt), 2, dec_voc_size, dtype=jnp.int32)
    # Add some padding tokens so the masks actually do something.
    src = src.at[0, -2:].set(src_pad_idx)
    trg = trg.at[1, -3:].set(trg_pad_idx)

    fwd = jax.jit(partial(transformer_forward, n_head=n_head,
                          src_pad_idx=src_pad_idx, trg_pad_idx=trg_pad_idx,
                          dec_voc=dec_voc_size))
    out = fwd(params, src, trg)
    out = jax.block_until_ready(out)

    assert out.shape == (B, Lt, dec_voc_size), out.shape
    assert bool(jnp.all(jnp.isfinite(out)))
    print("KERNEL_OK")
</pallas_src>

<mosaic_0001>
module attributes {stable_mosaic.version = 11 : i64} {
  func.func @_encoder_kernel(%arg0: i32, %arg1: memref<16x32xf32, #tpu.memory_space<vmem>>, %arg2: memref<2x8x8xf32, #tpu.memory_space<vmem>>, %arg3: memref<1x32x32xbf16, #tpu.memory_space<vmem>>, %arg4: memref<1x1x32xf32, #tpu.memory_space<vmem>>, %arg5: memref<1x32x64xbf16, #tpu.memory_space<vmem>>, %arg6: memref<1x1x64xf32, #tpu.memory_space<vmem>>, %arg7: memref<1x32x32xbf16, #tpu.memory_space<vmem>>, %arg8: memref<1x1x32xf32, #tpu.memory_space<vmem>>, %arg9: memref<1x1x32xf32, #tpu.memory_space<vmem>>, %arg10: memref<1x1x32xf32, #tpu.memory_space<vmem>>, %arg11: memref<1x32x64xbf16, #tpu.memory_space<vmem>>, %arg12: memref<1x1x64xf32, #tpu.memory_space<vmem>>, %arg13: memref<1x64x32xbf16, #tpu.memory_space<vmem>>, %arg14: memref<1x1x32xf32, #tpu.memory_space<vmem>>, %arg15: memref<1x1x32xf32, #tpu.memory_space<vmem>>, %arg16: memref<1x1x32xf32, #tpu.memory_space<vmem>>, %arg17: memref<16x32xf32, #tpu.memory_space<vmem>>, %arg18: memref<16x32xf32, #tpu.memory_space<vmem>>) attributes {dimension_semantics = [#tpu.dimension_semantics<arbitrary>], iteration_bounds = array<i64: 2>, scalar_prefetch = 0 : i64, scratch_operands = 1 : i64, tpu.core_type = #tpu.core_type<tc>, window_params = [{pipeline_mode = #tpu.pipeline_mode<synchronous>, transform_indices = @transform_0, window_bounds = array<i64: 16, 32>}, {pipeline_mode = #tpu.pipeline_mode<synchronous>, transform_indices = @transform_1, window_bounds = array<i64: 2, 8, 8>}, {transform_indices = @transform_2, window_bounds = array<i64: 1, 32, 32>}, {transform_indices = @transform_3, window_bounds = array<i64: 1, 1, 32>}, {transform_indices = @transform_4, window_bounds = array<i64: 1, 32, 64>}, {transform_indices = @transform_5, window_bounds = array<i64: 1, 1, 64>}, {transform_indices = @transform_6, window_bounds = array<i64: 1, 32, 32>}, {transform_indices = @transform_7, window_bounds = array<i64: 1, 1, 32>}, {transform_indices = @transform_8, window_bounds = array<i64: 1, 1, 32>}, {transform_indices = @transform_9, window_bounds = array<i64: 1, 1, 32>}, {transform_indices = @transform_10, window_bounds = array<i64: 1, 32, 64>}, {transform_indices = @transform_11, window_bounds = array<i64: 1, 1, 64>}, {transform_indices = @transform_12, window_bounds = array<i64: 1, 64, 32>}, {transform_indices = @transform_13, window_bounds = array<i64: 1, 1, 32>}, {transform_indices = @transform_14, window_bounds = array<i64: 1, 1, 32>}, {transform_indices = @transform_15, window_bounds = array<i64: 1, 1, 32>}, {pipeline_mode = #tpu.pipeline_mode<synchronous>, transform_indices = @transform_16, window_bounds = array<i64: 16, 32>}]} {
    %c0_i32 = arith.constant 0 : i32
    %0 = arith.cmpi eq, %arg0, %c0_i32 : i32
    %1 = arith.extui %0 : i1 to i32
    %c0_i32_0 = arith.constant 0 : i32
    %2 = arith.cmpi ne, %1, %c0_i32_0 : i32
    scf.if %2 {
      %c0_99 = arith.constant 0 : index
      %c0_100 = arith.constant 0 : index
      %281 = vector.load %arg1[%c0_99, %c0_100] : memref<16x32xf32, #tpu.memory_space<vmem>>, vector<16x32xf32>
      %c0_101 = arith.constant 0 : index
      %c0_102 = arith.constant 0 : index
      %282 = vector.load %arg18[%c0_101, %c0_102] : memref<16x32xf32, #tpu.memory_space<vmem>>, vector<16x32xf32>
      tpu.vector_store %arg18[%c0_101, %c0_102], %281 {strides = array<i32>} : memref<16x32xf32, #tpu.memory_space<vmem>>, vector<16x32xf32>,
    } else {
    }
    %c0 = arith.constant 0 : index
    %c0_1 = arith.constant 0 : index
    %3 = vector.load %arg18[%c0, %c0_1] : memref<16x32xf32, #tpu.memory_space<vmem>>, vector<16x32xf32>
    %c0_2 = arith.constant 0 : index
    %c0_3 = arith.constant 0 : index
    %c0_4 = arith.constant 0 : index
    %4 = vector.load %arg2[%c0_2, %c0_3, %c0_4] : memref<2x8x8xf32, #tpu.memory_space<vmem>>, vector<2x8x8xf32>
    %c0_5 = arith.constant 0 : index
    %c0_6 = arith.constant 0 : index
    %c0_7 = arith.constant 0 : index
    %5 = vector.load %arg3[%c0_5, %c0_6, %c0_7] : memref<1x32x32xbf16, #tpu.memory_space<vmem>>, vector<1x32x32xbf16>
    %6 = vector.shape_cast %5 : vector<1x32x32xbf16> to vector<32x32xbf16>
    %c0_8 = arith.constant 0 : index
    %c0_9 = arith.constant 0 : index
    %c0_10 = arith.constant 0 : index
    %7 = vector.load %arg4[%c0_8, %c0_9, %c0_10] : memref<1x1x32xf32, #tpu.memory_space<vmem>>, vector<1x1x32xf32>
    %8 = vector.shape_cast %7 : vector<1x1x32xf32> to vector<1x32xf32>
    %c0_11 = arith.constant 0 : index
    %c0_12 = arith.constant 0 : index
    %c0_13 = arith.constant 0 : index
    %9 = vector.load %arg5[%c0_11, %c0_12, %c0_13] : memref<1x32x64xbf16, #tpu.memory_space<vmem>>, vector<1x32x64xbf16>
    %10 = vector.shape_cast %9 : vector<1x32x64xbf16> to vector<32x64xbf16>
    %c0_14 = arith.constant 0 : index
    %c0_15 = arith.constant 0 : index
    %c0_16 = arith.constant 0 : index
    %11 = vector.load %arg6[%c0_14, %c0_15, %c0_16] : memref<1x1x64xf32, #tpu.memory_space<vmem>>, vector<1x1x64xf32>
    %12 = vector.shape_cast %11 : vector<1x1x64xf32> to vector<1x64xf32>
    %c0_17 = arith.constant 0 : index
    %c0_18 = arith.constant 0 : index
    %c0_19 = arith.constant 0 : index
    %13 = vector.load %arg7[%c0_17, %c0_18, %c0_19] : memref<1x32x32xbf16, #tpu.memory_space<vmem>>, vector<1x32x32xbf16>
    %14 = vector.shape_cast %13 : vector<1x32x32xbf16> to vector<32x32xbf16>
    %c0_20 = arith.constant 0 : index
    %c0_21 = arith.constant 0 : index
    %c0_22 = arith.constant 0 : index
    %15 = vector.load %arg8[%c0_20, %c0_21, %c0_22] : memref<1x1x32xf32, #tpu.memory_space<vmem>>, vector<1x1x32xf32>
    %16 = vector.shape_cast %15 : vector<1x1x32xf32> to vector<1x32xf32>
    %c0_23 = arith.constant 0 : index
    %c0_24 = arith.constant 0 : index
    %c0_25 = arith.constant 0 : index
    %17 = vector.load %arg9[%c0_23, %c0_24, %c0_25] : memref<1x1x32xf32, #tpu.memory_space<vmem>>, vector<1x1x32xf32>
    %18 = vector.shape_cast %17 : vector<1x1x32xf32> to vector<1x32xf32>
    %c0_26 = arith.constant 0 : index
    %c0_27 = arith.constant 0 : index
    %c0_28 = arith.constant 0 : index
    %19 = vector.load %arg10[%c0_26, %c0_27, %c0_28] : memref<1x1x32xf32, #tpu.memory_space<vmem>>, vector<1x1x32xf32>
    %20 = vector.shape_cast %19 : vector<1x1x32xf32> to vector<1x32xf32>
    %21 = arith.truncf %3 : vector<16x32xf32> to vector<16x32xbf16>
    %cst = arith.constant dense<0.000000e+00> : vector<16x32xf32>
    %22 = tpu.matmul %21, %6, %cst {dimension_numbers = #tpu.dot_dimension_numbers<[1], [0], [0], [1], [0, 0, 1, 1], [], []>} : vector<16x32xbf16>, vector<32x32xbf16>, vector<16x32xf32> -> vector<16x32xf32>
    %23 = vector.broadcast %8 : vector<1x32xf32> to vector<16x32xf32>
    %24 = arith.addf %22, %23 : vector<16x32xf32>
    %cst_29 = arith.constant dense<0.000000e+00> : vector<16x64xf32>
    %25 = tpu.matmul %21, %10, %cst_29 {dimension_numbers = #tpu.dot_dimension_numbers<[1], [0], [0], [1], [0, 0, 1, 1], [], []>} : vector<16x32xbf16>, vector<32x64xbf16>, vector<16x64xf32> -> vector<16x64xf32>
    %26 = vector.broadcast %12 : vector<1x64xf32> to vector<16x64xf32>
    %27 = arith.addf %25, %26 : vector<16x64xf32>
    %28 = vector.extract_strided_slice %27 {offsets = [0, 0], sizes = [16, 32], strides = [1, 1]} : vector<16x64xf32> to vector<16x32xf32>
    %29 = vector.extract_strided_slice %27 {offsets = [0, 32], sizes = [16, 32], strides = [1, 1]} : vector<16x64xf32> to vector<16x32xf32>
    %cst_30 = arith.constant 1.000000e+00 : f32
    %30 = vector.broadcast %cst_30 : f32 to vector<2x8x8xf32>
    %31 = arith.subf %4, %30 : vector<2x8x8xf32>
    %cst_31 = arith.constant 1.000000e+04 : f32
    %32 = vector.broadcast %cst_31 : f32 to vector<2x8x8xf32>
    %33 = arith.mulf %31, %32 : vector<2x8x8xf32>
    %34 = vector.extract_strided_slice %4 {offsets = [0, 0, 0], sizes = [1, 8, 8], strides = [1, 1, 1]} : vector<2x8x8xf32> to vector<1x8x8xf32>
    %35 = vector.shape_cast %34 : vector<1x8x8xf32> to vector<8x8xf32>
    %36 = vector.extract_strided_slice %33 {offsets = [0, 0, 0], sizes = [1, 8, 8], strides = [1, 1, 1]} : vector<2x8x8xf32> to vector<1x8x8xf32>
    %37 = vector.shape_cast %36 : vector<1x8x8xf32> to vector<8x8xf32>
    %38 = vector.extract_strided_slice %24 {offsets = [0, 0], sizes = [8, 8], strides = [1, 1]} : vector<16x32xf32> to vector<8x8xf32>
    %39 = arith.truncf %38 : vector<8x8xf32> to vector<8x8xbf16>
    %40 = vector.extract_strided_slice %28 {offsets = [0, 0], sizes = [8, 8], strides = [1, 1]} : vector<16x32xf32> to vector<8x8xf32>
    %41 = arith.truncf %40 : vector<8x8xf32> to vector<8x8xbf16>
    %42 = vector.extract_strided_slice %29 {offsets = [0, 0], sizes = [8, 8], strides = [1, 1]} : vector<16x32xf32> to vector<8x8xf32>
    %43 = arith.truncf %42 : vector<8x8xf32> to vector<8x8xbf16>
    %cst_32 = arith.constant dense<0.000000e+00> : vector<8x8xf32>
    %44 = tpu.matmul %39, %41, %cst_32 {dimension_numbers = #tpu.dot_dimension_numbers<[1], [1], [0], [0], [0, 0, 1, 0], [], []>} : vector<8x8xbf16>, vector<8x8xbf16>, vector<8x8xf32> -> vector<8x8xf32>
    %45 = arith.mulf %44, %35 : vector<8x8xf32>
    %46 = arith.addf %45, %37 : vector<8x8xf32>
    %cst_33 = arith.constant dense<0xFF800000> : vector<8xf32>
    %47 = vector.multi_reduction <maximumf>, %46, %cst_33 [1] : vector<8x8xf32> to vector<8xf32>
    %48 = vector.shape_cast %47 : vector<8xf32> to vector<8x1xf32>
    %49 = vector.broadcast %48 : vector<8x1xf32> to vector<8x8xf32>
    %50 = arith.subf %46, %49 : vector<8x8xf32>
    %51 = math.exp %50 : vector<8x8xf32>
    %cst_34 = arith.constant dense<0.000000e+00> : vector<8xf32>
    %52 = vector.multi_reduction <add>, %51, %cst_34 [1] : vector<8x8xf32> to vector<8xf32>
    %53 = vector.shape_cast %52 : vector<8xf32> to vector<8x1xf32>
    %54 = vector.broadcast %53 : vector<8x1xf32> to vector<8x8xf32>
    %55 = arith.divf %51, %54 : vector<8x8xf32>
    %56 = arith.truncf %55 : vector<8x8xf32> to vector<8x8xbf16>
    %cst_35 = arith.constant dense<0.000000e+00> : vector<8x8xf32>
    %57 = tpu.matmul %56, %43, %cst_35 {dimension_numbers = #tpu.dot_dimension_numbers<[1], [0], [0], [1], [0, 0, 1, 1], [], []>} : vector<8x8xbf16>, vector<8x8xbf16>, vector<8x8xf32> -> vector<8x8xf32>
    %58 = vector.extract_strided_slice %24 {offsets = [0, 8], sizes = [8, 8], strides = [1, 1]} : vector<16x32xf32> to vector<8x8xf32>
    %59 = arith.truncf %58 : vector<8x8xf32> to vector<8x8xbf16>
    %60 = vector.extract_strided_slice %28 {offsets = [0, 8], sizes = [8, 8], strides = [1, 1]} : vector<16x32xf32> to vector<8x8xf32>
    %61 = arith.truncf %60 : vector<8x8xf32> to vector<8x8xbf16>
    %62 = vector.extract_strided_slice %29 {offsets = [0, 8], sizes = [8, 8], strides = [1, 1]} : vector<16x32xf32> to vector<8x8xf32>
    %63 = arith.truncf %62 : vector<8x8xf32> to vector<8x8xbf16>
    %cst_36 = arith.constant dense<0.000000e+00> : vector<8x8xf32>
    %64 = tpu.matmul %59, %61, %cst_36 {dimension_numbers = #tpu.dot_dimension_numbers<[1], [1], [0], [0], [0, 0, 1, 0], [], []>} : vector<8x8xbf16>, vector<8x8xbf16>, vector<8x8xf32> -> vector<8x8xf32>
    %65 = arith.mulf %64, %35 : vector<8x8xf32>
    %66 = arith.addf %65, %37 : vector<8x8xf32>
    %cst_37 = arith.constant dense<0xFF800000> : vector<8xf32>
    %67 = vector.multi_reduction <maximumf>, %66, %cst_37 [1] : vector<8x8xf32> to vector<8xf32>
    %68 = vector.shape_cast %67 : vector<8xf32> to vector<8x1xf32>
    %69 = vector.broadcast %68 : vector<8x1xf32> to vector<8x8xf32>
    %70 = arith.subf %66, %69 : vector<8x8xf32>
    %71 = math.exp %70 : vector<8x8xf32>
    %cst_38 = arith.constant dense<0.000000e+00> : vector<8xf32>
    %72 = vector.multi_reduction <add>, %71, %cst_38 [1] : vector<8x8xf32> to vector<8xf32>
    %73 = vector.shape_cast %72 : vector<8xf32> to vector<8x1xf32>
    %74 = vector.broadcast %73 : vector<8x1xf32> to vector<8x8xf32>
    %75 = arith.divf %71, %74 : vector<8x8xf32>
    %76 = arith.truncf %75 : vector<8x8xf32> to vector<8x8xbf16>
    %cst_39 = arith.constant dense<0.000000e+00> : vector<8x8xf32>
    %77 = tpu.matmul %76, %63, %cst_39 {dimension_numbers = #tpu.dot_dimension_numbers<[1], [0], [0], [1], [0, 0, 1, 1], [], []>} : vector<8x8xbf16>, vector<8x8xbf16>, vector<8x8xf32> -> vector<8x8xf32>
    %78 = vector.extract_strided_slice %24 {offsets = [0, 16], sizes = [8, 8], strides = [1, 1]} : vector<16x32xf32> to vector<8x8xf32>
    %79 = arith.truncf %78 : vector<8x8xf32> to vector<8x8xbf16>
    %80 = vector.extract_strided_slice %28 {offsets = [0, 16], sizes = [8, 8], strides = [1, 1]} : vector<16x32xf32> to vector<8x8xf32>
    %81 = arith.truncf %80 : vector<8x8xf32> to vector<8x8xbf16>
    %82 = vector.extract_strided_slice %29 {offsets = [0, 16], sizes = [8, 8], strides = [1, 1]} : vector<16x32xf32> to vector<8x8xf32>
    %83 = arith.truncf %82 : vector<8x8xf32> to vector<8x8xbf16>
    %cst_40 = arith.constant dense<0.000000e+00> : vector<8x8xf32>
    %84 = tpu.matmul %79, %81, %cst_40 {dimension_numbers = #tpu.dot_dimension_numbers<[1], [1], [0], [0], [0, 0, 1, 0], [], []>} : vector<8x8xbf16>, vector<8x8xbf16>, vector<8x8xf32> -> vector<8x8xf32>
    %85 = arith.mulf %84, %35 : vector<8x8xf32>
    %86 = arith.addf %85, %37 : vector<8x8xf32>
    %cst_41 = arith.constant dense<0xFF800000> : vector<8xf32>
    %87 = vector.multi_reduction <maximumf>, %86, %cst_41 [1] : vector<8x8xf32> to vector<8xf32>
    %88 = vector.shape_cast %87 : vector<8xf32> to vector<8x1xf32>
    %89 = vector.broadcast %88 : vector<8x1xf32> to vector<8x8xf32>
    %90 = arith.subf %86, %89 : vector<8x8xf32>
    %91 = math.exp %90 : vector<8x8xf32>
    %cst_42 = arith.constant dense<0.000000e+00> : vector<8xf32>
    %92 = vector.multi_reduction <add>, %91, %cst_42 [1] : vector<8x8xf32> to vector<8xf32>
    %93 = vector.shape_cast %92 : vector<8xf32> to vector<8x1xf32>
    %94 = vector.broadcast %93 : vector<8x1xf32> to vector<8x8xf32>
    %95 = arith.divf %91, %94 : vector<8x8xf32>
    %96 = arith.truncf %95 : vector<8x8xf32> to vector<8x8xbf16>
    %cst_43 = arith.constant dense<0.000000e+00> : vector<8x8xf32>
    %97 = tpu.matmul %96, %83, %cst_43 {dimension_numbers = #tpu.dot_dimension_numbers<[1], [0], [0], [1], [0, 0, 1, 1], [], []>} : vector<8x8xbf16>, vector<8x8xbf16>, vector<8x8xf32> -> vector<8x8xf32>
    %98 = vector.extract_strided_slice %24 {offsets = [0, 24], sizes = [8, 8], strides = [1, 1]} : vector<16x32xf32> to vector<8x8xf32>
    %99 = arith.truncf %98 : vector<8x8xf32> to vector<8x8xbf16>
    %100 = vector.extract_strided_slice %28 {offsets = [0, 24], sizes = [8, 8], strides = [1, 1]} : vector<16x32xf32> to vector<8x8xf32>
    %101 = arith.truncf %100 : vector<8x8xf32> to vector<8x8xbf16>
    %102 = vector.extract_strided_slice %29 {offsets = [0, 24], sizes = [8, 8], strides = [1, 1]} : vector<16x32xf32> to vector<8x8xf32>
    %103 = arith.truncf %102 : vector<8x8xf32> to vector<8x8xbf16>
    %cst_44 = arith.constant dense<0.000000e+00> : vector<8x8xf32>
    %104 = tpu.matmul %99, %101, %cst_44 {dimension_numbers = #tpu.dot_dimension_numbers<[1], [1], [0], [0], [0, 0, 1, 0], [], []>} : vector<8x8xbf16>, vector<8x8xbf16>, vector<8x8xf32> -> vector<8x8xf32>
    %105 = arith.mulf %104, %35 : vector<8x8xf32>
    %106 = arith.addf %105, %37 : vector<8x8xf32>
    %cst_45 = arith.constant dense<0xFF800000> : vector<8xf32>
    %107 = vector.multi_reduction <maximumf>, %106, %cst_45 [1] : vector<8x8xf32> to vector<8xf32>
    %108 = vector.shape_cast %107 : vector<8xf32> to vector<8x1xf32>
    %109 = vector.broadcast %108 : vector<8x1xf32> to vector<8x8xf32>
    %110 = arith.subf %106, %109 : vector<8x8xf32>
    %111 = math.exp %110 : vector<8x8xf32>
    %cst_46 = arith.constant dense<0.000000e+00> : vector<8xf32>
    %112 = vector.multi_reduction <add>, %111, %cst_46 [1] : vector<8x8xf32> to vector<8xf32>
    %113 = vector.shape_cast %112 : vector<8xf32> to vector<8x1xf32>
    %114 = vector.broadcast %113 : vector<8x1xf32> to vector<8x8xf32>
    %115 = arith.divf %111, %114 : vector<8x8xf32>
    %116 = arith.truncf %115 : vector<8x8xf32> to vector<8x8xbf16>
    %cst_47 = arith.constant dense<0.000000e+00> : vector<8x8xf32>
    %117 = tpu.matmul %116, %103, %cst_47 {dimension_numbers = #tpu.dot_dimension_numbers<[1], [0], [0], [1], [0, 0, 1, 1], [], []>} : vector<8x8xbf16>, vector<8x8xbf16>, vector<8x8xf32> -> vector<8x8xf32>
    %118 = tpu.concatenate %57, %77, %97, %117 in 1 : vector<8x8xf32>, vector<8x8xf32>, vector<8x8xf32>, vector<8x8xf32> -> vector<8x32xf32>
    %119 = vector.extract_strided_slice %4 {offsets = [1, 0, 0], sizes = [1, 8, 8], strides = [1, 1, 1]} : vector<2x8x8xf32> to vector<1x8x8xf32>
    %120 = vector.shape_cast %119 : vector<1x8x8xf32> to vector<8x8xf32>
    %121 = vector.extract_strided_slice %33 {offsets = [1, 0, 0], sizes = [1, 8, 8], strides = [1, 1, 1]} : vector<2x8x8xf32> to vector<1x8x8xf32>
    %122 = vector.shape_cast %121 : vector<1x8x8xf32> to vector<8x8xf32>
    %123 = vector.extract_strided_slice %24 {offsets = [8, 0], sizes = [8, 8], strides = [1, 1]} : vector<16x32xf32> to vector<8x8xf32>
    %124 = arith.truncf %123 : vector<8x8xf32> to vector<8x8xbf16>
    %125 = vector.extract_strided_slice %28 {offsets = [8, 0], sizes = [8, 8], strides = [1, 1]} : vector<16x32xf32> to vector<8x8xf32>
    %126 = arith.truncf %125 : vector<8x8xf32> to vector<8x8xbf16>
    %127 = vector.extract_strided_slice %29 {offsets = [8, 0], sizes = [8, 8], strides = [1, 1]} : vector<16x32xf32> to vector<8x8xf32>
    %128 = arith.truncf %127 : vector<8x8xf32> to vector<8x8xbf16>
    %cst_48 = arith.constant dense<0.000000e+00> : vector<8x8xf32>
    %129 = tpu.matmul %124, %126, %cst_48 {dimension_numbers = #tpu.dot_dimension_numbers<[1], [1], [0], [0], [0, 0, 1, 0], [], []>} : vector<8x8xbf16>, vector<8x8xbf16>, vector<8x8xf32> -> vector<8x8xf32>
    %130 = arith.mulf %129, %120 : vector<8x8xf32>
    %131 = arith.addf %130, %122 : vector<8x8xf32>
    %cst_49 = arith.constant dense<0xFF800000> : vector<8xf32>
    %132 = vector.multi_reduction <maximumf>, %131, %cst_49 [1] : vector<8x8xf32> to vector<8xf32>
    %133 = vector.shape_cast %132 : vector<8xf32> to vector<8x1xf32>
    %134 = vector.broadcast %133 : vector<8x1xf32> to vector<8x8xf32>
    %135 = arith.subf %131, %134 : vector<8x8xf32>
    %136 = math.exp %135 : vector<8x8xf32>
    %cst_50 = arith.constant dense<0.000000e+00> : vector<8xf32>
    %137 = vector.multi_reduction <add>, %136, %cst_50 [1] : vector<8x8xf32> to vector<8xf32>
    %138 = vector.shape_cast %137 : vector<8xf32> to vector<8x1xf32>
    %139 = vector.broadcast %138 : vector<8x1xf32> to vector<8x8xf32>
    %140 = arith.divf %136, %139 : vector<8x8xf32>
    %141 = arith.truncf %140 : vector<8x8xf32> to vector<8x8xbf16>
    %cst_51 = arith.constant dense<0.000000e+00> : vector<8x8xf32>
    %142 = tpu.matmul %141, %128, %cst_51 {dimension_numbers = #tpu.dot_dimension_numbers<[1], [0], [0], [1], [0, 0, 1, 1], [], []>} : vector<8x8xbf16>, vector<8x8xbf16>, vector<8x8xf32> -> vector<8x8xf32>
    %143 = vector.extract_strided_slice %24 {offsets = [8, 8], sizes = [8, 8], strides = [1, 1]} : vector<16x32xf32> to vector<8x8xf32>
    %144 = arith.truncf %143 : vector<8x8xf32> to vector<8x8xbf16>
    %145 = vector.extract_strided_slice %28 {offsets = [8, 8], sizes = [8, 8], strides = [1, 1]} : vector<16x32xf32> to vector<8x8xf32>
    %146 = arith.truncf %145 : vector<8x8xf32> to vector<8x8xbf16>
    %147 = vector.extract_strided_slice %29 {offsets = [8, 8], sizes = [8, 8], strides = [1, 1]} : vector<16x32xf32> to vector<8x8xf32>
    %148 = arith.truncf %147 : vector<8x8xf32> to vector<8x8xbf16>
    %cst_52 = arith.constant dense<0.000000e+00> : vector<8x8xf32>
    %149 = tpu.matmul %144, %146, %cst_52 {dimension_numbers = #tpu.dot_dimension_numbers<[1], [1], [0], [0], [0, 0, 1, 0], [], []>} : vector<8x8xbf16>, vector<8x8xbf16>, vector<8x8xf32> -> vector<8x8xf32>
    %150 = arith.mulf %149, %120 : vector<8x8xf32>
    %151 = arith.addf %150, %122 : vector<8x8xf32>
    %cst_53 = arith.constant dense<0xFF800000> : vector<8xf32>
    %152 = vector.multi_reduction <maximumf>, %151, %cst_53 [1] : vector<8x8xf32> to vector<8xf32>
    %153 = vector.shape_cast %152 : vector<8xf32> to vector<8x1xf32>
    %154 = vector.broadcast %153 : vector<8x1xf32> to vector<8x8xf32>
    %155 = arith.subf %151, %154 : vector<8x8xf32>
    %156 = math.exp %155 : vector<8x8xf32>
    %cst_54 = arith.constant dense<0.000000e+00> : vector<8xf32>
    %157 = vector.multi_reduction <add>, %156, %cst_54 [1] : vector<8x8xf32> to vector<8xf32>
    %158 = vector.shape_cast %157 : vector<8xf32> to vector<8x1xf32>
    %159 = vector.broadcast %158 : vector<8x1xf32> to vector<8x8xf32>
    %160 = arith.divf %156, %159 : vector<8x8xf32>
    %161 = arith.truncf %160 : vector<8x8xf32> to vector<8x8xbf16>
    %cst_55 = arith.constant dense<0.000000e+00> : vector<8x8xf32>
    %162 = tpu.matmul %161, %148, %cst_55 {dimension_numbers = #tpu.dot_dimension_numbers<[1], [0], [0], [1], [0, 0, 1, 1], [], []>} : vector<8x8xbf16>, vector<8x8xbf16>, vector<8x8xf32> -> vector<8x8xf32>
    %163 = vector.extract_strided_slice %24 {offsets = [8, 16], sizes = [8, 8], strides = [1, 1]} : vector<16x32xf32> to vector<8x8xf32>
    %164 = arith.truncf %163 : vector<8x8xf32> to vector<8x8xbf16>
    %165 = vector.extract_strided_slice %28 {offsets = [8, 16], sizes = [8, 8], strides = [1, 1]} : vector<16x32xf32> to vector<8x8xf32>
    %166 = arith.truncf %165 : vector<8x8xf32> to vector<8x8xbf16>
    %167 = vector.extract_strided_slice %29 {offsets = [8, 16], sizes = [8, 8], strides = [1, 1]} : vector<16x32xf32> to vector<8x8xf32>
    %168 = arith.truncf %167 : vector<8x8xf32> to vector<8x8xbf16>
    %cst_56 = arith.constant dense<0.000000e+00> : vector<8x8xf32>
    %169 = tpu.matmul %164, %166, %cst_56 {dimension_numbers = #tpu.dot_dimension_numbers<[1], [1], [0], [0], [0, 0, 1, 0], [], []>} : vector<8x8xbf16>, vector<8x8xbf16>, vector<8x8xf32> -> vector<8x8xf32>
    %170 = arith.mulf %169, %120 : vector<8x8xf32>
    %171 = arith.addf %170, %122 : vector<8x8xf32>
    %cst_57 = arith.constant dense<0xFF800000> : vector<8xf32>
    %172 = vector.multi_reduction <maximumf>, %171, %cst_57 [1] : vector<8x8xf32> to vector<8xf32>
    %173 = vector.shape_cast %172 : vector<8xf32> to vector<8x1xf32>
    %174 = vector.broadcast %173 : vector<8x1xf32> to vector<8x8xf32>
    %175 = arith.subf %171, %174 : vector<8x8xf32>
    %176 = math.exp %175 : vector<8x8xf32>
    %cst_58 = arith.constant dense<0.000000e+00> : vector<8xf32>
    %177 = vector.multi_reduction <add>, %176, %cst_58 [1] : vector<8x8xf32> to vector<8xf32>
    %178 = vector.shape_cast %177 : vector<8xf32> to vector<8x1xf32>
    %179 = vector.broadcast %178 : vector<8x1xf32> to vector<8x8xf32>
    %180 = arith.divf %176, %179 : vector<8x8xf32>
    %181 = arith.truncf %180 : vector<8x8xf32> to vector<8x8xbf16>
    %cst_59 = arith.constant dense<0.000000e+00> : vector<8x8xf32>
    %182 = tpu.matmul %181, %168, %cst_59 {dimension_numbers = #tpu.dot_dimension_numbers<[1], [0], [0], [1], [0, 0, 1, 1], [], []>} : vector<8x8xbf16>, vector<8x8xbf16>, vector<8x8xf32> -> vector<8x8xf32>
    %183 = vector.extract_strided_slice %24 {offsets = [8, 24], sizes = [8, 8], strides = [1, 1]} : vector<16x32xf32> to vector<8x8xf32>
    %184 = arith.truncf %183 : vector<8x8xf32> to vector<8x8xbf16>
    %185 = vector.extract_strided_slice %28 {offsets = [8, 24], sizes = [8, 8], strides = [1, 1]} : vector<16x32xf32> to vector<8x8xf32>
    %186 = arith.truncf %185 : vector<8x8xf32> to vector<8x8xbf16>
    %187 = vector.extract_strided_slice %29 {offsets = [8, 24], sizes = [8, 8], strides = [1, 1]} : vector<16x32xf32> to vector<8x8xf32>
    %188 = arith.truncf %187 : vector<8x8xf32> to vector<8x8xbf16>
    %cst_60 = arith.constant dense<0.000000e+00> : vector<8x8xf32>
    %189 = tpu.matmul %184, %186, %cst_60 {dimension_numbers = #tpu.dot_dimension_numbers<[1], [1], [0], [0], [0, 0, 1, 0], [], []>} : vector<8x8xbf16>, vector<8x8xbf16>, vector<8x8xf32> -> vector<8x8xf32>
    %190 = arith.mulf %189, %120 : vector<8x8xf32>
    %191 = arith.addf %190, %122 : vector<8x8xf32>
    %cst_61 = arith.constant dense<0xFF800000> : vector<8xf32>
    %192 = vector.multi_reduction <maximumf>, %191, %cst_61 [1] : vector<8x8xf32> to vector<8xf32>
    %193 = vector.shape_cast %192 : vector<8xf32> to vector<8x1xf32>
    %194 = vector.broadcast %193 : vector<8x1xf32> to vector<8x8xf32>
    %195 = arith.subf %191, %194 : vector<8x8xf32>
    %196 = math.exp %195 : vector<8x8xf32>
    %cst_62 = arith.constant dense<0.000000e+00> : vector<8xf32>
    %197 = vector.multi_reduction <add>, %196, %cst_62 [1] : vector<8x8xf32> to vector<8xf32>
    %198 = vector.shape_cast %197 : vector<8xf32> to vector<8x1xf32>
    %199 = vector.broadcast %198 : vector<8x1xf32> to vector<8x8xf32>
    %200 = arith.divf %196, %199 : vector<8x8xf32>
    %201 = arith.truncf %200 : vector<8x8xf32> to vector<8x8xbf16>
    %cst_63 = arith.constant dense<0.000000e+00> : vector<8x8xf32>
    %202 = tpu.matmul %201, %188, %cst_63 {dimension_numbers = #tpu.dot_dimension_numbers<[1], [0], [0], [1], [0, 0, 1, 1], [], []>} : vector<8x8xbf16>, vector<8x8xbf16>, vector<8x8xf32> -> vector<8x8xf32>
    %203 = tpu.concatenate %142, %162, %182, %202 in 1 : vector<8x8xf32>, vector<8x8xf32>, vector<8x8xf32>, vector<8x8xf32> -> vector<8x32xf32>
    %204 = tpu.concatenate %118, %203 in 0 : vector<8x32xf32>, vector<8x32xf32> -> vector<16x32xf32>
    %205 = arith.truncf %204 : vector<16x32xf32> to vector<16x32xbf16>
    %cst_64 = arith.constant dense<0.000000e+00> : vector<16x32xf32>
    %206 = tpu.matmul %205, %14, %cst_64 {dimension_numbers = #tpu.dot_dimension_numbers<[1], [0], [0], [1], [0, 0, 1, 1], [], []>} : vector<16x32xbf16>, vector<32x32xbf16>, vector<16x32xf32> -> vector<16x32xf32>
    %207 = vector.broadcast %16 : vector<1x32xf32> to vector<16x32xf32>
    %208 = arith.addf %206, %207 : vector<16x32xf32>
    %209 = arith.addf %208, %3 : vector<16x32xf32>
    %cst_65 = arith.constant dense<0.000000e+00> : vector<16xf32>
    %210 = vector.multi_reduction <add>, %209, %cst_65 [1] : vector<16x32xf32> to vector<16xf32>
    %211 = vector.shape_cast %210 : vector<16xf32> to vector<16x1xf32>
    %cst_66 = arith.constant 3.200000e+01 : f32
    %212 = vector.broadcast %cst_66 : f32 to vector<16x1xf32>
    %213 = arith.divf %211, %212 : vector<16x1xf32>
    %214 = vector.broadcast %213 : vector<16x1xf32> to vector<16x32xf32>
    %215 = arith.subf %209, %214 : vector<16x32xf32>
    %216 = arith.mulf %215, %215 : vector<16x32xf32>
    %cst_67 = arith.constant dense<0.000000e+00> : vector<16xf32>
    %217 = vector.multi_reduction <add>, %216, %cst_67 [1] : vector<16x32xf32> to vector<16xf32>
    %218 = vector.shape_cast %217 : vector<16xf32> to vector<16x1xf32>
    %cst_68 = arith.constant 3.200000e+01 : f32
    %219 = vector.broadcast %cst_68 : f32 to vector<16x1xf32>
    %220 = arith.divf %218, %219 : vector<16x1xf32>
    %221 = vector.broadcast %213 : vector<16x1xf32> to vector<16x32xf32>
    %222 = arith.subf %209, %221 : vector<16x32xf32>
    %cst_69 = arith.constant 9.99999996E-13 : f32
    %223 = vector.broadcast %cst_69 : f32 to vector<16x1xf32>
    %224 = arith.addf %220, %223 : vector<16x1xf32>
    %225 = math.rsqrt %224 : vector<16x1xf32>
    %226 = vector.broadcast %225 : vector<16x1xf32> to vector<16x32xf32>
    %227 = arith.mulf %222, %226 : vector<16x32xf32>
    %228 = vector.broadcast %18 : vector<1x32xf32> to vector<16x32xf32>
    %229 = arith.mulf %227, %228 : vector<16x32xf32>
    %230 = vector.broadcast %20 : vector<1x32xf32> to vector<16x32xf32>
    %231 = arith.addf %229, %230 : vector<16x32xf32>
    %c0_70 = arith.constant 0 : index
    %c0_71 = arith.constant 0 : index
    %c0_72 = arith.constant 0 : index
    %232 = vector.load %arg11[%c0_70, %c0_71, %c0_72] : memref<1x32x64xbf16, #tpu.memory_space<vmem>>, vector<1x32x64xbf16>
    %233 = vector.shape_cast %232 : vector<1x32x64xbf16> to vector<32x64xbf16>
    %c0_73 = arith.constant 0 : index
    %c0_74 = arith.constant 0 : index
    %c0_75 = arith.constant 0 : index
    %234 = vector.load %arg12[%c0_73, %c0_74, %c0_75] : memref<1x1x64xf32, #tpu.memory_space<vmem>>, vector<1x1x64xf32>
    %235 = vector.shape_cast %234 : vector<1x1x64xf32> to vector<1x64xf32>
    %c0_76 = arith.constant 0 : index
    %c0_77 = arith.constant 0 : index
    %c0_78 = arith.constant 0 : index
    %236 = vector.load %arg13[%c0_76, %c0_77, %c0_78] : memref<1x64x32xbf16, #tpu.memory_space<vmem>>, vector<1x64x32xbf16>
    %237 = vector.shape_cast %236 : vector<1x64x32xbf16> to vector<64x32xbf16>
    %c0_79 = arith.constant 0 : index
    %c0_80 = arith.constant 0 : index
    %c0_81 = arith.constant 0 : index
    %238 = vector.load %arg14[%c0_79, %c0_80, %c0_81] : memref<1x1x32xf32, #tpu.memory_space<vmem>>, vector<1x1x32xf32>
    %239 = vector.shape_cast %238 : vector<1x1x32xf32> to vector<1x32xf32>
    %c0_82 = arith.constant 0 : index
    %c0_83 = arith.constant 0 : index
    %c0_84 = arith.constant 0 : index
    %240 = vector.load %arg15[%c0_82, %c0_83, %c0_84] : memref<1x1x32xf32, #tpu.memory_space<vmem>>, vector<1x1x32xf32>
    %241 = vector.shape_cast %240 : vector<1x1x32xf32> to vector<1x32xf32>
    %c0_85 = arith.constant 0 : index
    %c0_86 = arith.constant 0 : index
    %c0_87 = arith.constant 0 : index
    %242 = vector.load %arg16[%c0_85, %c0_86, %c0_87] : memref<1x1x32xf32, #tpu.memory_space<vmem>>, vector<1x1x32xf32>
    %243 = vector.shape_cast %242 : vector<1x1x32xf32> to vector<1x32xf32>
    %244 = arith.truncf %231 : vector<16x32xf32> to vector<16x32xbf16>
    %cst_88 = arith.constant dense<0.000000e+00> : vector<16x64xf32>
    %245 = tpu.matmul %244, %233, %cst_88 {dimension_numbers = #tpu.dot_dimension_numbers<[1], [0], [0], [1], [0, 0, 1, 1], [], []>} : vector<16x32xbf16>, vector<32x64xbf16>, vector<16x64xf32> -> vector<16x64xf32>
    %246 = vector.broadcast %235 : vector<1x64xf32> to vector<16x64xf32>
    %247 = arith.addf %245, %246 : vector<16x64xf32>
    %cst_89 = arith.constant 0.000000e+00 : f32
    %248 = vector.broadcast %cst_89 : f32 to vector<16x64xf32>
    %249 = arith.maximumf %247, %248 : vector<16x64xf32>
    %250 = arith.truncf %249 : vector<16x64xf32> to vector<16x64xbf16>
    %cst_90 = arith.constant dense<0.000000e+00> : vector<16x32xf32>
    %251 = tpu.matmul %250, %237, %cst_90 {dimension_numbers = #tpu.dot_dimension_numbers<[1], [0], [0], [1], [0, 0, 1, 1], [], []>} : vector<16x64xbf16>, vector<64x32xbf16>, vector<16x32xf32> -> vector<16x32xf32>
    %252 = vector.broadcast %239 : vector<1x32xf32> to vector<16x32xf32>
    %253 = arith.addf %251, %252 : vector<16x32xf32>
    %254 = arith.addf %253, %231 : vector<16x32xf32>
    %cst_91 = arith.constant dense<0.000000e+00> : vector<16xf32>
    %255 = vector.multi_reduction <add>, %254, %cst_91 [1] : vector<16x32xf32> to vector<16xf32>
    %256 = vector.shape_cast %255 : vector<16xf32> to vector<16x1xf32>
    %cst_92 = arith.constant 3.200000e+01 : f32
    %257 = vector.broadcast %cst_92 : f32 to vector<16x1xf32>
    %258 = arith.divf %256, %257 : vector<16x1xf32>
    %259 = vector.broadcast %258 : vector<16x1xf32> to vector<16x32xf32>
    %260 = arith.subf %254, %259 : vector<16x32xf32>
    %261 = arith.mulf %260, %260 : vector<16x32xf32>
    %cst_93 = arith.constant dense<0.000000e+00> : vector<16xf32>
    %262 = vector.multi_reduction <add>, %261, %cst_93 [1] : vector<16x32xf32> to vector<16xf32>
    %263 = vector.shape_cast %262 : vector<16xf32> to vector<16x1xf32>
    %cst_94 = arith.constant 3.200000e+01 : f32
    %264 = vector.broadcast %cst_94 : f32 to vector<16x1xf32>
    %265 = arith.divf %263, %264 : vector<16x1xf32>
    %266 = vector.broadcast %258 : vector<16x1xf32> to vector<16x32xf32>
    %267 = arith.subf %254, %266 : vector<16x32xf32>
    %cst_95 = arith.constant 9.99999996E-13 : f32
    %268 = vector.broadcast %cst_95 : f32 to vector<16x1xf32>
    %269 = arith.addf %265, %268 : vector<16x1xf32>
    %270 = math.rsqrt %269 : vector<16x1xf32>
    %271 = vector.broadcast %270 : vector<16x1xf32> to vector<16x32xf32>
    %272 = arith.mulf %267, %271 : vector<16x32xf32>
    %273 = vector.broadcast %241 : vector<1x32xf32> to vector<16x32xf32>
    %274 = arith.mulf %272, %273 : vector<16x32xf32>
    %275 = vector.broadcast %243 : vector<1x32xf32> to vector<16x32xf32>
    %276 = arith.addf %274, %275 : vector<16x32xf32>
    %c0_96 = arith.constant 0 : index
    %c0_97 = arith.constant 0 : index
    %277 = vector.load %arg18[%c0_96, %c0_97] : memref<16x32xf32, #tpu.memory_space<vmem>>, vector<16x32xf32>
    tpu.vector_store %arg18[%c0_96, %c0_97], %276 {strides = array<i32>} : memref<16x32xf32, #tpu.memory_space<vmem>>, vector<16x32xf32>,
    %c1_i32 = arith.constant 1 : i32
    %278 = arith.cmpi eq, %arg0, %c1_i32 : i32
    %279 = arith.extui %278 : i1 to i32
    %c0_i32_98 = arith.constant 0 : i32
    %280 = arith.cmpi ne, %279, %c0_i32_98 : i32
    scf.if %280 {
      %c0_99 = arith.constant 0 : index
      %c0_100 = arith.constant 0 : index
      %281 = vector.load %arg18[%c0_99, %c0_100] : memref<16x32xf32, #tpu.memory_space<vmem>>, vector<16x32xf32>
      %c0_101 = arith.constant 0 : index
      %c0_102 = arith.constant 0 : index
      %282 = vector.load %arg17[%c0_101, %c0_102] : memref<16x32xf32, #tpu.memory_space<vmem>>, vector<16x32xf32>
      tpu.vector_store %arg17[%c0_101, %c0_102], %281 {strides = array<i32>} : memref<16x32xf32, #tpu.memory_space<vmem>>, vector<16x32xf32>,
    } else {
    }
    return
  }
  func.func @transform_0(%arg0: i32) -> (i32, i32) {
    %c0_i32 = arith.constant 0 : i32
    %c0_i32_0 = arith.constant 0 : i32
    %c0_i32_1 = arith.constant 0 : i32
    return %c0_i32, %c0_i32_0 : i32, i32
  }
  func.func @transform_1(%arg0: i32) -> (i32, i32, i32) {
    %c0_i32 = arith.constant 0 : i32
    %c0_i32_0 = arith.constant 0 : i32
    %c0_i32_1 = arith.constant 0 : i32
    %c0_i32_2 = arith.constant 0 : i32
    return %c0_i32, %c0_i32_0, %c0_i32_1 : i32, i32, i32
  }
  func.func @transform_2(%arg0: i32) -> (i32, i32, i32) {
    %c0_i32 = arith.constant 0 : i32
    %c0_i32_0 = arith.constant 0 : i32
    %c0_i32_1 = arith.constant 0 : i32
    return %arg0, %c0_i32, %c0_i32_0 : i32, i32, i32
  }
  func.func @transform_3(%arg0: i32) -> (i32, i32, i32) {
    %c0_i32 = arith.constant 0 : i32
    %c0_i32_0 = arith.constant 0 : i32
    %c0_i32_1 = arith.constant 0 : i32
    return %arg0, %c0_i32, %c0_i32_0 : i32, i32, i32
  }
  func.func @transform_4(%arg0: i32) -> (i32, i32, i32) {
    %c0_i32 = arith.constant 0 : i32
    %c0_i32_0 = arith.constant 0 : i32
    %c0_i32_1 = arith.constant 0 : i32
    return %arg0, %c0_i32, %c0_i32_0 : i32, i32, i32
  }
  func.func @transform_5(%arg0: i32) -> (i32, i32, i32) {
    %c0_i32 = arith.constant 0 : i32
    %c0_i32_0 = arith.constant 0 : i32
    %c0_i32_1 = arith.constant 0 : i32
    return %arg0, %c0_i32, %c0_i32_0 : i32, i32, i32
  }
  func.func @transform_6(%arg0: i32) -> (i32, i32, i32) {
    %c0_i32 = arith.constant 0 : i32
    %c0_i32_0 = arith.constant 0 : i32
    %c0_i32_1 = arith.constant 0 : i32
    return %arg0, %c0_i32, %c0_i32_0 : i32, i32, i32
  }
  func.func @transform_7(%arg0: i32) -> (i32, i32, i32) {
    %c0_i32 = arith.constant 0 : i32
    %c0_i32_0 = arith.constant 0 : i32
    %c0_i32_1 = arith.constant 0 : i32
    return %arg0, %c0_i32, %c0_i32_0 : i32, i32, i32
  }
  func.func @transform_8(%arg0: i32) -> (i32, i32, i32) {
    %c0_i32 = arith.constant 0 : i32
    %c0_i32_0 = arith.constant 0 : i32
    %c0_i32_1 = arith.constant 0 : i32
    return %arg0, %c0_i32, %c0_i32_0 : i32, i32, i32
  }
  func.func @transform_9(%arg0: i32) -> (i32, i32, i32) {
    %c0_i32 = arith.constant 0 : i32
    %c0_i32_0 = arith.constant 0 : i32
    %c0_i32_1 = arith.constant 0 : i32
    return %arg0, %c0_i32, %c0_i32_0 : i32, i32, i32
  }
  func.func @transform_10(%arg0: i32) -> (i32, i32, i32) {
    %c0_i32 = arith.constant 0 : i32
    %c0_i32_0 = arith.constant 0 : i32
    %c0_i32_1 = arith.constant 0 : i32
    return %arg0, %c0_i32, %c0_i32_0 : i32, i32, i32
  }
  func.func @transform_11(%arg0: i32) -> (i32, i32, i32) {
    %c0_i32 = arith.constant 0 : i32
    %c0_i32_0 = arith.constant 0 : i32
    %c0_i32_1 = arith.constant 0 : i32
    return %arg0, %c0_i32, %c0_i32_0 : i32, i32, i32
  }
  func.func @transform_12(%arg0: i32) -> (i32, i32, i32) {
    %c0_i32 = arith.constant 0 : i32
    %c0_i32_0 = arith.constant 0 : i32
    %c0_i32_1 = arith.constant 0 : i32
    return %arg0, %c0_i32, %c0_i32_0 : i32, i32, i32
  }
  func.func @transform_13(%arg0: i32) -> (i32, i32, i32) {
    %c0_i32 = arith.constant 0 : i32
    %c0_i32_0 = arith.constant 0 : i32
    %c0_i32_1 = arith.constant 0 : i32
    return %arg0, %c0_i32, %c0_i32_0 : i32, i32, i32
  }
  func.func @transform_14(%arg0: i32) -> (i32, i32, i32) {
    %c0_i32 = arith.constant 0 : i32
    %c0_i32_0 = arith.constant 0 : i32
    %c0_i32_1 = arith.constant 0 : i32
    return %arg0, %c0_i32, %c0_i32_0 : i32, i32, i32
  }
  func.func @transform_15(%arg0: i32) -> (i32, i32, i32) {
    %c0_i32 = arith.constant 0 : i32
    %c0_i32_0 = arith.constant 0 : i32
    %c0_i32_1 = arith.constant 0 : i32
    return %arg0, %c0_i32, %c0_i32_0 : i32, i32, i32
  }
  func.func @transform_16(%arg0: i32) -> (i32, i32) {
    %c0_i32 = arith.constant 0 : i32
    %c0_i32_0 = arith.constant 0 : i32
    %c0_i32_1 = arith.constant 0 : i32
    return %c0_i32, %c0_i32_0 : i32, i32
  }
}

module attributes {stable_mosaic.version = 11 : i64} {
  func.func @_decoder_kernel(%arg0: i32, %arg1: memref<16x32xf32, #tpu.memory_space<vmem>>, %arg2: memref<16x32xf32, #tpu.memory_space<vmem>>, %arg3: memref<2x8x8xf32, #tpu.memory_space<vmem>>, %arg4: memref<2x8x8xf32, #tpu.memory_space<vmem>>, %arg5: memref<1x32x32xbf16, #tpu.memory_space<vmem>>, %arg6: memref<1x1x32xf32, #tpu.memory_space<vmem>>, %arg7: memref<1x32x64xbf16, #tpu.memory_space<vmem>>, %arg8: memref<1x1x64xf32, #tpu.memory_space<vmem>>, %arg9: memref<1x32x32xbf16, #tpu.memory_space<vmem>>, %arg10: memref<1x1x32xf32, #tpu.memory_space<vmem>>, %arg11: memref<1x1x32xf32, #tpu.memory_space<vmem>>, %arg12: memref<1x1x32xf32, #tpu.memory_space<vmem>>, %arg13: memref<1x32x32xbf16, #tpu.memory_space<vmem>>, %arg14: memref<1x1x32xf32, #tpu.memory_space<vmem>>, %arg15: memref<1x32x64xbf16, #tpu.memory_space<vmem>>, %arg16: memref<1x1x64xf32, #tpu.memory_space<vmem>>, %arg17: memref<1x32x32xbf16, #tpu.memory_space<vmem>>, %arg18: memref<1x1x32xf32, #tpu.memory_space<vmem>>, %arg19: memref<1x1x32xf32, #tpu.memory_space<vmem>>, %arg20: memref<1x1x32xf32, #tpu.memory_space<vmem>>, %arg21: memref<1x32x64xbf16, #tpu.memory_space<vmem>>, %arg22: memref<1x1x64xf32, #tpu.memory_space<vmem>>, %arg23: memref<1x64x32xbf16, #tpu.memory_space<vmem>>, %arg24: memref<1x1x32xf32, #tpu.memory_space<vmem>>, %arg25: memref<1x1x32xf32, #tpu.memory_space<vmem>>, %arg26: memref<1x1x32xf32, #tpu.memory_space<vmem>>, %arg27: memref<32x128xbf16, #tpu.memory_space<vmem>>, %arg28: memref<1x128xf32, #tpu.memory_space<vmem>>, %arg29: memref<16x128xf32, #tpu.memory_space<vmem>>, %arg30: memref<16x32xf32, #tpu.memory_space<vmem>>) attributes {dimension_semantics = [#tpu.dimension_semantics<arbitrary>], iteration_bounds = array<i64: 2>, scalar_prefetch = 0 : i64, scratch_operands = 1 : i64, tpu.core_type = #tpu.core_type<tc>, window_params = [{pipeline_mode = #tpu.pipeline_mode<synchronous>, transform_indices = @transform_0, window_bounds = array<i64: 16, 32>}, {pipeline_mode = #tpu.pipeline_mode<synchronous>, transform_indices = @transform_1, window_bounds = array<i64: 16, 32>}, {pipeline_mode = #tpu.pipeline_mode<synchronous>, transform_indices = @transform_2, window_bounds = array<i64: 2, 8, 8>}, {pipeline_mode = #tpu.pipeline_mode<synchronous>, transform_indices = @transform_3, window_bounds = array<i64: 2, 8, 8>}, {transform_indices = @transform_4, window_bounds = array<i64: 1, 32, 32>}, {transform_indices = @transform_5, window_bounds = array<i64: 1, 1, 32>}, {transform_indices = @transform_6, window_bounds = array<i64: 1, 32, 64>}, {transform_indices = @transform_7, window_bounds = array<i64: 1, 1, 64>}, {transform_indices = @transform_8, window_bounds = array<i64: 1, 32, 32>}, {transform_indices = @transform_9, window_bounds = array<i64: 1, 1, 32>}, {transform_indices = @transform_10, window_bounds = array<i64: 1, 1, 32>}, {transform_indices = @transform_11, window_bounds = array<i64: 1, 1, 32>}, {transform_indices = @transform_12, window_bounds = array<i64: 1, 32, 32>}, {transform_indices = @transform_13, window_bounds = array<i64: 1, 1, 32>}, {transform_indices = @transform_14, window_bounds = array<i64: 1, 32, 64>}, {transform_indices = @transform_15, window_bounds = array<i64: 1, 1, 64>}, {transform_indices = @transform_16, window_bounds = array<i64: 1, 32, 32>}, {transform_indices = @transform_17, window_bounds = array<i64: 1, 1, 32>}, {transform_indices = @transform_18, window_bounds = array<i64: 1, 1, 32>}, {transform_indices = @transform_19, window_bounds = array<i64: 1, 1, 32>}, {transform_indices = @transform_20, window_bounds = array<i64: 1, 32, 64>}, {transform_indices = @transform_21, window_bounds = array<i64: 1, 1, 64>}, {transform_indices = @transform_22, window_bounds = array<i64: 1, 64, 32>}, {transform_indices = @transform_23, window_bounds = array<i64: 1, 1, 32>}, {transform_indices = @transform_24, window_bounds = array<i64: 1, 1, 32>}, {transform_indices = @transform_25, window_bounds = array<i64: 1, 1, 32>}, {pipeline_mode = #tpu.pipeline_mode<synchronous>, transform_indices = @transform_26, window_bounds = array<i64: 32, 128>}, {pipeline_mode = #tpu.pipeline_mode<synchronous>, transform_indices = @transform_27, window_bounds = array<i64: 1, 128>}, {pipeline_mode = #tpu.pipeline_mode<synchronous>, transform_indices = @transform_28, window_bounds = array<i64: 16, 128>}]} {
    %c0_i32 = arith.constant 0 : i32
    %0 = arith.cmpi eq, %arg0, %c0_i32 : i32
    %1 = arith.extui %0 : i1 to i32
    %c0_i32_0 = arith.constant 0 : i32
    %2 = arith.cmpi ne, %1, %c0_i32_0 : i32
    scf.if %2 {
      %c0_170 = arith.constant 0 : index
      %c0_171 = arith.constant 0 : index
      %511 = vector.load %arg1[%c0_170, %c0_171] : memref<16x32xf32, #tpu.memory_space<vmem>>, vector<16x32xf32>
      %c0_172 = arith.constant 0 : index
      %c0_173 = arith.constant 0 : index
      %512 = vector.load %arg30[%c0_172, %c0_173] : memref<16x32xf32, #tpu.memory_space<vmem>>, vector<16x32xf32>
      tpu.vector_store %arg30[%c0_172, %c0_173], %511 {strides = array<i32>} : memref<16x32xf32, #tpu.memory_space<vmem>>, vector<16x32xf32>,
    } else {
    }
    %c0 = arith.constant 0 : index
    %c0_1 = arith.constant 0 : index
    %3 = vector.load %arg30[%c0, %c0_1] : memref<16x32xf32, #tpu.memory_space<vmem>>, vector<16x32xf32>
    %c0_2 = arith.constant 0 : index
    %c0_3 = arith.constant 0 : index
    %4 = vector.load %arg2[%c0_2, %c0_3] : memref<16x32xf32, #tpu.memory_space<vmem>>, vector<16x32xf32>
    %c0_4 = arith.constant 0 : index
    %c0_5 = arith.constant 0 : index
    %c0_6 = arith.constant 0 : index
    %5 = vector.load %arg3[%c0_4, %c0_5, %c0_6] : memref<2x8x8xf32, #tpu.memory_space<vmem>>, vector<2x8x8xf32>
    %c0_7 = arith.constant 0 : index
    %c0_8 = arith.constant 0 : index
    %c0_9 = arith.constant 0 : index
    %6 = vector.load %arg5[%c0_7, %c0_8, %c0_9] : memref<1x32x32xbf16, #tpu.memory_space<vmem>>, vector<1x32x32xbf16>
    %7 = vector.shape_cast %6 : vector<1x32x32xbf16> to vector<32x32xbf16>
    %c0_10 = arith.constant 0 : index
    %c0_11 = arith.constant 0 : index
    %c0_12 = arith.constant 0 : index
    %8 = vector.load %arg6[%c0_10, %c0_11, %c0_12] : memref<1x1x32xf32, #tpu.memory_space<vmem>>, vector<1x1x32xf32>
    %9 = vector.shape_cast %8 : vector<1x1x32xf32> to vector<1x32xf32>
    %c0_13 = arith.constant 0 : index
    %c0_14 = arith.constant 0 : index
    %c0_15 = arith.constant 0 : index
    %10 = vector.load %arg7[%c0_13, %c0_14, %c0_15] : memref<1x32x64xbf16, #tpu.memory_space<vmem>>, vector<1x32x64xbf16>
    %11 = vector.shape_cast %10 : vector<1x32x64xbf16> to vector<32x64xbf16>
    %c0_16 = arith.constant 0 : index
    %c0_17 = arith.constant 0 : index
    %c0_18 = arith.constant 0 : index
    %12 = vector.load %arg8[%c0_16, %c0_17, %c0_18] : memref<1x1x64xf32, #tpu.memory_space<vmem>>, vector<1x1x64xf32>
    %13 = vector.shape_cast %12 : vector<1x1x64xf32> to vector<1x64xf32>
    %c0_19 = arith.constant 0 : index
    %c0_20 = arith.constant 0 : index
    %c0_21 = arith.constant 0 : index
    %14 = vector.load %arg9[%c0_19, %c0_20, %c0_21] : memref<1x32x32xbf16, #tpu.memory_space<vmem>>, vector<1x32x32xbf16>
    %15 = vector.shape_cast %14 : vector<1x32x32xbf16> to vector<32x32xbf16>
    %c0_22 = arith.constant 0 : index
    %c0_23 = arith.constant 0 : index
    %c0_24 = arith.constant 0 : index
    %16 = vector.load %arg10[%c0_22, %c0_23, %c0_24] : memref<1x1x32xf32, #tpu.memory_space<vmem>>, vector<1x1x32xf32>
    %17 = vector.shape_cast %16 : vector<1x1x32xf32> to vector<1x32xf32>
    %c0_25 = arith.constant 0 : index
    %c0_26 = arith.constant 0 : index
    %c0_27 = arith.constant 0 : index
    %18 = vector.load %arg11[%c0_25, %c0_26, %c0_27] : memref<1x1x32xf32, #tpu.memory_space<vmem>>, vector<1x1x32xf32>
    %19 = vector.shape_cast %18 : vector<1x1x32xf32> to vector<1x32xf32>
    %c0_28 = arith.constant 0 : index
    %c0_29 = arith.constant 0 : index
    %c0_30 = arith.constant 0 : index
    %20 = vector.load %arg12[%c0_28, %c0_29, %c0_30] : memref<1x1x32xf32, #tpu.memory_space<vmem>>, vector<1x1x32xf32>
    %21 = vector.shape_cast %20 : vector<1x1x32xf32> to vector<1x32xf32>
    %22 = arith.truncf %3 : vector<16x32xf32> to vector<16x32xbf16>
    %cst = arith.constant dense<0.000000e+00> : vector<16x32xf32>
    %23 = tpu.matmul %22, %7, %cst {dimension_numbers = #tpu.dot_dimension_numbers<[1], [0], [0], [1], [0, 0, 1, 1], [], []>} : vector<16x32xbf16>, vector<32x32xbf16>, vector<16x32xf32> -> vector<16x32xf32>
    %24 = vector.broadcast %9 : vector<1x32xf32> to vector<16x32xf32>
    %25 = arith.addf %23, %24 : vector<16x32xf32>
    %cst_31 = arith.constant dense<0.000000e+00> : vector<16x64xf32>
    %26 = tpu.matmul %22, %11, %cst_31 {dimension_numbers = #tpu.dot_dimension_numbers<[1], [0], [0], [1], [0, 0, 1, 1], [], []>} : vector<16x32xbf16>, vector<32x64xbf16>, vector<16x64xf32> -> vector<16x64xf32>
    %27 = vector.broadcast %13 : vector<1x64xf32> to vector<16x64xf32>
    %28 = arith.addf %26, %27 : vector<16x64xf32>
    %29 = vector.extract_strided_slice %28 {offsets = [0, 0], sizes = [16, 32], strides = [1, 1]} : vector<16x64xf32> to vector<16x32xf32>
    %30 = vector.extract_strided_slice %28 {offsets = [0, 32], sizes = [16, 32], strides = [1, 1]} : vector<16x64xf32> to vector<16x32xf32>
    %cst_32 = arith.constant 1.000000e+00 : f32
    %31 = vector.broadcast %cst_32 : f32 to vector<2x8x8xf32>
    %32 = arith.subf %5, %31 : vector<2x8x8xf32>
    %cst_33 = arith.constant 1.000000e+04 : f32
    %33 = vector.broadcast %cst_33 : f32 to vector<2x8x8xf32>
    %34 = arith.mulf %32, %33 : vector<2x8x8xf32>
    %35 = vector.extract_strided_slice %5 {offsets = [0, 0, 0], sizes = [1, 8, 8], strides = [1, 1, 1]} : vector<2x8x8xf32> to vector<1x8x8xf32>
    %36 = vector.shape_cast %35 : vector<1x8x8xf32> to vector<8x8xf32>
    %37 = vector.extract_strided_slice %34 {offsets = [0, 0, 0], sizes = [1, 8, 8], strides = [1, 1, 1]} : vector<2x8x8xf32> to vector<1x8x8xf32>
    %38 = vector.shape_cast %37 : vector<1x8x8xf32> to vector<8x8xf32>
    %39 = vector.extract_strided_slice %25 {offsets = [0, 0], sizes = [8, 8], strides = [1, 1]} : vector<16x32xf32> to vector<8x8xf32>
    %40 = arith.truncf %39 : vector<8x8xf32> to vector<8x8xbf16>
    %41 = vector.extract_strided_slice %29 {offsets = [0, 0], sizes = [8, 8], strides = [1, 1]} : vector<16x32xf32> to vector<8x8xf32>
    %42 = arith.truncf %41 : vector<8x8xf32> to vector<8x8xbf16>
    %43 = vector.extract_strided_slice %30 {offsets = [0, 0], sizes = [8, 8], strides = [1, 1]} : vector<16x32xf32> to vector<8x8xf32>
    %44 = arith.truncf %43 : vector<8x8xf32> to vector<8x8xbf16>
    %cst_34 = arith.constant dense<0.000000e+00> : vector<8x8xf32>
    %45 = tpu.matmul %40, %42, %cst_34 {dimension_numbers = #tpu.dot_dimension_numbers<[1], [1], [0], [0], [0, 0, 1, 0], [], []>} : vector<8x8xbf16>, vector<8x8xbf16>, vector<8x8xf32> -> vector<8x8xf32>
    %46 = arith.mulf %45, %36 : vector<8x8xf32>
    %47 = arith.addf %46, %38 : vector<8x8xf32>
    %cst_35 = arith.constant dense<0xFF800000> : vector<8xf32>
    %48 = vector.multi_reduction <maximumf>, %47, %cst_35 [1] : vector<8x8xf32> to vector<8xf32>
    %49 = vector.shape_cast %48 : vector<8xf32> to vector<8x1xf32>
    %50 = vector.broadcast %49 : vector<8x1xf32> to vector<8x8xf32>
    %51 = arith.subf %47, %50 : vector<8x8xf32>
    %52 = math.exp %51 : vector<8x8xf32>
    %cst_36 = arith.constant dense<0.000000e+00> : vector<8xf32>
    %53 = vector.multi_reduction <add>, %52, %cst_36 [1] : vector<8x8xf32> to vector<8xf32>
    %54 = vector.shape_cast %53 : vector<8xf32> to vector<8x1xf32>
    %55 = vector.broadcast %54 : vector<8x1xf32> to vector<8x8xf32>
    %56 = arith.divf %52, %55 : vector<8x8xf32>
    %57 = arith.truncf %56 : vector<8x8xf32> to vector<8x8xbf16>
    %cst_37 = arith.constant dense<0.000000e+00> : vector<8x8xf32>
    %58 = tpu.matmul %57, %44, %cst_37 {dimension_numbers = #tpu.dot_dimension_numbers<[1], [0], [0], [1], [0, 0, 1, 1], [], []>} : vector<8x8xbf16>, vector<8x8xbf16>, vector<8x8xf32> -> vector<8x8xf32>
    %59 = vector.extract_strided_slice %25 {offsets = [0, 8], sizes = [8, 8], strides = [1, 1]} : vector<16x32xf32> to vector<8x8xf32>
    %60 = arith.truncf %59 : vector<8x8xf32> to vector<8x8xbf16>
    %61 = vector.extract_strided_slice %29 {offsets = [0, 8], sizes = [8, 8], strides = [1, 1]} : vector<16x32xf32> to vector<8x8xf32>
    %62 = arith.truncf %61 : vector<8x8xf32> to vector<8x8xbf16>
    %63 = vector.extract_strided_slice %30 {offsets = [0, 8], sizes = [8, 8], strides = [1, 1]} : vector<16x32xf32> to vector<8x8xf32>
    %64 = arith.truncf %63 : vector<8x8xf32> to vector<8x8xbf16>
    %cst_38 = arith.constant dense<0.000000e+00> : vector<8x8xf32>
    %65 = tpu.matmul %60, %62, %cst_38 {dimension_numbers = #tpu.dot_dimension_numbers<[1], [1], [0], [0], [0, 0, 1, 0], [], []>} : vector<8x8xbf16>, vector<8x8xbf16>, vector<8x8xf32> -> vector<8x8xf32>
    %66 = arith.mulf %65, %36 : vector<8x8xf32>
    %67 = arith.addf %66, %38 : vector<8x8xf32>
    %cst_39 = arith.constant dense<0xFF800000> : vector<8xf32>
    %68 = vector.multi_reduction <maximumf>, %67, %cst_39 [1] : vector<8x8xf32> to vector<8xf32>
    %69 = vector.shape_cast %68 : vector<8xf32> to vector<8x1xf32>
    %70 = vector.broadcast %69 : vector<8x1xf32> to vector<8x8xf32>
    %71 = arith.subf %67, %70 : vector<8x8xf32>
    %72 = math.exp %71 : vector<8x8xf32>
    %cst_40 = arith.constant dense<0.000000e+00> : vector<8xf32>
    %73 = vector.multi_reduction <add>, %72, %cst_40 [1] : vector<8x8xf32> to vector<8xf32>
    %74 = vector.shape_cast %73 : vector<8xf32> to vector<8x1xf32>
    %75 = vector.broadcast %74 : vector<8x1xf32> to vector<8x8xf32>
    %76 = arith.divf %72, %75 : vector<8x8xf32>
    %77 = arith.truncf %76 : vector<8x8xf32> to vector<8x8xbf16>
    %cst_41 = arith.constant dense<0.000000e+00> : vector<8x8xf32>
    %78 = tpu.matmul %77, %64, %cst_41 {dimension_numbers = #tpu.dot_dimension_numbers<[1], [0], [0], [1], [0, 0, 1, 1], [], []>} : vector<8x8xbf16>, vector<8x8xbf16>, vector<8x8xf32> -> vector<8x8xf32>
    %79 = vector.extract_strided_slice %25 {offsets = [0, 16], sizes = [8, 8], strides = [1, 1]} : vector<16x32xf32> to vector<8x8xf32>
    %80 = arith.truncf %79 : vector<8x8xf32> to vector<8x8xbf16>
    %81 = vector.extract_strided_slice %29 {offsets = [0, 16], sizes = [8, 8], strides = [1, 1]} : vector<16x32xf32> to vector<8x8xf32>
    %82 = arith.truncf %81 : vector<8x8xf32> to vector<8x8xbf16>
    %83 = vector.extract_strided_slice %30 {offsets = [0, 16], sizes = [8, 8], strides = [1, 1]} : vector<16x32xf32> to vector<8x8xf32>
    %84 = arith.truncf %83 : vector<8x8xf32> to vector<8x8xbf16>
    %cst_42 = arith.constant dense<0.000000e+00> : vector<8x8xf32>
    %85 = tpu.matmul %80, %82, %cst_42 {dimension_numbers = #tpu.dot_dimension_numbers<[1], [1], [0], [0], [0, 0, 1, 0], [], []>} : vector<8x8xbf16>, vector<8x8xbf16>, vector<8x8xf32> -> vector<8x8xf32>
    %86 = arith.mulf %85, %36 : vector<8x8xf32>
    %87 = arith.addf %86, %38 : vector<8x8xf32>
    %cst_43 = arith.constant dense<0xFF800000> : vector<8xf32>
    %88 = vector.multi_reduction <maximumf>, %87, %cst_43 [1] : vector<8x8xf32> to vector<8xf32>
    %89 = vector.shape_cast %88 : vector<8xf32> to vector<8x1xf32>
    %90 = vector.broadcast %89 : vector<8x1xf32> to vector<8x8xf32>
    %91 = arith.subf %87, %90 : vector<8x8xf32>
    %92 = math.exp %91 : vector<8x8xf32>
    %cst_44 = arith.constant dense<0.000000e+00> : vector<8xf32>
    %93 = vector.multi_reduction <add>, %92, %cst_44 [1] : vector<8x8xf32> to vector<8xf32>
    %94 = vector.shape_cast %93 : vector<8xf32> to vector<8x1xf32>
    %95 = vector.broadcast %94 : vector<8x1xf32> to vector<8x8xf32>
    %96 = arith.divf %92, %95 : vector<8x8xf32>
    %97 = arith.truncf %96 : vector<8x8xf32> to vector<8x8xbf16>
    %cst_45 = arith.constant dense<0.000000e+00> : vector<8x8xf32>
    %98 = tpu.matmul %97, %84, %cst_45 {dimension_numbers = #tpu.dot_dimension_numbers<[1], [0], [0], [1], [0, 0, 1, 1], [], []>} : vector<8x8xbf16>, vector<8x8xbf16>, vector<8x8xf32> -> vector<8x8xf32>
    %99 = vector.extract_strided_slice %25 {offsets = [0, 24], sizes = [8, 8], strides = [1, 1]} : vector<16x32xf32> to vector<8x8xf32>
    %100 = arith.truncf %99 : vector<8x8xf32> to vector<8x8xbf16>
    %101 = vector.extract_strided_slice %29 {offsets = [0, 24], sizes = [8, 8], strides = [1, 1]} : vector<16x32xf32> to vector<8x8xf32>
    %102 = arith.truncf %101 : vector<8x8xf32> to vector<8x8xbf16>
    %103 = vector.extract_strided_slice %30 {offsets = [0, 24], sizes = [8, 8], strides = [1, 1]} : vector<16x32xf32> to vector<8x8xf32>
    %104 = arith.truncf %103 : vector<8x8xf32> to vector<8x8xbf16>
    %cst_46 = arith.constant dense<0.000000e+00> : vector<8x8xf32>
    %105 = tpu.matmul %100, %102, %cst_46 {dimension_numbers = #tpu.dot_dimension_numbers<[1], [1], [0], [0], [0, 0, 1, 0], [], []>} : vector<8x8xbf16>, vector<8x8xbf16>, vector<8x8xf32> -> vector<8x8xf32>
    %106 = arith.mulf %105, %36 : vector<8x8xf32>
    %107 = arith.addf %106, %38 : vector<8x8xf32>
    %cst_47 = arith.constant dense<0xFF800000> : vector<8xf32>
    %108 = vector.multi_reduction <maximumf>, %107, %cst_47 [1] : vector<8x8xf32> to vector<8xf32>
    %109 = vector.shape_cast %108 : vector<8xf32> to vector<8x1xf32>
    %110 = vector.broadcast %109 : vector<8x1xf32> to vector<8x8xf32>
    %111 = arith.subf %107, %110 : vector<8x8xf32>
    %112 = math.exp %111 : vector<8x8xf32>
    %cst_48 = arith.constant dense<0.000000e+00> : vector<8xf32>
    %113 = vector.multi_reduction <add>, %112, %cst_48 [1] : vector<8x8xf32> to vector<8xf32>
    %114 = vector.shape_cast %113 : vector<8xf32> to vector<8x1xf32>
    %115 = vector.broadcast %114 : vector<8x1xf32> to vector<8x8xf32>
    %116 = arith.divf %112, %115 : vector<8x8xf32>
    %117 = arith.truncf %116 : vector<8x8xf32> to vector<8x8xbf16>
    %cst_49 = arith.constant dense<0.000000e+00> : vector<8x8xf32>
    %118 = tpu.matmul %117, %104, %cst_49 {dimension_numbers = #tpu.dot_dimension_numbers<[1], [0], [0], [1], [0, 0, 1, 1], [], []>} : vector<8x8xbf16>, vector<8x8xbf16>, vector<8x8xf32> -> vector<8x8xf32>
    %119 = tpu.concatenate %58, %78, %98, %118 in 1 : vector<8x8xf32>, vector<8x8xf32>, vector<8x8xf32>, vector<8x8xf32> -> vector<8x32xf32>
    %120 = vector.extract_strided_slice %5 {offsets = [1, 0, 0], sizes = [1, 8, 8], strides = [1, 1, 1]} : vector<2x8x8xf32> to vector<1x8x8xf32>
    %121 = vector.shape_cast %120 : vector<1x8x8xf32> to vector<8x8xf32>
    %122 = vector.extract_strided_slice %34 {offsets = [1, 0, 0], sizes = [1, 8, 8], strides = [1, 1, 1]} : vector<2x8x8xf32> to vector<1x8x8xf32>
    %123 = vector.shape_cast %122 : vector<1x8x8xf32> to vector<8x8xf32>
    %124 = vector.extract_strided_slice %25 {offsets = [8, 0], sizes = [8, 8], strides = [1, 1]} : vector<16x32xf32> to vector<8x8xf32>
    %125 = arith.truncf %124 : vector<8x8xf32> to vector<8x8xbf16>
    %126 = vector.extract_strided_slice %29 {offsets = [8, 0], sizes = [8, 8], strides = [1, 1]} : vector<16x32xf32> to vector<8x8xf32>
    %127 = arith.truncf %126 : vector<8x8xf32> to vector<8x8xbf16>
    %128 = vector.extract_strided_slice %30 {offsets = [8, 0], sizes = [8, 8], strides = [1, 1]} : vector<16x32xf32> to vector<8x8xf32>
    %129 = arith.truncf %128 : vector<8x8xf32> to vector<8x8xbf16>
    %cst_50 = arith.constant dense<0.000000e+00> : vector<8x8xf32>
    %130 = tpu.matmul %125, %127, %cst_50 {dimension_numbers = #tpu.dot_dimension_numbers<[1], [1], [0], [0], [0, 0, 1, 0], [], []>} : vector<8x8xbf16>, vector<8x8xbf16>, vector<8x8xf32> -> vector<8x8xf32>
    %131 = arith.mulf %130, %121 : vector<8x8xf32>
    %132 = arith.addf %131, %123 : vector<8x8xf32>
    %cst_51 = arith.constant dense<0xFF800000> : vector<8xf32>
    %133 = vector.multi_reduction <maximumf>, %132, %cst_51 [1] : vector<8x8xf32> to vector<8xf32>
    %134 = vector.shape_cast %133 : vector<8xf32> to vector<8x1xf32>
    %135 = vector.broadcast %134 : vector<8x1xf32> to vector<8x8xf32>
    %136 = arith.subf %132, %135 : vector<8x8xf32>
    %137 = math.exp %136 : vector<8x8xf32>
    %cst_52 = arith.constant dense<0.000000e+00> : vector<8xf32>
    %138 = vector.multi_reduction <add>, %137, %cst_52 [1] : vector<8x8xf32> to vector<8xf32>
    %139 = vector.shape_cast %138 : vector<8xf32> to vector<8x1xf32>
    %140 = vector.broadcast %139 : vector<8x1xf32> to vector<8x8xf32>
    %141 = arith.divf %137, %140 : vector<8x8xf32>
    %142 = arith.truncf %141 : vector<8x8xf32> to vector<8x8xbf16>
    %cst_53 = arith.constant dense<0.000000e+00> : vector<8x8xf32>
    %143 = tpu.matmul %142, %129, %cst_53 {dimension_numbers = #tpu.dot_dimension_numbers<[1], [0], [0], [1], [0, 0, 1, 1], [], []>} : vector<8x8xbf16>, vector<8x8xbf16>, vector<8x8xf32> -> vector<8x8xf32>
    %144 = vector.extract_strided_slice %25 {offsets = [8, 8], sizes = [8, 8], strides = [1, 1]} : vector<16x32xf32> to vector<8x8xf32>
    %145 = arith.truncf %144 : vector<8x8xf32> to vector<8x8xbf16>
    %146 = vector.extract_strided_slice %29 {offsets = [8, 8], sizes = [8, 8], strides = [1, 1]} : vector<16x32xf32> to vector<8x8xf32>
    %147 = arith.truncf %146 : vector<8x8xf32> to vector<8x8xbf16>
    %148 = vector.extract_strided_slice %30 {offsets = [8, 8], sizes = [8, 8], strides = [1, 1]} : vector<16x32xf32> to vector<8x8xf32>
    %149 = arith.truncf %148 : vector<8x8xf32> to vector<8x8xbf16>
    %cst_54 = arith.constant dense<0.000000e+00> : vector<8x8xf32>
    %150 = tpu.matmul %145, %147, %cst_54 {dimension_numbers = #tpu.dot_dimension_numbers<[1], [1], [0], [0], [0, 0, 1, 0], [], []>} : vector<8x8xbf16>, vector<8x8xbf16>, vector<8x8xf32> -> vector<8x8xf32>
    %151 = arith.mulf %150, %121 : vector<8x8xf32>
    %152 = arith.addf %151, %123 : vector<8x8xf32>
    %cst_55 = arith.constant dense<0xFF800000> : vector<8xf32>
    %153 = vector.multi_reduction <maximumf>, %152, %cst_55 [1] : vector<8x8xf32> to vector<8xf32>
    %154 = vector.shape_cast %153 : vector<8xf32> to vector<8x1xf32>
    %155 = vector.broadcast %154 : vector<8x1xf32> to vector<8x8xf32>
    %156 = arith.subf %152, %155 : vector<8x8xf32>
    %157 = math.exp %156 : vector<8x8xf32>
    %cst_56 = arith.constant dense<0.000000e+00> : vector<8xf32>
    %158 = vector.multi_reduction <add>, %157, %cst_56 [1] : vector<8x8xf32> to vector<8xf32>
    %159 = vector.shape_cast %158 : vector<8xf32> to vector<8x1xf32>
    %160 = vector.broadcast %159 : vector<8x1xf32> to vector<8x8xf32>
    %161 = arith.divf %157, %160 : vector<8x8xf32>
    %162 = arith.truncf %161 : vector<8x8xf32> to vector<8x8xbf16>
    %cst_57 = arith.constant dense<0.000000e+00> : vector<8x8xf32>
    %163 = tpu.matmul %162, %149, %cst_57 {dimension_numbers = #tpu.dot_dimension_numbers<[1], [0], [0], [1], [0, 0, 1, 1], [], []>} : vector<8x8xbf16>, vector<8x8xbf16>, vector<8x8xf32> -> vector<8x8xf32>
    %164 = vector.extract_strided_slice %25 {offsets = [8, 16], sizes = [8, 8], strides = [1, 1]} : vector<16x32xf32> to vector<8x8xf32>
    %165 = arith.truncf %164 : vector<8x8xf32> to vector<8x8xbf16>
    %166 = vector.extract_strided_slice %29 {offsets = [8, 16], sizes = [8, 8], strides = [1, 1]} : vector<16x32xf32> to vector<8x8xf32>
    %167 = arith.truncf %166 : vector<8x8xf32> to vector<8x8xbf16>
    %168 = vector.extract_strided_slice %30 {offsets = [8, 16], sizes = [8, 8], strides = [1, 1]} : vector<16x32xf32> to vector<8x8xf32>
    %169 = arith.truncf %168 : vector<8x8xf32> to vector<8x8xbf16>
    %cst_58 = arith.constant dense<0.000000e+00> : vector<8x8xf32>
    %170 = tpu.matmul %165, %167, %cst_58 {dimension_numbers = #tpu.dot_dimension_numbers<[1], [1], [0], [0], [0, 0, 1, 0], [], []>} : vector<8x8xbf16>, vector<8x8xbf16>, vector<8x8xf32> -> vector<8x8xf32>
    %171 = arith.mulf %170, %121 : vector<8x8xf32>
    %172 = arith.addf %171, %123 : vector<8x8xf32>
    %cst_59 = arith.constant dense<0xFF800000> : vector<8xf32>
    %173 = vector.multi_reduction <maximumf>, %172, %cst_59 [1] : vector<8x8xf32> to vector<8xf32>
    %174 = vector.shape_cast %173 : vector<8xf32> to vector<8x1xf32>
    %175 = vector.broadcast %174 : vector<8x1xf32> to vector<8x8xf32>
    %176 = arith.subf %172, %175 : vector<8x8xf32>
    %177 = math.exp %176 : vector<8x8xf32>
    %cst_60 = arith.constant dense<0.000000e+00> : vector<8xf32>
    %178 = vector.multi_reduction <add>, %177, %cst_60 [1] : vector<8x8xf32> to vector<8xf32>
    %179 = vector.shape_cast %178 : vector<8xf32> to vector<8x1xf32>
    %180 = vector.broadcast %179 : vector<8x1xf32> to vector<8x8xf32>
    %181 = arith.divf %177, %180 : vector<8x8xf32>
    %182 = arith.truncf %181 : vector<8x8xf32> to vector<8x8xbf16>
    %cst_61 = arith.constant dense<0.000000e+00> : vector<8x8xf32>
    %183 = tpu.matmul %182, %169, %cst_61 {dimension_numbers = #tpu.dot_dimension_numbers<[1], [0], [0], [1], [0, 0, 1, 1], [], []>} : vector<8x8xbf16>, vector<8x8xbf16>, vector<8x8xf32> -> vector<8x8xf32>
    %184 = vector.extract_strided_slice %25 {offsets = [8, 24], sizes = [8, 8], strides = [1, 1]} : vector<16x32xf32> to vector<8x8xf32>
    %185 = arith.truncf %184 : vector<8x8xf32> to vector<8x8xbf16>
    %186 = vector.extract_strided_slice %29 {offsets = [8, 24], sizes = [8, 8], strides = [1, 1]} : vector<16x32xf32> to vector<8x8xf32>
    %187 = arith.truncf %186 : vector<8x8xf32> to vector<8x8xbf16>
    %188 = vector.extract_strided_slice %30 {offsets = [8, 24], sizes = [8, 8], strides = [1, 1]} : vector<16x32xf32> to vector<8x8xf32>
    %189 = arith.truncf %188 : vector<8x8xf32> to vector<8x8xbf16>
    %cst_62 = arith.constant dense<0.000000e+00> : vector<8x8xf32>
    %190 = tpu.matmul %185, %187, %cst_62 {dimension_numbers = #tpu.dot_dimension_numbers<[1], [1], [0], [0], [0, 0, 1, 0], [], []>} : vector<8x8xbf16>, vector<8x8xbf16>, vector<8x8xf32> -> vector<8x8xf32>
    %191 = arith.mulf %190, %121 : vector<8x8xf32>
    %192 = arith.addf %191, %123 : vector<8x8xf32>
    %cst_63 = arith.constant dense<0xFF800000> : vector<8xf32>
    %193 = vector.multi_reduction <maximumf>, %192, %cst_63 [1] : vector<8x8xf32> to vector<8xf32>
    %194 = vector.shape_cast %193 : vector<8xf32> to vector<8x1xf32>
    %195 = vector.broadcast %194 : vector<8x1xf32> to vector<8x8xf32>
    %196 = arith.subf %192, %195 : vector<8x8xf32>
    %197 = math.exp %196 : vector<8x8xf32>
    %cst_64 = arith.constant dense<0.000000e+00> : vector<8xf32>
    %198 = vector.multi_reduction <add>, %197, %cst_64 [1] : vector<8x8xf32> to vector<8xf32>
    %199 = vector.shape_cast %198 : vector<8xf32> to vector<8x1xf32>
    %200 = vector.broadcast %199 : vector<8x1xf32> to vector<8x8xf32>
    %201 = arith.divf %197, %200 : vector<8x8xf32>
    %202 = arith.truncf %201 : vector<8x8xf32> to vector<8x8xbf16>
    %cst_65 = arith.constant dense<0.000000e+00> : vector<8x8xf32>
    %203 = tpu.matmul %202, %189, %cst_65 {dimension_numbers = #tpu.dot_dimension_numbers<[1], [0], [0], [1], [0, 0, 1, 1], [], []>} : vector<8x8xbf16>, vector<8x8xbf16>, vector<8x8xf32> -> vector<8x8xf32>
    %204 = tpu.concatenate %143, %163, %183, %203 in 1 : vector<8x8xf32>, vector<8x8xf32>, vector<8x8xf32>, vector<8x8xf32> -> vector<8x32xf32>
    %205 = tpu.concatenate %119, %204 in 0 : vector<8x32xf32>, vector<8x32xf32> -> vector<16x32xf32>
    %206 = arith.truncf %205 : vector<16x32xf32> to vector<16x32xbf16>
    %cst_66 = arith.constant dense<0.000000e+00> : vector<16x32xf32>
    %207 = tpu.matmul %206, %15, %cst_66 {dimension_numbers = #tpu.dot_dimension_numbers<[1], [0], [0], [1], [0, 0, 1, 1], [], []>} : vector<16x32xbf16>, vector<32x32xbf16>, vector<16x32xf32> -> vector<16x32xf32>
    %208 = vector.broadcast %17 : vector<1x32xf32> to vector<16x32xf32>
    %209 = arith.addf %207, %208 : vector<16x32xf32>
    %210 = arith.addf %209, %3 : vector<16x32xf32>
    %cst_67 = arith.constant dense<0.000000e+00> : vector<16xf32>
    %211 = vector.multi_reduction <add>, %210, %cst_67 [1] : vector<16x32xf32> to vector<16xf32>
    %212 = vector.shape_cast %211 : vector<16xf32> to vector<16x1xf32>
    %cst_68 = arith.constant 3.200000e+01 : f32
    %213 = vector.broadcast %cst_68 : f32 to vector<16x1xf32>
    %214 = arith.divf %212, %213 : vector<16x1xf32>
    %215 = vector.broadcast %214 : vector<16x1xf32> to vector<16x32xf32>
    %216 = arith.subf %210, %215 : vector<16x32xf32>
    %217 = arith.mulf %216, %216 : vector<16x32xf32>
    %cst_69 = arith.constant dense<0.000000e+00> : vector<16xf32>
    %218 = vector.multi_reduction <add>, %217, %cst_69 [1] : vector<16x32xf32> to vector<16xf32>
    %219 = vector.shape_cast %218 : vector<16xf32> to vector<16x1xf32>
    %cst_70 = arith.constant 3.200000e+01 : f32
    %220 = vector.broadcast %cst_70 : f32 to vector<16x1xf32>
    %221 = arith.divf %219, %220 : vector<16x1xf32>
    %222 = vector.broadcast %214 : vector<16x1xf32> to vector<16x32xf32>
    %223 = arith.subf %210, %222 : vector<16x32xf32>
    %cst_71 = arith.constant 9.99999996E-13 : f32
    %224 = vector.broadcast %cst_71 : f32 to vector<16x1xf32>
    %225 = arith.addf %221, %224 : vector<16x1xf32>
    %226 = math.rsqrt %225 : vector<16x1xf32>
    %227 = vector.broadcast %226 : vector<16x1xf32> to vector<16x32xf32>
    %228 = arith.mulf %223, %227 : vector<16x32xf32>
    %229 = vector.broadcast %19 : vector<1x32xf32> to vector<16x32xf32>
    %230 = arith.mulf %228, %229 : vector<16x32xf32>
    %231 = vector.broadcast %21 : vector<1x32xf32> to vector<16x32xf32>
    %232 = arith.addf %230, %231 : vector<16x32xf32>
    %c0_72 = arith.constant 0 : index
    %c0_73 = arith.constant 0 : index
    %c0_74 = arith.constant 0 : index
    %233 = vector.load %arg4[%c0_72, %c0_73, %c0_74] : memref<2x8x8xf32, #tpu.memory_space<vmem>>, vector<2x8x8xf32>
    %c0_75 = arith.constant 0 : index
    %c0_76 = arith.constant 0 : index
    %c0_77 = arith.constant 0 : index
    %234 = vector.load %arg13[%c0_75, %c0_76, %c0_77] : memref<1x32x32xbf16, #tpu.memory_space<vmem>>, vector<1x32x32xbf16>
    %235 = vector.shape_cast %234 : vector<1x32x32xbf16> to vector<32x32xbf16>
    %c0_78 = arith.constant 0 : index
    %c0_79 = arith.constant 0 : index
    %c0_80 = arith.constant 0 : index
    %236 = vector.load %arg14[%c0_78, %c0_79, %c0_80] : memref<1x1x32xf32, #tpu.memory_space<vmem>>, vector<1x1x32xf32>
    %237 = vector.shape_cast %236 : vector<1x1x32xf32> to vector<1x32xf32>
    %c0_81 = arith.constant 0 : index
    %c0_82 = arith.constant 0 : index
    %c0_83 = arith.constant 0 : index
    %238 = vector.load %arg15[%c0_81, %c0_82, %c0_83] : memref<1x32x64xbf16, #tpu.memory_space<vmem>>, vector<1x32x64xbf16>
    %239 = vector.shape_cast %238 : vector<1x32x64xbf16> to vector<32x64xbf16>
    %c0_84 = arith.constant 0 : index
    %c0_85 = arith.constant 0 : index
    %c0_86 = arith.constant 0 : index
    %240 = vector.load %arg16[%c0_84, %c0_85, %c0_86] : memref<1x1x64xf32, #tpu.memory_space<vmem>>, vector<1x1x64xf32>
    %241 = vector.shape_cast %240 : vector<1x1x64xf32> to vector<1x64xf32>
    %c0_87 = arith.constant 0 : index
    %c0_88 = arith.constant 0 : index
    %c0_89 = arith.constant 0 : index
    %242 = vector.load %arg17[%c0_87, %c0_88, %c0_89] : memref<1x32x32xbf16, #tpu.memory_space<vmem>>, vector<1x32x32xbf16>
    %243 = vector.shape_cast %242 : vector<1x32x32xbf16> to vector<32x32xbf16>
    %c0_90 = arith.constant 0 : index
    %c0_91 = arith.constant 0 : index
    %c0_92 = arith.constant 0 : index
    %244 = vector.load %arg18[%c0_90, %c0_91, %c0_92] : memref<1x1x32xf32, #tpu.memory_space<vmem>>, vector<1x1x32xf32>
    %245 = vector.shape_cast %244 : vector<1x1x32xf32> to vector<1x32xf32>
    %c0_93 = arith.constant 0 : index
    %c0_94 = arith.constant 0 : index
    %c0_95 = arith.constant 0 : index
    %246 = vector.load %arg19[%c0_93, %c0_94, %c0_95] : memref<1x1x32xf32, #tpu.memory_space<vmem>>, vector<1x1x32xf32>
    %247 = vector.shape_cast %246 : vector<1x1x32xf32> to vector<1x32xf32>
    %c0_96 = arith.constant 0 : index
    %c0_97 = arith.constant 0 : index
    %c0_98 = arith.constant 0 : index
    %248 = vector.load %arg20[%c0_96, %c0_97, %c0_98] : memref<1x1x32xf32, #tpu.memory_space<vmem>>, vector<1x1x32xf32>
    %249 = vector.shape_cast %248 : vector<1x1x32xf32> to vector<1x32xf32>
    %250 = arith.truncf %232 : vector<16x32xf32> to vector<16x32xbf16>
    %251 = arith.truncf %4 : vector<16x32xf32> to vector<16x32xbf16>
    %cst_99 = arith.constant dense<0.000000e+00> : vector<16x32xf32>
    %252 = tpu.matmul %250, %235, %cst_99 {dimension_numbers = #tpu.dot_dimension_numbers<[1], [0], [0], [1], [0, 0, 1, 1], [], []>} : vector<16x32xbf16>, vector<32x32xbf16>, vector<16x32xf32> -> vector<16x32xf32>
    %253 = vector.broadcast %237 : vector<1x32xf32> to vector<16x32xf32>
    %254 = arith.addf %252, %253 : vector<16x32xf32>
    %cst_100 = arith.constant dense<0.000000e+00> : vector<16x64xf32>
    %255 = tpu.matmul %251, %239, %cst_100 {dimension_numbers = #tpu.dot_dimension_numbers<[1], [0], [0], [1], [0, 0, 1, 1], [], []>} : vector<16x32xbf16>, vector<32x64xbf16>, vector<16x64xf32> -> vector<16x64xf32>
    %256 = vector.broadcast %241 : vector<1x64xf32> to vector<16x64xf32>
    %257 = arith.addf %255, %256 : vector<16x64xf32>
    %258 = vector.extract_strided_slice %257 {offsets = [0, 0], sizes = [16, 32], strides = [1, 1]} : vector<16x64xf32> to vector<16x32xf32>
    %259 = vector.extract_strided_slice %257 {offsets = [0, 32], sizes = [16, 32], strides = [1, 1]} : vector<16x64xf32> to vector<16x32xf32>
    %cst_101 = arith.constant 1.000000e+00 : f32
    %260 = vector.broadcast %cst_101 : f32 to vector<2x8x8xf32>
    %261 = arith.subf %233, %260 : vector<2x8x8xf32>
    %cst_102 = arith.constant 1.000000e+04 : f32
    %262 = vector.broadcast %cst_102 : f32 to vector<2x8x8xf32>
    %263 = arith.mulf %261, %262 : vector<2x8x8xf32>
    %264 = vector.extract_strided_slice %233 {offsets = [0, 0, 0], sizes = [1, 8, 8], strides = [1, 1, 1]} : vector<2x8x8xf32> to vector<1x8x8xf32>
    %265 = vector.shape_cast %264 : vector<1x8x8xf32> to vector<8x8xf32>
    %266 = vector.extract_strided_slice %263 {offsets = [0, 0, 0], sizes = [1, 8, 8], strides = [1, 1, 1]} : vector<2x8x8xf32> to vector<1x8x8xf32>
    %267 = vector.shape_cast %266 : vector<1x8x8xf32> to vector<8x8xf32>
    %268 = vector.extract_strided_slice %254 {offsets = [0, 0], sizes = [8, 8], strides = [1, 1]} : vector<16x32xf32> to vector<8x8xf32>
    %269 = arith.truncf %268 : vector<8x8xf32> to vector<8x8xbf16>
    %270 = vector.extract_strided_slice %258 {offsets = [0, 0], sizes = [8, 8], strides = [1, 1]} : vector<16x32xf32> to vector<8x8xf32>
    %271 = arith.truncf %270 : vector<8x8xf32> to vector<8x8xbf16>
    %272 = vector.extract_strided_slice %259 {offsets = [0, 0], sizes = [8, 8], strides = [1, 1]} : vector<16x32xf32> to vector<8x8xf32>
    %273 = arith.truncf %272 : vector<8x8xf32> to vector<8x8xbf16>
    %cst_103 = arith.constant dense<0.000000e+00> : vector<8x8xf32>
    %274 = tpu.matmul %269, %271, %cst_103 {dimension_numbers = #tpu.dot_dimension_numbers<[1], [1], [0], [0], [0, 0, 1, 0], [], []>} : vector<8x8xbf16>, vector<8x8xbf16>, vector<8x8xf32> -> vector<8x8xf32>
    %275 = arith.mulf %274, %265 : vector<8x8xf32>
    %276 = arith.addf %275, %267 : vector<8x8xf32>
    %cst_104 = arith.constant dense<0xFF800000> : vector<8xf32>
    %277 = vector.multi_reduction <maximumf>, %276, %cst_104 [1] : vector<8x8xf32> to vector<8xf32>
    %278 = vector.shape_cast %277 : vector<8xf32> to vector<8x1xf32>
    %279 = vector.broadcast %278 : vector<8x1xf32> to vector<8x8xf32>
    %280 = arith.subf %276, %279 : vector<8x8xf32>
    %281 = math.exp %280 : vector<8x8xf32>
    %cst_105 = arith.constant dense<0.000000e+00> : vector<8xf32>
    %282 = vector.multi_reduction <add>, %281, %cst_105 [1] : vector<8x8xf32> to vector<8xf32>
    %283 = vector.shape_cast %282 : vector<8xf32> to vector<8x1xf32>
    %284 = vector.broadcast %283 : vector<8x1xf32> to vector<8x8xf32>
    %285 = arith.divf %281, %284 : vector<8x8xf32>
    %286 = arith.truncf %285 : vector<8x8xf32> to vector<8x8xbf16>
    %cst_106 = arith.constant dense<0.000000e+00> : vector<8x8xf32>
    %287 = tpu.matmul %286, %273, %cst_106 {dimension_numbers = #tpu.dot_dimension_numbers<[1], [0], [0], [1], [0, 0, 1, 1], [], []>} : vector<8x8xbf16>, vector<8x8xbf16>, vector<8x8xf32> -> vector<8x8xf32>
    %288 = vector.extract_strided_slice %254 {offsets = [0, 8], sizes = [8, 8], strides = [1, 1]} : vector<16x32xf32> to vector<8x8xf32>
    %289 = arith.truncf %288 : vector<8x8xf32> to vector<8x8xbf16>
    %290 = vector.extract_strided_slice %258 {offsets = [0, 8], sizes = [8, 8], strides = [1, 1]} : vector<16x32xf32> to vector<8x8xf32>
    %291 = arith.truncf %290 : vector<8x8xf32> to vector<8x8xbf16>
    %292 = vector.extract_strided_slice %259 {offsets = [0, 8], sizes = [8, 8], strides = [1, 1]} : vector<16x32xf32> to vector<8x8xf32>
    %293 = arith.truncf %292 : vector<8x8xf32> to vector<8x8xbf16>
    %cst_107 = arith.constant dense<0.000000e+00> : vector<8x8xf32>
    %294 = tpu.matmul %289, %291, %cst_107 {dimension_numbers = #tpu.dot_dimension_numbers<[1], [1], [0], [0], [0, 0, 1, 0], [], []>} : vector<8x8xbf16>, vector<8x8xbf16>, vector<8x8xf32> -> vector<8x8xf32>
    %295 = arith.mulf %294, %265 : vector<8x8xf32>
    %296 = arith.addf %295, %267 : vector<8x8xf32>
    %cst_108 = arith.constant dense<0xFF800000> : vector<8xf32>
    %297 = vector.multi_reduction <maximumf>, %296, %cst_108 [1] : vector<8x8xf32> to vector<8xf32>
    %298 = vector.shape_cast %297 : vector<8xf32> to vector<8x1xf32>
    %299 = vector.broadcast %298 : vector<8x1xf32> to vector<8x8xf32>
    %300 = arith.subf %296, %299 : vector<8x8xf32>
    %301 = math.exp %300 : vector<8x8xf32>
    %cst_109 = arith.constant dense<0.000000e+00> : vector<8xf32>
    %302 = vector.multi_reduction <add>, %301, %cst_109 [1] : vector<8x8xf32> to vector<8xf32>
    %303 = vector.shape_cast %302 : vector<8xf32> to vector<8x1xf32>
    %304 = vector.broadcast %303 : vector<8x1xf32> to vector<8x8xf32>
    %305 = arith.divf %301, %304 : vector<8x8xf32>
    %306 = arith.truncf %305 : vector<8x8xf32> to vector<8x8xbf16>
    %cst_110 = arith.constant dense<0.000000e+00> : vector<8x8xf32>
    %307 = tpu.matmul %306, %293, %cst_110 {dimension_numbers = #tpu.dot_dimension_numbers<[1], [0], [0], [1], [0, 0, 1, 1], [], []>} : vector<8x8xbf16>, vector<8x8xbf16>, vector<8x8xf32> -> vector<8x8xf32>
    %308 = vector.extract_strided_slice %254 {offsets = [0, 16], sizes = [8, 8], strides = [1, 1]} : vector<16x32xf32> to vector<8x8xf32>
    %309 = arith.truncf %308 : vector<8x8xf32> to vector<8x8xbf16>
    %310 = vector.extract_strided_slice %258 {offsets = [0, 16], sizes = [8, 8], strides = [1, 1]} : vector<16x32xf32> to vector<8x8xf32>
    %311 = arith.truncf %310 : vector<8x8xf32> to vector<8x8xbf16>
    %312 = vector.extract_strided_slice %259 {offsets = [0, 16], sizes = [8, 8], strides = [1, 1]} : vector<16x32xf32> to vector<8x8xf32>
    %313 = arith.truncf %312 : vector<8x8xf32> to vector<8x8xbf16>
    %cst_111 = arith.constant dense<0.000000e+00> : vector<8x8xf32>
    %314 = tpu.matmul %309, %311, %cst_111 {dimension_numbers = #tpu.dot_dimension_numbers<[1], [1], [0], [0], [0, 0, 1, 0], [], []>} : vector<8x8xbf16>, vector<8x8xbf16>, vector<8x8xf32> -> vector<8x8xf32>
    %315 = arith.mulf %314, %265 : vector<8x8xf32>
    %316 = arith.addf %315, %267 : vector<8x8xf32>
    %cst_112 = arith.constant dense<0xFF800000> : vector<8xf32>
    %317 = vector.multi_reduction <maximumf>, %316, %cst_112 [1] : vector<8x8xf32> to vector<8xf32>
    %318 = vector.shape_cast %317 : vector<8xf32> to vector<8x1xf32>
    %319 = vector.broadcast %318 : vector<8x1xf32> to vector<8x8xf32>
    %320 = arith.subf %316, %319 : vector<8x8xf32>
    %321 = math.exp %320 : vector<8x8xf32>
    %cst_113 = arith.constant dense<0.000000e+00> : vector<8xf32>
    %322 = vector.multi_reduction <add>, %321, %cst_113 [1] : vector<8x8xf32> to vector<8xf32>
    %323 = vector.shape_cast %322 : vector<8xf32> to vector<8x1xf32>
    %324 = vector.broadcast %323 : vector<8x1xf32> to vector<8x8xf32>
    %325 = arith.divf %321, %324 : vector<8x8xf32>
    %326 = arith.truncf %325 : vector<8x8xf32> to vector<8x8xbf16>
    %cst_114 = arith.constant dense<0.000000e+00> : vector<8x8xf32>
    %327 = tpu.matmul %326, %313, %cst_114 {dimension_numbers = #tpu.dot_dimension_numbers<[1], [0], [0], [1], [0, 0, 1, 1], [], []>} : vector<8x8xbf16>, vector<8x8xbf16>, vector<8x8xf32> -> vector<8x8xf32>
    %328 = vector.extract_strided_slice %254 {offsets = [0, 24], sizes = [8, 8], strides = [1, 1]} : vector<16x32xf32> to vector<8x8xf32>
    %329 = arith.truncf %328 : vector<8x8xf32> to vector<8x8xbf16>
    %330 = vector.extract_strided_slice %258 {offsets = [0, 24], sizes = [8, 8], strides = [1, 1]} : vector<16x32xf32> to vector<8x8xf32>
    %331 = arith.truncf %330 : vector<8x8xf32> to vector<8x8xbf16>
    %332 = vector.extract_strided_slice %259 {offsets = [0, 24], sizes = [8, 8], strides = [1, 1]} : vector<16x32xf32> to vector<8x8xf32>
    %333 = arith.truncf %332 : vector<8x8xf32> to vector<8x8xbf16>
    %cst_115 = arith.constant dense<0.000000e+00> : vector<8x8xf32>
    %334 = tpu.matmul %329, %331, %cst_115 {dimension_numbers = #tpu.dot_dimension_numbers<[1], [1], [0], [0], [0, 0, 1, 0], [], []>} : vector<8x8xbf16>, vector<8x8xbf16>, vector<8x8xf32> -> vector<8x8xf32>
    %335 = arith.mulf %334, %265 : vector<8x8xf32>
    %336 = arith.addf %335, %267 : vector<8x8xf32>
    %cst_116 = arith.constant dense<0xFF800000> : vector<8xf32>
    %337 = vector.multi_reduction <maximumf>, %336, %cst_116 [1] : vector<8x8xf32> to vector<8xf32>
    %338 = vector.shape_cast %337 : vector<8xf32> to vector<8x1xf32>
    %339 = vector.broadcast %338 : vector<8x1xf32> to vector<8x8xf32>
    %340 = arith.subf %336, %339 : vector<8x8xf32>
    %341 = math.exp %340 : vector<8x8xf32>
    %cst_117 = arith.constant dense<0.000000e+00> : vector<8xf32>
    %342 = vector.multi_reduction <add>, %341, %cst_117 [1] : vector<8x8xf32> to vector<8xf32>
    %343 = vector.shape_cast %342 : vector<8xf32> to vector<8x1xf32>
    %344 = vector.broadcast %343 : vector<8x1xf32> to vector<8x8xf32>
    %345 = arith.divf %341, %344 : vector<8x8xf32>
    %346 = arith.truncf %345 : vector<8x8xf32> to vector<8x8xbf16>
    %cst_118 = arith.constant dense<0.000000e+00> : vector<8x8xf32>
    %347 = tpu.matmul %346, %333, %cst_118 {dimension_numbers = #tpu.dot_dimension_numbers<[1], [0], [0], [1], [0, 0, 1, 1], [], []>} : vector<8x8xbf16>, vector<8x8xbf16>, vector<8x8xf32> -> vector<8x8xf32>
    %348 = tpu.concatenate %287, %307, %327, %347 in 1 : vector<8x8xf32>, vector<8x8xf32>, vector<8x8xf32>, vector<8x8xf32> -> vector<8x32xf32>
    %349 = vector.extract_strided_slice %233 {offsets = [1, 0, 0], sizes = [1, 8, 8], strides = [1, 1, 1]} : vector<2x8x8xf32> to vector<1x8x8xf32>
    %350 = vector.shape_cast %349 : vector<1x8x8xf32> to vector<8x8xf32>
    %351 = vector.extract_strided_slice %263 {offsets = [1, 0, 0], sizes = [1, 8, 8], strides = [1, 1, 1]} : vector<2x8x8xf32> to vector<1x8x8xf32>
    %352 = vector.shape_cast %351 : vector<1x8x8xf32> to vector<8x8xf32>
    %353 = vector.extract_strided_slice %254 {offsets = [8, 0], sizes = [8, 8], strides = [1, 1]} : vector<16x32xf32> to vector<8x8xf32>
    %354 = arith.truncf %353 : vector<8x8xf32> to vector<8x8xbf16>
    %355 = vector.extract_strided_slice %258 {offsets = [8, 0], sizes = [8, 8], strides = [1, 1]} : vector<16x32xf32> to vector<8x8xf32>
    %356 = arith.truncf %355 : vector<8x8xf32> to vector<8x8xbf16>
    %357 = vector.extract_strided_slice %259 {offsets = [8, 0], sizes = [8, 8], strides = [1, 1]} : vector<16x32xf32> to vector<8x8xf32>
    %358 = arith.truncf %357 : vector<8x8xf32> to vector<8x8xbf16>
    %cst_119 = arith.constant dense<0.000000e+00> : vector<8x8xf32>
    %359 = tpu.matmul %354, %356, %cst_119 {dimension_numbers = #tpu.dot_dimension_numbers<[1], [1], [0], [0], [0, 0, 1, 0], [], []>} : vector<8x8xbf16>, vector<8x8xbf16>, vector<8x8xf32> -> vector<8x8xf32>
    %360 = arith.mulf %359, %350 : vector<8x8xf32>
    %361 = arith.addf %360, %352 : vector<8x8xf32>
    %cst_120 = arith.constant dense<0xFF800000> : vector<8xf32>
    %362 = vector.multi_reduction <maximumf>, %361, %cst_120 [1] : vector<8x8xf32> to vector<8xf32>
    %363 = vector.shape_cast %362 : vector<8xf32> to vector<8x1xf32>
    %364 = vector.broadcast %363 : vector<8x1xf32> to vector<8x8xf32>
    %365 = arith.subf %361, %364 : vector<8x8xf32>
    %366 = math.exp %365 : vector<8x8xf32>
    %cst_121 = arith.constant dense<0.000000e+00> : vector<8xf32>
    %367 = vector.multi_reduction <add>, %366, %cst_121 [1] : vector<8x8xf32> to vector<8xf32>
    %368 = vector.shape_cast %367 : vector<8xf32> to vector<8x1xf32>
    %369 = vector.broadcast %368 : vector<8x1xf32> to vector<8x8xf32>
    %370 = arith.divf %366, %369 : vector<8x8xf32>
    %371 = arith.truncf %370 : vector<8x8xf32> to vector<8x8xbf16>
    %cst_122 = arith.constant dense<0.000000e+00> : vector<8x8xf32>
    %372 = tpu.matmul %371, %358, %cst_122 {dimension_numbers = #tpu.dot_dimension_numbers<[1], [0], [0], [1], [0, 0, 1, 1], [], []>} : vector<8x8xbf16>, vector<8x8xbf16>, vector<8x8xf32> -> vector<8x8xf32>
    %373 = vector.extract_strided_slice %254 {offsets = [8, 8], sizes = [8, 8], strides = [1, 1]} : vector<16x32xf32> to vector<8x8xf32>
    %374 = arith.truncf %373 : vector<8x8xf32> to vector<8x8xbf16>
    %375 = vector.extract_strided_slice %258 {offsets = [8, 8], sizes = [8, 8], strides = [1, 1]} : vector<16x32xf32> to vector<8x8xf32>
    %376 = arith.truncf %375 : vector<8x8xf32> to vector<8x8xbf16>
    %377 = vector.extract_strided_slice %259 {offsets = [8, 8], sizes = [8, 8], strides = [1, 1]} : vector<16x32xf32> to vector<8x8xf32>
    %378 = arith.truncf %377 : vector<8x8xf32> to vector<8x8xbf16>
    %cst_123 = arith.constant dense<0.000000e+00> : vector<8x8xf32>
    %379 = tpu.matmul %374, %376, %cst_123 {dimension_numbers = #tpu.dot_dimension_numbers<[1], [1], [0], [0], [0, 0, 1, 0], [], []>} : vector<8x8xbf16>, vector<8x8xbf16>, vector<8x8xf32> -> vector<8x8xf32>
    %380 = arith.mulf %379, %350 : vector<8x8xf32>
    %381 = arith.addf %380, %352 : vector<8x8xf32>
    %cst_124 = arith.constant dense<0xFF800000> : vector<8xf32>
    %382 = vector.multi_reduction <maximumf>, %381, %cst_124 [1] : vector<8x8xf32> to vector<8xf32>
    %383 = vector.shape_cast %382 : vector<8xf32> to vector<8x1xf32>
    %384 = vector.broadcast %383 : vector<8x1xf32> to vector<8x8xf32>
    %385 = arith.subf %381, %384 : vector<8x8xf32>
    %386 = math.exp %385 : vector<8x8xf32>
    %cst_125 = arith.constant dense<0.000000e+00> : vector<8xf32>
    %387 = vector.multi_reduction <add>, %386, %cst_125 [1] : vector<8x8xf32> to vector<8xf32>
    %388 = vector.shape_cast %387 : vector<8xf32> to vector<8x1xf32>
    %389 = vector.broadcast %388 : vector<8x1xf32> to vector<8x8xf32>
    %390 = arith.divf %386, %389 : vector<8x8xf32>
    %391 = arith.truncf %390 : vector<8x8xf32> to vector<8x8xbf16>
    %cst_126 = arith.constant dense<0.000000e+00> : vector<8x8xf32>
    %392 = tpu.matmul %391, %378, %cst_126 {dimension_numbers = #tpu.dot_dimension_numbers<[1], [0], [0], [1], [0, 0, 1, 1], [], []>} : vector<8x8xbf16>, vector<8x8xbf16>, vector<8x8xf32> -> vector<8x8xf32>
    %393 = vector.extract_strided_slice %254 {offsets = [8, 16], sizes = [8, 8], strides = [1, 1]} : vector<16x32xf32> to vector<8x8xf32>
    %394 = arith.truncf %393 : vector<8x8xf32> to vector<8x8xbf16>
    %395 = vector.extract_strided_slice %258 {offsets = [8, 16], sizes = [8, 8], strides = [1, 1]} : vector<16x32xf32> to vector<8x8xf32>
    %396 = arith.truncf %395 : vector<8x8xf32> to vector<8x8xbf16>
    %397 = vector.extract_strided_slice %259 {offsets = [8, 16], sizes = [8, 8], strides = [1, 1]} : vector<16x32xf32> to vector<8x8xf32>
    %398 = arith.truncf %397 : vector<8x8xf32> to vector<8x8xbf16>
    %cst_127 = arith.constant dense<0.000000e+00> : vector<8x8xf32>
    %399 = tpu.matmul %394, %396, %cst_127 {dimension_numbers = #tpu.dot_dimension_numbers<[1], [1], [0], [0], [0, 0, 1, 0], [], []>} : vector<8x8xbf16>, vector<8x8xbf16>, vector<8x8xf32> -> vector<8x8xf32>
    %400 = arith.mulf %399, %350 : vector<8x8xf32>
    %401 = arith.addf %400, %352 : vector<8x8xf32>
    %cst_128 = arith.constant dense<0xFF800000> : vector<8xf32>
    %402 = vector.multi_reduction <maximumf>, %401, %cst_128 [1] : vector<8x8xf32> to vector<8xf32>
    %403 = vector.shape_cast %402 : vector<8xf32> to vector<8x1xf32>
    %404 = vector.broadcast %403 : vector<8x1xf32> to vector<8x8xf32>
    %405 = arith.subf %401, %404 : vector<8x8xf32>
    %406 = math.exp %405 : vector<8x8xf32>
    %cst_129 = arith.constant dense<0.000000e+00> : vector<8xf32>
    %407 = vector.multi_reduction <add>, %406, %cst_129 [1] : vector<8x8xf32> to vector<8xf32>
    %408 = vector.shape_cast %407 : vector<8xf32> to vector<8x1xf32>
    %409 = vector.broadcast %408 : vector<8x1xf32> to vector<8x8xf32>
    %410 = arith.divf %406, %409 : vector<8x8xf32>
    %411 = arith.truncf %410 : vector<8x8xf32> to vector<8x8xbf16>
    %cst_130 = arith.constant dense<0.000000e+00> : vector<8x8xf32>
    %412 = tpu.matmul %411, %398, %cst_130 {dimension_numbers = #tpu.dot_dimension_numbers<[1], [0], [0], [1], [0, 0, 1, 1], [], []>} : vector<8x8xbf16>, vector<8x8xbf16>, vector<8x8xf32> -> vector<8x8xf32>
    %413 = vector.extract_strided_slice %254 {offsets = [8, 24], sizes = [8, 8], strides = [1, 1]} : vector<16x32xf32> to vector<8x8xf32>
    %414 = arith.truncf %413 : vector<8x8xf32> to vector<8x8xbf16>
    %415 = vector.extract_strided_slice %258 {offsets = [8, 24], sizes = [8, 8], strides = [1, 1]} : vector<16x32xf32> to vector<8x8xf32>
    %416 = arith.truncf %415 : vector<8x8xf32> to vector<8x8xbf16>
    %417 = vector.extract_strided_slice %259 {offsets = [8, 24], sizes = [8, 8], strides = [1, 1]} : vector<16x32xf32> to vector<8x8xf32>
    %418 = arith.truncf %417 : vector<8x8xf32> to vector<8x8xbf16>
    %cst_131 = arith.constant dense<0.000000e+00> : vector<8x8xf32>
    %419 = tpu.matmul %414, %416, %cst_131 {dimension_numbers = #tpu.dot_dimension_numbers<[1], [1], [0], [0], [0, 0, 1, 0], [], []>} : vector<8x8xbf16>, vector<8x8xbf16>, vector<8x8xf32> -> vector<8x8xf32>
    %420 = arith.mulf %419, %350 : vector<8x8xf32>
    %421 = arith.addf %420, %352 : vector<8x8xf32>
    %cst_132 = arith.constant dense<0xFF800000> : vector<8xf32>
    %422 = vector.multi_reduction <maximumf>, %421, %cst_132 [1] : vector<8x8xf32> to vector<8xf32>
    %423 = vector.shape_cast %422 : vector<8xf32> to vector<8x1xf32>
    %424 = vector.broadcast %423 : vector<8x1xf32> to vector<8x8xf32>
    %425 = arith.subf %421, %424 : vector<8x8xf32>
    %426 = math.exp %425 : vector<8x8xf32>
    %cst_133 = arith.constant dense<0.000000e+00> : vector<8xf32>
    %427 = vector.multi_reduction <add>, %426, %cst_133 [1] : vector<8x8xf32> to vector<8xf32>
    %428 = vector.shape_cast %427 : vector<8xf32> to vector<8x1xf32>
    %429 = vector.broadcast %428 : vector<8x1xf32> to vector<8x8xf32>
    %430 = arith.divf %426, %429 : vector<8x8xf32>
    %431 = arith.truncf %430 : vector<8x8xf32> to vector<8x8xbf16>
    %cst_134 = arith.constant dense<0.000000e+00> : vector<8x8xf32>
    %432 = tpu.matmul %431, %418, %cst_134 {dimension_numbers = #tpu.dot_dimension_numbers<[1], [0], [0], [1], [0, 0, 1, 1], [], []>} : vector<8x8xbf16>, vector<8x8xbf16>, vector<8x8xf32> -> vector<8x8xf32>
    %433 = tpu.concatenate %372, %392, %412, %432 in 1 : vector<8x8xf32>, vector<8x8xf32>, vector<8x8xf32>, vector<8x8xf32> -> vector<8x32xf32>
    %434 = tpu.concatenate %348, %433 in 0 : vector<8x32xf32>, vector<8x32xf32> -> vector<16x32xf32>
    %435 = arith.truncf %434 : vector<16x32xf32> to vector<16x32xbf16>
    %cst_135 = arith.constant dense<0.000000e+00> : vector<16x32xf32>
    %436 = tpu.matmul %435, %243, %cst_135 {dimension_numbers = #tpu.dot_dimension_numbers<[1], [0], [0], [1], [0, 0, 1, 1], [], []>} : vector<16x32xbf16>, vector<32x32xbf16>, vector<16x32xf32> -> vector<16x32xf32>
    %437 = vector.broadcast %245 : vector<1x32xf32> to vector<16x32xf32>
    %438 = arith.addf %436, %437 : vector<16x32xf32>
    %439 = arith.addf %438, %232 : vector<16x32xf32>
    %cst_136 = arith.constant dense<0.000000e+00> : vector<16xf32>
    %440 = vector.multi_reduction <add>, %439, %cst_136 [1] : vector<16x32xf32> to vector<16xf32>
    %441 = vector.shape_cast %440 : vector<16xf32> to vector<16x1xf32>
    %cst_137 = arith.constant 3.200000e+01 : f32
    %442 = vector.broadcast %cst_137 : f32 to vector<16x1xf32>
    %443 = arith.divf %441, %442 : vector<16x1xf32>
    %444 = vector.broadcast %443 : vector<16x1xf32> to vector<16x32xf32>
    %445 = arith.subf %439, %444 : vector<16x32xf32>
    %446 = arith.mulf %445, %445 : vector<16x32xf32>
    %cst_138 = arith.constant dense<0.000000e+00> : vector<16xf32>
    %447 = vector.multi_reduction <add>, %446, %cst_138 [1] : vector<16x32xf32> to vector<16xf32>
    %448 = vector.shape_cast %447 : vector<16xf32> to vector<16x1xf32>
    %cst_139 = arith.constant 3.200000e+01 : f32
    %449 = vector.broadcast %cst_139 : f32 to vector<16x1xf32>
    %450 = arith.divf %448, %449 : vector<16x1xf32>
    %451 = vector.broadcast %443 : vector<16x1xf32> to vector<16x32xf32>
    %452 = arith.subf %439, %451 : vector<16x32xf32>
    %cst_140 = arith.constant 9.99999996E-13 : f32
    %453 = vector.broadcast %cst_140 : f32 to vector<16x1xf32>
    %454 = arith.addf %450, %453 : vector<16x1xf32>
    %455 = math.rsqrt %454 : vector<16x1xf32>
    %456 = vector.broadcast %455 : vector<16x1xf32> to vector<16x32xf32>
    %457 = arith.mulf %452, %456 : vector<16x32xf32>
    %458 = vector.broadcast %247 : vector<1x32xf32> to vector<16x32xf32>
    %459 = arith.mulf %457, %458 : vector<16x32xf32>
    %460 = vector.broadcast %249 : vector<1x32xf32> to vector<16x32xf32>
    %461 = arith.addf %459, %460 : vector<16x32xf32>
    %c0_141 = arith.constant 0 : index
    %c0_142 = arith.constant 0 : index
    %c0_143 = arith.constant 0 : index
    %462 = vector.load %arg21[%c0_141, %c0_142, %c0_143] : memref<1x32x64xbf16, #tpu.memory_space<vmem>>, vector<1x32x64xbf16>
    %463 = vector.shape_cast %462 : vector<1x32x64xbf16> to vector<32x64xbf16>
    %c0_144 = arith.constant 0 : index
    %c0_145 = arith.constant 0 : index
    %c0_146 = arith.constant 0 : index
    %464 = vector.load %arg22[%c0_144, %c0_145, %c0_146] : memref<1x1x64xf32, #tpu.memory_space<vmem>>, vector<1x1x64xf32>
    %465 = vector.shape_cast %464 : vector<1x1x64xf32> to vector<1x64xf32>
    %c0_147 = arith.constant 0 : index
    %c0_148 = arith.constant 0 : index
    %c0_149 = arith.constant 0 : index
    %466 = vector.load %arg23[%c0_147, %c0_148, %c0_149] : memref<1x64x32xbf16, #tpu.memory_space<vmem>>, vector<1x64x32xbf16>
    %467 = vector.shape_cast %466 : vector<1x64x32xbf16> to vector<64x32xbf16>
    %c0_150 = arith.constant 0 : index
    %c0_151 = arith.constant 0 : index
    %c0_152 = arith.constant 0 : index
    %468 = vector.load %arg24[%c0_150, %c0_151, %c0_152] : memref<1x1x32xf32, #tpu.memory_space<vmem>>, vector<1x1x32xf32>
    %469 = vector.shape_cast %468 : vector<1x1x32xf32> to vector<1x32xf32>
    %c0_153 = arith.constant 0 : index
    %c0_154 = arith.constant 0 : index
    %c0_155 = arith.constant 0 : index
    %470 = vector.load %arg25[%c0_153, %c0_154, %c0_155] : memref<1x1x32xf32, #tpu.memory_space<vmem>>, vector<1x1x32xf32>
    %471 = vector.shape_cast %470 : vector<1x1x32xf32> to vector<1x32xf32>
    %c0_156 = arith.constant 0 : index
    %c0_157 = arith.constant 0 : index
    %c0_158 = arith.constant 0 : index
    %472 = vector.load %arg26[%c0_156, %c0_157, %c0_158] : memref<1x1x32xf32, #tpu.memory_space<vmem>>, vector<1x1x32xf32>
    %473 = vector.shape_cast %472 : vector<1x1x32xf32> to vector<1x32xf32>
    %474 = arith.truncf %461 : vector<16x32xf32> to vector<16x32xbf16>
    %cst_159 = arith.constant dense<0.000000e+00> : vector<16x64xf32>
    %475 = tpu.matmul %474, %463, %cst_159 {dimension_numbers = #tpu.dot_dimension_numbers<[1], [0], [0], [1], [0, 0, 1, 1], [], []>} : vector<16x32xbf16>, vector<32x64xbf16>, vector<16x64xf32> -> vector<16x64xf32>
    %476 = vector.broadcast %465 : vector<1x64xf32> to vector<16x64xf32>
    %477 = arith.addf %475, %476 : vector<16x64xf32>
    %cst_160 = arith.constant 0.000000e+00 : f32
    %478 = vector.broadcast %cst_160 : f32 to vector<16x64xf32>
    %479 = arith.maximumf %477, %478 : vector<16x64xf32>
    %480 = arith.truncf %479 : vector<16x64xf32> to vector<16x64xbf16>
    %cst_161 = arith.constant dense<0.000000e+00> : vector<16x32xf32>
    %481 = tpu.matmul %480, %467, %cst_161 {dimension_numbers = #tpu.dot_dimension_numbers<[1], [0], [0], [1], [0, 0, 1, 1], [], []>} : vector<16x64xbf16>, vector<64x32xbf16>, vector<16x32xf32> -> vector<16x32xf32>
    %482 = vector.broadcast %469 : vector<1x32xf32> to vector<16x32xf32>
    %483 = arith.addf %481, %482 : vector<16x32xf32>
    %484 = arith.addf %483, %461 : vector<16x32xf32>
    %cst_162 = arith.constant dense<0.000000e+00> : vector<16xf32>
    %485 = vector.multi_reduction <add>, %484, %cst_162 [1] : vector<16x32xf32> to vector<16xf32>
    %486 = vector.shape_cast %485 : vector<16xf32> to vector<16x1xf32>
    %cst_163 = arith.constant 3.200000e+01 : f32
    %487 = vector.broadcast %cst_163 : f32 to vector<16x1xf32>
    %488 = arith.divf %486, %487 : vector<16x1xf32>
    %489 = vector.broadcast %488 : vector<16x1xf32> to vector<16x32xf32>
    %490 = arith.subf %484, %489 : vector<16x32xf32>
    %491 = arith.mulf %490, %490 : vector<16x32xf32>
    %cst_164 = arith.constant dense<0.000000e+00> : vector<16xf32>
    %492 = vector.multi_reduction <add>, %491, %cst_164 [1] : vector<16x32xf32> to vector<16xf32>
    %493 = vector.shape_cast %492 : vector<16xf32> to vector<16x1xf32>
    %cst_165 = arith.constant 3.200000e+01 : f32
    %494 = vector.broadcast %cst_165 : f32 to vector<16x1xf32>
    %495 = arith.divf %493, %494 : vector<16x1xf32>
    %496 = vector.broadcast %488 : vector<16x1xf32> to vector<16x32xf32>
    %497 = arith.subf %484, %496 : vector<16x32xf32>
    %cst_166 = arith.constant 9.99999996E-13 : f32
    %498 = vector.broadcast %cst_166 : f32 to vector<16x1xf32>
    %499 = arith.addf %495, %498 : vector<16x1xf32>
    %500 = math.rsqrt %499 : vector<16x1xf32>
    %501 = vector.broadcast %500 : vector<16x1xf32> to vector<16x32xf32>
    %502 = arith.mulf %497, %501 : vector<16x32xf32>
    %503 = vector.broadcast %471 : vector<1x32xf32> to vector<16x32xf32>
    %504 = arith.mulf %502, %503 : vector<16x32xf32>
    %505 = vector.broadcast %473 : vector<1x32xf32> to vector<16x32xf32>
    %506 = arith.addf %504, %505 : vector<16x32xf32>
    %c0_167 = arith.constant 0 : index
    %c0_168 = arith.constant 0 : index
    %507 = vector.load %arg30[%c0_167, %c0_168] : memref<16x32xf32, #tpu.memory_space<vmem>>, vector<16x32xf32>
    tpu.vector_store %arg30[%c0_167, %c0_168], %506 {strides = array<i32>} : memref<16x32xf32, #tpu.memory_space<vmem>>, vector<16x32xf32>,
    %c1_i32 = arith.constant 1 : i32
    %508 = arith.cmpi eq, %arg0, %c1_i32 : i32
    %509 = arith.extui %508 : i1 to i32
    %c0_i32_169 = arith.constant 0 : i32
    %510 = arith.cmpi ne, %509, %c0_i32_169 : i32
    scf.if %510 {
      %c0_170 = arith.constant 0 : index
      %c0_171 = arith.constant 0 : index
      %511 = vector.load %arg30[%c0_170, %c0_171] : memref<16x32xf32, #tpu.memory_space<vmem>>, vector<16x32xf32>
      %512 = arith.truncf %511 : vector<16x32xf32> to vector<16x32xbf16>
      %c0_172 = arith.constant 0 : index
      %c0_173 = arith.constant 0 : index
      %513 = vector.load %arg27[%c0_172, %c0_173] : memref<32x128xbf16, #tpu.memory_space<vmem>>, vector<32x128xbf16>
      %cst_174 = arith.constant dense<0.000000e+00> : vector<16x128xf32>
      %514 = tpu.matmul %512, %513, %cst_174 {dimension_numbers = #tpu.dot_dimension_numbers<[1], [0], [0], [1], [0, 0, 1, 1], [], []>} : vector<16x32xbf16>, vector<32x128xbf16>, vector<16x128xf32> -> vector<16x128xf32>
      %c0_175 = arith.constant 0 : index
      %c0_176 = arith.constant 0 : index
      %515 = vector.load %arg28[%c0_175, %c0_176] : memref<1x128xf32, #tpu.memory_space<vmem>>, vector<1x128xf32>
      %516 = vector.broadcast %515 : vector<1x128xf32> to vector<16x128xf32>
      %517 = arith.addf %514, %516 : vector<16x128xf32>
      %c0_177 = arith.constant 0 : index
      %c0_178 = arith.constant 0 : index
      %518 = vector.load %arg29[%c0_177, %c0_178] : memref<16x128xf32, #tpu.memory_space<vmem>>, vector<16x128xf32>
      tpu.vector_store %arg29[%c0_177, %c0_178], %517 {strides = array<i32>} : memref<16x128xf32, #tpu.memory_space<vmem>>, vector<16x128xf32>,
    } else {
    }
    return
  }
  func.func @transform_0(%arg0: i32) -> (i32, i32) {
    %c0_i32 = arith.constant 0 : i32
    %c0_i32_0 = arith.constant 0 : i32
    %c0_i32_1 = arith.constant 0 : i32
    return %c0_i32, %c0_i32_0 : i32, i32
  }
  func.func @transform_1(%arg0: i32) -> (i32, i32) {
    %c0_i32 = arith.constant 0 : i32
    %c0_i32_0 = arith.constant 0 : i32
    %c0_i32_1 = arith.constant 0 : i32
    return %c0_i32, %c0_i32_0 : i32, i32
  }
  func.func @transform_2(%arg0: i32) -> (i32, i32, i32) {
    %c0_i32 = arith.constant 0 : i32
    %c0_i32_0 = arith.constant 0 : i32
    %c0_i32_1 = arith.constant 0 : i32
    %c0_i32_2 = arith.constant 0 : i32
    return %c0_i32, %c0_i32_0, %c0_i32_1 : i32, i32, i32
  }
  func.func @transform_3(%arg0: i32) -> (i32, i32, i32) {
    %c0_i32 = arith.constant 0 : i32
    %c0_i32_0 = arith.constant 0 : i32
    %c0_i32_1 = arith.constant 0 : i32
    %c0_i32_2 = arith.constant 0 : i32
    return %c0_i32, %c0_i32_0, %c0_i32_1 : i32, i32, i32
  }
  func.func @transform_4(%arg0: i32) -> (i32, i32, i32) {
    %c0_i32 = arith.constant 0 : i32
    %c0_i32_0 = arith.constant 0 : i32
    %c0_i32_1 = arith.constant 0 : i32
    return %arg0, %c0_i32, %c0_i32_0 : i32, i32, i32
  }
  func.func @transform_5(%arg0: i32) -> (i32, i32, i32) {
    %c0_i32 = arith.constant 0 : i32
    %c0_i32_0 = arith.constant 0 : i32
    %c0_i32_1 = arith.constant 0 : i32
    return %arg0, %c0_i32, %c0_i32_0 : i32, i32, i32
  }
  func.func @transform_6(%arg0: i32) -> (i32, i32, i32) {
    %c0_i32 = arith.constant 0 : i32
    %c0_i32_0 = arith.constant 0 : i32
    %c0_i32_1 = arith.constant 0 : i32
    return %arg0, %c0_i32, %c0_i32_0 : i32, i32, i32
  }
  func.func @transform_7(%arg0: i32) -> (i32, i32, i32) {
    %c0_i32 = arith.constant 0 : i32
    %c0_i32_0 = arith.constant 0 : i32
    %c0_i32_1 = arith.constant 0 : i32
    return %arg0, %c0_i32, %c0_i32_0 : i32, i32, i32
  }
  func.func @transform_8(%arg0: i32) -> (i32, i32, i32) {
    %c0_i32 = arith.constant 0 : i32
    %c0_i32_0 = arith.constant 0 : i32
    %c0_i32_1 = arith.constant 0 : i32
    return %arg0, %c0_i32, %c0_i32_0 : i32, i32, i32
  }
  func.func @transform_9(%arg0: i32) -> (i32, i32, i32) {
    %c0_i32 = arith.constant 0 : i32
    %c0_i32_0 = arith.constant 0 : i32
    %c0_i32_1 = arith.constant 0 : i32
    return %arg0, %c0_i32, %c0_i32_0 : i32, i32, i32
  }
  func.func @transform_10(%arg0: i32) -> (i32, i32, i32) {
    %c0_i32 = arith.constant 0 : i32
    %c0_i32_0 = arith.constant 0 : i32
    %c0_i32_1 = arith.constant 0 : i32
    return %arg0, %c0_i32, %c0_i32_0 : i32, i32, i32
  }
  func.func @transform_11(%arg0: i32) -> (i32, i32, i32) {
    %c0_i32 = arith.constant 0 : i32
    %c0_i32_0 = arith.constant 0 : i32
    %c0_i32_1 = arith.constant 0 : i32
    return %arg0, %c0_i32, %c0_i32_0 : i32, i32, i32
  }
  func.func @transform_12(%arg0: i32) -> (i32, i32, i32) {
    %c0_i32 = arith.constant 0 : i32
    %c0_i32_0 = arith.constant 0 : i32
    %c0_i32_1 = arith.constant 0 : i32
    return %arg0, %c0_i32, %c0_i32_0 : i32, i32, i32
  }
  func.func @transform_13(%arg0: i32) -> (i32, i32, i32) {
    %c0_i32 = arith.constant 0 : i32
    %c0_i32_0 = arith.constant 0 : i32
    %c0_i32_1 = arith.constant 0 : i32
    return %arg0, %c0_i32, %c0_i32_0 : i32, i32, i32
  }
  func.func @transform_14(%arg0: i32) -> (i32, i32, i32) {
    %c0_i32 = arith.constant 0 : i32
    %c0_i32_0 = arith.constant 0 : i32
    %c0_i32_1 = arith.constant 0 : i32
    return %arg0, %c0_i32, %c0_i32_0 : i32, i32, i32
  }
  func.func @transform_15(%arg0: i32) -> (i32, i32, i32) {
    %c0_i32 = arith.constant 0 : i32
    %c0_i32_0 = arith.constant 0 : i32
    %c0_i32_1 = arith.constant 0 : i32
    return %arg0, %c0_i32, %c0_i32_0 : i32, i32, i32
  }
  func.func @transform_16(%arg0: i32) -> (i32, i32, i32) {
    %c0_i32 = arith.constant 0 : i32
    %c0_i32_0 = arith.constant 0 : i32
    %c0_i32_1 = arith.constant 0 : i32
    return %arg0, %c0_i32, %c0_i32_0 : i32, i32, i32
  }
  func.func @transform_17(%arg0: i32) -> (i32, i32, i32) {
    %c0_i32 = arith.constant 0 : i32
    %c0_i32_0 = arith.constant 0 : i32
    %c0_i32_1 = arith.constant 0 : i32
    return %arg0, %c0_i32, %c0_i32_0 : i32, i32, i32
  }
  func.func @transform_18(%arg0: i32) -> (i32, i32, i32) {
    %c0_i32 = arith.constant 0 : i32
    %c0_i32_0 = arith.constant 0 : i32
    %c0_i32_1 = arith.constant 0 : i32
    return %arg0, %c0_i32, %c0_i32_0 : i32, i32, i32
  }
  func.func @transform_19(%arg0: i32) -> (i32, i32, i32) {
    %c0_i32 = arith.constant 0 : i32
    %c0_i32_0 = arith.constant 0 : i32
    %c0_i32_1 = arith.constant 0 : i32
    return %arg0, %c0_i32, %c0_i32_0 : i32, i32, i32
  }
  func.func @transform_20(%arg0: i32) -> (i32, i32, i32) {
    %c0_i32 = arith.constant 0 : i32
    %c0_i32_0 = arith.constant 0 : i32
    %c0_i32_1 = arith.constant 0 : i32
    return %arg0, %c0_i32, %c0_i32_0 : i32, i32, i32
  }
  func.func @transform_21(%arg0: i32) -> (i32, i32, i32) {
    %c0_i32 = arith.constant 0 : i32
    %c0_i32_0 = arith.constant 0 : i32
    %c0_i32_1 = arith.constant 0 : i32
    return %arg0, %c0_i32, %c0_i32_0 : i32, i32, i32
  }
  func.func @transform_22(%arg0: i32) -> (i32, i32, i32) {
    %c0_i32 = arith.constant 0 : i32
    %c0_i32_0 = arith.constant 0 : i32
    %c0_i32_1 = arith.constant 0 : i32
    return %arg0, %c0_i32, %c0_i32_0 : i32, i32, i32
  }
  func.func @transform_23(%arg0: i32) -> (i32, i32, i32) {
    %c0_i32 = arith.constant 0 : i32
    %c0_i32_0 = arith.constant 0 : i32
    %c0_i32_1 = arith.constant 0 : i32
    return %arg0, %c0_i32, %c0_i32_0 : i32, i32, i32
  }
  func.func @transform_24(%arg0: i32) -> (i32, i32, i32) {
    %c0_i32 = arith.constant 0 : i32
    %c0_i32_0 = arith.constant 0 : i32
    %c0_i32_1 = arith.constant 0 : i32
    return %arg0, %c0_i32, %c0_i32_0 : i32, i32, i32
  }
  func.func @transform_25(%arg0: i32) -> (i32, i32, i32) {
    %c0_i32 = arith.constant 0 : i32
    %c0_i32_0 = arith.constant 0 : i32
    %c0_i32_1 = arith.constant 0 : i32
    return %arg0, %c0_i32, %c0_i32_0 : i32, i32, i32
  }
  func.func @transform_26(%arg0: i32) -> (i32, i32) {
    %c0_i32 = arith.constant 0 : i32
    %c0_i32_0 = arith.constant 0 : i32
    %c0_i32_1 = arith.constant 0 : i32
    return %c0_i32, %c0_i32_0 : i32, i32
  }
  func.func @transform_27(%arg0: i32) -> (i32, i32) {
    %c0_i32 = arith.constant 0 : i32
    %c0_i32_0 = arith.constant 0 : i32
    %c0_i32_1 = arith.constant 0 : i32
    return %c0_i32, %c0_i32_0 : i32, i32
  }
  func.func @transform_28(%arg0: i32) -> (i32, i32) {
    %c0_i32 = arith.constant 0 : i32
    %c0_i32_0 = arith.constant 0 : i32
    %c0_i32_1 = arith.constant 0 : i32
    return %c0_i32, %c0_i32_0 : i32, i32
  }
}

</mosaic_0001>

<llo_original>
// kernel: transformer_forward.2
$region0: #{transformer_forward.2}
  #allocation0 [shape = 'u32[]', space=smem, size = 0x4, offset = 0x4, fixed_abs, tag = 'smem constant byte address 0x4 - core index']
  #allocation1 [shape = 'u32[144,128]{1,0:T(1,128)}', space=vmem, size = 0x12000, scoped, tag = 'internal scratch']
  #allocation2 [shape = 'f32[16,32]{1,0:T(8,128)}', space=vmem, size = 0x2000, scoped, tag = 'scratch operand']
  %s0 = inlined_call_operand.vmem [shape: f32[16,32], index: 0, kind: input, shape index: {}]
  %s1 = inlined_call_operand.vmem [shape: f32[2,8,8], index: 1, kind: input, shape index: {}]
  %s2 = inlined_call_operand.vmem [shape: bf16[2,32,32], index: 2, kind: input, shape index: {}]
  %s3 = inlined_call_operand.vmem [shape: f32[2,1,32], index: 3, kind: input, shape index: {}]
  %s4 = inlined_call_operand.vmem [shape: bf16[2,32,64], index: 4, kind: input, shape index: {}]
  %s5 = inlined_call_operand.vmem [shape: f32[2,1,64], index: 5, kind: input, shape index: {}]
  %s6 = inlined_call_operand.vmem [shape: bf16[2,32,32], index: 6, kind: input, shape index: {}]
  %s7 = inlined_call_operand.vmem [shape: f32[2,1,32], index: 7, kind: input, shape index: {}]
  %s8 = inlined_call_operand.vmem [shape: f32[2,1,32], index: 8, kind: input, shape index: {}]
  %s9 = inlined_call_operand.vmem [shape: f32[2,1,32], index: 9, kind: input, shape index: {}]
  %s10 = inlined_call_operand.vmem [shape: bf16[2,32,64], index: 10, kind: input, shape index: {}]
  %s11 = inlined_call_operand.vmem [shape: f32[2,1,64], index: 11, kind: input, shape index: {}]
  %s12 = inlined_call_operand.vmem [shape: bf16[2,64,32], index: 12, kind: input, shape index: {}]
  %s13 = inlined_call_operand.vmem [shape: f32[2,1,32], index: 13, kind: input, shape index: {}]
  %s14 = inlined_call_operand.vmem [shape: f32[2,1,32], index: 14, kind: input, shape index: {}]
  %s15 = inlined_call_operand.vmem [shape: f32[2,1,32], index: 15, kind: input, shape index: {}]
  %s16 = inlined_call_operand.vmem [shape: f32[16,32], index: 16, kind: output, shape index: {}]
  %s17 = sld [smem:[#allocation0]]
  $region105: #{transformer_forward.2} parent=0
    _
  %s19 = ssub.s32 1, %s17
  %s20 = scalar_select 0, %s19, %s17
  loop: start=0, step=1, limit=4
  $region2: #{transformer_forward.2} parent=0 // loop_pre_header
    _
  $region3: #{transformer_forward.2} parent=0 // loop_header
    %s22 = sphi 0, %s26
    %p23 = scmp.ge.s32.totalorder %s22, 4
    %s30 = sphi 0, %s30
    %s32 = sphi 0, %s30
    %s33 = sphi 0, %s32
    %s47 = sphi 0, %s33
    %s51 = sphi 0, %s51
    %s53 = sphi 0, %s51
    %s54 = sphi 0, %s53
    %s68 = sphi 0, %s54
    %s74 = sphi 0, %s76
    %s77 = sphi 0, %s74
    %s78 = sphi 0, %s77
    %s94 = sphi 0, %s78
    %s100 = sphi 0, %s102
    %s103 = sphi 0, %s100
    %s104 = sphi 0, %s103
    %s120 = sphi 0, %s104
    %s126 = sphi 0, %s128
    %s129 = sphi 0, %s126
    %s130 = sphi 0, %s129
    %s146 = sphi 0, %s130
    %s152 = sphi 0, %s154
    %s155 = sphi 0, %s152
    %s156 = sphi 0, %s155
    %s172 = sphi 0, %s156
    %s178 = sphi 0, %s180
    %s181 = sphi 0, %s178
    %s182 = sphi 0, %s181
    %s198 = sphi 0, %s182
    %s204 = sphi 0, %s206
    %s207 = sphi 0, %s204
    %s208 = sphi 0, %s207
    %s224 = sphi 0, %s208
    %s230 = sphi 0, %s232
    %s233 = sphi 0, %s230
    %s234 = sphi 0, %s233
    %s250 = sphi 0, %s234
    %s256 = sphi 0, %s258
    %s259 = sphi 0, %s256
    %s260 = sphi 0, %s259
    %s276 = sphi 0, %s260
    %s282 = sphi 0, %s284
    %s285 = sphi 0, %s282
    %s286 = sphi 0, %s285
    %s302 = sphi 0, %s286
    %s308 = sphi 0, %s310
    %s311 = sphi 0, %s308
    %s312 = sphi 0, %s311
    %s328 = sphi 0, %s312
    %s334 = sphi 0, %s336
    %s337 = sphi 0, %s334
    %s338 = sphi 0, %s337
    %s354 = sphi 0, %s338
    %s360 = sphi 0, %s362
    %s363 = sphi 0, %s360
    %s364 = sphi 0, %s363
    %s380 = sphi 0, %s364
    %s386 = sphi 0, %s388
    %s389 = sphi 0, %s386
    %s390 = sphi 0, %s389
    %s406 = sphi 0, %s390
    %s412 = sphi 0, %s414
    %s415 = sphi 0, %s412
    %s416 = sphi 0, %s415
    %s432 = sphi 0, %s416
    %s436 = sphi 0, %s436
    %s438 = sphi 0, %s436
    %s439 = sphi 0, %s438
    %s453 = sphi 0, %s439
  $region4: #{transformer_forward.2} parent=0 // loop_header_branch
    %25 = sbr.rel (%p23) target = $region8
  $region5: #{transformer_forward.2} parent=0 // loop_body
    %s27 = ssub.s32 %s22, 1
    %s28 = ssub.s32 %s22, 2
    %s29 = sadd.s32 %s22, 1
    %s31 = sadd.s32 %s30, 1
    %p34 = scmp.eq.s32.totalorder %s22, 1
    %p35 = scmp.ne.s32.totalorder %s30, %s32
    %p36 = scmp.eq.s32.totalorder %s22, 0
    %p37 = por %p35, %p36
    %p38 = scmp.ne.s32.totalorder %s30, %s32
    %p39 = scmp.eq.s32.totalorder %s27, 1
    %p40 = por %p38, %p39
    %p41 = scmp.ne.s32.totalorder %s32, %s33
    %p42 = scmp.eq.s32.totalorder %s27, 0
    %p43 = por %p41, %p42
    %p44 = scmp.ne.s32.totalorder %s32, %s33
    %p45 = scmp.eq.s32.totalorder %s28, 1
    %p46 = por %p44, %p45
    %p48 = scmp.ne.s32.totalorder %s33, %s47
    %p49 = scmp.eq.s32.totalorder %s28, 0
    %p50 = por %p48, %p49
    %s52 = sadd.s32 %s51, 1
    %p55 = scmp.eq.s32.totalorder %s22, 1
    %p56 = scmp.ne.s32.totalorder %s51, %s53
    %p57 = scmp.eq.s32.totalorder %s22, 0
    %p58 = por %p56, %p57
    %p59 = scmp.ne.s32.totalorder %s51, %s53
    %p60 = scmp.eq.s32.totalorder %s27, 1
    %p61 = por %p59, %p60
    %p62 = scmp.ne.s32.totalorder %s53, %s54
    %p63 = scmp.eq.s32.totalorder %s27, 0
    %p64 = por %p62, %p63
    %p65 = scmp.ne.s32.totalorder %s53, %s54
    %p66 = scmp.eq.s32.totalorder %s28, 1
    %p67 = por %p65, %p66
    %p69 = scmp.ne.s32.totalorder %s54, %s68
    %p70 = scmp.eq.s32.totalorder %s28, 0
    %p71 = por %p69, %p70
    %s72 = ssub.s32 %s22, %s29
    %p73 = scmp.eq.s32.totalorder %s72, 0
    %s75 = sadd.s32 %s74, 1
    %s76 = scalar_select %p73, %s74, %s75
    %p79 = pneg %p73
    %p80 = scmp.eq.s32.totalorder %s22, 1
    %p81 = por %p79, %p80
    %p82 = scmp.ne.s32.totalorder %s74, %s77
    %p83 = scmp.eq.s32.totalorder %s22, 0
    %p84 = por %p82, %p83
    %p85 = scmp.ne.s32.totalorder %s74, %s77
    %p86 = scmp.eq.s32.totalorder %s27, 1
    %p87 = por %p85, %p86
    %p88 = scmp.ne.s32.totalorder %s77, %s78
    %p89 = scmp.eq.s32.totalorder %s27, 0
    %p90 = por %p88, %p89
    %p91 = scmp.ne.s32.totalorder %s77, %s78
    %p92 = scmp.eq.s32.totalorder %s28, 1
    %p93 = por %p91, %p92
    %p95 = scmp.ne.s32.totalorder %s78, %s94
    %p96 = scmp.eq.s32.totalorder %s28, 0
    %p97 = por %p95, %p96
    %s98 = ssub.s32 %s22, %s29
    %p99 = scmp.eq.s32.totalorder %s98, 0
    %s101 = sadd.s32 %s100, 1
    %s102 = scalar_select %p99, %s100, %s101
    %p105 = pneg %p99
    %p106 = scmp.eq.s32.totalorder %s22, 1
    %p107 = por %p105, %p106
    %p108 = scmp.ne.s32.totalorder %s100, %s103
    %p109 = scmp.eq.s32.totalorder %s22, 0
    %p110 = por %p108, %p109
    %p111 = scmp.ne.s32.totalorder %s100, %s103
    %p112 = scmp.eq.s32.totalorder %s27, 1
    %p113 = por %p111, %p112
    %p114 = scmp.ne.s32.totalorder %s103, %s104
    %p115 = scmp.eq.s32.totalorder %s27, 0
    %p116 = por %p114, %p115
    %p117 = scmp.ne.s32.totalorder %s103, %s104
    %p118 = scmp.eq.s32.totalorder %s28, 1
    %p119 = por %p117, %p118
    %p121 = scmp.ne.s32.totalorder %s104, %s120
    %p122 = scmp.eq.s32.totalorder %s28, 0
    %p123 = por %p121, %p122
    %s124 = ssub.s32 %s22, %s29
    %p125 = scmp.eq.s32.totalorder %s124, 0
    %s127 = sadd.s32 %s126, 1
    %s128 = scalar_select %p125, %s126, %s127
    %p131 = pneg %p125
    %p132 = scmp.eq.s32.totalorder %s22, 1
    %p133 = por %p131, %p132
    %p134 = scmp.ne.s32.totalorder %s126, %s129
    %p135 = scmp.eq.s32.totalorder %s22, 0
    %p136 = por %p134, %p135
    %p137 = scmp.ne.s32.totalorder %s126, %s129
    %p138 = scmp.eq.s32.totalorder %s27, 1
    %p139 = por %p137, %p138
    %p140 = scmp.ne.s32.totalorder %s129, %s130
    %p141 = scmp.eq.s32.totalorder %s27, 0
    %p142 = por %p140, %p141
    %p143 = scmp.ne.s32.totalorder %s129, %s130
    %p144 = scmp.eq.s32.totalorder %s28, 1
    %p145 = por %p143, %p144
    %p147 = scmp.ne.s32.totalorder %s130, %s146
    %p148 = scmp.eq.s32.totalorder %s28, 0
    %p149 = por %p147, %p148
    %s150 = ssub.s32 %s22, %s29
    %p151 = scmp.eq.s32.totalorder %s150, 0
    %s153 = sadd.s32 %s152, 1
    %s154 = scalar_select %p151, %s152, %s153
    %p157 = pneg %p151
    %p158 = scmp.eq.s32.totalorder %s22, 1
    %p159 = por %p157, %p158
    %p160 = scmp.ne.s32.totalorder %s152, %s155
    %p161 = scmp.eq.s32.totalorder %s22, 0
    %p162 = por %p160, %p161
    %p163 = scmp.ne.s32.totalorder %s152, %s155
    %p164 = scmp.eq.s32.totalorder %s27, 1
    %p165 = por %p163, %p164
    %p166 = scmp.ne.s32.totalorder %s155, %s156
    %p167 = scmp.eq.s32.totalorder %s27, 0
    %p168 = por %p166, %p167
    %p169 = scmp.ne.s32.totalorder %s155, %s156
    %p170 = scmp.eq.s32.totalorder %s28, 1
    %p171 = por %p169, %p170
    %p173 = scmp.ne.s32.totalorder %s156, %s172
    %p174 = scmp.eq.s32.totalorder %s28, 0
    %p175 = por %p173, %p174
    %s176 = ssub.s32 %s22, %s29
    %p177 = scmp.eq.s32.totalorder %s176, 0
    %s179 = sadd.s32 %s178, 1
    %s180 = scalar_select %p177, %s178, %s179
    %p183 = pneg %p177
    %p184 = scmp.eq.s32.totalorder %s22, 1
    %p185 = por %p183, %p184
    %p186 = scmp.ne.s32.totalorder %s178, %s181
    %p187 = scmp.eq.s32.totalorder %s22, 0
    %p188 = por %p186, %p187
    %p189 = scmp.ne.s32.totalorder %s178, %s181
    %p190 = scmp.eq.s32.totalorder %s27, 1
    %p191 = por %p189, %p190
    %p192 = scmp.ne.s32.totalorder %s181, %s182
    %p193 = scmp.eq.s32.totalorder %s27, 0
    %p194 = por %p192, %p193
    %p195 = scmp.ne.s32.totalorder %s181, %s182
    %p196 = scmp.eq.s32.totalorder %s28, 1
    %p197 = por %p195, %p196
    %p199 = scmp.ne.s32.totalorder %s182, %s198
    %p200 = scmp.eq.s32.totalorder %s28, 0
    %p201 = por %p199, %p200
    %s202 = ssub.s32 %s22, %s29
    %p203 = scmp.eq.s32.totalorder %s202, 0
    %s205 = sadd.s32 %s204, 1
    %s206 = scalar_select %p203, %s204, %s205
    %p209 = pneg %p203
    %p210 = scmp.eq.s32.totalorder %s22, 1
    %p211 = por %p209, %p210
    %p212 = scmp.ne.s32.totalorder %s204, %s207
    %p213 = scmp.eq.s32.totalorder %s22, 0
    %p214 = por %p212, %p213
    %p215 = scmp.ne.s32.totalorder %s204, %s207
    %p216 = scmp.eq.s32.totalorder %s27, 1
    %p217 = por %p215, %p216
    %p218 = scmp.ne.s32.totalorder %s207, %s208
    %p219 = scmp.eq.s32.totalorder %s27, 0
    %p220 = por %p218, %p219
    %p221 = scmp.ne.s32.totalorder %s207, %s208
    %p222 = scmp.eq.s32.totalorder %s28, 1
    %p223 = por %p221, %p222
    %p225 = scmp.ne.s32.totalorder %s208, %s224
    %p226 = scmp.eq.s32.totalorder %s28, 0
    %p227 = por %p225, %p226
    %s228 = ssub.s32 %s22, %s29
    %p229 = scmp.eq.s32.totalorder %s228, 0
    %s231 = sadd.s32 %s230, 1
    %s232 = scalar_select %p229, %s230, %s231
    %p235 = pneg %p229
    %p236 = scmp.eq.s32.totalorder %s22, 1
    %p237 = por %p235, %p236
    %p238 = scmp.ne.s32.totalorder %s230, %s233
    %p239 = scmp.eq.s32.totalorder %s22, 0
    %p240 = por %p238, %p239
    %p241 = scmp.ne.s32.totalorder %s230, %s233
    %p242 = scmp.eq.s32.totalorder %s27, 1
    %p243 = por %p241, %p242
    %p244 = scmp.ne.s32.totalorder %s233, %s234
    %p245 = scmp.eq.s32.totalorder %s27, 0
    %p246 = por %p244, %p245
    %p247 = scmp.ne.s32.totalorder %s233, %s234
    %p248 = scmp.eq.s32.totalorder %s28, 1
    %p249 = por %p247, %p248
    %p251 = scmp.ne.s32.totalorder %s234, %s250
    %p252 = scmp.eq.s32.totalorder %s28, 0
    %p253 = por %p251, %p252
    %s254 = ssub.s32 %s22, %s29
    %p255 = scmp.eq.s32.totalorder %s254, 0
    %s257 = sadd.s32 %s256, 1
    %s258 = scalar_select %p255, %s256, %s257
    %p261 = pneg %p255
    %p262 = scmp.eq.s32.totalorder %s22, 1
    %p263 = por %p261, %p262
    %p264 = scmp.ne.s32.totalorder %s256, %s259
    %p265 = scmp.eq.s32.totalorder %s22, 0
    %p266 = por %p264, %p265
    %p267 = scmp.ne.s32.totalorder %s256, %s259
    %p268 = scmp.eq.s32.totalorder %s27, 1
    %p269 = por %p267, %p268
    %p270 = scmp.ne.s32.totalorder %s259, %s260
    %p271 = scmp.eq.s32.totalorder %s27, 0
    %p272 = por %p270, %p271
    %p273 = scmp.ne.s32.totalorder %s259, %s260
    %p274 = scmp.eq.s32.totalorder %s28, 1
    %p275 = por %p273, %p274
    %p277 = scmp.ne.s32.totalorder %s260, %s276
    %p278 = scmp.eq.s32.totalorder %s28, 0
    %p279 = por %p277, %p278
    %s280 = ssub.s32 %s22, %s29
    %p281 = scmp.eq.s32.totalorder %s280, 0
    %s283 = sadd.s32 %s282, 1
    %s284 = scalar_select %p281, %s282, %s283
    %p287 = pneg %p281
    %p288 = scmp.eq.s32.totalorder %s22, 1
    %p289 = por %p287, %p288
    %p290 = scmp.ne.s32.totalorder %s282, %s285
    %p291 = scmp.eq.s32.totalorder %s22, 0
    %p292 = por %p290, %p291
    %p293 = scmp.ne.s32.totalorder %s282, %s285
    %p294 = scmp.eq.s32.totalorder %s27, 1
    %p295 = por %p293, %p294
    %p296 = scmp.ne.s32.totalorder %s285, %s286
    %p297 = scmp.eq.s32.totalorder %s27, 0
    %p298 = por %p296, %p297
    %p299 = scmp.ne.s32.totalorder %s285, %s286
    %p300 = scmp.eq.s32.totalorder %s28, 1
    %p301 = por %p299, %p300
    %p303 = scmp.ne.s32.totalorder %s286, %s302
    %p304 = scmp.eq.s32.totalorder %s28, 0
    %p305 = por %p303, %p304
    %s306 = ssub.s32 %s22, %s29
    %p307 = scmp.eq.s32.totalorder %s306, 0
    %s309 = sadd.s32 %s308, 1
    %s310 = scalar_select %p307, %s308, %s309
    %p313 = pneg %p307
    %p314 = scmp.eq.s32.totalorder %s22, 1
    %p315 = por %p313, %p314
    %p316 = scmp.ne.s32.totalorder %s308, %s311
    %p317 = scmp.eq.s32.totalorder %s22, 0
    %p318 = por %p316, %p317
    %p319 = scmp.ne.s32.totalorder %s308, %s311
    %p320 = scmp.eq.s32.totalorder %s27, 1
    %p321 = por %p319, %p320
    %p322 = scmp.ne.s32.totalorder %s311, %s312
    %p323 = scmp.eq.s32.totalorder %s27, 0
    %p324 = por %p322, %p323
    %p325 = scmp.ne.s32.totalorder %s311, %s312
    %p326 = scmp.eq.s32.totalorder %s28, 1
    %p327 = por %p325, %p326
    %p329 = scmp.ne.s32.totalorder %s312, %s328
    %p330 = scmp.eq.s32.totalorder %s28, 0
    %p331 = por %p329, %p330
    %s332 = ssub.s32 %s22, %s29
    %p333 = scmp.eq.s32.totalorder %s332, 0
    %s335 = sadd.s32 %s334, 1
    %s336 = scalar_select %p333, %s334, %s335
    %p339 = pneg %p333
    %p340 = scmp.eq.s32.totalorder %s22, 1
    %p341 = por %p339, %p340
    %p342 = scmp.ne.s32.totalorder %s334, %s337
    %p343 = scmp.eq.s32.totalorder %s22, 0
    %p344 = por %p342, %p343
    %p345 = scmp.ne.s32.totalorder %s334, %s337
    %p346 = scmp.eq.s32.totalorder %s27, 1
    %p347 = por %p345, %p346
    %p348 = scmp.ne.s32.totalorder %s337, %s338
    %p349 = scmp.eq.s32.totalorder %s27, 0
    %p350 = por %p348, %p349
    %p351 = scmp.ne.s32.totalorder %s337, %s338
    %p352 = scmp.eq.s32.totalorder %s28, 1
    %p353 = por %p351, %p352
    %p355 = scmp.ne.s32.totalorder %s338, %s354
    %p356 = scmp.eq.s32.totalorder %s28, 0
    %p357 = por %p355, %p356
    %s358 = ssub.s32 %s22, %s29
    %p359 = scmp.eq.s32.totalorder %s358, 0
    %s361 = sadd.s32 %s360, 1
    %s362 = scalar_select %p359, %s360, %s361
    %p365 = pneg %p359
    %p366 = scmp.eq.s32.totalorder %s22, 1
    %p367 = por %p365, %p366
    %p368 = scmp.ne.s32.totalorder %s360, %s363
    %p369 = scmp.eq.s32.totalorder %s22, 0
    %p370 = por %p368, %p369
    %p371 = scmp.ne.s32.totalorder %s360, %s363
    %p372 = scmp.eq.s32.totalorder %s27, 1
    %p373 = por %p371, %p372
    %p374 = scmp.ne.s32.totalorder %s363, %s364
    %p375 = scmp.eq.s32.totalorder %s27, 0
    %p376 = por %p374, %p375
    %p377 = scmp.ne.s32.totalorder %s363, %s364
    %p378 = scmp.eq.s32.totalorder %s28, 1
    %p379 = por %p377, %p378
    %p381 = scmp.ne.s32.totalorder %s364, %s380
    %p382 = scmp.eq.s32.totalorder %s28, 0
    %p383 = por %p381, %p382
    %s384 = ssub.s32 %s22, %s29
    %p385 = scmp.eq.s32.totalorder %s384, 0
    %s387 = sadd.s32 %s386, 1
    %s388 = scalar_select %p385, %s386, %s387
    %p391 = pneg %p385
    %p392 = scmp.eq.s32.totalorder %s22, 1
    %p393 = por %p391, %p392
    %p394 = scmp.ne.s32.totalorder %s386, %s389
    %p395 = scmp.eq.s32.totalorder %s22, 0
    %p396 = por %p394, %p395
    %p397 = scmp.ne.s32.totalorder %s386, %s389
    %p398 = scmp.eq.s32.totalorder %s27, 1
    %p399 = por %p397, %p398
    %p400 = scmp.ne.s32.totalorder %s389, %s390
    %p401 = scmp.eq.s32.totalorder %s27, 0
    %p402 = por %p400, %p401
    %p403 = scmp.ne.s32.totalorder %s389, %s390
    %p404 = scmp.eq.s32.totalorder %s28, 1
    %p405 = por %p403, %p404
    %p407 = scmp.ne.s32.totalorder %s390, %s406
    %p408 = scmp.eq.s32.totalorder %s28, 0
    %p409 = por %p407, %p408
    %s410 = ssub.s32 %s22, %s29
    %p411 = scmp.eq.s32.totalorder %s410, 0
    %s413 = sadd.s32 %s412, 1
    %s414 = scalar_select %p411, %s412, %s413
    %p417 = pneg %p411
    %p418 = scmp.eq.s32.totalorder %s22, 1
    %p419 = por %p417, %p418
    %p420 = scmp.ne.s32.totalorder %s412, %s415
    %p421 = scmp.eq.s32.totalorder %s22, 0
    %p422 = por %p420, %p421
    %p423 = scmp.ne.s32.totalorder %s412, %s415
    %p424 = scmp.eq.s32.totalorder %s27, 1
    %p425 = por %p423, %p424
    %p426 = scmp.ne.s32.totalorder %s415, %s416
    %p427 = scmp.eq.s32.totalorder %s27, 0
    %p428 = por %p426, %p427
    %p429 = scmp.ne.s32.totalorder %s415, %s416
    %p430 = scmp.eq.s32.totalorder %s28, 1
    %p431 = por %p429, %p430
    %p433 = scmp.ne.s32.totalorder %s416, %s432
    %p434 = scmp.eq.s32.totalorder %s28, 0
    %p435 = por %p433, %p434
    %s437 = sadd.s32 %s436, 1
    %p440 = scmp.eq.s32.totalorder %s22, 1
    %p441 = scmp.ne.s32.totalorder %s436, %s438
    %p442 = scmp.eq.s32.totalorder %s22, 0
    %p443 = por %p441, %p442
    %p444 = scmp.ne.s32.totalorder %s436, %s438
    %p445 = scmp.eq.s32.totalorder %s27, 1
    %p446 = por %p444, %p445
    %p447 = scmp.ne.s32.totalorder %s438, %s439
    %p448 = scmp.eq.s32.totalorder %s27, 0
    %p449 = por %p447, %p448
    %p450 = scmp.ne.s32.totalorder %s438, %s439
    %p451 = scmp.eq.s32.totalorder %s28, 1
    %p452 = por %p450, %p451
    %p454 = scmp.ne.s32.totalorder %s439, %s453
    %p455 = scmp.eq.s32.totalorder %s28, 0
    %p456 = por %p454, %p455
    %p457 = scmp.le.s32.totalorder 1, %s22
    %p458 = scmp.lt.s32.totalorder %s22, 3
    %p459 = pnand %p457, %p458
    %p460 = pneg %p459
    // Predicated region
    $region9: #{transformer_forward.2} parent=5 // pred_check
      _
    $region10: #{transformer_forward.2} parent=5 // pred_check_branch
      %462 = sbr.rel (%p459) target = $region12
    $region11: #{transformer_forward.2} parent=5 // pred_region
      %s463 = ssub.s32 %s22, 1
      // Predicated region
      $region13: #{transformer_forward.2} parent=11 // pred_check
        %p464 = pneg %p43
      $region14: #{transformer_forward.2} parent=11 // pred_check_branch
        %466 = sbr.rel (%p464) target = $region16
      $region15: #{transformer_forward.2} parent=11 // pred_region
        _
      $region16: #{transformer_forward.2} parent=11 // pred_fallthru
        _
      // Predicated region
      $region17: #{transformer_forward.2} parent=11 // pred_check
        %p467 = pneg %p64
      $region18: #{transformer_forward.2} parent=11 // pred_check_branch
        %469 = sbr.rel (%p467) target = $region20
      $region19: #{transformer_forward.2} parent=11 // pred_region
        _
      $region20: #{transformer_forward.2} parent=11 // pred_fallthru
        _
    $region12: #{transformer_forward.2} parent=5 // pred_fallthru
      _
    %p470 = scmp.lt.s32.totalorder %s22, 2
    // Predicated region
    $region21: #{transformer_forward.2} parent=5 // pred_check
      %p471 = pneg %p470
    $region22: #{transformer_forward.2} parent=5 // pred_check_branch
      %473 = sbr.rel (%p471) target = $region24
    $region23: #{transformer_forward.2} parent=5 // pred_region
      // Predicated region
      $region25: #{transformer_forward.2} parent=23 // pred_check
        %p474 = pneg %p84
      $region26: #{transformer_forward.2} parent=23 // pred_check_branch
        %476 = sbr.rel (%p474) target = $region28
      $region27: #{transformer_forward.2} parent=23 // pred_region
        %p477 = scmp.lt.s32.totalorder %s22, 1
        %s478 = scalar_select %p477, %s22, 1
        %s479 = smul.addr %s478, 4
        %s480 = smul.addr %s479, 4
        %s481 = scalar_lea.vmem %s2, %s480
      $region28: #{transformer_forward.2} parent=23 // pred_fallthru
        _
      // Predicated region
      $region29: #{transformer_forward.2} parent=23 // pred_check
        %p482 = pneg %p110
      $region30: #{transformer_forward.2} parent=23 // pred_check_branch
        %484 = sbr.rel (%p482) target = $region32
      $region31: #{transformer_forward.2} parent=23 // pred_region
        %p485 = scmp.lt.s32.totalorder %s22, 1
        %s486 = scalar_select %p485, %s22, 1
        %s487 = scalar_lea.vmem %s3, %s486
      $region32: #{transformer_forward.2} parent=23 // pred_fallthru
        _
      // Predicated region
      $region33: #{transformer_forward.2} parent=23 // pred_check
        %p488 = pneg %p136
      $region34: #{transformer_forward.2} parent=23 // pred_check_branch
        %490 = sbr.rel (%p488) target = $region36
      $region35: #{transformer_forward.2} parent=23 // pred_region
        %p491 = scmp.lt.s32.totalorder %s22, 1
        %s492 = scalar_select %p491, %s22, 1
        %s493 = smul.addr %s492, 4
        %s494 = smul.addr %s493, 4
        %s495 = scalar_lea.vmem %s4, %s494
      $region36: #{transformer_forward.2} parent=23 // pred_fallthru
        _
      // Predicated region
      $region37: #{transformer_forward.2} parent=23 // pred_check
        %p496 = pneg %p162
      $region38: #{transformer_forward.2} parent=23 // pred_check_branch
        %498 = sbr.rel (%p496) target = $region40
      $region39: #{transformer_forward.2} parent=23 // pred_region
        %p499 = scmp.lt.s32.totalorder %s22, 1
        %s500 = scalar_select %p499, %s22, 1
        %s501 = scalar_lea.vmem %s5, %s500
      $region40: #{transformer_forward.2} parent=23 // pred_fallthru
        _
      // Predicated region
      $region41: #{transformer_forward.2} parent=23 // pred_check
        %p502 = pneg %p188
      $region42: #{transformer_forward.2} parent=23 // pred_check_branch
        %504 = sbr.rel (%p502) target = $region44
      $region43: #{transformer_forward.2} parent=23 // pred_region
        %p505 = scmp.lt.s32.totalorder %s22, 1
        %s506 = scalar_select %p505, %s22, 1
        %s507 = smul.addr %s506, 4
        %s508 = smul.addr %s507, 4
        %s509 = scalar_lea.vmem %s6, %s508
      $region44: #{transformer_forward.2} parent=23 // pred_fallthru
        _
      // Predicated region
      $region45: #{transformer_forward.2} parent=23 // pred_check
        %p510 = pneg %p214
      $region46: #{transformer_forward.2} parent=23 // pred_check_branch
        %512 = sbr.rel (%p510) target = $region48
      $region47: #{transformer_forward.2} parent=23 // pred_region
        %p513 = scmp.lt.s32.totalorder %s22, 1
        %s514 = scalar_select %p513, %s22, 1
        %s515 = scalar_lea.vmem %s7, %s514
      $region48: #{transformer_forward.2} parent=23 // pred_fallthru
        _
      // Predicated region
      $region49: #{transformer_forward.2} parent=23 // pred_check
        %p516 = pneg %p240
      $region50: #{transformer_forward.2} parent=23 // pred_check_branch
        %518 = sbr.rel (%p516) target = $region52
      $region51: #{transformer_forward.2} parent=23 // pred_region
        %p519 = scmp.lt.s32.totalorder %s22, 1
        %s520 = scalar_select %p519, %s22, 1
        %s521 = scalar_lea.vmem %s8, %s520
      $region52: #{transformer_forward.2} parent=23 // pred_fallthru
        _
      // Predicated region
      $region53: #{transformer_forward.2} parent=23 // pred_check
        %p522 = pneg %p266
      $region54: #{transformer_forward.2} parent=23 // pred_check_branch
        %524 = sbr.rel (%p522) target = $region56
      $region55: #{transformer_forward.2} parent=23 // pred_region
        %p525 = scmp.lt.s32.totalorder %s22, 1
        %s526 = scalar_select %p525, %s22, 1
        %s527 = scalar_lea.vmem %s9, %s526
      $region56: #{transformer_forward.2} parent=23 // pred_fallthru
        _
      // Predicated region
      $region57: #{transformer_forward.2} parent=23 // pred_check
        %p528 = pneg %p292
      $region58: #{transformer_forward.2} parent=23 // pred_check_branch
        %530 = sbr.rel (%p528) target = $region60
      $region59: #{transformer_forward.2} parent=23 // pred_region
        %p531 = scmp.lt.s32.totalorder %s22, 1
        %s532 = scalar_select %p531, %s22, 1
        %s533 = smul.addr %s532, 4
        %s534 = smul.addr %s533, 4
        %s535 = scalar_lea.vmem %s10, %s534
      $region60: #{transformer_forward.2} parent=23 // pred_fallthru
        _
      // Predicated region
      $region61: #{transformer_forward.2} parent=23 // pred_check
        %p536 = pneg %p318
      $region62: #{transformer_forward.2} parent=23 // pred_check_branch
        %538 = sbr.rel (%p536) target = $region64
      $region63: #{transformer_forward.2} parent=23 // pred_region
        %p539 = scmp.lt.s32.totalorder %s22, 1
        %s540 = scalar_select %p539, %s22, 1
        %s541 = scalar_lea.vmem %s11, %s540
      $region64: #{transformer_forward.2} parent=23 // pred_fallthru
        _
      // Predicated region
      $region65: #{transformer_forward.2} parent=23 // pred_check
        %p542 = pneg %p344
      $region66: #{transformer_forward.2} parent=23 // pred_check_branch
        %544 = sbr.rel (%p542) target = $region68
      $region67: #{transformer_forward.2} parent=23 // pred_region
        %p545 = scmp.lt.s32.totalorder %s22, 1
        %s546 = scalar_select %p545, %s22, 1
        %s547 = smul.addr %s546, 8
        %s548 = smul.addr %s547, 4
        %s549 = scalar_lea.vmem %s12, %s548
      $region68: #{transformer_forward.2} parent=23 // pred_fallthru
        _
      // Predicated region
      $region69: #{transformer_forward.2} parent=23 // pred_check
        %p550 = pneg %p370
      $region70: #{transformer_forward.2} parent=23 // pred_check_branch
        %552 = sbr.rel (%p550) target = $region72
      $region71: #{transformer_forward.2} parent=23 // pred_region
        %p553 = scmp.lt.s32.totalorder %s22, 1
        %s554 = scalar_select %p553, %s22, 1
        %s555 = scalar_lea.vmem %s13, %s554
      $region72: #{transformer_forward.2} parent=23 // pred_fallthru
        _
      // Predicated region
      $region73: #{transformer_forward.2} parent=23 // pred_check
        %p556 = pneg %p396
      $region74: #{transformer_forward.2} parent=23 // pred_check_branch
        %558 = sbr.rel (%p556) target = $region76
      $region75: #{transformer_forward.2} parent=23 // pred_region
        %p559 = scmp.lt.s32.totalorder %s22, 1
        %s560 = scalar_select %p559, %s22, 1
        %s561 = scalar_lea.vmem %s14, %s560
      $region76: #{transformer_forward.2} parent=23 // pred_fallthru
        _
      // Predicated region
      $region77: #{transformer_forward.2} parent=23 // pred_check
        %p562 = pneg %p422
      $region78: #{transformer_forward.2} parent=23 // pred_check_branch
        %564 = sbr.rel (%p562) target = $region80
      $region79: #{transformer_forward.2} parent=23 // pred_region
        %p565 = scmp.lt.s32.totalorder %s22, 1
        %s566 = scalar_select %p565, %s22, 1
        %s567 = scalar_lea.vmem %s15, %s566
      $region80: #{transformer_forward.2} parent=23 // pred_fallthru
        _
    $region24: #{transformer_forward.2} parent=5 // pred_fallthru
      _
    %p568 = scmp.le.s32.totalorder 1, %s22
    %p569 = scmp.lt.s32.totalorder %s22, 3
    %p570 = pnand %p568, %p569
    %p571 = pneg %p570
    // Predicated region
    $region81: #{transformer_forward.2} parent=5 // pred_check
      _
    $region82: #{transformer_forward.2} parent=5 // pred_check_branch
      %573 = sbr.rel (%p570) target = $region84
    $region83: #{transformer_forward.2} parent=5 // pred_region
      %s574 = ssub.s32 %s22, 1
      %p575 = pneg %p43
      %p576 = pneg %p40
      %p577 = pneg %p64
      %p578 = pneg %p61
      %p579 = scmp.lt.s32.totalorder %s27, 1
      %s580 = scalar_select %p579, %s27, 1
      %s581 = smul.addr %s580, 4
      %s582 = smul.addr %s581, 4
      %s583 = scalar_lea.vmem %s2, %s582
      %p584 = pneg %p90
      %p585 = pneg %p87
      %p586 = scmp.lt.s32.totalorder %s27, 1
      %s587 = scalar_select %p586, %s27, 1
      %s588 = scalar_lea.vmem %s3, %s587
      %p589 = pneg %p116
      %p590 = pneg %p113
      %p591 = scmp.lt.s32.totalorder %s27, 1
      %s592 = scalar_select %p591, %s27, 1
      %s593 = smul.addr %s592, 4
      %s594 = smul.addr %s593, 4
      %s595 = scalar_lea.vmem %s4, %s594
      %p596 = pneg %p142
      %p597 = pneg %p139
      %p598 = scmp.lt.s32.totalorder %s27, 1
      %s599 = scalar_select %p598, %s27, 1
      %s600 = scalar_lea.vmem %s5, %s599
      %p601 = pneg %p168
      %p602 = pneg %p165
      %p603 = scmp.lt.s32.totalorder %s27, 1
      %s604 = scalar_select %p603, %s27, 1
      %s605 = smul.addr %s604, 4
      %s606 = smul.addr %s605, 4
      %s607 = scalar_lea.vmem %s6, %s606
      %p608 = pneg %p194
      %p609 = pneg %p191
      %p610 = scmp.lt.s32.totalorder %s27, 1
      %s611 = scalar_select %p610, %s27, 1
      %s612 = scalar_lea.vmem %s7, %s611
      %p613 = pneg %p220
      %p614 = pneg %p217
      %p615 = scmp.lt.s32.totalorder %s27, 1
      %s616 = scalar_select %p615, %s27, 1
      %s617 = scalar_lea.vmem %s8, %s616
      %p618 = pneg %p246
      %p619 = pneg %p243
      %p620 = scmp.lt.s32.totalorder %s27, 1
      %s621 = scalar_select %p620, %s27, 1
      %s622 = scalar_lea.vmem %s9, %s621
      %p623 = pneg %p272
      %p624 = pneg %p269
      %p625 = scmp.lt.s32.totalorder %s27, 1
      %s626 = scalar_select %p625, %s27, 1
      %s627 = smul.addr %s626, 4
      %s628 = smul.addr %s627, 4
      %s629 = scalar_lea.vmem %s10, %s628
      %p630 = pneg %p298
      %p631 = pneg %p295
      %p632 = scmp.lt.s32.totalorder %s27, 1
      %s633 = scalar_select %p632, %s27, 1
      %s634 = scalar_lea.vmem %s11, %s633
      %p635 = pneg %p324
      %p636 = pneg %p321
      %p637 = scmp.lt.s32.totalorder %s27, 1
      %s638 = scalar_select %p637, %s27, 1
      %s639 = smul.addr %s638, 8
      %s640 = smul.addr %s639, 4
      %s641 = scalar_lea.vmem %s12, %s640
      %p642 = pneg %p350
      %p643 = pneg %p347
      %p644 = scmp.lt.s32.totalorder %s27, 1
      %s645 = scalar_select %p644, %s27, 1
      %s646 = scalar_lea.vmem %s13, %s645
      %p647 = pneg %p376
      %p648 = pneg %p373
      %p649 = scmp.lt.s32.totalorder %s27, 1
      %s650 = scalar_select %p649, %s27, 1
      %s651 = scalar_lea.vmem %s14, %s650
      %p652 = pneg %p402
      %p653 = pneg %p399
      %p654 = scmp.lt.s32.totalorder %s27, 1
      %s655 = scalar_select %p654, %s27, 1
      %s656 = scalar_lea.vmem %s15, %s655
      %p657 = pneg %p428
      %p658 = pneg %p425
      %p659 = pneg %p449
      %p660 = pneg %p446
      %p661 = scmp.lt.s32.totalorder %s27, 1
      %s662 = scalar_select %p661, %s27, 1
      %s663 = smul.addr %s662, 4
      %s664 = smul.addr %s663, 4
      %s665 = scalar_lea.vmem %s2, %s664
      %p666 = scmp.lt.s32.totalorder %s27, 1
      %s667 = scalar_select %p666, %s27, 1
      %s668 = scalar_lea.vmem %s3, %s667
      %p669 = scmp.lt.s32.totalorder %s27, 1
      %s670 = scalar_select %p669, %s27, 1
      %s671 = smul.addr %s670, 4
      %s672 = smul.addr %s671, 4
      %s673 = scalar_lea.vmem %s4, %s672
      %p674 = scmp.lt.s32.totalorder %s27, 1
      %s675 = scalar_select %p674, %s27, 1
      %s676 = scalar_lea.vmem %s5, %s675
      %p677 = scmp.lt.s32.totalorder %s27, 1
      %s678 = scalar_select %p677, %s27, 1
      %s679 = smul.addr %s678, 4
      %s680 = smul.addr %s679, 4
      %s681 = scalar_lea.vmem %s6, %s680
      %p682 = scmp.lt.s32.totalorder %s27, 1
      %s683 = scalar_select %p682, %s27, 1
      %s684 = scalar_lea.vmem %s7, %s683
      %p685 = scmp.lt.s32.totalorder %s27, 1
      %s686 = scalar_select %p685, %s27, 1
      %s687 = scalar_lea.vmem %s8, %s686
      %p688 = scmp.lt.s32.totalorder %s27, 1
      %s689 = scalar_select %p688, %s27, 1
      %s690 = scalar_lea.vmem %s9, %s689
      %p691 = scmp.lt.s32.totalorder %s27, 1
      %s692 = scalar_select %p691, %s27, 1
      %s693 = smul.addr %s692, 4
      %s694 = smul.addr %s693, 4
      %s695 = scalar_lea.vmem %s10, %s694
      %p696 = scmp.lt.s32.totalorder %s27, 1
      %s697 = scalar_select %p696, %s27, 1
      %s698 = scalar_lea.vmem %s11, %s697
      %p699 = scmp.lt.s32.totalorder %s27, 1
      %s700 = scalar_select %p699, %s27, 1
      %s701 = smul.addr %s700, 8
      %s702 = smul.addr %s701, 4
      %s703 = scalar_lea.vmem %s12, %s702
      %p704 = scmp.lt.s32.totalorder %s27, 1
      %s705 = scalar_select %p704, %s27, 1
      %s706 = scalar_lea.vmem %s13, %s705
      %p707 = scmp.lt.s32.totalorder %s27, 1
      %s708 = scalar_select %p707, %s27, 1
      %s709 = scalar_lea.vmem %s14, %s708
      %p710 = scmp.lt.s32.totalorder %s27, 1
      %s711 = scalar_select %p710, %s27, 1
      %s712 = scalar_lea.vmem %s15, %s711
      %p714 = scmp.eq.s32.totalorder %s27, 0
      // Predicated region
      $region85: #{transformer_forward.2} parent=83 // pred_check
        %p715 = pneg %p714
      $region86: #{transformer_forward.2} parent=83 // pred_check_branch
        %717 = sbr.rel (%p715) target = $region88
      $region87: #{transformer_forward.2} parent=83 // pred_region
        %v718 = vld [vmem:[%s0] sm:$0xff]
        %v719 = vld [vmem:[%s0 + $0x8] sm:$0xff]
        %vm720 = vcmask 261120
        %721 = vst.msk [vmem:[#allocation2] sm:$0xff] %vm720, %v718
        %722 = vst.msk [vmem:[#allocation2 + $0x8] sm:$0xff] %vm720, %v719
      $region88: #{transformer_forward.2} parent=83 // pred_fallthru
        _
      %v723 = vld [vmem:[#allocation2] sm:$0xff]
      %v724 = vld [vmem:[#allocation2 + $0x8] sm:$0xff]
      %v725 = vld [vmem:[%s1] sm:$0xff]
      %v726 = vld [vmem:[%s1 + $0x8] sm:$0xff]
      %v727 = vld [vmem:[%s665] sm:$0xf]
      %v728 = vld [vmem:[%s665 + $0x4] sm:$0xf]
      %v729 = vld [vmem:[%s665 + $0x8] sm:$0xf]
      %v730 = vld [vmem:[%s665 + $0xc] sm:$0xf]
      %v731 = vld [vmem:[%s668] sm:$0x1]
      %v732 = vld [vmem:[%s673] sm:$0xf]
      %v733 = vld [vmem:[%s673 + $0x4] sm:$0xf]
      %v734 = vld [vmem:[%s673 + $0x8] sm:$0xf]
      %v735 = vld [vmem:[%s673 + $0xc] sm:$0xf]
      %v736 = vld [vmem:[%s676] sm:$0x1]
      %v737 = vld [vmem:[%s681] sm:$0xf]
      %v738 = vld [vmem:[%s681 + $0x4] sm:$0xf]
      %v739 = vld [vmem:[%s681 + $0x8] sm:$0xf]
      %v740 = vld [vmem:[%s681 + $0xc] sm:$0xf]
      %v741 = vld [vmem:[%s684] sm:$0x1]
      %v742 = vld [vmem:[%s687] sm:$0x1]
      %v743 = vld [vmem:[%s690] sm:$0x1]
      %v744 = vpack.c.bf16 %v724, %v723
      %v746 = vlaneseq
      %v747 = vshrl.u32 %v746, 7
      %v748 = vsub.s32 0, %v747
      %v749 = vrot.slane %v731, %v748
      %v755 = vunpack.c.l.b16 %v727
      %v756 = vunpack.c.l.b16 %v728
      %v757 = vunpack.c.l.b16 %v729
      %v758 = vunpack.c.l.b16 %v730
      %v759 = vpack.c.b16 %v756, %v755
      %v760 = vpack.c.b16 %v758, %v757
      %vm763 = vcmask 261120
      %v765 = vsel %vm763, %v744, 0
      %767 = vmatprep.subr.bf16.mxu0 0
      %768 = vmatpush1.bf16.msra.mxu0 0
      %769 = vmatprep.subr.bf16.mxu0 0
      %770 = vmatpush1.bf16.msra.mxu0 0
      %771 = vmatprep.subr.bf16.mxu0 0
      %772 = vmatpush1.bf16.msra.mxu0 0
      %773 = vmatprep.subr.bf16.mxu0 0
      %774 = vmatpush1.bf16.msra.mxu0 0
      %775 = vmatprep.subr.bf16.mxu0 0
      %776 = vmatpush1.bf16.msra.mxu0 0
      %777 = vmatprep.subr.bf16.mxu0 0
      %778 = vmatpush1.bf16.msra.mxu0 0
      %779 = vmatprep.subr.bf16.mxu0 0
      %780 = vmatpush1.bf16.msra.mxu0 %v760
      %781 = vmatprep.subr.bf16.mxu0 0
      %782 = vmatpush1.bf16.msra.mxu0 %v759
      %783 = vmatprep.subr.bf16.mxu0 0
      %784 = vmatpush2.bf16.msra.mxu0 0
      %785 = vmatprep.subr.bf16.mxu0 0
      %786 = vmatpush2.bf16.msra.mxu0 0
      %787 = vmatprep.subr.bf16.mxu0 0
      %788 = vmatpush2.bf16.msra.mxu0 0
      %789 = vmatprep.subr.bf16.mxu0 0
      %790 = vmatpush2.bf16.msra.mxu0 0
      %791 = vmatprep.subr.bf16.mxu0 0
      %792 = vmatpush2.bf16.msra.mxu0 0
      %793 = vmatprep.subr.bf16.mxu0 0
      %794 = vmatpush2.bf16.msra.mxu0 0
      %795 = vmatprep.subr.bf16.mxu0 0
      %796 = vmatpush2.bf16.msra.mxu0 0
      %797 = vmatprep.subr.bf16.mxu0 0
      %798 = vmatpush2.bf16.msra.mxu0 0
      %799 = vmatprep.mubr.bf16.mxu0 0
      %800 = vmatmul.mubr.bf16.gmra.mxu0 %v765
      %v801 = vpop.f32.mrf.mxu0
      %v802 = vadd.f32 %v749, %v801
      %v803 = vpop.f32.mrf.mxu0
      %v804 = vpop.f32.mrf.mxu0
      %v805 = vadd.f32 %v749, %v804
      %v806 = vpop.f32.mrf.mxu0
      %807 = vdwg.mxu0
      %v809 = vlaneseq
      %v810 = vshrl.u32 %v809, 7
      %v811 = vsub.s32 0, %v810
      %v812 = vrot.slane %v736, %v811
      %v818 = vunpack.c.l.b16 %v732
      %v819 = vunpack.c.l.b16 %v733
      %v820 = vunpack.c.l.b16 %v734
      %v821 = vunpack.c.l.b16 %v735
      %v822 = vpack.c.b16 %v819, %v818
      %v823 = vpack.c.b16 %v821, %v820
      %826 = vmatprep.subr.bf16.mxu0 0
      %827 = vmatpush1.bf16.msra.mxu0 0
      %828 = vmatprep.subr.bf16.mxu0 0
      %829 = vmatpush1.bf16.msra.mxu0 0
      %830 = vmatprep.subr.bf16.mxu0 0
      %831 = vmatpush1.bf16.msra.mxu0 0
      %832 = vmatprep.subr.bf16.mxu0 0
      %833 = vmatpush1.bf16.msra.mxu0 0
      %834 = vmatprep.subr.bf16.mxu0 0
      %835 = vmatpush1.bf16.msra.mxu0 0
      %836 = vmatprep.subr.bf16.mxu0 0
      %837 = vmatpush1.bf16.msra.mxu0 0
      %838 = vmatprep.subr.bf16.mxu0 0
      %839 = vmatpush1.bf16.msra.mxu0 %v823
      %840 = vmatprep.subr.bf16.mxu0 0
      %841 = vmatpush1.bf16.msra.mxu0 %v822
      %842 = vmatprep.subr.bf16.mxu0 0
      %843 = vmatpush2.bf16.msra.mxu0 0
      %844 = vmatprep.subr.bf16.mxu0 0
      %845 = vmatpush2.bf16.msra.mxu0 0
      %846 = vmatprep.subr.bf16.mxu0 0
      %847 = vmatpush2.bf16.msra.mxu0 0
      %848 = vmatprep.subr.bf16.mxu0 0
      %849 = vmatpush2.bf16.msra.mxu0 0
      %850 = vmatprep.subr.bf16.mxu0 0
      %851 = vmatpush2.bf16.msra.mxu0 0
      %852 = vmatprep.subr.bf16.mxu0 0
      %853 = vmatpush2.bf16.msra.mxu0 0
      %854 = vmatprep.subr.bf16.mxu0 0
      %855 = vmatpush2.bf16.msra.mxu0 0
      %856 = vmatprep.subr.bf16.mxu0 0
      %857 = vmatpush2.bf16.msra.mxu0 0
      %858 = vmatprep.mubr.bf16.mxu0 0
      %859 = vmatmul.mubr.bf16.gmra.mxu0 %v765
      %v860 = vpop.f32.mrf.mxu0
      %v861 = vadd.f32 %v812, %v860
      %v862 = vpop.f32.mrf.mxu0
      %v863 = vpop.f32.mrf.mxu0
      %v864 = vadd.f32 %v812, %v863
      %v865 = vpop.f32.mrf.mxu0
      %866 = vdwg.mxu0
      %v867 = vsub.f32 %v725, 1.0
      %v868 = vsub.f32 %v726, 1.0
      %v869 = vmul.f32 %v867, 10000.0
      %v870 = vmul.f32 %v868, 10000.0
      %v871 = vpack.c.bf16 %v802, %v802
      %v872 = vpack.c.bf16 %v861, %v861
      %vm873 = vcmask 64512
      %v875 = vsel %vm873, %v871, 0
      %v878 = vsel %vm873, %v872, 0
      %880 = vmatprep.subr.bf16.mxu0 0
      %881 = vmatpush1.bf16.xpose.msra.mxu0 0
      %882 = vmatprep.subr.bf16.mxu0 0
      %883 = vmatpush1.bf16.xpose.msra.mxu0 0
      %884 = vmatprep.subr.bf16.mxu0 0
      %885 = vmatpush1.bf16.xpose.msra.mxu0 0
      %886 = vmatprep.subr.bf16.mxu0 0
      %887 = vmatpush1.bf16.xpose.msra.mxu0 0
      %888 = vmatprep.subr.bf16.mxu0 0
      %889 = vmatpush1.bf16.xpose.msra.mxu0 0
      %890 = vmatprep.subr.bf16.mxu0 0
      %891 = vmatpush1.bf16.xpose.msra.mxu0 0
      %892 = vmatprep.subr.bf16.mxu0 0
      %893 = vmatpush1.bf16.xpose.msra.mxu0 0
      %894 = vmatprep.subr.bf16.mxu0 0
      %895 = vmatpush1.bf16.xpose.msra.mxu0 %v878
      %896 = vmatprep.subr.bf16.mxu0 0
      %897 = vmatpush2.bf16.xpose.msra.mxu0 0
      %898 = vmatprep.subr.bf16.mxu0 0
      %899 = vmatpush2.bf16.xpose.msra.mxu0 0
      %900 = vmatprep.subr.bf16.mxu0 0
      %901 = vmatpush2.bf16.xpose.msra.mxu0 0
      %902 = vmatprep.subr.bf16.mxu0 0
      %903 = vmatpush2.bf16.xpose.msra.mxu0 0
      %904 = vmatprep.subr.bf16.mxu0 0
      %905 = vmatpush2.bf16.xpose.msra.mxu0 0
      %906 = vmatprep.subr.bf16.mxu0 0
      %907 = vmatpush2.bf16.xpose.msra.mxu0 0
      %908 = vmatprep.subr.bf16.mxu0 0
      %909 = vmatpush2.bf16.xpose.msra.mxu0 0
      %910 = vmatprep.subr.bf16.mxu0 0
      %911 = vmatpush2.bf16.xpose.msra.mxu0 0
      %912 = vmatprep.mubr.bf16.mxu0 0
      %913 = vmatmul.mubr.bf16.gmra.mxu0 %v875
      %v914 = vpop.f32.mrf.mxu0
      %v915 = vadd.f32 0.0, %v914
      %v916 = vpop.f32.mrf.mxu0
      %v917 = vpop.f32.mrf.mxu0
      %v918 = vpop.f32.mrf.mxu0
      %919 = vdwg.mxu0
      %v920 = vmul.f32 %v915, %v725
      %v921 = vadd.f32 %v920, %v869
      %v922 = vsel %vm873, %v921, -inf
      %923 = vmax.xlane.f32.xlu0 %v922
      %v924 = vpop.xlane.xlu0 %923
      %v925 = vsub.f32 %v921, %v924
      %v926 = vmul.f32 %v925, 1.442695
      %v927 = vpow.pop %v926
      %v928 = vsel %vm873, %v927, 0.0
      %929 = vadd.xlane.f32.xlu0 %v928
      %v930 = vpop.xlane.xlu0 %929
      %v931 = vrcp.pop %v930
      %v932 = vmul.f32 %v927, %v931
      %v933 = vpack.c.bf16 %v932, %v932
      %935 = vrot.lane.b32.xlu0 %v872, 96
      %v936 = vpop.permute.xlu0 %935
      %v938 = vsel %vm873, %v933, 0
      %vm940 = vcmask 1043456
      %v942 = vsel %vm940, %v936, 0
      %944 = vmatprep.subr.bf16.mxu0 0
      %945 = vmatpush1.bf16.msra.mxu0 0
      %946 = vmatprep.subr.bf16.mxu0 0
      %947 = vmatpush1.bf16.msra.mxu0 0
      %948 = vmatprep.subr.bf16.mxu0 0
      %949 = vmatpush1.bf16.msra.mxu0 0
      %950 = vmatprep.subr.bf16.mxu0 0
      %951 = vmatpush1.bf16.msra.mxu0 0
      %952 = vmatprep.subr.bf16.mxu0 0
      %953 = vmatpush1.bf16.msra.mxu0 0
      %954 = vmatprep.subr.bf16.mxu0 0
      %955 = vmatpush1.bf16.msra.mxu0 0
      %956 = vmatprep.subr.bf16.mxu0 0
      %957 = vmatpush1.bf16.msra.mxu0 0
      %958 = vmatprep.subr.bf16.mxu0 0
      %959 = vmatpush1.bf16.msra.mxu0 %v942
      %960 = vmatprep.subr.bf16.mxu0 0
      %961 = vmatpush2.bf16.msra.mxu0 0
      %962 = vmatprep.subr.bf16.mxu0 0
      %963 = vmatpush2.bf16.msra.mxu0 0
      %964 = vmatprep.subr.bf16.mxu0 0
      %965 = vmatpush2.bf16.msra.mxu0 0
      %966 = vmatprep.subr.bf16.mxu0 0
      %967 = vmatpush2.bf16.msra.mxu0 0
      %968 = vmatprep.subr.bf16.mxu0 0
      %969 = vmatpush2.bf16.msra.mxu0 0
      %970 = vmatprep.subr.bf16.mxu0 0
      %971 = vmatpush2.bf16.msra.mxu0 0
      %972 = vmatprep.subr.bf16.mxu0 0
      %973 = vmatpush2.bf16.msra.mxu0 0
      %974 = vmatprep.subr.bf16.mxu0 0
      %975 = vmatpush2.bf16.msra.mxu0 0
      %976 = vmatprep.mubr.bf16.mxu0 0
      %977 = vmatmul.mubr.bf16.gmra.mxu0 %v938
      %v978 = vpop.f32.mrf.mxu0
      %v979 = vadd.f32 0.0, %v978
      %v980 = vpop.f32.mrf.mxu0
      %v981 = vpop.f32.mrf.mxu0
      %v982 = vpop.f32.mrf.mxu0
      %983 = vdwg.mxu0
      %985 = vrot.lane.b32.xlu0 %v871, 120
      %v986 = vpop.permute.xlu0 %985
      %987 = vrot.lane.b32.xlu0 %v872, 120
      %v988 = vpop.permute.xlu0 %987
      %v990 = vsel %vm873, %v986, 0
      %v993 = vsel %vm873, %v988, 0
      %995 = vmatprep.subr.bf16.mxu0 0
      %996 = vmatpush1.bf16.xpose.msra.mxu0 0
      %997 = vmatprep.subr.bf16.mxu0 0
      %998 = vmatpush1.bf16.xpose.msra.mxu0 0
      %999 = vmatprep.subr.bf16.mxu0 0
      %1000 = vmatpush1.bf16.xpose.msra.mxu0 0
      %1001 = vmatprep.subr.bf16.mxu0 0
      %1002 = vmatpush1.bf16.xpose.msra.mxu0 0
      %1003 = vmatprep.subr.bf16.mxu0 0
      %1004 = vmatpush1.bf16.xpose.msra.mxu0 0
      %1005 = vmatprep.subr.bf16.mxu0 0
      %1006 = vmatpush1.bf16.xpose.msra.mxu0 0
      %1007 = vmatprep.subr.bf16.mxu0 0
      %1008 = vmatpush1.bf16.xpose.msra.mxu0 0
      %1009 = vmatprep.subr.bf16.mxu0 0
      %1010 = vmatpush1.bf16.xpose.msra.mxu0 %v993
      %1011 = vmatprep.subr.bf16.mxu0 0
      %1012 = vmatpush2.bf16.xpose.msra.mxu0 0
      %1013 = vmatprep.subr.bf16.mxu0 0
      %1014 = vmatpush2.bf16.xpose.msra.mxu0 0
      %1015 = vmatprep.subr.bf16.mxu0 0
      %1016 = vmatpush2.bf16.xpose.msra.mxu0 0
      %1017 = vmatprep.subr.bf16.mxu0 0
      %1018 = vmatpush2.bf16.xpose.msra.mxu0 0
      %1019 = vmatprep.subr.bf16.mxu0 0
      %1020 = vmatpush2.bf16.xpose.msra.mxu0 0
      %1021 = vmatprep.subr.bf16.mxu0 0
      %1022 = vmatpush2.bf16.xpose.msra.mxu0 0
      %1023 = vmatprep.subr.bf16.mxu0 0
      %1024 = vmatpush2.bf16.xpose.msra.mxu0 0
      %1025 = vmatprep.subr.bf16.mxu0 0
      %1026 = vmatpush2.bf16.xpose.msra.mxu0 0
      %1027 = vmatprep.mubr.bf16.mxu0 0
      %1028 = vmatmul.mubr.bf16.gmra.mxu0 %v990
      %v1029 = vpop.f32.mrf.mxu0
      %v1030 = vadd.f32 0.0, %v1029
      %v1031 = vpop.f32.mrf.mxu0
      %v1032 = vpop.f32.mrf.mxu0
      %v1033 = vpop.f32.mrf.mxu0
      %1034 = vdwg.mxu0
      %v1035 = vmul.f32 %v1030, %v725
      %v1036 = vadd.f32 %v1035, %v869
      %v1037 = vsel %vm873, %v1036, -inf
      %1038 = vmax.xlane.f32.xlu0 %v1037
      %v1039 = vpop.xlane.xlu0 %1038
      %v1040 = vsub.f32 %v1036, %v1039
      %v1041 = vmul.f32 %v1040, 1.442695
      %v1042 = vpow.pop %v1041
      %v1043 = vsel %vm873, %v1042, 0.0
      %1044 = vadd.xlane.f32.xlu0 %v1043
      %v1045 = vpop.xlane.xlu0 %1044
      %v1046 = vrcp.pop %v1045
      %v1047 = vmul.f32 %v1042, %v1046
      %v1048 = vpack.c.bf16 %v1047, %v1047
      %1049 = vrot.lane.b32.xlu0 %v872, 88
      %v1050 = vpop.permute.xlu0 %1049
      %v1052 = vsel %vm873, %v1048, 0
      %v1055 = vsel %vm940, %v1050, 0
      %1057 = vmatprep.subr.bf16.mxu0 0
      %1058 = vmatpush1.bf16.msra.mxu0 0
      %1059 = vmatprep.subr.bf16.mxu0 0
      %1060 = vmatpush1.bf16.msra.mxu0 0
      %1061 = vmatprep.subr.bf16.mxu0 0
      %1062 = vmatpush1.bf16.msra.mxu0 0
      %1063 = vmatprep.subr.bf16.mxu0 0
      %1064 = vmatpush1.bf16.msra.mxu0 0
      %1065 = vmatprep.subr.bf16.mxu0 0
      %1066 = vmatpush1.bf16.msra.mxu0 0
      %1067 = vmatprep.subr.bf16.mxu0 0
      %1068 = vmatpush1.bf16.msra.mxu0 0
      %1069 = vmatprep.subr.bf16.mxu0 0
      %1070 = vmatpush1.bf16.msra.mxu0 0
      %1071 = vmatprep.subr.bf16.mxu0 0
      %1072 = vmatpush1.bf16.msra.mxu0 %v1055
      %1073 = vmatprep.subr.bf16.mxu0 0
      %1074 = vmatpush2.bf16.msra.mxu0 0
      %1075 = vmatprep.subr.bf16.mxu0 0
      %1076 = vmatpush2.bf16.msra.mxu0 0
      %1077 = vmatprep.subr.bf16.mxu0 0
      %1078 = vmatpush2.bf16.msra.mxu0 0
      %1079 = vmatprep.subr.bf16.mxu0 0
      %1080 = vmatpush2.bf16.msra.mxu0 0
      %1081 = vmatprep.subr.bf16.mxu0 0
      %1082 = vmatpush2.bf16.msra.mxu0 0
      %1083 = vmatprep.subr.bf16.mxu0 0
      %1084 = vmatpush2.bf16.msra.mxu0 0
      %1085 = vmatprep.subr.bf16.mxu0 0
      %1086 = vmatpush2.bf16.msra.mxu0 0
      %1087 = vmatprep.subr.bf16.mxu0 0
      %1088 = vmatpush2.bf16.msra.mxu0 0
      %1089 = vmatprep.mubr.bf16.mxu0 0
      %1090 = vmatmul.mubr.bf16.gmra.mxu0 %v1052
      %v1091 = vpop.f32.mrf.mxu0
      %v1092 = vadd.f32 0.0, %v1091
      %v1093 = vpop.f32.mrf.mxu0
      %v1094 = vpop.f32.mrf.mxu0
      %v1095 = vpop.f32.mrf.mxu0
      %1096 = vdwg.mxu0
      %1097 = vrot.lane.b32.xlu0 %v871, 112
      %v1098 = vpop.permute.xlu0 %1097
      %1099 = vrot.lane.b32.xlu0 %v872, 112
      %v1100 = vpop.permute.xlu0 %1099
      %v1102 = vsel %vm873, %v1098, 0
      %v1105 = vsel %vm873, %v1100, 0
      %1107 = vmatprep.subr.bf16.mxu0 0
      %1108 = vmatpush1.bf16.xpose.msra.mxu0 0
      %1109 = vmatprep.subr.bf16.mxu0 0
      %1110 = vmatpush1.bf16.xpose.msra.mxu0 0
      %1111 = vmatprep.subr.bf16.mxu0 0
      %1112 = vmatpush1.bf16.xpose.msra.mxu0 0
      %1113 = vmatprep.subr.bf16.mxu0 0
      %1114 = vmatpush1.bf16.xpose.msra.mxu0 0
      %1115 = vmatprep.subr.bf16.mxu0 0
      %1116 = vmatpush1.bf16.xpose.msra.mxu0 0
      %1117 = vmatprep.subr.bf16.mxu0 0
      %1118 = vmatpush1.bf16.xpose.msra.mxu0 0
      %1119 = vmatprep.subr.bf16.mxu0 0
      %1120 = vmatpush1.bf16.xpose.msra.mxu0 0
      %1121 = vmatprep.subr.bf16.mxu0 0
      %1122 = vmatpush1.bf16.xpose.msra.mxu0 %v1105
      %1123 = vmatprep.subr.bf16.mxu0 0
      %1124 = vmatpush2.bf16.xpose.msra.mxu0 0
      %1125 = vmatprep.subr.bf16.mxu0 0
      %1126 = vmatpush2.bf16.xpose.msra.mxu0 0
      %1127 = vmatprep.subr.bf16.mxu0 0
      %1128 = vmatpush2.bf16.xpose.msra.mxu0 0
      %1129 = vmatprep.subr.bf16.mxu0 0
      %1130 = vmatpush2.bf16.xpose.msra.mxu0 0
      %1131 = vmatprep.subr.bf16.mxu0 0
      %1132 = vmatpush2.bf16.xpose.msra.mxu0 0
      %1133 = vmatprep.subr.bf16.mxu0 0
      %1134 = vmatpush2.bf16.xpose.msra.mxu0 0
      %1135 = vmatprep.subr.bf16.mxu0 0
      %1136 = vmatpush2.bf16.xpose.msra.mxu0 0
      %1137 = vmatprep.subr.bf16.mxu0 0
      %1138 = vmatpush2.bf16.xpose.msra.mxu0 0
      %1139 = vmatprep.mubr.bf16.mxu0 0
      %1140 = vmatmul.mubr.bf16.gmra.mxu0 %v1102
      %v1141 = vpop.f32.mrf.mxu0
      %v1142 = vadd.f32 0.0, %v1141
      %v1143 = vpop.f32.mrf.mxu0
      %v1144 = vpop.f32.mrf.mxu0
      %v1145 = vpop.f32.mrf.mxu0
      %1146 = vdwg.mxu0
      %v1147 = vmul.f32 %v1142, %v725
      %v1148 = vadd.f32 %v1147, %v869
      %v1149 = vsel %vm873, %v1148, -inf
      %1150 = vmax.xlane.f32.xlu0 %v1149
      %v1151 = vpop.xlane.xlu0 %1150
      %v1152 = vsub.f32 %v1148, %v1151
      %v1153 = vmul.f32 %v1152, 1.442695
      %v1154 = vpow.pop %v1153
      %v1155 = vsel %vm873, %v1154, 0.0
      %1156 = vadd.xlane.f32.xlu0 %v1155
      %v1157 = vpop.xlane.xlu0 %1156
      %v1158 = vrcp.pop %v1157
      %v1159 = vmul.f32 %v1154, %v1158
      %v1160 = vpack.c.bf16 %v1159, %v1159
      %1161 = vrot.lane.b32.xlu0 %v872, 80
      %v1162 = vpop.permute.xlu0 %1161
      %v1164 = vsel %vm873, %v1160, 0
      %v1167 = vsel %vm940, %v1162, 0
      %1169 = vmatprep.subr.bf16.mxu0 0
      %1170 = vmatpush1.bf16.msra.mxu0 0
      %1171 = vmatprep.subr.bf16.mxu0 0
      %1172 = vmatpush1.bf16.msra.mxu0 0
      %1173 = vmatprep.subr.bf16.mxu0 0
      %1174 = vmatpush1.bf16.msra.mxu0 0
      %1175 = vmatprep.subr.bf16.mxu0 0
      %1176 = vmatpush1.bf16.msra.mxu0 0
      %1177 = vmatprep.subr.bf16.mxu0 0
      %1178 = vmatpush1.bf16.msra.mxu0 0
      %1179 = vmatprep.subr.bf16.mxu0 0
      %1180 = vmatpush1.bf16.msra.mxu0 0
      %1181 = vmatprep.subr.bf16.mxu0 0
      %1182 = vmatpush1.bf16.msra.mxu0 0
      %1183 = vmatprep.subr.bf16.mxu0 0
      %1184 = vmatpush1.bf16.msra.mxu0 %v1167
      %1185 = vmatprep.subr.bf16.mxu0 0
      %1186 = vmatpush2.bf16.msra.mxu0 0
      %1187 = vmatprep.subr.bf16.mxu0 0
      %1188 = vmatpush2.bf16.msra.mxu0 0
      %1189 = vmatprep.subr.bf16.mxu0 0
      %1190 = vmatpush2.bf16.msra.mxu0 0
      %1191 = vmatprep.subr.bf16.mxu0 0
      %1192 = vmatpush2.bf16.msra.mxu0 0
      %1193 = vmatprep.subr.bf16.mxu0 0
      %1194 = vmatpush2.bf16.msra.mxu0 0
      %1195 = vmatprep.subr.bf16.mxu0 0
      %1196 = vmatpush2.bf16.msra.mxu0 0
      %1197 = vmatprep.subr.bf16.mxu0 0
      %1198 = vmatpush2.bf16.msra.mxu0 0
      %1199 = vmatprep.subr.bf16.mxu0 0
      %1200 = vmatpush2.bf16.msra.mxu0 0
      %1201 = vmatprep.mubr.bf16.mxu0 0
      %1202 = vmatmul.mubr.bf16.gmra.mxu0 %v1164
      %v1203 = vpop.f32.mrf.mxu0
      %v1204 = vadd.f32 0.0, %v1203
      %v1205 = vpop.f32.mrf.mxu0
      %v1206 = vpop.f32.mrf.mxu0
      %v1207 = vpop.f32.mrf.mxu0
      %1208 = vdwg.mxu0
      %1209 = vrot.lane.b32.xlu0 %v871, 104
      %v1210 = vpop.permute.xlu0 %1209
      %1211 = vrot.lane.b32.xlu0 %v872, 104
      %v1212 = vpop.permute.xlu0 %1211
      %v1214 = vsel %vm873, %v1210, 0
      %v1217 = vsel %vm873, %v1212, 0
      %1219 = vmatprep.subr.bf16.mxu0 0
      %1220 = vmatpush1.bf16.xpose.msra.mxu0 0
      %1221 = vmatprep.subr.bf16.mxu0 0
      %1222 = vmatpush1.bf16.xpose.msra.mxu0 0
      %1223 = vmatprep.subr.bf16.mxu0 0
      %1224 = vmatpush1.bf16.xpose.msra.mxu0 0
      %1225 = vmatprep.subr.bf16.mxu0 0
      %1226 = vmatpush1.bf16.xpose.msra.mxu0 0
      %1227 = vmatprep.subr.bf16.mxu0 0
      %1228 = vmatpush1.bf16.xpose.msra.mxu0 0
      %1229 = vmatprep.subr.bf16.mxu0 0
      %1230 = vmatpush1.bf16.xpose.msra.mxu0 0
      %1231 = vmatprep.subr.bf16.mxu0 0
      %1232 = vmatpush1.bf16.xpose.msra.mxu0 0
      %1233 = vmatprep.subr.bf16.mxu0 0
      %1234 = vmatpush1.bf16.xpose.msra.mxu0 %v1217
      %1235 = vmatprep.subr.bf16.mxu0 0
      %1236 = vmatpush2.bf16.xpose.msra.mxu0 0
      %1237 = vmatprep.subr.bf16.mxu0 0
      %1238 = vmatpush2.bf16.xpose.msra.mxu0 0
      %1239 = vmatprep.subr.bf16.mxu0 0
      %1240 = vmatpush2.bf16.xpose.msra.mxu0 0
      %1241 = vmatprep.subr.bf16.mxu0 0
      %1242 = vmatpush2.bf16.xpose.msra.mxu0 0
      %1243 = vmatprep.subr.bf16.mxu0 0
      %1244 = vmatpush2.bf16.xpose.msra.mxu0 0
      %1245 = vmatprep.subr.bf16.mxu0 0
      %1246 = vmatpush2.bf16.xpose.msra.mxu0 0
      %1247 = vmatprep.subr.bf16.mxu0 0
      %1248 = vmatpush2.bf16.xpose.msra.mxu0 0
      %1249 = vmatprep.subr.bf16.mxu0 0
      %1250 = vmatpush2.bf16.xpose.msra.mxu0 0
      %1251 = vmatprep.mubr.bf16.mxu0 0
      %1252 = vmatmul.mubr.bf16.gmra.mxu0 %v1214
      %v1253 = vpop.f32.mrf.mxu0
      %v1254 = vadd.f32 0.0, %v1253
      %v1255 = vpop.f32.mrf.mxu0
      %v1256 = vpop.f32.mrf.mxu0
      %v1257 = vpop.f32.mrf.mxu0
      %1258 = vdwg.mxu0
      %v1259 = vmul.f32 %v1254, %v725
      %v1260 = vadd.f32 %v1259, %v869
      %v1261 = vsel %vm873, %v1260, -inf
      %1262 = vmax.xlane.f32.xlu0 %v1261
      %v1263 = vpop.xlane.xlu0 %1262
      %v1264 = vsub.f32 %v1260, %v1263
      %v1265 = vmul.f32 %v1264, 1.442695
      %v1266 = vpow.pop %v1265
      %v1267 = vsel %vm873, %v1266, 0.0
      %1268 = vadd.xlane.f32.xlu0 %v1267
      %v1269 = vpop.xlane.xlu0 %1268
      %v1270 = vrcp.pop %v1269
      %v1271 = vmul.f32 %v1266, %v1270
      %v1272 = vpack.c.bf16 %v1271, %v1271
      %1273 = vrot.lane.b32.xlu0 %v872, 72
      %v1274 = vpop.permute.xlu0 %1273
      %v1276 = vsel %vm873, %v1272, 0
      %v1279 = vsel %vm940, %v1274, 0
      %1281 = vmatprep.subr.bf16.mxu0 0
      %1282 = vmatpush1.bf16.msra.mxu0 0
      %1283 = vmatprep.subr.bf16.mxu0 0
      %1284 = vmatpush1.bf16.msra.mxu0 0
      %1285 = vmatprep.subr.bf16.mxu0 0
      %1286 = vmatpush1.bf16.msra.mxu0 0
      %1287 = vmatprep.subr.bf16.mxu0 0
      %1288 = vmatpush1.bf16.msra.mxu0 0
      %1289 = vmatprep.subr.bf16.mxu0 0
      %1290 = vmatpush1.bf16.msra.mxu0 0
      %1291 = vmatprep.subr.bf16.mxu0 0
      %1292 = vmatpush1.bf16.msra.mxu0 0
      %1293 = vmatprep.subr.bf16.mxu0 0
      %1294 = vmatpush1.bf16.msra.mxu0 0
      %1295 = vmatprep.subr.bf16.mxu0 0
      %1296 = vmatpush1.bf16.msra.mxu0 %v1279
      %1297 = vmatprep.subr.bf16.mxu0 0
      %1298 = vmatpush2.bf16.msra.mxu0 0
      %1299 = vmatprep.subr.bf16.mxu0 0
      %1300 = vmatpush2.bf16.msra.mxu0 0
      %1301 = vmatprep.subr.bf16.mxu0 0
      %1302 = vmatpush2.bf16.msra.mxu0 0
      %1303 = vmatprep.subr.bf16.mxu0 0
      %1304 = vmatpush2.bf16.msra.mxu0 0
      %1305 = vmatprep.subr.bf16.mxu0 0
      %1306 = vmatpush2.bf16.msra.mxu0 0
      %1307 = vmatprep.subr.bf16.mxu0 0
      %1308 = vmatpush2.bf16.msra.mxu0 0
      %1309 = vmatprep.subr.bf16.mxu0 0
      %1310 = vmatpush2.bf16.msra.mxu0 0
      %1311 = vmatprep.subr.bf16.mxu0 0
      %1312 = vmatpush2.bf16.msra.mxu0 0
      %1313 = vmatprep.mubr.bf16.mxu0 0
      %1314 = vmatmul.mubr.bf16.gmra.mxu0 %v1276
      %v1315 = vpop.f32.mrf.mxu0
      %v1316 = vadd.f32 0.0, %v1315
      %v1317 = vpop.f32.mrf.mxu0
      %v1318 = vpop.f32.mrf.mxu0
      %v1319 = vpop.f32.mrf.mxu0
      %1320 = vdwg.mxu0
      %1322 = vrot.lane.b32.xlu0 %v1092, 8
      %v1323 = vpop.permute.xlu0 %1322
      %1326 = vrot.lane.b32.xlu0 %v1204, 16
      %v1327 = vpop.permute.xlu0 %1326
      %1330 = vrot.lane.b32.xlu0 %v1316, 24
      %v1331 = vpop.permute.xlu0 %1330
      %v1333 = vsel %vm873, %v979, %v1323
      %vm1334 = vcmask 130048
      %v1335 = vsel %vm1334, %v1333, %v1327
      %vm1336 = vcmask 195584
      %v1337 = vsel %vm1336, %v1335, %v1331
      %v1338 = vpack.c.bf16 %v805, %v805
      %v1339 = vpack.c.bf16 %v864, %v864
      %v1341 = vsel %vm873, %v1338, 0
      %v1344 = vsel %vm873, %v1339, 0
      %1346 = vmatprep.subr.bf16.mxu0 0
      %1347 = vmatpush1.bf16.xpose.msra.mxu0 0
      %1348 = vmatprep.subr.bf16.mxu0 0
      %1349 = vmatpush1.bf16.xpose.msra.mxu0 0
      %1350 = vmatprep.subr.bf16.mxu0 0
      %1351 = vmatpush1.bf16.xpose.msra.mxu0 0
      %1352 = vmatprep.subr.bf16.mxu0 0
      %1353 = vmatpush1.bf16.xpose.msra.mxu0 0
      %1354 = vmatprep.subr.bf16.mxu0 0
      %1355 = vmatpush1.bf16.xpose.msra.mxu0 0
      %1356 = vmatprep.subr.bf16.mxu0 0
      %1357 = vmatpush1.bf16.xpose.msra.mxu0 0
      %1358 = vmatprep.subr.bf16.mxu0 0
      %1359 = vmatpush1.bf16.xpose.msra.mxu0 0
      %1360 = vmatprep.subr.bf16.mxu0 0
      %1361 = vmatpush1.bf16.xpose.msra.mxu0 %v1344
      %1362 = vmatprep.subr.bf16.mxu0 0
      %1363 = vmatpush2.bf16.xpose.msra.mxu0 0
      %1364 = vmatprep.subr.bf16.mxu0 0
      %1365 = vmatpush2.bf16.xpose.msra.mxu0 0
      %1366 = vmatprep.subr.bf16.mxu0 0
      %1367 = vmatpush2.bf16.xpose.msra.mxu0 0
      %1368 = vmatprep.subr.bf16.mxu0 0
      %1369 = vmatpush2.bf16.xpose.msra.mxu0 0
      %1370 = vmatprep.subr.bf16.mxu0 0
      %1371 = vmatpush2.bf16.xpose.msra.mxu0 0
      %1372 = vmatprep.subr.bf16.mxu0 0
      %1373 = vmatpush2.bf16.xpose.msra.mxu0 0
      %1374 = vmatprep.subr.bf16.mxu0 0
      %1375 = vmatpush2.bf16.xpose.msra.mxu0 0
      %1376 = vmatprep.subr.bf16.mxu0 0
      %1377 = vmatpush2.bf16.xpose.msra.mxu0 0
      %1378 = vmatprep.mubr.bf16.mxu0 0
      %1379 = vmatmul.mubr.bf16.gmra.mxu0 %v1341
      %v1380 = vpop.f32.mrf.mxu0
      %v1381 = vadd.f32 0.0, %v1380
      %v1382 = vpop.f32.mrf.mxu0
      %v1383 = vpop.f32.mrf.mxu0
      %v1384 = vpop.f32.mrf.mxu0
      %1385 = vdwg.mxu0
      %v1386 = vmul.f32 %v1381, %v726
      %v1387 = vadd.f32 %v1386, %v870
      %v1388 = vsel %vm873, %v1387, -inf
      %1389 = vmax.xlane.f32.xlu0 %v1388
      %v1390 = vpop.xlane.xlu0 %1389
      %v1391 = vsub.f32 %v1387, %v1390
      %v1392 = vmul.f32 %v1391, 1.442695
      %v1393 = vpow.pop %v1392
      %v1394 = vsel %vm873, %v1393, 0.0
      %1395 = vadd.xlane.f32.xlu0 %v1394
      %v1396 = vpop.xlane.xlu0 %1395
      %v1397 = vrcp.pop %v1396
      %v1398 = vmul.f32 %v1393, %v1397
      %v1399 = vpack.c.bf16 %v1398, %v1398
      %1401 = vrot.lane.b32.xlu0 %v1339, 96
      %v1402 = vpop.permute.xlu0 %1401
      %v1404 = vsel %vm873, %v1399, 0
      %v1407 = vsel %vm940, %v1402, 0
      %1409 = vmatprep.subr.bf16.mxu0 0
      %1410 = vmatpush1.bf16.msra.mxu0 0
      %1411 = vmatprep.subr.bf16.mxu0 0
      %1412 = vmatpush1.bf16.msra.mxu0 0
      %1413 = vmatprep.subr.bf16.mxu0 0
      %1414 = vmatpush1.bf16.msra.mxu0 0
      %1415 = vmatprep.subr.bf16.mxu0 0
      %1416 = vmatpush1.bf16.msra.mxu0 0
      %1417 = vmatprep.subr.bf16.mxu0 0
      %1418 = vmatpush1.bf16.msra.mxu0 0
      %1419 = vmatprep.subr.bf16.mxu0 0
      %1420 = vmatpush1.bf16.msra.mxu0 0
      %1421 = vmatprep.subr.bf16.mxu0 0
      %1422 = vmatpush1.bf16.msra.mxu0 0
      %1423 = vmatprep.subr.bf16.mxu0 0
      %1424 = vmatpush1.bf16.msra.mxu0 %v1407
      %1425 = vmatprep.subr.bf16.mxu0 0
      %1426 = vmatpush2.bf16.msra.mxu0 0
      %1427 = vmatprep.subr.bf16.mxu0 0
      %1428 = vmatpush2.bf16.msra.mxu0 0
      %1429 = vmatprep.subr.bf16.mxu0 0
      %1430 = vmatpush2.bf16.msra.mxu0 0
      %1431 = vmatprep.subr.bf16.mxu0 0
      %1432 = vmatpush2.bf16.msra.mxu0 0
      %1433 = vmatprep.subr.bf16.mxu0 0
      %1434 = vmatpush2.bf16.msra.mxu0 0
      %1435 = vmatprep.subr.bf16.mxu0 0
      %1436 = vmatpush2.bf16.msra.mxu0 0
      %1437 = vmatprep.subr.bf16.mxu0 0
      %1438 = vmatpush2.bf16.msra.mxu0 0
      %1439 = vmatprep.subr.bf16.mxu0 0
      %1440 = vmatpush2.bf16.msra.mxu0 0
      %1441 = vmatprep.mubr.bf16.mxu0 0
      %1442 = vmatmul.mubr.bf16.gmra.mxu0 %v1404
      %v1443 = vpop.f32.mrf.mxu0
      %v1444 = vadd.f32 0.0, %v1443
      %v1445 = vpop.f32.mrf.mxu0
      %v1446 = vpop.f32.mrf.mxu0
      %v1447 = vpop.f32.mrf.mxu0
      %1448 = vdwg.mxu0
      %1450 = vrot.lane.b32.xlu0 %v1338, 120
      %v1451 = vpop.permute.xlu0 %1450
      %1452 = vrot.lane.b32.xlu0 %v1339, 120
      %v1453 = vpop.permute.xlu0 %1452
      %v1455 = vsel %vm873, %v1451, 0
      %v1458 = vsel %vm873, %v1453, 0
      %1460 = vmatprep.subr.bf16.mxu0 0
      %1461 = vmatpush1.bf16.xpose.msra.mxu0 0
      %1462 = vmatprep.subr.bf16.mxu0 0
      %1463 = vmatpush1.bf16.xpose.msra.mxu0 0
      %1464 = vmatprep.subr.bf16.mxu0 0
      %1465 = vmatpush1.bf16.xpose.msra.mxu0 0
      %1466 = vmatprep.subr.bf16.mxu0 0
      %1467 = vmatpush1.bf16.xpose.msra.mxu0 0
      %1468 = vmatprep.subr.bf16.mxu0 0
      %1469 = vmatpush1.bf16.xpose.msra.mxu0 0
      %1470 = vmatprep.subr.bf16.mxu0 0
      %1471 = vmatpush1.bf16.xpose.msra.mxu0 0
      %1472 = vmatprep.subr.bf16.mxu0 0
      %1473 = vmatpush1.bf16.xpose.msra.mxu0 0
      %1474 = vmatprep.subr.bf16.mxu0 0
      %1475 = vmatpush1.bf16.xpose.msra.mxu0 %v1458
      %1476 = vmatprep.subr.bf16.mxu0 0
      %1477 = vmatpush2.bf16.xpose.msra.mxu0 0
      %1478 = vmatprep.subr.bf16.mxu0 0
      %1479 = vmatpush2.bf16.xpose.msra.mxu0 0
      %1480 = vmatprep.subr.bf16.mxu0 0
      %1481 = vmatpush2.bf16.xpose.msra.mxu0 0
      %1482 = vmatprep.subr.bf16.mxu0 0
      %1483 = vmatpush2.bf16.xpose.msra.mxu0 0
      %1484 = vmatprep.subr.bf16.mxu0 0
      %1485 = vmatpush2.bf16.xpose.msra.mxu0 0
      %1486 = vmatprep.subr.bf16.mxu0 0
      %1487 = vmatpush2.bf16.xpose.msra.mxu0 0
      %1488 = vmatprep.subr.bf16.mxu0 0
      %1489 = vmatpush2.bf16.xpose.msra.mxu0 0
      %1490 = vmatprep.subr.bf16.mxu0 0
      %1491 = vmatpush2.bf16.xpose.msra.mxu0 0
      %1492 = vmatprep.mubr.bf16.mxu0 0
      %1493 = vmatmul.mubr.bf16.gmra.mxu0 %v1455
      %v1494 = vpop.f32.mrf.mxu0
      %v1495 = vadd.f32 0.0, %v1494
      %v1496 = vpop.f32.mrf.mxu0
      %v1497 = vpop.f32.mrf.mxu0
      %v1498 = vpop.f32.mrf.mxu0
      %1499 = vdwg.mxu0
      %v1500 = vmul.f32 %v1495, %v726
      %v1501 = vadd.f32 %v1500, %v870
      %v1502 = vsel %vm873, %v1501, -inf
      %1503 = vmax.xlane.f32.xlu0 %v1502
      %v1504 = vpop.xlane.xlu0 %1503
      %v1505 = vsub.f32 %v1501, %v1504
      %v1506 = vmul.f32 %v1505, 1.442695
      %v1507 = vpow.pop %v1506
      %v1508 = vsel %vm873, %v1507, 0.0
      %1509 = vadd.xlane.f32.xlu0 %v1508
      %v1510 = vpop.xlane.xlu0 %1509
      %v1511 = vrcp.pop %v1510
      %v1512 = vmul.f32 %v1507, %v1511
      %v1513 = vpack.c.bf16 %v1512, %v1512
      %1514 = vrot.lane.b32.xlu0 %v1339, 88
      %v1515 = vpop.permute.xlu0 %1514
      %v1517 = vsel %vm873, %v1513, 0
      %v1520 = vsel %vm940, %v1515, 0
      %1522 = vmatprep.subr.bf16.mxu0 0
      %1523 = vmatpush1.bf16.msra.mxu0 0
      %1524 = vmatprep.subr.bf16.mxu0 0
      %1525 = vmatpush1.bf16.msra.mxu0 0
      %1526 = vmatprep.subr.bf16.mxu0 0
      %1527 = vmatpush1.bf16.msra.mxu0 0
      %1528 = vmatprep.subr.bf16.mxu0 0
      %1529 = vmatpush1.bf16.msra.mxu0 0
      %1530 = vmatprep.subr.bf16.mxu0 0
      %1531 = vmatpush1.bf16.msra.mxu0 0
      %1532 = vmatprep.subr.bf16.mxu0 0
      %1533 = vmatpush1.bf16.msra.mxu0 0
      %1534 = vmatprep.subr.bf16.mxu0 0
      %1535 = vmatpush1.bf16.msra.mxu0 0
      %1536 = vmatprep.subr.bf16.mxu0 0
      %1537 = vmatpush1.bf16.msra.mxu0 %v1520
      %1538 = vmatprep.subr.bf16.mxu0 0
      %1539 = vmatpush2.bf16.msra.mxu0 0
      %1540 = vmatprep.subr.bf16.mxu0 0
      %1541 = vmatpush2.bf16.msra.mxu0 0
      %1542 = vmatprep.subr.bf16.mxu0 0
      %1543 = vmatpush2.bf16.msra.mxu0 0
      %1544 = vmatprep.subr.bf16.mxu0 0
      %1545 = vmatpush2.bf16.msra.mxu0 0
      %1546 = vmatprep.subr.bf16.mxu0 0
      %1547 = vmatpush2.bf16.msra.mxu0 0
      %1548 = vmatprep.subr.bf16.mxu0 0
      %1549 = vmatpush2.bf16.msra.mxu0 0
      %1550 = vmatprep.subr.bf16.mxu0 0
      %1551 = vmatpush2.bf16.msra.mxu0 0
      %1552 = vmatprep.subr.bf16.mxu0 0
      %1553 = vmatpush2.bf16.msra.mxu0 0
      %1554 = vmatprep.mubr.bf16.mxu0 0
      %1555 = vmatmul.mubr.bf16.gmra.mxu0 %v1517
      %v1556 = vpop.f32.mrf.mxu0
      %v1557 = vadd.f32 0.0, %v1556
      %v1558 = vpop.f32.mrf.mxu0
      %v1559 = vpop.f32.mrf.mxu0
      %v1560 = vpop.f32.mrf.mxu0
      %1561 = vdwg.mxu0
      %1562 = vrot.lane.b32.xlu0 %v1338, 112
      %v1563 = vpop.permute.xlu0 %1562
      %1564 = vrot.lane.b32.xlu0 %v1339, 112
      %v1565 = vpop.permute.xlu0 %1564
      %v1567 = vsel %vm873, %v1563, 0
      %v1570 = vsel %vm873, %v1565, 0
      %1572 = vmatprep.subr.bf16.mxu0 0
      %1573 = vmatpush1.bf16.xpose.msra.mxu0 0
      %1574 = vmatprep.subr.bf16.mxu0 0
      %1575 = vmatpush1.bf16.xpose.msra.mxu0 0
      %1576 = vmatprep.subr.bf16.mxu0 0
      %1577 = vmatpush1.bf16.xpose.msra.mxu0 0
      %1578 = vmatprep.subr.bf16.mxu0 0
      %1579 = vmatpush1.bf16.xpose.msra.mxu0 0
      %1580 = vmatprep.subr.bf16.mxu0 0
      %1581 = vmatpush1.bf16.xpose.msra.mxu0 0
      %1582 = vmatprep.subr.bf16.mxu0 0
      %1583 = vmatpush1.bf16.xpose.msra.mxu0 0
      %1584 = vmatprep.subr.bf16.mxu0 0
      %1585 = vmatpush1.bf16.xpose.msra.mxu0 0
      %1586 = vmatprep.subr.bf16.mxu0 0
      %1587 = vmatpush1.bf16.xpose.msra.mxu0 %v1570
      %1588 = vmatprep.subr.bf16.mxu0 0
      %1589 = vmatpush2.bf16.xpose.msra.mxu0 0
      %1590 = vmatprep.subr.bf16.mxu0 0
      %1591 = vmatpush2.bf16.xpose.msra.mxu0 0
      %1592 = vmatprep.subr.bf16.mxu0 0
      %1593 = vmatpush2.bf16.xpose.msra.mxu0 0
      %1594 = vmatprep.subr.bf16.mxu0 0
      %1595 = vmatpush2.bf16.xpose.msra.mxu0 0
      %1596 = vmatprep.subr.bf16.mxu0 0
      %1597 = vmatpush2.bf16.xpose.msra.mxu0 0
      %1598 = vmatprep.subr.bf16.mxu0 0
      %1599 = vmatpush2.bf16.xpose.msra.mxu0 0
      %1600 = vmatprep.subr.bf16.mxu0 0
      %1601 = vmatpush2.bf16.xpose.msra.mxu0 0
      %1602 = vmatprep.subr.bf16.mxu0 0
      %1603 = vmatpush2.bf16.xpose.msra.mxu0 0
      %1604 = vmatprep.mubr.bf16.mxu0 0
      %1605 = vmatmul.mubr.bf16.gmra.mxu0 %v1567
      %v1606 = vpop.f32.mrf.mxu0
      %v1607 = vadd.f32 0.0, %v1606
      %v1608 = vpop.f32.mrf.mxu0
      %v1609 = vpop.f32.mrf.mxu0
      %v1610 = vpop.f32.mrf.mxu0
      %1611 = vdwg.mxu0
      %v1612 = vmul.f32 %v1607, %v726
      %v1613 = vadd.f32 %v1612, %v870
      %v1614 = vsel %vm873, %v1613, -inf
      %1615 = vmax.xlane.f32.xlu0 %v1614
      %v1616 = vpop.xlane.xlu0 %1615
      %v1617 = vsub.f32 %v1613, %v1616
      %v1618 = vmul.f32 %v1617, 1.442695
      %v1619 = vpow.pop %v1618
      %v1620 = vsel %vm873, %v1619, 0.0
      %1621 = vadd.xlane.f32.xlu0 %v1620
      %v1622 = vpop.xlane.xlu0 %1621
      %v1623 = vrcp.pop %v1622
      %v1624 = vmul.f32 %v1619, %v1623
      %v1625 = vpack.c.bf16 %v1624, %v1624
      %1626 = vrot.lane.b32.xlu0 %v1339, 80
      %v1627 = vpop.permute.xlu0 %1626
      %v1629 = vsel %vm873, %v1625, 0
      %v1632 = vsel %vm940, %v1627, 0
      %1634 = vmatprep.subr.bf16.mxu0 0
      %1635 = vmatpush1.bf16.msra.mxu0 0
      %1636 = vmatprep.subr.bf16.mxu0 0
      %1637 = vmatpush1.bf16.msra.mxu0 0
      %1638 = vmatprep.subr.bf16.mxu0 0
      %1639 = vmatpush1.bf16.msra.mxu0 0
      %1640 = vmatprep.subr.bf16.mxu0 0
      %1641 = vmatpush1.bf16.msra.mxu0 0
      %1642 = vmatprep.subr.bf16.mxu0 0
      %1643 = vmatpush1.bf16.msra.mxu0 0
      %1644 = vmatprep.subr.bf16.mxu0 0
      %1645 = vmatpush1.bf16.msra.mxu0 0
      %1646 = vmatprep.subr.bf16.mxu0 0
      %1647 = vmatpush1.bf16.msra.mxu0 0
      %1648 = vmatprep.subr.bf16.mxu0 0
      %1649 = vmatpush1.bf16.msra.mxu0 %v1632
      %1650 = vmatprep.subr.bf16.mxu0 0
      %1651 = vmatpush2.bf16.msra.mxu0 0
      %1652 = vmatprep.subr.bf16.mxu0 0
      %1653 = vmatpush2.bf16.msra.mxu0 0
      %1654 = vmatprep.subr.bf16.mxu0 0
      %1655 = vmatpush2.bf16.msra.mxu0 0
      %1656 = vmatprep.subr.bf16.mxu0 0
      %1657 = vmatpush2.bf16.msra.mxu0 0
      %1658 = vmatprep.subr.bf16.mxu0 0
      %1659 = vmatpush2.bf16.msra.mxu0 0
      %1660 = vmatprep.subr.bf16.mxu0 0
      %1661 = vmatpush2.bf16.msra.mxu0 0
      %1662 = vmatprep.subr.bf16.mxu0 0
      %1663 = vmatpush2.bf16.msra.mxu0 0
      %1664 = vmatprep.subr.bf16.mxu0 0
      %1665 = vmatpush2.bf16.msra.mxu0 0
      %1666 = vmatprep.mubr.bf16.mxu0 0
      %1667 = vmatmul.mubr.bf16.gmra.mxu0 %v1629
      %v1668 = vpop.f32.mrf.mxu0
      %v1669 = vadd.f32 0.0, %v1668
      %v1670 = vpop.f32.mrf.mxu0
      %v1671 = vpop.f32.mrf.mxu0
      %v1672 = vpop.f32.mrf.mxu0
      %1673 = vdwg.mxu0
      %1674 = vrot.lane.b32.xlu0 %v1338, 104
      %v1675 = vpop.permute.xlu0 %1674
      %1676 = vrot.lane.b32.xlu0 %v1339, 104
      %v1677 = vpop.permute.xlu0 %1676
      %v1679 = vsel %vm873, %v1675, 0
      %v1682 = vsel %vm873, %v1677, 0
      %1684 = vmatprep.subr.bf16.mxu0 0
      %1685 = vmatpush1.bf16.xpose.msra.mxu0 0
      %1686 = vmatprep.subr.bf16.mxu0 0
      %1687 = vmatpush1.bf16.xpose.msra.mxu0 0
      %1688 = vmatprep.subr.bf16.mxu0 0
      %1689 = vmatpush1.bf16.xpose.msra.mxu0 0
      %1690 = vmatprep.subr.bf16.mxu0 0
      %1691 = vmatpush1.bf16.xpose.msra.mxu0 0
      %1692 = vmatprep.subr.bf16.mxu0 0
      %1693 = vmatpush1.bf16.xpose.msra.mxu0 0
      %1694 = vmatprep.subr.bf16.mxu0 0
      %1695 = vmatpush1.bf16.xpose.msra.mxu0 0
      %1696 = vmatprep.subr.bf16.mxu0 0
      %1697 = vmatpush1.bf16.xpose.msra.mxu0 0
      %1698 = vmatprep.subr.bf16.mxu0 0
      %1699 = vmatpush1.bf16.xpose.msra.mxu0 %v1682
      %1700 = vmatprep.subr.bf16.mxu0 0
      %1701 = vmatpush2.bf16.xpose.msra.mxu0 0
      %1702 = vmatprep.subr.bf16.mxu0 0
      %1703 = vmatpush2.bf16.xpose.msra.mxu0 0
      %1704 = vmatprep.subr.bf16.mxu0 0
      %1705 = vmatpush2.bf16.xpose.msra.mxu0 0
      %1706 = vmatprep.subr.bf16.mxu0 0
      %1707 = vmatpush2.bf16.xpose.msra.mxu0 0
      %1708 = vmatprep.subr.bf16.mxu0 0
      %1709 = vmatpush2.bf16.xpose.msra.mxu0 0
      %1710 = vmatprep.subr.bf16.mxu0 0
      %1711 = vmatpush2.bf16.xpose.msra.mxu0 0
      %1712 = vmatprep.subr.bf16.mxu0 0
      %1713 = vmatpush2.bf16.xpose.msra.mxu0 0
      %1714 = vmatprep.subr.bf16.mxu0 0
      %1715 = vmatpush2.bf16.xpose.msra.mxu0 0
      %1716 = vmatprep.mubr.bf16.mxu0 0
      %1717 = vmatmul.mubr.bf16.gmra.mxu0 %v1679
      %v1718 = vpop.f32.mrf.mxu0
      %v1719 = vadd.f32 0.0, %v1718
      %v1720 = vpop.f32.mrf.mxu0
      %v1721 = vpop.f32.mrf.mxu0
      %v1722 = vpop.f32.mrf.mxu0
      %1723 = vdwg.mxu0
      %v1724 = vmul.f32 %v1719, %v726
      %v1725 = vadd.f32 %v1724, %v870
      %v1726 = vsel %vm873, %v1725, -inf
      %1727 = vmax.xlane.f32.xlu0 %v1726
      %v1728 = vpop.xlane.xlu0 %1727
      %v1729 = vsub.f32 %v1725, %v1728
      %v1730 = vmul.f32 %v1729, 1.442695
      %v1731 = vpow.pop %v1730
      %v1732 = vsel %vm873, %v1731, 0.0
      %1733 = vadd.xlane.f32.xlu0 %v1732
      %v1734 = vpop.xlane.xlu0 %1733
      %v1735 = vrcp.pop %v1734
      %v1736 = vmul.f32 %v1731, %v1735
      %v1737 = vpack.c.bf16 %v1736, %v1736
      %1738 = vrot.lane.b32.xlu0 %v1339, 72
      %v1739 = vpop.permute.xlu0 %1738
      %v1741 = vsel %vm873, %v1737, 0
      %v1744 = vsel %vm940, %v1739, 0
      %1746 = vmatprep.subr.bf16.mxu0 0
      %1747 = vmatpush1.bf16.msra.mxu0 0
      %1748 = vmatprep.subr.bf16.mxu0 0
      %1749 = vmatpush1.bf16.msra.mxu0 0
      %1750 = vmatprep.subr.bf16.mxu0 0
      %1751 = vmatpush1.bf16.msra.mxu0 0
      %1752 = vmatprep.subr.bf16.mxu0 0
      %1753 = vmatpush1.bf16.msra.mxu0 0
      %1754 = vmatprep.subr.bf16.mxu0 0
      %1755 = vmatpush1.bf16.msra.mxu0 0
      %1756 = vmatprep.subr.bf16.mxu0 0
      %1757 = vmatpush1.bf16.msra.mxu0 0
      %1758 = vmatprep.subr.bf16.mxu0 0
      %1759 = vmatpush1.bf16.msra.mxu0 0
      %1760 = vmatprep.subr.bf16.mxu0 0
      %1761 = vmatpush1.bf16.msra.mxu0 %v1744
      %1762 = vmatprep.subr.bf16.mxu0 0
      %1763 = vmatpush2.bf16.msra.mxu0 0
      %1764 = vmatprep.subr.bf16.mxu0 0
      %1765 = vmatpush2.bf16.msra.mxu0 0
      %1766 = vmatprep.subr.bf16.mxu0 0
      %1767 = vmatpush2.bf16.msra.mxu0 0
      %1768 = vmatprep.subr.bf16.mxu0 0
      %1769 = vmatpush2.bf16.msra.mxu0 0
      %1770 = vmatprep.subr.bf16.mxu0 0
      %1771 = vmatpush2.bf16.msra.mxu0 0
      %1772 = vmatprep.subr.bf16.mxu0 0
      %1773 = vmatpush2.bf16.msra.mxu0 0
      %1774 = vmatprep.subr.bf16.mxu0 0
      %1775 = vmatpush2.bf16.msra.mxu0 0
      %1776 = vmatprep.subr.bf16.mxu0 0
      %1777 = vmatpush2.bf16.msra.mxu0 0
      %1778 = vmatprep.mubr.bf16.mxu0 0
      %1779 = vmatmul.mubr.bf16.gmra.mxu0 %v1741
      %v1780 = vpop.f32.mrf.mxu0
      %v1781 = vadd.f32 0.0, %v1780
      %v1782 = vpop.f32.mrf.mxu0
      %v1783 = vpop.f32.mrf.mxu0
      %v1784 = vpop.f32.mrf.mxu0
      %1785 = vdwg.mxu0
      %1787 = vrot.lane.b32.xlu0 %v1557, 8
      %v1788 = vpop.permute.xlu0 %1787
      %1791 = vrot.lane.b32.xlu0 %v1669, 16
      %v1792 = vpop.permute.xlu0 %1791
      %1795 = vrot.lane.b32.xlu0 %v1781, 24
      %v1796 = vpop.permute.xlu0 %1795
      %v1798 = vsel %vm873, %v1444, %v1788
      %v1799 = vsel %vm1334, %v1798, %v1792
      %v1800 = vsel %vm1336, %v1799, %v1796
      %v1801 = vpack.c.bf16 %v1800, %v1337
      %v1803 = vlaneseq
      %v1804 = vshrl.u32 %v1803, 7
      %v1805 = vsub.s32 0, %v1804
      %v1806 = vrot.slane %v741, %v1805
      %v1812 = vunpack.c.l.b16 %v737
      %v1813 = vunpack.c.l.b16 %v738
      %v1814 = vunpack.c.l.b16 %v739
      %v1815 = vunpack.c.l.b16 %v740
      %v1816 = vpack.c.b16 %v1813, %v1812
      %v1817 = vpack.c.b16 %v1815, %v1814
      %v1821 = vsel %vm763, %v1801, 0
      %1823 = vmatprep.subr.bf16.mxu0 0
      %1824 = vmatpush1.bf16.msra.mxu0 0
      %1825 = vmatprep.subr.bf16.mxu0 0
      %1826 = vmatpush1.bf16.msra.mxu0 0
      %1827 = vmatprep.subr.bf16.mxu0 0
      %1828 = vmatpush1.bf16.msra.mxu0 0
      %1829 = vmatprep.subr.bf16.mxu0 0
      %1830 = vmatpush1.bf16.msra.mxu0 0
      %1831 = vmatprep.subr.bf16.mxu0 0
      %1832 = vmatpush1.bf16.msra.mxu0 0
      %1833 = vmatprep.subr.bf16.mxu0 0
      %1834 = vmatpush1.bf16.msra.mxu0 0
      %1835 = vmatprep.subr.bf16.mxu0 0
      %1836 = vmatpush1.bf16.msra.mxu0 %v1817
      %1837 = vmatprep.subr.bf16.mxu0 0
      %1838 = vmatpush1.bf16.msra.mxu0 %v1816
      %1839 = vmatprep.subr.bf16.mxu0 0
      %1840 = vmatpush2.bf16.msra.mxu0 0
      %1841 = vmatprep.subr.bf16.mxu0 0
      %1842 = vmatpush2.bf16.msra.mxu0 0
      %1843 = vmatprep.subr.bf16.mxu0 0
      %1844 = vmatpush2.bf16.msra.mxu0 0
      %1845 = vmatprep.subr.bf16.mxu0 0
      %1846 = vmatpush2.bf16.msra.mxu0 0
      %1847 = vmatprep.subr.bf16.mxu0 0
      %1848 = vmatpush2.bf16.msra.mxu0 0
      %1849 = vmatprep.subr.bf16.mxu0 0
      %1850 = vmatpush2.bf16.msra.mxu0 0
      %1851 = vmatprep.subr.bf16.mxu0 0
      %1852 = vmatpush2.bf16.msra.mxu0 0
      %1853 = vmatprep.subr.bf16.mxu0 0
      %1854 = vmatpush2.bf16.msra.mxu0 0
      %1855 = vmatprep.mubr.bf16.mxu0 0
      %1856 = vmatmul.mubr.bf16.gmra.mxu0 %v1821
      %v1857 = vpop.f32.mrf.mxu0
      %v1858 = vadd.f32 %v1806, %v1857
      %v1859 = vpop.f32.mrf.mxu0
      %v1860 = vpop.f32.mrf.mxu0
      %v1861 = vadd.f32 %v1806, %v1860
      %v1862 = vpop.f32.mrf.mxu0
      %1863 = vdwg.mxu0
      %v1864 = vadd.f32 %v1858, %v723
      %v1865 = vadd.f32 %v1861, %v724
      %v1866 = vsel %vm763, %v1864, 0.0
      %1867 = vadd.xlane.f32.xlu0 %v1866
      %v1868 = vpop.xlane.xlu0 %1867
      %v1869 = vsel %vm763, %v1865, 0.0
      %1870 = vadd.xlane.f32.xlu0 %v1869
      %v1871 = vpop.xlane.xlu0 %1870
      %v1872 = vrcp.pop 32.0
      %v1873 = vmul.f32 %v1868, %v1872
      %v1874 = vmul.f32 %v1871, %v1872
      %v1875 = vsub.f32 %v1864, %v1873
      %v1876 = vsub.f32 %v1865, %v1874
      %v1877 = vmul.f32 %v1875, %v1875
      %v1878 = vmul.f32 %v1876, %v1876
      %v1879 = vsel %vm763, %v1877, 0.0
      %1880 = vadd.xlane.f32.xlu0 %v1879
      %v1881 = vpop.xlane.xlu0 %1880
      %v1882 = vsel %vm763, %v1878, 0.0
      %1883 = vadd.xlane.f32.xlu0 %v1882
      %v1884 = vpop.xlane.xlu0 %1883
      %v1885 = vmul.f32 %v1881, %v1872
      %v1886 = vmul.f32 %v1884, %v1872
      %v1887 = vadd.f32 %v1885, 1e-12
      %v1888 = vadd.f32 %v1886, 1e-12
      %v1889 = vrsqrt.pop %v1887
      %v1890 = vrsqrt.pop %v1888
      %v1891 = vmul.f32 %v1875, %v1889
      %v1892 = vmul.f32 %v1876, %v1890
      %v1894 = vlaneseq
      %v1895 = vshrl.u32 %v1894, 7
      %v1896 = vsub.s32 0, %v1895
      %v1897 = vrot.slane %v742, %v1896
      %v1899 = vmul.f32 %v1891, %v1897
      %v1900 = vmul.f32 %v1892, %v1897
      %v1902 = vlaneseq
      %v1903 = vshrl.u32 %v1902, 7
      %v1904 = vsub.s32 0, %v1903
      %v1905 = vrot.slane %v743, %v1904
      %v1907 = vadd.f32 %v1899, %v1905
      %v1908 = vadd.f32 %v1900, %v1905
      %v1909 = vld [vmem:[%s695] sm:$0xf]
      %v1910 = vld [vmem:[%s695 + $0x4] sm:$0xf]
      %v1911 = vld [vmem:[%s695 + $0x8] sm:$0xf]
      %v1912 = vld [vmem:[%s695 + $0xc] sm:$0xf]
      %v1913 = vld [vmem:[%s698] sm:$0x1]
      %v1914 = vld [vmem:[%s703] sm:$0xf]
      %v1915 = vld [vmem:[%s703 + $0x4] sm:$0xf]
      %v1916 = vld [vmem:[%s703 + $0x8] sm:$0xf]
      %v1917 = vld [vmem:[%s703 + $0xc] sm:$0xf]
      %v1918 = vld [vmem:[%s703 + $0x10] sm:$0xf]
      %v1919 = vld [vmem:[%s703 + $0x14] sm:$0xf]
      %v1920 = vld [vmem:[%s703 + $0x18] sm:$0xf]
      %v1921 = vld [vmem:[%s703 + $0x1c] sm:$0xf]
      %v1922 = vld [vmem:[%s706] sm:$0x1]
      %v1923 = vld [vmem:[%s709] sm:$0x1]
      %v1924 = vld [vmem:[%s712] sm:$0x1]
      %v1925 = vpack.c.bf16 %v1908, %v1907
      %v1927 = vlaneseq
      %v1928 = vshrl.u32 %v1927, 7
      %v1929 = vsub.s32 0, %v1928
      %v1930 = vrot.slane %v1913, %v1929
      %v1936 = vunpack.c.l.b16 %v1909
      %v1937 = vunpack.c.l.b16 %v1910
      %v1938 = vunpack.c.l.b16 %v1911
      %v1939 = vunpack.c.l.b16 %v1912
      %v1940 = vpack.c.b16 %v1937, %v1936
      %v1941 = vpack.c.b16 %v1939, %v1938
      %v1945 = vsel %vm763, %v1925, 0
      %1947 = vmatprep.subr.bf16.mxu0 0
      %1948 = vmatpush1.bf16.msra.mxu0 0
      %1949 = vmatprep.subr.bf16.mxu0 0
      %1950 = vmatpush1.bf16.msra.mxu0 0
      %1951 = vmatprep.subr.bf16.mxu0 0
      %1952 = vmatpush1.bf16.msra.mxu0 0
      %1953 = vmatprep.subr.bf16.mxu0 0
      %1954 = vmatpush1.bf16.msra.mxu0 0
      %1955 = vmatprep.subr.bf16.mxu0 0
      %1956 = vmatpush1.bf16.msra.mxu0 0
      %1957 = vmatprep.subr.bf16.mxu0 0
      %1958 = vmatpush1.bf16.msra.mxu0 0
      %1959 = vmatprep.subr.bf16.mxu0 0
      %1960 = vmatpush1.bf16.msra.mxu0 %v1941
      %1961 = vmatprep.subr.bf16.mxu0 0
      %1962 = vmatpush1.bf16.msra.mxu0 %v1940
      %1963 = vmatprep.subr.bf16.mxu0 0
      %1964 = vmatpush2.bf16.msra.mxu0 0
      %1965 = vmatprep.subr.bf16.mxu0 0
      %1966 = vmatpush2.bf16.msra.mxu0 0
      %1967 = vmatprep.subr.bf16.mxu0 0
      %1968 = vmatpush2.bf16.msra.mxu0 0
      %1969 = vmatprep.subr.bf16.mxu0 0
      %1970 = vmatpush2.bf16.msra.mxu0 0
      %1971 = vmatprep.subr.bf16.mxu0 0
      %1972 = vmatpush2.bf16.msra.mxu0 0
      %1973 = vmatprep.subr.bf16.mxu0 0
      %1974 = vmatpush2.bf16.msra.mxu0 0
      %1975 = vmatprep.subr.bf16.mxu0 0
      %1976 = vmatpush2.bf16.msra.mxu0 0
      %1977 = vmatprep.subr.bf16.mxu0 0
      %1978 = vmatpush2.bf16.msra.mxu0 0
      %1979 = vmatprep.mubr.bf16.mxu0 0
      %1980 = vmatmul.mubr.bf16.gmra.mxu0 %v1945
      %v1981 = vpop.f32.mrf.mxu0
      %v1982 = vadd.f32 %v1930, %v1981
      %v1983 = vpop.f32.mrf.mxu0
      %v1984 = vpop.f32.mrf.mxu0
      %v1985 = vadd.f32 %v1930, %v1984
      %v1986 = vpop.f32.mrf.mxu0
      %1987 = vdwg.mxu0
      %v1988 = vmax.f32 %v1982, 0.0
      %v1989 = vmax.f32 %v1985, 0.0
      %v1990 = vpack.c.bf16 %v1989, %v1988
      %v1992 = vlaneseq
      %v1993 = vshrl.u32 %v1992, 7
      %v1994 = vsub.s32 0, %v1993
      %v1995 = vrot.slane %v1922, %v1994
      %v2005 = vunpack.c.l.b16 %v1914
      %v2006 = vunpack.c.l.b16 %v1915
      %v2007 = vunpack.c.l.b16 %v1916
      %v2008 = vunpack.c.l.b16 %v1917
      %v2009 = vunpack.c.l.b16 %v1918
      %v2010 = vunpack.c.l.b16 %v1919
      %v2011 = vunpack.c.l.b16 %v1920
      %v2012 = vunpack.c.l.b16 %v1921
      %v2013 = vpack.c.b16 %v2006, %v2005
      %v2014 = vpack.c.b16 %v2008, %v2007
      %v2015 = vpack.c.b16 %v2010, %v2009
      %v2016 = vpack.c.b16 %v2012, %v2011
      %vm2021 = vcmask 523264
      %v2023 = vsel %vm2021, %v1990, 0
      %2025 = vmatprep.subr.bf16.mxu0 0
      %2026 = vmatpush1.bf16.msra.mxu0 0
      %2027 = vmatprep.subr.bf16.mxu0 0
      %2028 = vmatpush1.bf16.msra.mxu0 0
      %2029 = vmatprep.subr.bf16.mxu0 0
      %2030 = vmatpush1.bf16.msra.mxu0 0
      %2031 = vmatprep.subr.bf16.mxu0 0
      %2032 = vmatpush1.bf16.msra.mxu0 0
      %2033 = vmatprep.subr.bf16.mxu0 0
      %2034 = vmatpush1.bf16.msra.mxu0 %v2016
      %2035 = vmatprep.subr.bf16.mxu0 0
      %2036 = vmatpush1.bf16.msra.mxu0 %v2015
      %2037 = vmatprep.subr.bf16.mxu0 0
      %2038 = vmatpush1.bf16.msra.mxu0 %v2014
      %2039 = vmatprep.subr.bf16.mxu0 0
      %2040 = vmatpush1.bf16.msra.mxu0 %v2013
      %2041 = vmatprep.subr.bf16.mxu0 0
      %2042 = vmatpush2.bf16.msra.mxu0 0
      %2043 = vmatprep.subr.bf16.mxu0 0
      %2044 = vmatpush2.bf16.msra.mxu0 0
      %2045 = vmatprep.subr.bf16.mxu0 0
      %2046 = vmatpush2.bf16.msra.mxu0 0
      %2047 = vmatprep.subr.bf16.mxu0 0
      %2048 = vmatpush2.bf16.msra.mxu0 0
      %2049 = vmatprep.subr.bf16.mxu0 0
      %2050 = vmatpush2.bf16.msra.mxu0 0
      %2051 = vmatprep.subr.bf16.mxu0 0
      %2052 = vmatpush2.bf16.msra.mxu0 0
      %2053 = vmatprep.subr.bf16.mxu0 0
      %2054 = vmatpush2.bf16.msra.mxu0 0
      %2055 = vmatprep.subr.bf16.mxu0 0
      %2056 = vmatpush2.bf16.msra.mxu0 0
      %2057 = vmatprep.mubr.bf16.mxu0 0
      %2058 = vmatmul.mubr.bf16.gmra.mxu0 %v2023
      %v2059 = vpop.f32.mrf.mxu0
      %v2060 = vadd.f32 %v1995, %v2059
      %v2061 = vpop.f32.mrf.mxu0
      %v2062 = vpop.f32.mrf.mxu0
      %v2063 = vadd.f32 %v1995, %v2062
      %v2064 = vpop.f32.mrf.mxu0
      %2065 = vdwg.mxu0
      %v2066 = vadd.f32 %v2060, %v1907
      %v2067 = vadd.f32 %v2063, %v1908
      %v2068 = vsel %vm763, %v2066, 0.0
      %2069 = vadd.xlane.f32.xlu0 %v2068
      %v2070 = vpop.xlane.xlu0 %2069
      %v2071 = vsel %vm763, %v2067, 0.0
      %2072 = vadd.xlane.f32.xlu0 %v2071
      %v2073 = vpop.xlane.xlu0 %2072
      %v2074 = vmul.f32 %v2070, %v1872
      %v2075 = vmul.f32 %v2073, %v1872
      %v2076 = vsub.f32 %v2066, %v2074
      %v2077 = vsub.f32 %v2067, %v2075
      %v2078 = vmul.f32 %v2076, %v2076
      %v2079 = vmul.f32 %v2077, %v2077
      %v2080 = vsel %vm763, %v2078, 0.0
      %2081 = vadd.xlane.f32.xlu0 %v2080
      %v2082 = vpop.xlane.xlu0 %2081
      %v2083 = vsel %vm763, %v2079, 0.0
      %2084 = vadd.xlane.f32.xlu0 %v2083
      %v2085 = vpop.xlane.xlu0 %2084
      %v2086 = vmul.f32 %v2082, %v1872
      %v2087 = vmul.f32 %v2085, %v1872
      %v2088 = vadd.f32 %v2086, 1e-12
      %v2089 = vadd.f32 %v2087, 1e-12
      %v2090 = vrsqrt.pop %v2088
      %v2091 = vrsqrt.pop %v2089
      %v2092 = vmul.f32 %v2076, %v2090
      %v2093 = vmul.f32 %v2077, %v2091
      %v2095 = vlaneseq
      %v2096 = vshrl.u32 %v2095, 7
      %v2097 = vsub.s32 0, %v2096
      %v2098 = vrot.slane %v1923, %v2097
      %v2100 = vmul.f32 %v2092, %v2098
      %v2101 = vmul.f32 %v2093, %v2098
      %v2103 = vlaneseq
      %v2104 = vshrl.u32 %v2103, 7
      %v2105 = vsub.s32 0, %v2104
      %v2106 = vrot.slane %v1924, %v2105
      %v2108 = vadd.f32 %v2100, %v2106
      %v2109 = vadd.f32 %v2101, %v2106
      %2110 = vst.msk [vmem:[#allocation2] sm:$0xff] %vm763, %v2108
      %2111 = vst.msk [vmem:[#allocation2 + $0x8] sm:$0xff] %vm763, %v2109
      %p2112 = scmp.eq.s32.totalorder %s27, 1
      // Predicated region
      $region89: #{transformer_forward.2} parent=83 // pred_check
        %p2113 = pneg %p2112
      $region90: #{transformer_forward.2} parent=83 // pred_check_branch
        %2115 = sbr.rel (%p2113) target = $region92
      $region91: #{transformer_forward.2} parent=83 // pred_region
        %v2116 = vld [vmem:[#allocation2] sm:$0xff]
        %v2117 = vld [vmem:[#allocation2 + $0x8] sm:$0xff]
        %2118 = vst.msk [vmem:[%s16] sm:$0xff] %vm763, %v2116
        %2119 = vst.msk [vmem:[%s16 + $0x8] sm:$0xff] %vm763, %v2117
      $region92: #{transformer_forward.2} parent=83 // pred_fallthru
        _
      // Predicated region
      $region93: #{transformer_forward.2} parent=83 // pred_check
        %p2120 = pneg %p446
      $region94: #{transformer_forward.2} parent=83 // pred_check_branch
        %2122 = sbr.rel (%p2120) target = $region96
      $region95: #{transformer_forward.2} parent=83 // pred_region
        _
      $region96: #{transformer_forward.2} parent=83 // pred_fallthru
        _
      // Predicated region
      $region97: #{transformer_forward.2} parent=83 // pred_check
        %p2123 = pneg %p446
      $region98: #{transformer_forward.2} parent=83 // pred_check_branch
        %2125 = sbr.rel (%p2123) target = $region100
      $region99: #{transformer_forward.2} parent=83 // pred_region
        _
      $region100: #{transformer_forward.2} parent=83 // pred_fallthru
        _
    $region84: #{transformer_forward.2} parent=5 // pred_fallthru
      _
    %p2126 = scmp.le.s32.totalorder 2, %s22
    // Predicated region
    $region101: #{transformer_forward.2} parent=5 // pred_check
      %p2127 = pneg %p2126
    $region102: #{transformer_forward.2} parent=5 // pred_check_branch
      %2129 = sbr.rel (%p2127) target = $region104
    $region103: #{transformer_forward.2} parent=5 // pred_region
      %s2130 = ssub.s32 %s22, 2
    $region104: #{transformer_forward.2} parent=5 // pred_fallthru
      _
  $region6: #{transformer_forward.2} parent=0 // loop_footer
    %s26 = sadd.s32 1, %s22
  $region7: #{transformer_forward.2} parent=0 // loop_footer_branch
    %21 = sbr.rel target = $region3
  $region8: #{transformer_forward.2} parent=0 // loop_exit
    _

// kernel: transformer_forward.3
$region0: #{transformer_forward.3}
  #allocation0 [shape = 'u32[]', space=smem, size = 0x4, offset = 0x4, fixed_abs, tag = 'smem constant byte address 0x4 - core index']
  #allocation1 [shape = 'u32[144,128]{1,0:T(1,128)}', space=vmem, size = 0x12000, scoped, tag = 'internal scratch']
  #allocation2 [shape = 'f32[16,32]{1,0:T(8,128)}', space=vmem, size = 0x2000, scoped, tag = 'scratch operand']
  %s0 = inlined_call_operand.vmem [shape: f32[16,32], index: 0, kind: input, shape index: {}]
  %s1 = inlined_call_operand.vmem [shape: f32[16,32], index: 1, kind: input, shape index: {}]
  %s2 = inlined_call_operand.vmem [shape: f32[2,8,8], index: 2, kind: input, shape index: {}]
  %s3 = inlined_call_operand.vmem [shape: f32[2,8,8], index: 3, kind: input, shape index: {}]
  %s4 = inlined_call_operand.vmem [shape: bf16[2,32,32], index: 4, kind: input, shape index: {}]
  %s5 = inlined_call_operand.vmem [shape: f32[2,1,32], index: 5, kind: input, shape index: {}]
  %s6 = inlined_call_operand.vmem [shape: bf16[2,32,64], index: 6, kind: input, shape index: {}]
  %s7 = inlined_call_operand.vmem [shape: f32[2,1,64], index: 7, kind: input, shape index: {}]
  %s8 = inlined_call_operand.vmem [shape: bf16[2,32,32], index: 8, kind: input, shape index: {}]
  %s9 = inlined_call_operand.vmem [shape: f32[2,1,32], index: 9, kind: input, shape index: {}]
  %s10 = inlined_call_operand.vmem [shape: f32[2,1,32], index: 10, kind: input, shape index: {}]
  %s11 = inlined_call_operand.vmem [shape: f32[2,1,32], index: 11, kind: input, shape index: {}]
  %s12 = inlined_call_operand.vmem [shape: bf16[2,32,32], index: 12, kind: input, shape index: {}]
  %s13 = inlined_call_operand.vmem [shape: f32[2,1,32], index: 13, kind: input, shape index: {}]
  %s14 = inlined_call_operand.vmem [shape: bf16[2,32,64], index: 14, kind: input, shape index: {}]
  %s15 = inlined_call_operand.vmem [shape: f32[2,1,64], index: 15, kind: input, shape index: {}]
  %s16 = inlined_call_operand.vmem [shape: bf16[2,32,32], index: 16, kind: input, shape index: {}]
  %s17 = inlined_call_operand.vmem [shape: f32[2,1,32], index: 17, kind: input, shape index: {}]
  %s18 = inlined_call_operand.vmem [shape: f32[2,1,32], index: 18, kind: input, shape index: {}]
  %s19 = inlined_call_operand.vmem [shape: f32[2,1,32], index: 19, kind: input, shape index: {}]
  %s20 = inlined_call_operand.vmem [shape: bf16[2,32,64], index: 20, kind: input, shape index: {}]
  %s21 = inlined_call_operand.vmem [shape: f32[2,1,64], index: 21, kind: input, shape index: {}]
  %s22 = inlined_call_operand.vmem [shape: bf16[2,64,32], index: 22, kind: input, shape index: {}]
  %s23 = inlined_call_operand.vmem [shape: f32[2,1,32], index: 23, kind: input, shape index: {}]
  %s24 = inlined_call_operand.vmem [shape: f32[2,1,32], index: 24, kind: input, shape index: {}]
  %s25 = inlined_call_operand.vmem [shape: f32[2,1,32], index: 25, kind: input, shape index: {}]
  %s26 = inlined_call_operand.vmem [shape: bf16[32,128], index: 26, kind: input, shape index: {}]
  %s27 = inlined_call_operand.vmem [shape: f32[1,128], index: 27, kind: input, shape index: {}]
  %s28 = inlined_call_operand.hbm [shape: f32[16,128], index: 28, kind: output, shape index: {}]
  %s29 = sld [smem:[#allocation0]]
  $region153: #{transformer_forward.3} parent=0
    _
  %s31 = ssub.s32 1, %s29
  %s32 = scalar_select 0, %s31, %s29
  $region1: #{transformer_forward.3} parent=0
    #allocation3 [shape = 'u8[8192]{0}', space=vmem, size = 0x2000, scoped, tag = 'output window, operand 0, single buffered']
    #allocation4 [shape = 's32[2]{0}', space=sflag, size = 0x8, scoped, tag = 'scoped memory for transformer_forward.3']
    %33 = vsyncpa [#allocation4], 0
    loop: start=0, step=1, limit=4
    $region2: #{transformer_forward.3} parent=1 // loop_pre_header
      _
    $region3: #{transformer_forward.3} parent=1 // loop_header
      %s35 = sphi 0, %s39
      %p36 = scmp.ge.s32.totalorder %s35, 4
      %s43 = sphi 0, %s43
      %s45 = sphi 0, %s43
      %s46 = sphi 0, %s45
      %s60 = sphi 0, %s46
      %s64 = sphi 0, %s64
      %s66 = sphi 0, %s64
      %s67 = sphi 0, %s66
      %s81 = sphi 0, %s67
      %s85 = sphi 0, %s85
      %s87 = sphi 0, %s85
      %s88 = sphi 0, %s87
      %s102 = sphi 0, %s88
      %s106 = sphi 0, %s106
      %s108 = sphi 0, %s106
      %s109 = sphi 0, %s108
      %s123 = sphi 0, %s109
      %s129 = sphi 0, %s131
      %s132 = sphi 0, %s129
      %s133 = sphi 0, %s132
      %s149 = sphi 0, %s133
      %s155 = sphi 0, %s157
      %s158 = sphi 0, %s155
      %s159 = sphi 0, %s158
      %s175 = sphi 0, %s159
      %s181 = sphi 0, %s183
      %s184 = sphi 0, %s181
      %s185 = sphi 0, %s184
      %s201 = sphi 0, %s185
      %s207 = sphi 0, %s209
      %s210 = sphi 0, %s207
      %s211 = sphi 0, %s210
      %s227 = sphi 0, %s211
      %s233 = sphi 0, %s235
      %s236 = sphi 0, %s233
      %s237 = sphi 0, %s236
      %s253 = sphi 0, %s237
      %s259 = sphi 0, %s261
      %s262 = sphi 0, %s259
      %s263 = sphi 0, %s262
      %s279 = sphi 0, %s263
      %s285 = sphi 0, %s287
      %s288 = sphi 0, %s285
      %s289 = sphi 0, %s288
      %s305 = sphi 0, %s289
      %s311 = sphi 0, %s313
      %s314 = sphi 0, %s311
      %s315 = sphi 0, %s314
      %s331 = sphi 0, %s315
      %s337 = sphi 0, %s339
      %s340 = sphi 0, %s337
      %s341 = sphi 0, %s340
      %s357 = sphi 0, %s341
      %s363 = sphi 0, %s365
      %s366 = sphi 0, %s363
      %s367 = sphi 0, %s366
      %s383 = sphi 0, %s367
      %s389 = sphi 0, %s391
      %s392 = sphi 0, %s389
      %s393 = sphi 0, %s392
      %s409 = sphi 0, %s393
      %s415 = sphi 0, %s417
      %s418 = sphi 0, %s415
      %s419 = sphi 0, %s418
      %s435 = sphi 0, %s419
      %s441 = sphi 0, %s443
      %s444 = sphi 0, %s441
      %s445 = sphi 0, %s444
      %s461 = sphi 0, %s445
      %s467 = sphi 0, %s469
      %s470 = sphi 0, %s467
      %s471 = sphi 0, %s470
      %s487 = sphi 0, %s471
      %s493 = sphi 0, %s495
      %s496 = sphi 0, %s493
      %s497 = sphi 0, %s496
      %s513 = sphi 0, %s497
      %s519 = sphi 0, %s521
      %s522 = sphi 0, %s519
      %s523 = sphi 0, %s522
      %s539 = sphi 0, %s523
      %s545 = sphi 0, %s547
      %s548 = sphi 0, %s545
      %s549 = sphi 0, %s548
      %s565 = sphi 0, %s549
      %s571 = sphi 0, %s573
      %s574 = sphi 0, %s571
      %s575 = sphi 0, %s574
      %s591 = sphi 0, %s575
      %s597 = sphi 0, %s599
      %s600 = sphi 0, %s597
      %s601 = sphi 0, %s600
      %s617 = sphi 0, %s601
      %s623 = sphi 0, %s625
      %s626 = sphi 0, %s623
      %s627 = sphi 0, %s626
      %s643 = sphi 0, %s627
      %s649 = sphi 0, %s651
      %s652 = sphi 0, %s649
      %s653 = sphi 0, %s652
      %s669 = sphi 0, %s653
      %s675 = sphi 0, %s677
      %s678 = sphi 0, %s675
      %s679 = sphi 0, %s678
      %s695 = sphi 0, %s679
      %s699 = sphi 0, %s699
      %s701 = sphi 0, %s699
      %s702 = sphi 0, %s701
      %s716 = sphi 0, %s702
      %s720 = sphi 0, %s720
      %s722 = sphi 0, %s720
      %s723 = sphi 0, %s722
      %s737 = sphi 0, %s723
      %s741 = sphi 0, %s741
      %s743 = sphi 0, %s741
      %s744 = sphi 0, %s743
      %s758 = sphi 0, %s744
    $region4: #{transformer_forward.3} parent=1 // loop_header_branch
      %38 = sbr.rel (%p36) target = $region8
    $region5: #{transformer_forward.3} parent=1 // loop_body
      %s40 = ssub.s32 %s35, 1
      %s41 = ssub.s32 %s35, 2
      %s42 = sadd.s32 %s35, 1
      %s44 = sadd.s32 %s43, 1
      %p47 = scmp.eq.s32.totalorder %s35, 1
      %p48 = scmp.ne.s32.totalorder %s43, %s45
      %p49 = scmp.eq.s32.totalorder %s35, 0
      %p50 = por %p48, %p49
      %p51 = scmp.ne.s32.totalorder %s43, %s45
      %p52 = scmp.eq.s32.totalorder %s40, 1
      %p53 = por %p51, %p52
      %p54 = scmp.ne.s32.totalorder %s45, %s46
      %p55 = scmp.eq.s32.totalorder %s40, 0
      %p56 = por %p54, %p55
      %p57 = scmp.ne.s32.totalorder %s45, %s46
      %p58 = scmp.eq.s32.totalorder %s41, 1
      %p59 = por %p57, %p58
      %p61 = scmp.ne.s32.totalorder %s46, %s60
      %p62 = scmp.eq.s32.totalorder %s41, 0
      %p63 = por %p61, %p62
      %s65 = sadd.s32 %s64, 1
      %p68 = scmp.eq.s32.totalorder %s35, 1
      %p69 = scmp.ne.s32.totalorder %s64, %s66
      %p70 = scmp.eq.s32.totalorder %s35, 0
      %p71 = por %p69, %p70
      %p72 = scmp.ne.s32.totalorder %s64, %s66
      %p73 = scmp.eq.s32.totalorder %s40, 1
      %p74 = por %p72, %p73
      %p75 = scmp.ne.s32.totalorder %s66, %s67
      %p76 = scmp.eq.s32.totalorder %s40, 0
      %p77 = por %p75, %p76
      %p78 = scmp.ne.s32.totalorder %s66, %s67
      %p79 = scmp.eq.s32.totalorder %s41, 1
      %p80 = por %p78, %p79
      %p82 = scmp.ne.s32.totalorder %s67, %s81
      %p83 = scmp.eq.s32.totalorder %s41, 0
      %p84 = por %p82, %p83
      %s86 = sadd.s32 %s85, 1
      %p89 = scmp.eq.s32.totalorder %s35, 1
      %p90 = scmp.ne.s32.totalorder %s85, %s87
      %p91 = scmp.eq.s32.totalorder %s35, 0
      %p92 = por %p90, %p91
      %p93 = scmp.ne.s32.totalorder %s85, %s87
      %p94 = scmp.eq.s32.totalorder %s40, 1
      %p95 = por %p93, %p94
      %p96 = scmp.ne.s32.totalorder %s87, %s88
      %p97 = scmp.eq.s32.totalorder %s40, 0
      %p98 = por %p96, %p97
      %p99 = scmp.ne.s32.totalorder %s87, %s88
      %p100 = scmp.eq.s32.totalorder %s41, 1
      %p101 = por %p99, %p100
      %p103 = scmp.ne.s32.totalorder %s88, %s102
      %p104 = scmp.eq.s32.totalorder %s41, 0
      %p105 = por %p103, %p104
      %s107 = sadd.s32 %s106, 1
      %p110 = scmp.eq.s32.totalorder %s35, 1
      %p111 = scmp.ne.s32.totalorder %s106, %s108
      %p112 = scmp.eq.s32.totalorder %s35, 0
      %p113 = por %p111, %p112
      %p114 = scmp.ne.s32.totalorder %s106, %s108
      %p115 = scmp.eq.s32.totalorder %s40, 1
      %p116 = por %p114, %p115
      %p117 = scmp.ne.s32.totalorder %s108, %s109
      %p118 = scmp.eq.s32.totalorder %s40, 0
      %p119 = por %p117, %p118
      %p120 = scmp.ne.s32.totalorder %s108, %s109
      %p121 = scmp.eq.s32.totalorder %s41, 1
      %p122 = por %p120, %p121
      %p124 = scmp.ne.s32.totalorder %s109, %s123
      %p125 = scmp.eq.s32.totalorder %s41, 0
      %p126 = por %p124, %p125
      %s127 = ssub.s32 %s35, %s42
      %p128 = scmp.eq.s32.totalorder %s127, 0
      %s130 = sadd.s32 %s129, 1
      %s131 = scalar_select %p128, %s129, %s130
      %p134 = pneg %p128
      %p135 = scmp.eq.s32.totalorder %s35, 1
      %p136 = por %p134, %p135
      %p137 = scmp.ne.s32.totalorder %s129, %s132
      %p138 = scmp.eq.s32.totalorder %s35, 0
      %p139 = por %p137, %p138
      %p140 = scmp.ne.s32.totalorder %s129, %s132
      %p141 = scmp.eq.s32.totalorder %s40, 1
      %p142 = por %p140, %p141
      %p143 = scmp.ne.s32.totalorder %s132, %s133
      %p144 = scmp.eq.s32.totalorder %s40, 0
      %p145 = por %p143, %p144
      %p146 = scmp.ne.s32.totalorder %s132, %s133
      %p147 = scmp.eq.s32.totalorder %s41, 1
      %p148 = por %p146, %p147
      %p150 = scmp.ne.s32.totalorder %s133, %s149
      %p151 = scmp.eq.s32.totalorder %s41, 0
      %p152 = por %p150, %p151
      %s153 = ssub.s32 %s35, %s42
      %p154 = scmp.eq.s32.totalorder %s153, 0
      %s156 = sadd.s32 %s155, 1
      %s157 = scalar_select %p154, %s155, %s156
      %p160 = pneg %p154
      %p161 = scmp.eq.s32.totalorder %s35, 1
      %p162 = por %p160, %p161
      %p163 = scmp.ne.s32.totalorder %s155, %s158
      %p164 = scmp.eq.s32.totalorder %s35, 0
      %p165 = por %p163, %p164
      %p166 = scmp.ne.s32.totalorder %s155, %s158
      %p167 = scmp.eq.s32.totalorder %s40, 1
      %p168 = por %p166, %p167
      %p169 = scmp.ne.s32.totalorder %s158, %s159
      %p170 = scmp.eq.s32.totalorder %s40, 0
      %p171 = por %p169, %p170
      %p172 = scmp.ne.s32.totalorder %s158, %s159
      %p173 = scmp.eq.s32.totalorder %s41, 1
      %p174 = por %p172, %p173
      %p176 = scmp.ne.s32.totalorder %s159, %s175
      %p177 = scmp.eq.s32.totalorder %s41, 0
      %p178 = por %p176, %p177
      %s179 = ssub.s32 %s35, %s42
      %p180 = scmp.eq.s32.totalorder %s179, 0
      %s182 = sadd.s32 %s181, 1
      %s183 = scalar_select %p180, %s181, %s182
      %p186 = pneg %p180
      %p187 = scmp.eq.s32.totalorder %s35, 1
      %p188 = por %p186, %p187
      %p189 = scmp.ne.s32.totalorder %s181, %s184
      %p190 = scmp.eq.s32.totalorder %s35, 0
      %p191 = por %p189, %p190
      %p192 = scmp.ne.s32.totalorder %s181, %s184
      %p193 = scmp.eq.s32.totalorder %s40, 1
      %p194 = por %p192, %p193
      %p195 = scmp.ne.s32.totalorder %s184, %s185
      %p196 = scmp.eq.s32.totalorder %s40, 0
      %p197 = por %p195, %p196
      %p198 = scmp.ne.s32.totalorder %s184, %s185
      %p199 = scmp.eq.s32.totalorder %s41, 1
      %p200 = por %p198, %p199
      %p202 = scmp.ne.s32.totalorder %s185, %s201
      %p203 = scmp.eq.s32.totalorder %s41, 0
      %p204 = por %p202, %p203
      %s205 = ssub.s32 %s35, %s42
      %p206 = scmp.eq.s32.totalorder %s205, 0
      %s208 = sadd.s32 %s207, 1
      %s209 = scalar_select %p206, %s207, %s208
      %p212 = pneg %p206
      %p213 = scmp.eq.s32.totalorder %s35, 1
      %p214 = por %p212, %p213
      %p215 = scmp.ne.s32.totalorder %s207, %s210
      %p216 = scmp.eq.s32.totalorder %s35, 0
      %p217 = por %p215, %p216
      %p218 = scmp.ne.s32.totalorder %s207, %s210
      %p219 = scmp.eq.s32.totalorder %s40, 1
      %p220 = por %p218, %p219
      %p221 = scmp.ne.s32.totalorder %s210, %s211
      %p222 = scmp.eq.s32.totalorder %s40, 0
      %p223 = por %p221, %p222
      %p224 = scmp.ne.s32.totalorder %s210, %s211
      %p225 = scmp.eq.s32.totalorder %s41, 1
      %p226 = por %p224, %p225
      %p228 = scmp.ne.s32.totalorder %s211, %s227
      %p229 = scmp.eq.s32.totalorder %s41, 0
      %p230 = por %p228, %p229
      %s231 = ssub.s32 %s35, %s42
      %p232 = scmp.eq.s32.totalorder %s231, 0
      %s234 = sadd.s32 %s233, 1
      %s235 = scalar_select %p232, %s233, %s234
      %p238 = pneg %p232
      %p239 = scmp.eq.s32.totalorder %s35, 1
      %p240 = por %p238, %p239
      %p241 = scmp.ne.s32.totalorder %s233, %s236
      %p242 = scmp.eq.s32.totalorder %s35, 0
      %p243 = por %p241, %p242
      %p244 = scmp.ne.s32.totalorder %s233, %s236
      %p245 = scmp.eq.s32.totalorder %s40, 1
      %p246 = por %p244, %p245
      %p247 = scmp.ne.s32.totalorder %s236, %s237
      %p248 = scmp.eq.s32.totalorder %s40, 0
      %p249 = por %p247, %p248
      %p250 = scmp.ne.s32.totalorder %s236, %s237
      %p251 = scmp.eq.s32.totalorder %s41, 1
      %p252 = por %p250, %p251
      %p254 = scmp.ne.s32.totalorder %s237, %s253
      %p255 = scmp.eq.s32.totalorder %s41, 0
      %p256 = por %p254, %p255
      %s257 = ssub.s32 %s35, %s42
      %p258 = scmp.eq.s32.totalorder %s257, 0
      %s260 = sadd.s32 %s259, 1
      %s261 = scalar_select %p258, %s259, %s260
      %p264 = pneg %p258
      %p265 = scmp.eq.s32.totalorder %s35, 1
      %p266 = por %p264, %p265
      %p267 = scmp.ne.s32.totalorder %s259, %s262
      %p268 = scmp.eq.s32.totalorder %s35, 0
      %p269 = por %p267, %p268
      %p270 = scmp.ne.s32.totalorder %s259, %s262
      %p271 = scmp.eq.s32.totalorder %s40, 1
      %p272 = por %p270, %p271
      %p273 = scmp.ne.s32.totalorder %s262, %s263
      %p274 = scmp.eq.s32.totalorder %s40, 0
      %p275 = por %p273, %p274
      %p276 = scmp.ne.s32.totalorder %s262, %s263
      %p277 = scmp.eq.s32.totalorder %s41, 1
      %p278 = por %p276, %p277
      %p280 = scmp.ne.s32.totalorder %s263, %s279
      %p281 = scmp.eq.s32.totalorder %s41, 0
      %p282 = por %p280, %p281
      %s283 = ssub.s32 %s35, %s42
      %p284 = scmp.eq.s32.totalorder %s283, 0
      %s286 = sadd.s32 %s285, 1
      %s287 = scalar_select %p284, %s285, %s286
      %p290 = pneg %p284
      %p291 = scmp.eq.s32.totalorder %s35, 1
      %p292 = por %p290, %p291
      %p293 = scmp.ne.s32.totalorder %s285, %s288
      %p294 = scmp.eq.s32.totalorder %s35, 0
      %p295 = por %p293, %p294
      %p296 = scmp.ne.s32.totalorder %s285, %s288
      %p297 = scmp.eq.s32.totalorder %s40, 1
      %p298 = por %p296, %p297
      %p299 = scmp.ne.s32.totalorder %s288, %s289
      %p300 = scmp.eq.s32.totalorder %s40, 0
      %p301 = por %p299, %p300
      %p302 = scmp.ne.s32.totalorder %s288, %s289
      %p303 = scmp.eq.s32.totalorder %s41, 1
      %p304 = por %p302, %p303
      %p306 = scmp.ne.s32.totalorder %s289, %s305
      %p307 = scmp.eq.s32.totalorder %s41, 0
      %p308 = por %p306, %p307
      %s309 = ssub.s32 %s35, %s42
      %p310 = scmp.eq.s32.totalorder %s309, 0
      %s312 = sadd.s32 %s311, 1
      %s313 = scalar_select %p310, %s311, %s312
      %p316 = pneg %p310
      %p317 = scmp.eq.s32.totalorder %s35, 1
      %p318 = por %p316, %p317
      %p319 = scmp.ne.s32.totalorder %s311, %s314
      %p320 = scmp.eq.s32.totalorder %s35, 0
      %p321 = por %p319, %p320
      %p322 = scmp.ne.s32.totalorder %s311, %s314
      %p323 = scmp.eq.s32.totalorder %s40, 1
      %p324 = por %p322, %p323
      %p325 = scmp.ne.s32.totalorder %s314, %s315
      %p326 = scmp.eq.s32.totalorder %s40, 0
      %p327 = por %p325, %p326
      %p328 = scmp.ne.s32.totalorder %s314, %s315
      %p329 = scmp.eq.s32.totalorder %s41, 1
      %p330 = por %p328, %p329
      %p332 = scmp.ne.s32.totalorder %s315, %s331
      %p333 = scmp.eq.s32.totalorder %s41, 0
      %p334 = por %p332, %p333
      %s335 = ssub.s32 %s35, %s42
      %p336 = scmp.eq.s32.totalorder %s335, 0
      %s338 = sadd.s32 %s337, 1
      %s339 = scalar_select %p336, %s337, %s338
      %p342 = pneg %p336
      %p343 = scmp.eq.s32.totalorder %s35, 1
      %p344 = por %p342, %p343
      %p345 = scmp.ne.s32.totalorder %s337, %s340
      %p346 = scmp.eq.s32.totalorder %s35, 0
      %p347 = por %p345, %p346
      %p348 = scmp.ne.s32.totalorder %s337, %s340
      %p349 = scmp.eq.s32.totalorder %s40, 1
      %p350 = por %p348, %p349
      %p351 = scmp.ne.s32.totalorder %s340, %s341
      %p352 = scmp.eq.s32.totalorder %s40, 0
      %p353 = por %p351, %p352
      %p354 = scmp.ne.s32.totalorder %s340, %s341
      %p355 = scmp.eq.s32.totalorder %s41, 1
      %p356 = por %p354, %p355
      %p358 = scmp.ne.s32.totalorder %s341, %s357
      %p359 = scmp.eq.s32.totalorder %s41, 0
      %p360 = por %p358, %p359
      %s361 = ssub.s32 %s35, %s42
      %p362 = scmp.eq.s32.totalorder %s361, 0
      %s364 = sadd.s32 %s363, 1
      %s365 = scalar_select %p362, %s363, %s364
      %p368 = pneg %p362
      %p369 = scmp.eq.s32.totalorder %s35, 1
      %p370 = por %p368, %p369
      %p371 = scmp.ne.s32.totalorder %s363, %s366
      %p372 = scmp.eq.s32.totalorder %s35, 0
      %p373 = por %p371, %p372
      %p374 = scmp.ne.s32.totalorder %s363, %s366
      %p375 = scmp.eq.s32.totalorder %s40, 1
      %p376 = por %p374, %p375
      %p377 = scmp.ne.s32.totalorder %s366, %s367
      %p378 = scmp.eq.s32.totalorder %s40, 0
      %p379 = por %p377, %p378
      %p380 = scmp.ne.s32.totalorder %s366, %s367
      %p381 = scmp.eq.s32.totalorder %s41, 1
      %p382 = por %p380, %p381
      %p384 = scmp.ne.s32.totalorder %s367, %s383
      %p385 = scmp.eq.s32.totalorder %s41, 0
      %p386 = por %p384, %p385
      %s387 = ssub.s32 %s35, %s42
      %p388 = scmp.eq.s32.totalorder %s387, 0
      %s390 = sadd.s32 %s389, 1
      %s391 = scalar_select %p388, %s389, %s390
      %p394 = pneg %p388
      %p395 = scmp.eq.s32.totalorder %s35, 1
      %p396 = por %p394, %p395
      %p397 = scmp.ne.s32.totalorder %s389, %s392
      %p398 = scmp.eq.s32.totalorder %s35, 0
      %p399 = por %p397, %p398
      %p400 = scmp.ne.s32.totalorder %s389, %s392
      %p401 = scmp.eq.s32.totalorder %s40, 1
      %p402 = por %p400, %p401
      %p403 = scmp.ne.s32.totalorder %s392, %s393
      %p404 = scmp.eq.s32.totalorder %s40, 0
      %p405 = por %p403, %p404
      %p406 = scmp.ne.s32.totalorder %s392, %s393
      %p407 = scmp.eq.s32.totalorder %s41, 1
      %p408 = por %p406, %p407
      %p410 = scmp.ne.s32.totalorder %s393, %s409
      %p411 = scmp.eq.s32.totalorder %s41, 0
      %p412 = por %p410, %p411
      %s413 = ssub.s32 %s35, %s42
      %p414 = scmp.eq.s32.totalorder %s413, 0
      %s416 = sadd.s32 %s415, 1
      %s417 = scalar_select %p414, %s415, %s416
      %p420 = pneg %p414
      %p421 = scmp.eq.s32.totalorder %s35, 1
      %p422 = por %p420, %p421
      %p423 = scmp.ne.s32.totalorder %s415, %s418
      %p424 = scmp.eq.s32.totalorder %s35, 0
      %p425 = por %p423, %p424
      %p426 = scmp.ne.s32.totalorder %s415, %s418
      %p427 = scmp.eq.s32.totalorder %s40, 1
      %p428 = por %p426, %p427
      %p429 = scmp.ne.s32.totalorder %s418, %s419
      %p430 = scmp.eq.s32.totalorder %s40, 0
      %p431 = por %p429, %p430
      %p432 = scmp.ne.s32.totalorder %s418, %s419
      %p433 = scmp.eq.s32.totalorder %s41, 1
      %p434 = por %p432, %p433
      %p436 = scmp.ne.s32.totalorder %s419, %s435
      %p437 = scmp.eq.s32.totalorder %s41, 0
      %p438 = por %p436, %p437
      %s439 = ssub.s32 %s35, %s42
      %p440 = scmp.eq.s32.totalorder %s439, 0
      %s442 = sadd.s32 %s441, 1
      %s443 = scalar_select %p440, %s441, %s442
      %p446 = pneg %p440
      %p447 = scmp.eq.s32.totalorder %s35, 1
      %p448 = por %p446, %p447
      %p449 = scmp.ne.s32.totalorder %s441, %s444
      %p450 = scmp.eq.s32.totalorder %s35, 0
      %p451 = por %p449, %p450
      %p452 = scmp.ne.s32.totalorder %s441, %s444
      %p453 = scmp.eq.s32.totalorder %s40, 1
      %p454 = por %p452, %p453
      %p455 = scmp.ne.s32.totalorder %s444, %s445
      %p456 = scmp.eq.s32.totalorder %s40, 0
      %p457 = por %p455, %p456
      %p458 = scmp.ne.s32.totalorder %s444, %s445
      %p459 = scmp.eq.s32.totalorder %s41, 1
      %p460 = por %p458, %p459
      %p462 = scmp.ne.s32.totalorder %s445, %s461
      %p463 = scmp.eq.s32.totalorder %s41, 0
      %p464 = por %p462, %p463
      %s465 = ssub.s32 %s35, %s42
      %p466 = scmp.eq.s32.totalorder %s465, 0
      %s468 = sadd.s32 %s467, 1
      %s469 = scalar_select %p466, %s467, %s468
      %p472 = pneg %p466
      %p473 = scmp.eq.s32.totalorder %s35, 1
      %p474 = por %p472, %p473
      %p475 = scmp.ne.s32.totalorder %s467, %s470
      %p476 = scmp.eq.s32.totalorder %s35, 0
      %p477 = por %p475, %p476
      %p478 = scmp.ne.s32.totalorder %s467, %s470
      %p479 = scmp.eq.s32.totalorder %s40, 1
      %p480 = por %p478, %p479
      %p481 = scmp.ne.s32.totalorder %s470, %s471
      %p482 = scmp.eq.s32.totalorder %s40, 0
      %p483 = por %p481, %p482
      %p484 = scmp.ne.s32.totalorder %s470, %s471
      %p485 = scmp.eq.s32.totalorder %s41, 1
      %p486 = por %p484, %p485
      %p488 = scmp.ne.s32.totalorder %s471, %s487
      %p489 = scmp.eq.s32.totalorder %s41, 0
      %p490 = por %p488, %p489
      %s491 = ssub.s32 %s35, %s42
      %p492 = scmp.eq.s32.totalorder %s491, 0
      %s494 = sadd.s32 %s493, 1
      %s495 = scalar_select %p492, %s493, %s494
      %p498 = pneg %p492
      %p499 = scmp.eq.s32.totalorder %s35, 1
      %p500 = por %p498, %p499
      %p501 = scmp.ne.s32.totalorder %s493, %s496
      %p502 = scmp.eq.s32.totalorder %s35, 0
      %p503 = por %p501, %p502
      %p504 = scmp.ne.s32.totalorder %s493, %s496
      %p505 = scmp.eq.s32.totalorder %s40, 1
      %p506 = por %p504, %p505
      %p507 = scmp.ne.s32.totalorder %s496, %s497
      %p508 = scmp.eq.s32.totalorder %s40, 0
      %p509 = por %p507, %p508
      %p510 = scmp.ne.s32.totalorder %s496, %s497
      %p511 = scmp.eq.s32.totalorder %s41, 1
      %p512 = por %p510, %p511
      %p514 = scmp.ne.s32.totalorder %s497, %s513
      %p515 = scmp.eq.s32.totalorder %s41, 0
      %p516 = por %p514, %p515
      %s517 = ssub.s32 %s35, %s42
      %p518 = scmp.eq.s32.totalorder %s517, 0
      %s520 = sadd.s32 %s519, 1
      %s521 = scalar_select %p518, %s519, %s520
      %p524 = pneg %p518
      %p525 = scmp.eq.s32.totalorder %s35, 1
      %p526 = por %p524, %p525
      %p527 = scmp.ne.s32.totalorder %s519, %s522
      %p528 = scmp.eq.s32.totalorder %s35, 0
      %p529 = por %p527, %p528
      %p530 = scmp.ne.s32.totalorder %s519, %s522
      %p531 = scmp.eq.s32.totalorder %s40, 1
      %p532 = por %p530, %p531
      %p533 = scmp.ne.s32.totalorder %s522, %s523
      %p534 = scmp.eq.s32.totalorder %s40, 0
      %p535 = por %p533, %p534
      %p536 = scmp.ne.s32.totalorder %s522, %s523
      %p537 = scmp.eq.s32.totalorder %s41, 1
      %p538 = por %p536, %p537
      %p540 = scmp.ne.s32.totalorder %s523, %s539
      %p541 = scmp.eq.s32.totalorder %s41, 0
      %p542 = por %p540, %p541
      %s543 = ssub.s32 %s35, %s42
      %p544 = scmp.eq.s32.totalorder %s543, 0
      %s546 = sadd.s32 %s545, 1
      %s547 = scalar_select %p544, %s545, %s546
      %p550 = pneg %p544
      %p551 = scmp.eq.s32.totalorder %s35, 1
      %p552 = por %p550, %p551
      %p553 = scmp.ne.s32.totalorder %s545, %s548
      %p554 = scmp.eq.s32.totalorder %s35, 0
      %p555 = por %p553, %p554
      %p556 = scmp.ne.s32.totalorder %s545, %s548
      %p557 = scmp.eq.s32.totalorder %s40, 1
      %p558 = por %p556, %p557
      %p559 = scmp.ne.s32.totalorder %s548, %s549
      %p560 = scmp.eq.s32.totalorder %s40, 0
      %p561 = por %p559, %p560
      %p562 = scmp.ne.s32.totalorder %s548, %s549
      %p563 = scmp.eq.s32.totalorder %s41, 1
      %p564 = por %p562, %p563
      %p566 = scmp.ne.s32.totalorder %s549, %s565
      %p567 = scmp.eq.s32.totalorder %s41, 0
      %p568 = por %p566, %p567
      %s569 = ssub.s32 %s35, %s42
      %p570 = scmp.eq.s32.totalorder %s569, 0
      %s572 = sadd.s32 %s571, 1
      %s573 = scalar_select %p570, %s571, %s572
      %p576 = pneg %p570
      %p577 = scmp.eq.s32.totalorder %s35, 1
      %p578 = por %p576, %p577
      %p579 = scmp.ne.s32.totalorder %s571, %s574
      %p580 = scmp.eq.s32.totalorder %s35, 0
      %p581 = por %p579, %p580
      %p582 = scmp.ne.s32.totalorder %s571, %s574
      %p583 = scmp.eq.s32.totalorder %s40, 1
      %p584 = por %p582, %p583
      %p585 = scmp.ne.s32.totalorder %s574, %s575
      %p586 = scmp.eq.s32.totalorder %s40, 0
      %p587 = por %p585, %p586
      %p588 = scmp.ne.s32.totalorder %s574, %s575
      %p589 = scmp.eq.s32.totalorder %s41, 1
      %p590 = por %p588, %p589
      %p592 = scmp.ne.s32.totalorder %s575, %s591
      %p593 = scmp.eq.s32.totalorder %s41, 0
      %p594 = por %p592, %p593
      %s595 = ssub.s32 %s35, %s42
      %p596 = scmp.eq.s32.totalorder %s595, 0
      %s598 = sadd.s32 %s597, 1
      %s599 = scalar_select %p596, %s597, %s598
      %p602 = pneg %p596
      %p603 = scmp.eq.s32.totalorder %s35, 1
      %p604 = por %p602, %p603
      %p605 = scmp.ne.s32.totalorder %s597, %s600
      %p606 = scmp.eq.s32.totalorder %s35, 0
      %p607 = por %p605, %p606
      %p608 = scmp.ne.s32.totalorder %s597, %s600
      %p609 = scmp.eq.s32.totalorder %s40, 1
      %p610 = por %p608, %p609
      %p611 = scmp.ne.s32.totalorder %s600, %s601
      %p612 = scmp.eq.s32.totalorder %s40, 0
      %p613 = por %p611, %p612
      %p614 = scmp.ne.s32.totalorder %s600, %s601
      %p615 = scmp.eq.s32.totalorder %s41, 1
      %p616 = por %p614, %p615
      %p618 = scmp.ne.s32.totalorder %s601, %s617
      %p619 = scmp.eq.s32.totalorder %s41, 0
      %p620 = por %p618, %p619
      %s621 = ssub.s32 %s35, %s42
      %p622 = scmp.eq.s32.totalorder %s621, 0
      %s624 = sadd.s32 %s623, 1
      %s625 = scalar_select %p622, %s623, %s624
      %p628 = pneg %p622
      %p629 = scmp.eq.s32.totalorder %s35, 1
      %p630 = por %p628, %p629
      %p631 = scmp.ne.s32.totalorder %s623, %s626
      %p632 = scmp.eq.s32.totalorder %s35, 0
      %p633 = por %p631, %p632
      %p634 = scmp.ne.s32.totalorder %s623, %s626
      %p635 = scmp.eq.s32.totalorder %s40, 1
      %p636 = por %p634, %p635
      %p637 = scmp.ne.s32.totalorder %s626, %s627
      %p638 = scmp.eq.s32.totalorder %s40, 0
      %p639 = por %p637, %p638
      %p640 = scmp.ne.s32.totalorder %s626, %s627
      %p641 = scmp.eq.s32.totalorder %s41, 1
      %p642 = por %p640, %p641
      %p644 = scmp.ne.s32.totalorder %s627, %s643
      %p645 = scmp.eq.s32.totalorder %s41, 0
      %p646 = por %p644, %p645
      %s647 = ssub.s32 %s35, %s42
      %p648 = scmp.eq.s32.totalorder %s647, 0
      %s650 = sadd.s32 %s649, 1
      %s651 = scalar_select %p648, %s649, %s650
      %p654 = pneg %p648
      %p655 = scmp.eq.s32.totalorder %s35, 1
      %p656 = por %p654, %p655
      %p657 = scmp.ne.s32.totalorder %s649, %s652
      %p658 = scmp.eq.s32.totalorder %s35, 0
      %p659 = por %p657, %p658
      %p660 = scmp.ne.s32.totalorder %s649, %s652
      %p661 = scmp.eq.s32.totalorder %s40, 1
      %p662 = por %p660, %p661
      %p663 = scmp.ne.s32.totalorder %s652, %s653
      %p664 = scmp.eq.s32.totalorder %s40, 0
      %p665 = por %p663, %p664
      %p666 = scmp.ne.s32.totalorder %s652, %s653
      %p667 = scmp.eq.s32.totalorder %s41, 1
      %p668 = por %p666, %p667
      %p670 = scmp.ne.s32.totalorder %s653, %s669
      %p671 = scmp.eq.s32.totalorder %s41, 0
      %p672 = por %p670, %p671
      %s673 = ssub.s32 %s35, %s42
      %p674 = scmp.eq.s32.totalorder %s673, 0
      %s676 = sadd.s32 %s675, 1
      %s677 = scalar_select %p674, %s675, %s676
      %p680 = pneg %p674
      %p681 = scmp.eq.s32.totalorder %s35, 1
      %p682 = por %p680, %p681
      %p683 = scmp.ne.s32.totalorder %s675, %s678
      %p684 = scmp.eq.s32.totalorder %s35, 0
      %p685 = por %p683, %p684
      %p686 = scmp.ne.s32.totalorder %s675, %s678
      %p687 = scmp.eq.s32.totalorder %s40, 1
      %p688 = por %p686, %p687
      %p689 = scmp.ne.s32.totalorder %s678, %s679
      %p690 = scmp.eq.s32.totalorder %s40, 0
      %p691 = por %p689, %p690
      %p692 = scmp.ne.s32.totalorder %s678, %s679
      %p693 = scmp.eq.s32.totalorder %s41, 1
      %p694 = por %p692, %p693
      %p696 = scmp.ne.s32.totalorder %s679, %s695
      %p697 = scmp.eq.s32.totalorder %s41, 0
      %p698 = por %p696, %p697
      %s700 = sadd.s32 %s699, 1
      %p703 = scmp.eq.s32.totalorder %s35, 1
      %p704 = scmp.ne.s32.totalorder %s699, %s701
      %p705 = scmp.eq.s32.totalorder %s35, 0
      %p706 = por %p704, %p705
      %p707 = scmp.ne.s32.totalorder %s699, %s701
      %p708 = scmp.eq.s32.totalorder %s40, 1
      %p709 = por %p707, %p708
      %p710 = scmp.ne.s32.totalorder %s701, %s702
      %p711 = scmp.eq.s32.totalorder %s40, 0
      %p712 = por %p710, %p711
      %p713 = scmp.ne.s32.totalorder %s701, %s702
      %p714 = scmp.eq.s32.totalorder %s41, 1
      %p715 = por %p713, %p714
      %p717 = scmp.ne.s32.totalorder %s702, %s716
      %p718 = scmp.eq.s32.totalorder %s41, 0
      %p719 = por %p717, %p718
      %s721 = sadd.s32 %s720, 1
      %p724 = scmp.eq.s32.totalorder %s35, 1
      %p725 = scmp.ne.s32.totalorder %s720, %s722
      %p726 = scmp.eq.s32.totalorder %s35, 0
      %p727 = por %p725, %p726
      %p728 = scmp.ne.s32.totalorder %s720, %s722
      %p729 = scmp.eq.s32.totalorder %s40, 1
      %p730 = por %p728, %p729
      %p731 = scmp.ne.s32.totalorder %s722, %s723
      %p732 = scmp.eq.s32.totalorder %s40, 0
      %p733 = por %p731, %p732
      %p734 = scmp.ne.s32.totalorder %s722, %s723
      %p735 = scmp.eq.s32.totalorder %s41, 1
      %p736 = por %p734, %p735
      %p738 = scmp.ne.s32.totalorder %s723, %s737
      %p739 = scmp.eq.s32.totalorder %s41, 0
      %p740 = por %p738, %p739
      %s742 = sadd.s32 %s741, 1
      %p745 = scmp.eq.s32.totalorder %s35, 1
      %p746 = scmp.ne.s32.totalorder %s741, %s743
      %p747 = scmp.eq.s32.totalorder %s35, 0
      %p748 = por %p746, %p747
      %p749 = scmp.ne.s32.totalorder %s741, %s743
      %p750 = scmp.eq.s32.totalorder %s40, 1
      %p751 = por %p749, %p750
      %p752 = scmp.ne.s32.totalorder %s743, %s744
      %p753 = scmp.eq.s32.totalorder %s40, 0
      %p754 = por %p752, %p753
      %p755 = scmp.ne.s32.totalorder %s743, %s744
      %p756 = scmp.eq.s32.totalorder %s41, 1
      %p757 = por %p755, %p756
      %p759 = scmp.ne.s32.totalorder %s744, %s758
      %p760 = scmp.eq.s32.totalorder %s41, 0
      %p761 = por %p759, %p760
      %p762 = scmp.le.s32.totalorder 1, %s35
      %p763 = scmp.lt.s32.totalorder %s35, 3
      %p764 = pnand %p762, %p763
      %p765 = pneg %p764
      // Predicated region
      $region9: #{transformer_forward.3} parent=5 // pred_check
        _
      $region10: #{transformer_forward.3} parent=5 // pred_check_branch
        %767 = sbr.rel (%p764) target = $region12
      $region11: #{transformer_forward.3} parent=5 // pred_region
        %s768 = ssub.s32 %s35, 1
        // Predicated region
        $region13: #{transformer_forward.3} parent=11 // pred_check
          %p769 = pneg %p56
        $region14: #{transformer_forward.3} parent=11 // pred_check_branch
          %771 = sbr.rel (%p769) target = $region16
        $region15: #{transformer_forward.3} parent=11 // pred_region
          _
        $region16: #{transformer_forward.3} parent=11 // pred_fallthru
          _
        // Predicated region
        $region17: #{transformer_forward.3} parent=11 // pred_check
          %p772 = pneg %p77
        $region18: #{transformer_forward.3} parent=11 // pred_check_branch
          %774 = sbr.rel (%p772) target = $region20
        $region19: #{transformer_forward.3} parent=11 // pred_region
          _
        $region20: #{transformer_forward.3} parent=11 // pred_fallthru
          _
        // Predicated region
        $region21: #{transformer_forward.3} parent=11 // pred_check
          %p775 = pneg %p98
        $region22: #{transformer_forward.3} parent=11 // pred_check_branch
          %777 = sbr.rel (%p775) target = $region24
        $region23: #{transformer_forward.3} parent=11 // pred_region
          _
        $region24: #{transformer_forward.3} parent=11 // pred_fallthru
          _
        // Predicated region
        $region25: #{transformer_forward.3} parent=11 // pred_check
          %p778 = pneg %p119
        $region26: #{transformer_forward.3} parent=11 // pred_check_branch
          %780 = sbr.rel (%p778) target = $region28
        $region27: #{transformer_forward.3} parent=11 // pred_region
          _
        $region28: #{transformer_forward.3} parent=11 // pred_fallthru
          _
        // Predicated region
        $region29: #{transformer_forward.3} parent=11 // pred_check
          %p781 = pneg %p712
        $region30: #{transformer_forward.3} parent=11 // pred_check_branch
          %783 = sbr.rel (%p781) target = $region32
        $region31: #{transformer_forward.3} parent=11 // pred_region
          _
        $region32: #{transformer_forward.3} parent=11 // pred_fallthru
          _
        // Predicated region
        $region33: #{transformer_forward.3} parent=11 // pred_check
          %p784 = pneg %p733
        $region34: #{transformer_forward.3} parent=11 // pred_check_branch
          %786 = sbr.rel (%p784) target = $region36
        $region35: #{transformer_forward.3} parent=11 // pred_region
          _
        $region36: #{transformer_forward.3} parent=11 // pred_fallthru
          _
      $region12: #{transformer_forward.3} parent=5 // pred_fallthru
        _
      %p787 = scmp.lt.s32.totalorder %s35, 2
      // Predicated region
      $region37: #{transformer_forward.3} parent=5 // pred_check
        %p788 = pneg %p787
      $region38: #{transformer_forward.3} parent=5 // pred_check_branch
        %790 = sbr.rel (%p788) target = $region40
      $region39: #{transformer_forward.3} parent=5 // pred_region
        // Predicated region
        $region41: #{transformer_forward.3} parent=39 // pred_check
          %p791 = pneg %p139
        $region42: #{transformer_forward.3} parent=39 // pred_check_branch
          %793 = sbr.rel (%p791) target = $region44
        $region43: #{transformer_forward.3} parent=39 // pred_region
          %p794 = scmp.lt.s32.totalorder %s35, 1
          %s795 = scalar_select %p794, %s35, 1
          %s796 = smul.addr %s795, 4
          %s797 = smul.addr %s796, 4
          %s798 = scalar_lea.vmem %s4, %s797
        $region44: #{transformer_forward.3} parent=39 // pred_fallthru
          _
        // Predicated region
        $region45: #{transformer_forward.3} parent=39 // pred_check
          %p799 = pneg %p165
        $region46: #{transformer_forward.3} parent=39 // pred_check_branch
          %801 = sbr.rel (%p799) target = $region48
        $region47: #{transformer_forward.3} parent=39 // pred_region
          %p802 = scmp.lt.s32.totalorder %s35, 1
          %s803 = scalar_select %p802, %s35, 1
          %s804 = scalar_lea.vmem %s5, %s803
        $region48: #{transformer_forward.3} parent=39 // pred_fallthru
          _
        // Predicated region
        $region49: #{transformer_forward.3} parent=39 // pred_check
          %p805 = pneg %p191
        $region50: #{transformer_forward.3} parent=39 // pred_check_branch
          %807 = sbr.rel (%p805) target = $region52
        $region51: #{transformer_forward.3} parent=39 // pred_region
          %p808 = scmp.lt.s32.totalorder %s35, 1
          %s809 = scalar_select %p808, %s35, 1
          %s810 = smul.addr %s809, 4
          %s811 = smul.addr %s810, 4
          %s812 = scalar_lea.vmem %s6, %s811
        $region52: #{transformer_forward.3} parent=39 // pred_fallthru
          _
        // Predicated region
        $region53: #{transformer_forward.3} parent=39 // pred_check
          %p813 = pneg %p217
        $region54: #{transformer_forward.3} parent=39 // pred_check_branch
          %815 = sbr.rel (%p813) target = $region56
        $region55: #{transformer_forward.3} parent=39 // pred_region
          %p816 = scmp.lt.s32.totalorder %s35, 1
          %s817 = scalar_select %p816, %s35, 1
          %s818 = scalar_lea.vmem %s7, %s817
        $region56: #{transformer_forward.3} parent=39 // pred_fallthru
          _
        // Predicated region
        $region57: #{transformer_forward.3} parent=39 // pred_check
          %p819 = pneg %p243
        $region58: #{transformer_forward.3} parent=39 // pred_check_branch
          %821 = sbr.rel (%p819) target = $region60
        $region59: #{transformer_forward.3} parent=39 // pred_region
          %p822 = scmp.lt.s32.totalorder %s35, 1
          %s823 = scalar_select %p822, %s35, 1
          %s824 = smul.addr %s823, 4
          %s825 = smul.addr %s824, 4
          %s826 = scalar_lea.vmem %s8, %s825
        $region60: #{transformer_forward.3} parent=39 // pred_fallthru
          _
        // Predicated region
        $region61: #{transformer_forward.3} parent=39 // pred_check
          %p827 = pneg %p269
        $region62: #{transformer_forward.3} parent=39 // pred_check_branch
          %829 = sbr.rel (%p827) target = $region64
        $region63: #{transformer_forward.3} parent=39 // pred_region
          %p830 = scmp.lt.s32.totalorder %s35, 1
          %s831 = scalar_select %p830, %s35, 1
          %s832 = scalar_lea.vmem %s9, %s831
        $region64: #{transformer_forward.3} parent=39 // pred_fallthru
          _
        // Predicated region
        $region65: #{transformer_forward.3} parent=39 // pred_check
          %p833 = pneg %p295
        $region66: #{transformer_forward.3} parent=39 // pred_check_branch
          %835 = sbr.rel (%p833) target = $region68
        $region67: #{transformer_forward.3} parent=39 // pred_region
          %p836 = scmp.lt.s32.totalorder %s35, 1
          %s837 = scalar_select %p836, %s35, 1
          %s838 = scalar_lea.vmem %s10, %s837
        $region68: #{transformer_forward.3} parent=39 // pred_fallthru
          _
        // Predicated region
        $region69: #{transformer_forward.3} parent=39 // pred_check
          %p839 = pneg %p321
        $region70: #{transformer_forward.3} parent=39 // pred_check_branch
          %841 = sbr.rel (%p839) target = $region72
        $region71: #{transformer_forward.3} parent=39 // pred_region
          %p842 = scmp.lt.s32.totalorder %s35, 1
          %s843 = scalar_select %p842, %s35, 1
          %s844 = scalar_lea.vmem %s11, %s843
        $region72: #{transformer_forward.3} parent=39 // pred_fallthru
          _
        // Predicated region
        $region73: #{transformer_forward.3} parent=39 // pred_check
          %p845 = pneg %p347
        $region74: #{transformer_forward.3} parent=39 // pred_check_branch
          %847 = sbr.rel (%p845) target = $region76
        $region75: #{transformer_forward.3} parent=39 // pred_region
          %p848 = scmp.lt.s32.totalorder %s35, 1
          %s849 = scalar_select %p848, %s35, 1
          %s850 = smul.addr %s849, 4
          %s851 = smul.addr %s850, 4
          %s852 = scalar_lea.vmem %s12, %s851
        $region76: #{transformer_forward.3} parent=39 // pred_fallthru
          _
        // Predicated region
        $region77: #{transformer_forward.3} parent=39 // pred_check
          %p853 = pneg %p373
        $region78: #{transformer_forward.3} parent=39 // pred_check_branch
          %855 = sbr.rel (%p853) target = $region80
        $region79: #{transformer_forward.3} parent=39 // pred_region
          %p856 = scmp.lt.s32.totalorder %s35, 1
          %s857 = scalar_select %p856, %s35, 1
          %s858 = scalar_lea.vmem %s13, %s857
        $region80: #{transformer_forward.3} parent=39 // pred_fallthru
          _
        // Predicated region
        $region81: #{transformer_forward.3} parent=39 // pred_check
          %p859 = pneg %p399
        $region82: #{transformer_forward.3} parent=39 // pred_check_branch
          %861 = sbr.rel (%p859) target = $region84
        $region83: #{transformer_forward.3} parent=39 // pred_region
          %p862 = scmp.lt.s32.totalorder %s35, 1
          %s863 = scalar_select %p862, %s35, 1
          %s864 = smul.addr %s863, 4
          %s865 = smul.addr %s864, 4
          %s866 = scalar_lea.vmem %s14, %s865
        $region84: #{transformer_forward.3} parent=39 // pred_fallthru
          _
        // Predicated region
        $region85: #{transformer_forward.3} parent=39 // pred_check
          %p867 = pneg %p425
        $region86: #{transformer_forward.3} parent=39 // pred_check_branch
          %869 = sbr.rel (%p867) target = $region88
        $region87: #{transformer_forward.3} parent=39 // pred_region
          %p870 = scmp.lt.s32.totalorder %s35, 1
          %s871 = scalar_select %p870, %s35, 1
          %s872 = scalar_lea.vmem %s15, %s871
        $region88: #{transformer_forward.3} parent=39 // pred_fallthru
          _
        // Predicated region
        $region89: #{transformer_forward.3} parent=39 // pred_check
          %p873 = pneg %p451
        $region90: #{transformer_forward.3} parent=39 // pred_check_branch
          %875 = sbr.rel (%p873) target = $region92
        $region91: #{transformer_forward.3} parent=39 // pred_region
          %p876 = scmp.lt.s32.totalorder %s35, 1
          %s877 = scalar_select %p876, %s35, 1
          %s878 = smul.addr %s877, 4
          %s879 = smul.addr %s878, 4
          %s880 = scalar_lea.vmem %s16, %s879
        $region92: #{transformer_forward.3} parent=39 // pred_fallthru
          _
        // Predicated region
        $region93: #{transformer_forward.3} parent=39 // pred_check
          %p881 = pneg %p477
        $region94: #{transformer_forward.3} parent=39 // pred_check_branch
          %883 = sbr.rel (%p881) target = $region96
        $region95: #{transformer_forward.3} parent=39 // pred_region
          %p884 = scmp.lt.s32.totalorder %s35, 1
          %s885 = scalar_select %p884, %s35, 1
          %s886 = scalar_lea.vmem %s17, %s885
        $region96: #{transformer_forward.3} parent=39 // pred_fallthru
          _
        // Predicated region
        $region97: #{transformer_forward.3} parent=39 // pred_check
          %p887 = pneg %p503
        $region98: #{transformer_forward.3} parent=39 // pred_check_branch
          %889 = sbr.rel (%p887) target = $region100
        $region99: #{transformer_forward.3} parent=39 // pred_region
          %p890 = scmp.lt.s32.totalorder %s35, 1
          %s891 = scalar_select %p890, %s35, 1
          %s892 = scalar_lea.vmem %s18, %s891
        $region100: #{transformer_forward.3} parent=39 // pred_fallthru
          _
        // Predicated region
        $region101: #{transformer_forward.3} parent=39 // pred_check
          %p893 = pneg %p529
        $region102: #{transformer_forward.3} parent=39 // pred_check_branch
          %895 = sbr.rel (%p893) target = $region104
        $region103: #{transformer_forward.3} parent=39 // pred_region
          %p896 = scmp.lt.s32.totalorder %s35, 1
          %s897 = scalar_select %p896, %s35, 1
          %s898 = scalar_lea.vmem %s19, %s897
        $region104: #{transformer_forward.3} parent=39 // pred_fallthru
          _
        // Predicated region
        $region105: #{transformer_forward.3} parent=39 // pred_check
          %p899 = pneg %p555
        $region106: #{transformer_forward.3} parent=39 // pred_check_branch
          %901 = sbr.rel (%p899) target = $region108
        $region107: #{transformer_forward.3} parent=39 // pred_region
          %p902 = scmp.lt.s32.totalorder %s35, 1
          %s903 = scalar_select %p902, %s35, 1
          %s904 = smul.addr %s903, 4
          %s905 = smul.addr %s904, 4
          %s906 = scalar_lea.vmem %s20, %s905
        $region108: #{transformer_forward.3} parent=39 // pred_fallthru
          _
        // Predicated region
        $region109: #{transformer_forward.3} parent=39 // pred_check
          %p907 = pneg %p581
        $region110: #{transformer_forward.3} parent=39 // pred_check_branch
          %909 = sbr.rel (%p907) target = $region112
        $region111: #{transformer_forward.3} parent=39 // pred_region
          %p910 = scmp.lt.s32.totalorder %s35, 1
          %s911 = scalar_select %p910, %s35, 1
          %s912 = scalar_lea.vmem %s21, %s911
        $region112: #{transformer_forward.3} parent=39 // pred_fallthru
          _
        // Predicated region
        $region113: #{transformer_forward.3} parent=39 // pred_check
          %p913 = pneg %p607
        $region114: #{transformer_forward.3} parent=39 // pred_check_branch
          %915 = sbr.rel (%p913) target = $region116
        $region115: #{transformer_forward.3} parent=39 // pred_region
          %p916 = scmp.lt.s32.totalorder %s35, 1
          %s917 = scalar_select %p916, %s35, 1
          %s918 = smul.addr %s917, 8
          %s919 = smul.addr %s918, 4
          %s920 = scalar_lea.vmem %s22, %s919
        $region116: #{transformer_forward.3} parent=39 // pred_fallthru
          _
        // Predicated region
        $region117: #{transformer_forward.3} parent=39 // pred_check
          %p921 = pneg %p633
        $region118: #{transformer_forward.3} parent=39 // pred_check_branch
          %923 = sbr.rel (%p921) target = $region120
        $region119: #{transformer_forward.3} parent=39 // pred_region
          %p924 = scmp.lt.s32.totalorder %s35, 1
          %s925 = scalar_select %p924, %s35, 1
          %s926 = scalar_lea.vmem %s23, %s925
        $region120: #{transformer_forward.3} parent=39 // pred_fallthru
          _
        // Predicated region
        $region121: #{transformer_forward.3} parent=39 // pred_check
          %p927 = pneg %p659
        $region122: #{transformer_forward.3} parent=39 // pred_check_branch
          %929 = sbr.rel (%p927) target = $region124
        $region123: #{transformer_forward.3} parent=39 // pred_region
          %p930 = scmp.lt.s32.totalorder %s35, 1
          %s931 = scalar_select %p930, %s35, 1
          %s932 = scalar_lea.vmem %s24, %s931
        $region124: #{transformer_forward.3} parent=39 // pred_fallthru
          _
        // Predicated region
        $region125: #{transformer_forward.3} parent=39 // pred_check
          %p933 = pneg %p685
        $region126: #{transformer_forward.3} parent=39 // pred_check_branch
          %935 = sbr.rel (%p933) target = $region128
        $region127: #{transformer_forward.3} parent=39 // pred_region
          %p936 = scmp.lt.s32.totalorder %s35, 1
          %s937 = scalar_select %p936, %s35, 1
          %s938 = scalar_lea.vmem %s25, %s937
        $region128: #{transformer_forward.3} parent=39 // pred_fallthru
          _
      $region40: #{transformer_forward.3} parent=5 // pred_fallthru
        _
      %p939 = scmp.le.s32.totalorder 1, %s35
      %p940 = scmp.lt.s32.totalorder %s35, 3
      %p941 = pnand %p939, %p940
      %p942 = pneg %p941
      // Predicated region
      $region129: #{transformer_forward.3} parent=5 // pred_check
        _
      $region130: #{transformer_forward.3} parent=5 // pred_check_branch
        %944 = sbr.rel (%p941) target = $region132
      $region131: #{transformer_forward.3} parent=5 // pred_region
        %s945 = ssub.s32 %s35, 1
        %p946 = pneg %p56
        %p947 = pneg %p53
        %p948 = pneg %p77
        %p949 = pneg %p74
        %p950 = pneg %p98
        %p951 = pneg %p95
        %p952 = pneg %p119
        %p953 = pneg %p116
        %p954 = scmp.lt.s32.totalorder %s40, 1
        %s955 = scalar_select %p954, %s40, 1
        %s956 = smul.addr %s955, 4
        %s957 = smul.addr %s956, 4
        %s958 = scalar_lea.vmem %s4, %s957
        %p959 = pneg %p145
        %p960 = pneg %p142
        %p961 = scmp.lt.s32.totalorder %s40, 1
        %s962 = scalar_select %p961, %s40, 1
        %s963 = scalar_lea.vmem %s5, %s962
        %p964 = pneg %p171
        %p965 = pneg %p168
        %p966 = scmp.lt.s32.totalorder %s40, 1
        %s967 = scalar_select %p966, %s40, 1
        %s968 = smul.addr %s967, 4
        %s969 = smul.addr %s968, 4
        %s970 = scalar_lea.vmem %s6, %s969
        %p971 = pneg %p197
        %p972 = pneg %p194
        %p973 = scmp.lt.s32.totalorder %s40, 1
        %s974 = scalar_select %p973, %s40, 1
        %s975 = scalar_lea.vmem %s7, %s974
        %p976 = pneg %p223
        %p977 = pneg %p220
        %p978 = scmp.lt.s32.totalorder %s40, 1
        %s979 = scalar_select %p978, %s40, 1
        %s980 = smul.addr %s979, 4
        %s981 = smul.addr %s980, 4
        %s982 = scalar_lea.vmem %s8, %s981
        %p983 = pneg %p249
        %p984 = pneg %p246
        %p985 = scmp.lt.s32.totalorder %s40, 1
        %s986 = scalar_select %p985, %s40, 1
        %s987 = scalar_lea.vmem %s9, %s986
        %p988 = pneg %p275
        %p989 = pneg %p272
        %p990 = scmp.lt.s32.totalorder %s40, 1
        %s991 = scalar_select %p990, %s40, 1
        %s992 = scalar_lea.vmem %s10, %s991
        %p993 = pneg %p301
        %p994 = pneg %p298
        %p995 = scmp.lt.s32.totalorder %s40, 1
        %s996 = scalar_select %p995, %s40, 1
        %s997 = scalar_lea.vmem %s11, %s996
        %p998 = pneg %p327
        %p999 = pneg %p324
        %p1000 = scmp.lt.s32.totalorder %s40, 1
        %s1001 = scalar_select %p1000, %s40, 1
        %s1002 = smul.addr %s1001, 4
        %s1003 = smul.addr %s1002, 4
        %s1004 = scalar_lea.vmem %s12, %s1003
        %p1005 = pneg %p353
        %p1006 = pneg %p350
        %p1007 = scmp.lt.s32.totalorder %s40, 1
        %s1008 = scalar_select %p1007, %s40, 1
        %s1009 = scalar_lea.vmem %s13, %s1008
        %p1010 = pneg %p379
        %p1011 = pneg %p376
        %p1012 = scmp.lt.s32.totalorder %s40, 1
        %s1013 = scalar_select %p1012, %s40, 1
        %s1014 = smul.addr %s1013, 4
        %s1015 = smul.addr %s1014, 4
        %s1016 = scalar_lea.vmem %s14, %s1015
        %p1017 = pneg %p405
        %p1018 = pneg %p402
        %p1019 = scmp.lt.s32.totalorder %s40, 1
        %s1020 = scalar_select %p1019, %s40, 1
        %s1021 = scalar_lea.vmem %s15, %s1020
        %p1022 = pneg %p431
        %p1023 = pneg %p428
        %p1024 = scmp.lt.s32.totalorder %s40, 1
        %s1025 = scalar_select %p1024, %s40, 1
        %s1026 = smul.addr %s1025, 4
        %s1027 = smul.addr %s1026, 4
        %s1028 = scalar_lea.vmem %s16, %s1027
        %p1029 = pneg %p457
        %p1030 = pneg %p454
        %p1031 = scmp.lt.s32.totalorder %s40, 1
        %s1032 = scalar_select %p1031, %s40, 1
        %s1033 = scalar_lea.vmem %s17, %s1032
        %p1034 = pneg %p483
        %p1035 = pneg %p480
        %p1036 = scmp.lt.s32.totalorder %s40, 1
        %s1037 = scalar_select %p1036, %s40, 1
        %s1038 = scalar_lea.vmem %s18, %s1037
        %p1039 = pneg %p509
        %p1040 = pneg %p506
        %p1041 = scmp.lt.s32.totalorder %s40, 1
        %s1042 = scalar_select %p1041, %s40, 1
        %s1043 = scalar_lea.vmem %s19, %s1042
        %p1044 = pneg %p535
        %p1045 = pneg %p532
        %p1046 = scmp.lt.s32.totalorder %s40, 1
        %s1047 = scalar_select %p1046, %s40, 1
        %s1048 = smul.addr %s1047, 4
        %s1049 = smul.addr %s1048, 4
        %s1050 = scalar_lea.vmem %s20, %s1049
        %p1051 = pneg %p561
        %p1052 = pneg %p558
        %p1053 = scmp.lt.s32.totalorder %s40, 1
        %s1054 = scalar_select %p1053, %s40, 1
        %s1055 = scalar_lea.vmem %s21, %s1054
        %p1056 = pneg %p587
        %p1057 = pneg %p584
        %p1058 = scmp.lt.s32.totalorder %s40, 1
        %s1059 = scalar_select %p1058, %s40, 1
        %s1060 = smul.addr %s1059, 8
        %s1061 = smul.addr %s1060, 4
        %s1062 = scalar_lea.vmem %s22, %s1061
        %p1063 = pneg %p613
        %p1064 = pneg %p610
        %p1065 = scmp.lt.s32.totalorder %s40, 1
        %s1066 = scalar_select %p1065, %s40, 1
        %s1067 = scalar_lea.vmem %s23, %s1066
        %p1068 = pneg %p639
        %p1069 = pneg %p636
        %p1070 = scmp.lt.s32.totalorder %s40, 1
        %s1071 = scalar_select %p1070, %s40, 1
        %s1072 = scalar_lea.vmem %s24, %s1071
        %p1073 = pneg %p665
        %p1074 = pneg %p662
        %p1075 = scmp.lt.s32.totalorder %s40, 1
        %s1076 = scalar_select %p1075, %s40, 1
        %s1077 = scalar_lea.vmem %s25, %s1076
        %p1078 = pneg %p691
        %p1079 = pneg %p688
        %p1080 = pneg %p712
        %p1081 = pneg %p709
        %p1082 = pneg %p733
        %p1083 = pneg %p730
        %p1084 = pneg %p754
        %p1085 = pneg %p751
        %p1086 = scmp.lt.s32.totalorder %s40, 1
        %s1087 = scalar_select %p1086, %s40, 1
        %s1088 = smul.addr %s1087, 4
        %s1089 = smul.addr %s1088, 4
        %s1090 = scalar_lea.vmem %s4, %s1089
        %p1091 = scmp.lt.s32.totalorder %s40, 1
        %s1092 = scalar_select %p1091, %s40, 1
        %s1093 = scalar_lea.vmem %s5, %s1092
        %p1094 = scmp.lt.s32.totalorder %s40, 1
        %s1095 = scalar_select %p1094, %s40, 1
        %s1096 = smul.addr %s1095, 4
        %s1097 = smul.addr %s1096, 4
        %s1098 = scalar_lea.vmem %s6, %s1097
        %p1099 = scmp.lt.s32.totalorder %s40, 1
        %s1100 = scalar_select %p1099, %s40, 1
        %s1101 = scalar_lea.vmem %s7, %s1100
        %p1102 = scmp.lt.s32.totalorder %s40, 1
        %s1103 = scalar_select %p1102, %s40, 1
        %s1104 = smul.addr %s1103, 4
        %s1105 = smul.addr %s1104, 4
        %s1106 = scalar_lea.vmem %s8, %s1105
        %p1107 = scmp.lt.s32.totalorder %s40, 1
        %s1108 = scalar_select %p1107, %s40, 1
        %s1109 = scalar_lea.vmem %s9, %s1108
        %p1110 = scmp.lt.s32.totalorder %s40, 1
        %s1111 = scalar_select %p1110, %s40, 1
        %s1112 = scalar_lea.vmem %s10, %s1111
        %p1113 = scmp.lt.s32.totalorder %s40, 1
        %s1114 = scalar_select %p1113, %s40, 1
        %s1115 = scalar_lea.vmem %s11, %s1114
        %p1116 = scmp.lt.s32.totalorder %s40, 1
        %s1117 = scalar_select %p1116, %s40, 1
        %s1118 = smul.addr %s1117, 4
        %s1119 = smul.addr %s1118, 4
        %s1120 = scalar_lea.vmem %s12, %s1119
        %p1121 = scmp.lt.s32.totalorder %s40, 1
        %s1122 = scalar_select %p1121, %s40, 1
        %s1123 = scalar_lea.vmem %s13, %s1122
        %p1124 = scmp.lt.s32.totalorder %s40, 1
        %s1125 = scalar_select %p1124, %s40, 1
        %s1126 = smul.addr %s1125, 4
        %s1127 = smul.addr %s1126, 4
        %s1128 = scalar_lea.vmem %s14, %s1127
        %p1129 = scmp.lt.s32.totalorder %s40, 1
        %s1130 = scalar_select %p1129, %s40, 1
        %s1131 = scalar_lea.vmem %s15, %s1130
        %p1132 = scmp.lt.s32.totalorder %s40, 1
        %s1133 = scalar_select %p1132, %s40, 1
        %s1134 = smul.addr %s1133, 4
        %s1135 = smul.addr %s1134, 4
        %s1136 = scalar_lea.vmem %s16, %s1135
        %p1137 = scmp.lt.s32.totalorder %s40, 1
        %s1138 = scalar_select %p1137, %s40, 1
        %s1139 = scalar_lea.vmem %s17, %s1138
        %p1140 = scmp.lt.s32.totalorder %s40, 1
        %s1141 = scalar_select %p1140, %s40, 1
        %s1142 = scalar_lea.vmem %s18, %s1141
        %p1143 = scmp.lt.s32.totalorder %s40, 1
        %s1144 = scalar_select %p1143, %s40, 1
        %s1145 = scalar_lea.vmem %s19, %s1144
        %p1146 = scmp.lt.s32.totalorder %s40, 1
        %s1147 = scalar_select %p1146, %s40, 1
        %s1148 = smul.addr %s1147, 4
        %s1149 = smul.addr %s1148, 4
        %s1150 = scalar_lea.vmem %s20, %s1149
        %p1151 = scmp.lt.s32.totalorder %s40, 1
        %s1152 = scalar_select %p1151, %s40, 1
        %s1153 = scalar_lea.vmem %s21, %s1152
        %p1154 = scmp.lt.s32.totalorder %s40, 1
        %s1155 = scalar_select %p1154, %s40, 1
        %s1156 = smul.addr %s1155, 8
        %s1157 = smul.addr %s1156, 4
        %s1158 = scalar_lea.vmem %s22, %s1157
        %p1159 = scmp.lt.s32.totalorder %s40, 1
        %s1160 = scalar_select %p1159, %s40, 1
        %s1161 = scalar_lea.vmem %s23, %s1160
        %p1162 = scmp.lt.s32.totalorder %s40, 1
        %s1163 = scalar_select %p1162, %s40, 1
        %s1164 = scalar_lea.vmem %s24, %s1163
        %p1165 = scmp.lt.s32.totalorder %s40, 1
        %s1166 = scalar_select %p1165, %s40, 1
        %s1167 = scalar_lea.vmem %s25, %s1166
        %p1169 = scmp.eq.s32.totalorder %s40, 0
        // Predicated region
        $region133: #{transformer_forward.3} parent=131 // pred_check
          %p1170 = pneg %p1169
        $region134: #{transformer_forward.3} parent=131 // pred_check_branch
          %1172 = sbr.rel (%p1170) target = $region136
        $region135: #{transformer_forward.3} parent=131 // pred_region
          %v1173 = vld [vmem:[%s0] sm:$0xff]
          %v1174 = vld [vmem:[%s0 + $0x8] sm:$0xff]
          %vm1175 = vcmask 261120
          %1176 = vst.msk [vmem:[#allocation2] sm:$0xff] %vm1175, %v1173
          %1177 = vst.msk [vmem:[#allocation2 + $0x8] sm:$0xff] %vm1175, %v1174
        $region136: #{transformer_forward.3} parent=131 // pred_fallthru
          _
        %v1178 = vld [vmem:[#allocation2] sm:$0xff]
        %v1179 = vld [vmem:[#allocation2 + $0x8] sm:$0xff]
        %v1180 = vld [vmem:[%s1] sm:$0xff]
        %v1181 = vld [vmem:[%s1 + $0x8] sm:$0xff]
        %v1182 = vld [vmem:[%s2] sm:$0xff]
        %v1183 = vld [vmem:[%s2 + $0x8] sm:$0xff]
        %v1184 = vld [vmem:[%s1090] sm:$0xf]
        %v1185 = vld [vmem:[%s1090 + $0x4] sm:$0xf]
        %v1186 = vld [vmem:[%s1090 + $0x8] sm:$0xf]
        %v1187 = vld [vmem:[%s1090 + $0xc] sm:$0xf]
        %v1188 = vld [vmem:[%s1093] sm:$0x1]
        %v1189 = vld [vmem:[%s1098] sm:$0xf]
        %v1190 = vld [vmem:[%s1098 + $0x4] sm:$0xf]
        %v1191 = vld [vmem:[%s1098 + $0x8] sm:$0xf]
        %v1192 = vld [vmem:[%s1098 + $0xc] sm:$0xf]
        %v1193 = vld [vmem:[%s1101] sm:$0x1]
        %v1194 = vld [vmem:[%s1106] sm:$0xf]
        %v1195 = vld [vmem:[%s1106 + $0x4] sm:$0xf]
        %v1196 = vld [vmem:[%s1106 + $0x8] sm:$0xf]
        %v1197 = vld [vmem:[%s1106 + $0xc] sm:$0xf]
        %v1198 = vld [vmem:[%s1109] sm:$0x1]
        %v1199 = vld [vmem:[%s1112] sm:$0x1]
        %v1200 = vld [vmem:[%s1115] sm:$0x1]
        %v1201 = vpack.c.bf16 %v1179, %v1178
        %v1203 = vlaneseq
        %v1204 = vshrl.u32 %v1203, 7
        %v1205 = vsub.s32 0, %v1204
        %v1206 = vrot.slane %v1188, %v1205
        %v1212 = vunpack.c.l.b16 %v1184
        %v1213 = vunpack.c.l.b16 %v1185
        %v1214 = vunpack.c.l.b16 %v1186
        %v1215 = vunpack.c.l.b16 %v1187
        %v1216 = vpack.c.b16 %v1213, %v1212
        %v1217 = vpack.c.b16 %v1215, %v1214
        %vm1220 = vcmask 261120
        %v1222 = vsel %vm1220, %v1201, 0
        %1224 = vmatprep.subr.bf16.mxu0 0
        %1225 = vmatpush1.bf16.msra.mxu0 0
        %1226 = vmatprep.subr.bf16.mxu0 0
        %1227 = vmatpush1.bf16.msra.mxu0 0
        %1228 = vmatprep.subr.bf16.mxu0 0
        %1229 = vmatpush1.bf16.msra.mxu0 0
        %1230 = vmatprep.subr.bf16.mxu0 0
        %1231 = vmatpush1.bf16.msra.mxu0 0
        %1232 = vmatprep.subr.bf16.mxu0 0
        %1233 = vmatpush1.bf16.msra.mxu0 0
        %1234 = vmatprep.subr.bf16.mxu0 0
        %1235 = vmatpush1.bf16.msra.mxu0 0
        %1236 = vmatprep.subr.bf16.mxu0 0
        %1237 = vmatpush1.bf16.msra.mxu0 %v1217
        %1238 = vmatprep.subr.bf16.mxu0 0
        %1239 = vmatpush1.bf16.msra.mxu0 %v1216
        %1240 = vmatprep.subr.bf16.mxu0 0
        %1241 = vmatpush2.bf16.msra.mxu0 0
        %1242 = vmatprep.subr.bf16.mxu0 0
        %1243 = vmatpush2.bf16.msra.mxu0 0
        %1244 = vmatprep.subr.bf16.mxu0 0
        %1245 = vmatpush2.bf16.msra.mxu0 0
        %1246 = vmatprep.subr.bf16.mxu0 0
        %1247 = vmatpush2.bf16.msra.mxu0 0
        %1248 = vmatprep.subr.bf16.mxu0 0
        %1249 = vmatpush2.bf16.msra.mxu0 0
        %1250 = vmatprep.subr.bf16.mxu0 0
        %1251 = vmatpush2.bf16.msra.mxu0 0
        %1252 = vmatprep.subr.bf16.mxu0 0
        %1253 = vmatpush2.bf16.msra.mxu0 0
        %1254 = vmatprep.subr.bf16.mxu0 0
        %1255 = vmatpush2.bf16.msra.mxu0 0
        %1256 = vmatprep.mubr.bf16.mxu0 0
        %1257 = vmatmul.mubr.bf16.gmra.mxu0 %v1222
        %v1258 = vpop.f32.mrf.mxu0
        %v1259 = vadd.f32 %v1206, %v1258
        %v1260 = vpop.f32.mrf.mxu0
        %v1261 = vpop.f32.mrf.mxu0
        %v1262 = vadd.f32 %v1206, %v1261
        %v1263 = vpop.f32.mrf.mxu0
        %1264 = vdwg.mxu0
        %v1266 = vlaneseq
        %v1267 = vshrl.u32 %v1266, 7
        %v1268 = vsub.s32 0, %v1267
        %v1269 = vrot.slane %v1193, %v1268
        %v1275 = vunpack.c.l.b16 %v1189
        %v1276 = vunpack.c.l.b16 %v1190
        %v1277 = vunpack.c.l.b16 %v1191
        %v1278 = vunpack.c.l.b16 %v1192
        %v1279 = vpack.c.b16 %v1276, %v1275
        %v1280 = vpack.c.b16 %v1278, %v1277
        %1283 = vmatprep.subr.bf16.mxu0 0
        %1284 = vmatpush1.bf16.msra.mxu0 0
        %1285 = vmatprep.subr.bf16.mxu0 0
        %1286 = vmatpush1.bf16.msra.mxu0 0
        %1287 = vmatprep.subr.bf16.mxu0 0
        %1288 = vmatpush1.bf16.msra.mxu0 0
        %1289 = vmatprep.subr.bf16.mxu0 0
        %1290 = vmatpush1.bf16.msra.mxu0 0
        %1291 = vmatprep.subr.bf16.mxu0 0
        %1292 = vmatpush1.bf16.msra.mxu0 0
        %1293 = vmatprep.subr.bf16.mxu0 0
        %1294 = vmatpush1.bf16.msra.mxu0 0
        %1295 = vmatprep.subr.bf16.mxu0 0
        %1296 = vmatpush1.bf16.msra.mxu0 %v1280
        %1297 = vmatprep.subr.bf16.mxu0 0
        %1298 = vmatpush1.bf16.msra.mxu0 %v1279
        %1299 = vmatprep.subr.bf16.mxu0 0
        %1300 = vmatpush2.bf16.msra.mxu0 0
        %1301 = vmatprep.subr.bf16.mxu0 0
        %1302 = vmatpush2.bf16.msra.mxu0 0
        %1303 = vmatprep.subr.bf16.mxu0 0
        %1304 = vmatpush2.bf16.msra.mxu0 0
        %1305 = vmatprep.subr.bf16.mxu0 0
        %1306 = vmatpush2.bf16.msra.mxu0 0
        %1307 = vmatprep.subr.bf16.mxu0 0
        %1308 = vmatpush2.bf16.msra.mxu0 0
        %1309 = vmatprep.subr.bf16.mxu0 0
        %1310 = vmatpush2.bf16.msra.mxu0 0
        %1311 = vmatprep.subr.bf16.mxu0 0
        %1312 = vmatpush2.bf16.msra.mxu0 0
        %1313 = vmatprep.subr.bf16.mxu0 0
        %1314 = vmatpush2.bf16.msra.mxu0 0
        %1315 = vmatprep.mubr.bf16.mxu0 0
        %1316 = vmatmul.mubr.bf16.gmra.mxu0 %v1222
        %v1317 = vpop.f32.mrf.mxu0
        %v1318 = vadd.f32 %v1269, %v1317
        %v1319 = vpop.f32.mrf.mxu0
        %v1320 = vpop.f32.mrf.mxu0
        %v1321 = vadd.f32 %v1269, %v1320
        %v1322 = vpop.f32.mrf.mxu0
        %1323 = vdwg.mxu0
        %v1324 = vsub.f32 %v1182, 1.0
        %v1325 = vsub.f32 %v1183, 1.0
        %v1326 = vmul.f32 %v1324, 10000.0
        %v1327 = vmul.f32 %v1325, 10000.0
        %v1328 = vpack.c.bf16 %v1259, %v1259
        %v1329 = vpack.c.bf16 %v1318, %v1318
        %vm1330 = vcmask 64512
        %v1332 = vsel %vm1330, %v1328, 0
        %v1335 = vsel %vm1330, %v1329, 0
        %1337 = vmatprep.subr.bf16.mxu0 0
        %1338 = vmatpush1.bf16.xpose.msra.mxu0 0
        %1339 = vmatprep.subr.bf16.mxu0 0
        %1340 = vmatpush1.bf16.xpose.msra.mxu0 0
        %1341 = vmatprep.subr.bf16.mxu0 0
        %1342 = vmatpush1.bf16.xpose.msra.mxu0 0
        %1343 = vmatprep.subr.bf16.mxu0 0
        %1344 = vmatpush1.bf16.xpose.msra.mxu0 0
        %1345 = vmatprep.subr.bf16.mxu0 0
        %1346 = vmatpush1.bf16.xpose.msra.mxu0 0
        %1347 = vmatprep.subr.bf16.mxu0 0
        %1348 = vmatpush1.bf16.xpose.msra.mxu0 0
        %1349 = vmatprep.subr.bf16.mxu0 0
        %1350 = vmatpush1.bf16.xpose.msra.mxu0 0
        %1351 = vmatprep.subr.bf16.mxu0 0
        %1352 = vmatpush1.bf16.xpose.msra.mxu0 %v1335
        %1353 = vmatprep.subr.bf16.mxu0 0
        %1354 = vmatpush2.bf16.xpose.msra.mxu0 0
        %1355 = vmatprep.subr.bf16.mxu0 0
        %1356 = vmatpush2.bf16.xpose.msra.mxu0 0
        %1357 = vmatprep.subr.bf16.mxu0 0
        %1358 = vmatpush2.bf16.xpose.msra.mxu0 0
        %1359 = vmatprep.subr.bf16.mxu0 0
        %1360 = vmatpush2.bf16.xpose.msra.mxu0 0
        %1361 = vmatprep.subr.bf16.mxu0 0
        %1362 = vmatpush2.bf16.xpose.msra.mxu0 0
        %1363 = vmatprep.subr.bf16.mxu0 0
        %1364 = vmatpush2.bf16.xpose.msra.mxu0 0
        %1365 = vmatprep.subr.bf16.mxu0 0
        %1366 = vmatpush2.bf16.xpose.msra.mxu0 0
        %1367 = vmatprep.subr.bf16.mxu0 0
        %1368 = vmatpush2.bf16.xpose.msra.mxu0 0
        %1369 = vmatprep.mubr.bf16.mxu0 0
        %1370 = vmatmul.mubr.bf16.gmra.mxu0 %v1332
        %v1371 = vpop.f32.mrf.mxu0
        %v1372 = vadd.f32 0.0, %v1371
        %v1373 = vpop.f32.mrf.mxu0
        %v1374 = vpop.f32.mrf.mxu0
        %v1375 = vpop.f32.mrf.mxu0
        %1376 = vdwg.mxu0
        %v1377 = vmul.f32 %v1372, %v1182
        %v1378 = vadd.f32 %v1377, %v1326
        %v1379 = vsel %vm1330, %v1378, -inf
        %1380 = vmax.xlane.f32.xlu0 %v1379
        %v1381 = vpop.xlane.xlu0 %1380
        %v1382 = vsub.f32 %v1378, %v1381
        %v1383 = vmul.f32 %v1382, 1.442695
        %v1384 = vpow.pop %v1383
        %v1385 = vsel %vm1330, %v1384, 0.0
        %1386 = vadd.xlane.f32.xlu0 %v1385
        %v1387 = vpop.xlane.xlu0 %1386
        %v1388 = vrcp.pop %v1387
        %v1389 = vmul.f32 %v1384, %v1388
        %v1390 = vpack.c.bf16 %v1389, %v1389
        %1392 = vrot.lane.b32.xlu0 %v1329, 96
        %v1393 = vpop.permute.xlu0 %1392
        %v1395 = vsel %vm1330, %v1390, 0
        %vm1397 = vcmask 1043456
        %v1399 = vsel %vm1397, %v1393, 0
        %1401 = vmatprep.subr.bf16.mxu0 0
        %1402 = vmatpush1.bf16.msra.mxu0 0
        %1403 = vmatprep.subr.bf16.mxu0 0
        %1404 = vmatpush1.bf16.msra.mxu0 0
        %1405 = vmatprep.subr.bf16.mxu0 0
        %1406 = vmatpush1.bf16.msra.mxu0 0
        %1407 = vmatprep.subr.bf16.mxu0 0
        %1408 = vmatpush1.bf16.msra.mxu0 0
        %1409 = vmatprep.subr.bf16.mxu0 0
        %1410 = vmatpush1.bf16.msra.mxu0 0
        %1411 = vmatprep.subr.bf16.mxu0 0
        %1412 = vmatpush1.bf16.msra.mxu0 0
        %1413 = vmatprep.subr.bf16.mxu0 0
        %1414 = vmatpush1.bf16.msra.mxu0 0
        %1415 = vmatprep.subr.bf16.mxu0 0
        %1416 = vmatpush1.bf16.msra.mxu0 %v1399
        %1417 = vmatprep.subr.bf16.mxu0 0
        %1418 = vmatpush2.bf16.msra.mxu0 0
        %1419 = vmatprep.subr.bf16.mxu0 0
        %1420 = vmatpush2.bf16.msra.mxu0 0
        %1421 = vmatprep.subr.bf16.mxu0 0
        %1422 = vmatpush2.bf16.msra.mxu0 0
        %1423 = vmatprep.subr.bf16.mxu0 0
        %1424 = vmatpush2.bf16.msra.mxu0 0
        %1425 = vmatprep.subr.bf16.mxu0 0
        %1426 = vmatpush2.bf16.msra.mxu0 0
        %1427 = vmatprep.subr.bf16.mxu0 0
        %1428 = vmatpush2.bf16.msra.mxu0 0
        %1429 = vmatprep.subr.bf16.mxu0 0
        %1430 = vmatpush2.bf16.msra.mxu0 0
        %1431 = vmatprep.subr.bf16.mxu0 0
        %1432 = vmatpush2.bf16.msra.mxu0 0
        %1433 = vmatprep.mubr.bf16.mxu0 0
        %1434 = vmatmul.mubr.bf16.gmra.mxu0 %v1395
        %v1435 = vpop.f32.mrf.mxu0
        %v1436 = vadd.f32 0.0, %v1435
        %v1437 = vpop.f32.mrf.mxu0
        %v1438 = vpop.f32.mrf.mxu0
        %v1439 = vpop.f32.mrf.mxu0
        %1440 = vdwg.mxu0
        %1442 = vrot.lane.b32.xlu0 %v1328, 120
        %v1443 = vpop.permute.xlu0 %1442
        %1444 = vrot.lane.b32.xlu0 %v1329, 120
        %v1445 = vpop.permute.xlu0 %1444
        %v1447 = vsel %vm1330, %v1443, 0
        %v1450 = vsel %vm1330, %v1445, 0
        %1452 = vmatprep.subr.bf16.mxu0 0
        %1453 = vmatpush1.bf16.xpose.msra.mxu0 0
        %1454 = vmatprep.subr.bf16.mxu0 0
        %1455 = vmatpush1.bf16.xpose.msra.mxu0 0
        %1456 = vmatprep.subr.bf16.mxu0 0
        %1457 = vmatpush1.bf16.xpose.msra.mxu0 0
        %1458 = vmatprep.subr.bf16.mxu0 0
        %1459 = vmatpush1.bf16.xpose.msra.mxu0 0
        %1460 = vmatprep.subr.bf16.mxu0 0
        %1461 = vmatpush1.bf16.xpose.msra.mxu0 0
        %1462 = vmatprep.subr.bf16.mxu0 0
        %1463 = vmatpush1.bf16.xpose.msra.mxu0 0
        %1464 = vmatprep.subr.bf16.mxu0 0
        %1465 = vmatpush1.bf16.xpose.msra.mxu0 0
        %1466 = vmatprep.subr.bf16.mxu0 0
        %1467 = vmatpush1.bf16.xpose.msra.mxu0 %v1450
        %1468 = vmatprep.subr.bf16.mxu0 0
        %1469 = vmatpush2.bf16.xpose.msra.mxu0 0
        %1470 = vmatprep.subr.bf16.mxu0 0
        %1471 = vmatpush2.bf16.xpose.msra.mxu0 0
        %1472 = vmatprep.subr.bf16.mxu0 0
        %1473 = vmatpush2.bf16.xpose.msra.mxu0 0
        %1474 = vmatprep.subr.bf16.mxu0 0
        %1475 = vmatpush2.bf16.xpose.msra.mxu0 0
        %1476 = vmatprep.subr.bf16.mxu0 0
        %1477 = vmatpush2.bf16.xpose.msra.mxu0 0
        %1478 = vmatprep.subr.bf16.mxu0 0
        %1479 = vmatpush2.bf16.xpose.msra.mxu0 0
        %1480 = vmatprep.subr.bf16.mxu0 0
        %1481 = vmatpush2.bf16.xpose.msra.mxu0 0
        %1482 = vmatprep.subr.bf16.mxu0 0
        %1483 = vmatpush2.bf16.xpose.msra.mxu0 0
        %1484 = vmatprep.mubr.bf16.mxu0 0
        %1485 = vmatmul.mubr.bf16.gmra.mxu0 %v1447
        %v1486 = vpop.f32.mrf.mxu0
        %v1487 = vadd.f32 0.0, %v1486
        %v1488 = vpop.f32.mrf.mxu0
        %v1489 = vpop.f32.mrf.mxu0
        %v1490 = vpop.f32.mrf.mxu0
        %1491 = vdwg.mxu0
        %v1492 = vmul.f32 %v1487, %v1182
        %v1493 = vadd.f32 %v1492, %v1326
        %v1494 = vsel %vm1330, %v1493, -inf
        %1495 = vmax.xlane.f32.xlu0 %v1494
        %v1496 = vpop.xlane.xlu0 %1495
        %v1497 = vsub.f32 %v1493, %v1496
        %v1498 = vmul.f32 %v1497, 1.442695
        %v1499 = vpow.pop %v1498
        %v1500 = vsel %vm1330, %v1499, 0.0
        %1501 = vadd.xlane.f32.xlu0 %v1500
        %v1502 = vpop.xlane.xlu0 %1501
        %v1503 = vrcp.pop %v1502
        %v1504 = vmul.f32 %v1499, %v1503
        %v1505 = vpack.c.bf16 %v1504, %v1504
        %1506 = vrot.lane.b32.xlu0 %v1329, 88
        %v1507 = vpop.permute.xlu0 %1506
        %v1509 = vsel %vm1330, %v1505, 0
        %v1512 = vsel %vm1397, %v1507, 0
        %1514 = vmatprep.subr.bf16.mxu0 0
        %1515 = vmatpush1.bf16.msra.mxu0 0
        %1516 = vmatprep.subr.bf16.mxu0 0
        %1517 = vmatpush1.bf16.msra.mxu0 0
        %1518 = vmatprep.subr.bf16.mxu0 0
        %1519 = vmatpush1.bf16.msra.mxu0 0
        %1520 = vmatprep.subr.bf16.mxu0 0
        %1521 = vmatpush1.bf16.msra.mxu0 0
        %1522 = vmatprep.subr.bf16.mxu0 0
        %1523 = vmatpush1.bf16.msra.mxu0 0
        %1524 = vmatprep.subr.bf16.mxu0 0
        %1525 = vmatpush1.bf16.msra.mxu0 0
        %1526 = vmatprep.subr.bf16.mxu0 0
        %1527 = vmatpush1.bf16.msra.mxu0 0
        %1528 = vmatprep.subr.bf16.mxu0 0
        %1529 = vmatpush1.bf16.msra.mxu0 %v1512
        %1530 = vmatprep.subr.bf16.mxu0 0
        %1531 = vmatpush2.bf16.msra.mxu0 0
        %1532 = vmatprep.subr.bf16.mxu0 0
        %1533 = vmatpush2.bf16.msra.mxu0 0
        %1534 = vmatprep.subr.bf16.mxu0 0
        %1535 = vmatpush2.bf16.msra.mxu0 0
        %1536 = vmatprep.subr.bf16.mxu0 0
        %1537 = vmatpush2.bf16.msra.mxu0 0
        %1538 = vmatprep.subr.bf16.mxu0 0
        %1539 = vmatpush2.bf16.msra.mxu0 0
        %1540 = vmatprep.subr.bf16.mxu0 0
        %1541 = vmatpush2.bf16.msra.mxu0 0
        %1542 = vmatprep.subr.bf16.mxu0 0
        %1543 = vmatpush2.bf16.msra.mxu0 0
        %1544 = vmatprep.subr.bf16.mxu0 0
        %1545 = vmatpush2.bf16.msra.mxu0 0
        %1546 = vmatprep.mubr.bf16.mxu0 0
        %1547 = vmatmul.mubr.bf16.gmra.mxu0 %v1509
        %v1548 = vpop.f32.mrf.mxu0
        %v1549 = vadd.f32 0.0, %v1548
        %v1550 = vpop.f32.mrf.mxu0
        %v1551 = vpop.f32.mrf.mxu0
        %v1552 = vpop.f32.mrf.mxu0
        %1553 = vdwg.mxu0
        %1554 = vrot.lane.b32.xlu0 %v1328, 112
        %v1555 = vpop.permute.xlu0 %1554
        %1556 = vrot.lane.b32.xlu0 %v1329, 112
        %v1557 = vpop.permute.xlu0 %1556
        %v1559 = vsel %vm1330, %v1555, 0
        %v1562 = vsel %vm1330, %v1557, 0
        %1564 = vmatprep.subr.bf16.mxu0 0
        %1565 = vmatpush1.bf16.xpose.msra.mxu0 0
        %1566 = vmatprep.subr.bf16.mxu0 0
        %1567 = vmatpush1.bf16.xpose.msra.mxu0 0
        %1568 = vmatprep.subr.bf16.mxu0 0
        %1569 = vmatpush1.bf16.xpose.msra.mxu0 0
        %1570 = vmatprep.subr.bf16.mxu0 0
        %1571 = vmatpush1.bf16.xpose.msra.mxu0 0
        %1572 = vmatprep.subr.bf16.mxu0 0
        %1573 = vmatpush1.bf16.xpose.msra.mxu0 0
        %1574 = vmatprep.subr.bf16.mxu0 0
        %1575 = vmatpush1.bf16.xpose.msra.mxu0 0
        %1576 = vmatprep.subr.bf16.mxu0 0
        %1577 = vmatpush1.bf16.xpose.msra.mxu0 0
        %1578 = vmatprep.subr.bf16.mxu0 0
        %1579 = vmatpush1.bf16.xpose.msra.mxu0 %v1562
        %1580 = vmatprep.subr.bf16.mxu0 0
        %1581 = vmatpush2.bf16.xpose.msra.mxu0 0
        %1582 = vmatprep.subr.bf16.mxu0 0
        %1583 = vmatpush2.bf16.xpose.msra.mxu0 0
        %1584 = vmatprep.subr.bf16.mxu0 0
        %1585 = vmatpush2.bf16.xpose.msra.mxu0 0
        %1586 = vmatprep.subr.bf16.mxu0 0
        %1587 = vmatpush2.bf16.xpose.msra.mxu0 0
        %1588 = vmatprep.subr.bf16.mxu0 0
        %1589 = vmatpush2.bf16.xpose.msra.mxu0 0
        %1590 = vmatprep.subr.bf16.mxu0 0
        %1591 = vmatpush2.bf16.xpose.msra.mxu0 0
        %1592 = vmatprep.subr.bf16.mxu0 0
        %1593 = vmatpush2.bf16.xpose.msra.mxu0 0
        %1594 = vmatprep.subr.bf16.mxu0 0
        %1595 = vmatpush2.bf16.xpose.msra.mxu0 0
        %1596 = vmatprep.mubr.bf16.mxu0 0
        %1597 = vmatmul.mubr.bf16.gmra.mxu0 %v1559
        %v1598 = vpop.f32.mrf.mxu0
        %v1599 = vadd.f32 0.0, %v1598
        %v1600 = vpop.f32.mrf.mxu0
        %v1601 = vpop.f32.mrf.mxu0
        %v1602 = vpop.f32.mrf.mxu0
        %1603 = vdwg.mxu0
        %v1604 = vmul.f32 %v1599, %v1182
        %v1605 = vadd.f32 %v1604, %v1326
        %v1606 = vsel %vm1330, %v1605, -inf
        %1607 = vmax.xlane.f32.xlu0 %v1606
        %v1608 = vpop.xlane.xlu0 %1607
        %v1609 = vsub.f32 %v1605, %v1608
        %v1610 = vmul.f32 %v1609, 1.442695
        %v1611 = vpow.pop %v1610
        %v1612 = vsel %vm1330, %v1611, 0.0
        %1613 = vadd.xlane.f32.xlu0 %v1612
        %v1614 = vpop.xlane.xlu0 %1613
        %v1615 = vrcp.pop %v1614
        %v1616 = vmul.f32 %v1611, %v1615
        %v1617 = vpack.c.bf16 %v1616, %v1616
        %1618 = vrot.lane.b32.xlu0 %v1329, 80
        %v1619 = vpop.permute.xlu0 %1618
        %v1621 = vsel %vm1330, %v1617, 0
        %v1624 = vsel %vm1397, %v1619, 0
        %1626 = vmatprep.subr.bf16.mxu0 0
        %1627 = vmatpush1.bf16.msra.mxu0 0
        %1628 = vmatprep.subr.bf16.mxu0 0
        %1629 = vmatpush1.bf16.msra.mxu0 0
        %1630 = vmatprep.subr.bf16.mxu0 0
        %1631 = vmatpush1.bf16.msra.mxu0 0
        %1632 = vmatprep.subr.bf16.mxu0 0
        %1633 = vmatpush1.bf16.msra.mxu0 0
        %1634 = vmatprep.subr.bf16.mxu0 0
        %1635 = vmatpush1.bf16.msra.mxu0 0
        %1636 = vmatprep.subr.bf16.mxu0 0
        %1637 = vmatpush1.bf16.msra.mxu0 0
        %1638 = vmatprep.subr.bf16.mxu0 0
        %1639 = vmatpush1.bf16.msra.mxu0 0
        %1640 = vmatprep.subr.bf16.mxu0 0
        %1641 = vmatpush1.bf16.msra.mxu0 %v1624
        %1642 = vmatprep.subr.bf16.mxu0 0
        %1643 = vmatpush2.bf16.msra.mxu0 0
        %1644 = vmatprep.subr.bf16.mxu0 0
        %1645 = vmatpush2.bf16.msra.mxu0 0
        %1646 = vmatprep.subr.bf16.mxu0 0
        %1647 = vmatpush2.bf16.msra.mxu0 0
        %1648 = vmatprep.subr.bf16.mxu0 0
        %1649 = vmatpush2.bf16.msra.mxu0 0
        %1650 = vmatprep.subr.bf16.mxu0 0
        %1651 = vmatpush2.bf16.msra.mxu0 0
        %1652 = vmatprep.subr.bf16.mxu0 0
        %1653 = vmatpush2.bf16.msra.mxu0 0
        %1654 = vmatprep.subr.bf16.mxu0 0
        %1655 = vmatpush2.bf16.msra.mxu0 0
        %1656 = vmatprep.subr.bf16.mxu0 0
        %1657 = vmatpush2.bf16.msra.mxu0 0
        %1658 = vmatprep.mubr.bf16.mxu0 0
        %1659 = vmatmul.mubr.bf16.gmra.mxu0 %v1621
        %v1660 = vpop.f32.mrf.mxu0
        %v1661 = vadd.f32 0.0, %v1660
        %v1662 = vpop.f32.mrf.mxu0
        %v1663 = vpop.f32.mrf.mxu0
        %v1664 = vpop.f32.mrf.mxu0
        %1665 = vdwg.mxu0
        %1666 = vrot.lane.b32.xlu0 %v1328, 104
        %v1667 = vpop.permute.xlu0 %1666
        %1668 = vrot.lane.b32.xlu0 %v1329, 104
        %v1669 = vpop.permute.xlu0 %1668
        %v1671 = vsel %vm1330, %v1667, 0
        %v1674 = vsel %vm1330, %v1669, 0
        %1676 = vmatprep.subr.bf16.mxu0 0
        %1677 = vmatpush1.bf16.xpose.msra.mxu0 0
        %1678 = vmatprep.subr.bf16.mxu0 0
        %1679 = vmatpush1.bf16.xpose.msra.mxu0 0
        %1680 = vmatprep.subr.bf16.mxu0 0
        %1681 = vmatpush1.bf16.xpose.msra.mxu0 0
        %1682 = vmatprep.subr.bf16.mxu0 0
        %1683 = vmatpush1.bf16.xpose.msra.mxu0 0
        %1684 = vmatprep.subr.bf16.mxu0 0
        %1685 = vmatpush1.bf16.xpose.msra.mxu0 0
        %1686 = vmatprep.subr.bf16.mxu0 0
        %1687 = vmatpush1.bf16.xpose.msra.mxu0 0
        %1688 = vmatprep.subr.bf16.mxu0 0
        %1689 = vmatpush1.bf16.xpose.msra.mxu0 0
        %1690 = vmatprep.subr.bf16.mxu0 0
        %1691 = vmatpush1.bf16.xpose.msra.mxu0 %v1674
        %1692 = vmatprep.subr.bf16.mxu0 0
        %1693 = vmatpush2.bf16.xpose.msra.mxu0 0
        %1694 = vmatprep.subr.bf16.mxu0 0
        %1695 = vmatpush2.bf16.xpose.msra.mxu0 0
        %1696 = vmatprep.subr.bf16.mxu0 0
        %1697 = vmatpush2.bf16.xpose.msra.mxu0 0
        %1698 = vmatprep.subr.bf16.mxu0 0
        %1699 = vmatpush2.bf16.xpose.msra.mxu0 0
        %1700 = vmatprep.subr.bf16.mxu0 0
        %1701 = vmatpush2.bf16.xpose.msra.mxu0 0
        %1702 = vmatprep.subr.bf16.mxu0 0
        %1703 = vmatpush2.bf16.xpose.msra.mxu0 0
        %1704 = vmatprep.subr.bf16.mxu0 0
        %1705 = vmatpush2.bf16.xpose.msra.mxu0 0
        %1706 = vmatprep.subr.bf16.mxu0 0
        %1707 = vmatpush2.bf16.xpose.msra.mxu0 0
        %1708 = vmatprep.mubr.bf16.mxu0 0
        %1709 = vmatmul.mubr.bf16.gmra.mxu0 %v1671
        %v1710 = vpop.f32.mrf.mxu0
        %v1711 = vadd.f32 0.0, %v1710
        %v1712 = vpop.f32.mrf.mxu0
        %v1713 = vpop.f32.mrf.mxu0
        %v1714 = vpop.f32.mrf.mxu0
        %1715 = vdwg.mxu0
        %v1716 = vmul.f32 %v1711, %v1182
        %v1717 = vadd.f32 %v1716, %v1326
        %v1718 = vsel %vm1330, %v1717, -inf
        %1719 = vmax.xlane.f32.xlu0 %v1718
        %v1720 = vpop.xlane.xlu0 %1719
        %v1721 = vsub.f32 %v1717, %v1720
        %v1722 = vmul.f32 %v1721, 1.442695
        %v1723 = vpow.pop %v1722
        %v1724 = vsel %vm1330, %v1723, 0.0
        %1725 = vadd.xlane.f32.xlu0 %v1724
        %v1726 = vpop.xlane.xlu0 %1725
        %v1727 = vrcp.pop %v1726
        %v1728 = vmul.f32 %v1723, %v1727
        %v1729 = vpack.c.bf16 %v1728, %v1728
        %1730 = vrot.lane.b32.xlu0 %v1329, 72
        %v1731 = vpop.permute.xlu0 %1730
        %v1733 = vsel %vm1330, %v1729, 0
        %v1736 = vsel %vm1397, %v1731, 0
        %1738 = vmatprep.subr.bf16.mxu0 0
        %1739 = vmatpush1.bf16.msra.mxu0 0
        %1740 = vmatprep.subr.bf16.mxu0 0
        %1741 = vmatpush1.bf16.msra.mxu0 0
        %1742 = vmatprep.subr.bf16.mxu0 0
        %1743 = vmatpush1.bf16.msra.mxu0 0
        %1744 = vmatprep.subr.bf16.mxu0 0
        %1745 = vmatpush1.bf16.msra.mxu0 0
        %1746 = vmatprep.subr.bf16.mxu0 0
        %1747 = vmatpush1.bf16.msra.mxu0 0
        %1748 = vmatprep.subr.bf16.mxu0 0
        %1749 = vmatpush1.bf16.msra.mxu0 0
        %1750 = vmatprep.subr.bf16.mxu0 0
        %1751 = vmatpush1.bf16.msra.mxu0 0
        %1752 = vmatprep.subr.bf16.mxu0 0
        %1753 = vmatpush1.bf16.msra.mxu0 %v1736
        %1754 = vmatprep.subr.bf16.mxu0 0
        %1755 = vmatpush2.bf16.msra.mxu0 0
        %1756 = vmatprep.subr.bf16.mxu0 0
        %1757 = vmatpush2.bf16.msra.mxu0 0
        %1758 = vmatprep.subr.bf16.mxu0 0
        %1759 = vmatpush2.bf16.msra.mxu0 0
        %1760 = vmatprep.subr.bf16.mxu0 0
        %1761 = vmatpush2.bf16.msra.mxu0 0
        %1762 = vmatprep.subr.bf16.mxu0 0
        %1763 = vmatpush2.bf16.msra.mxu0 0
        %1764 = vmatprep.subr.bf16.mxu0 0
        %1765 = vmatpush2.bf16.msra.mxu0 0
        %1766 = vmatprep.subr.bf16.mxu0 0
        %1767 = vmatpush2.bf16.msra.mxu0 0
        %1768 = vmatprep.subr.bf16.mxu0 0
        %1769 = vmatpush2.bf16.msra.mxu0 0
        %1770 = vmatprep.mubr.bf16.mxu0 0
        %1771 = vmatmul.mubr.bf16.gmra.mxu0 %v1733
        %v1772 = vpop.f32.mrf.mxu0
        %v1773 = vadd.f32 0.0, %v1772
        %v1774 = vpop.f32.mrf.mxu0
        %v1775 = vpop.f32.mrf.mxu0
        %v1776 = vpop.f32.mrf.mxu0
        %1777 = vdwg.mxu0
        %1779 = vrot.lane.b32.xlu0 %v1549, 8
        %v1780 = vpop.permute.xlu0 %1779
        %1783 = vrot.lane.b32.xlu0 %v1661, 16
        %v1784 = vpop.permute.xlu0 %1783
        %1787 = vrot.lane.b32.xlu0 %v1773, 24
        %v1788 = vpop.permute.xlu0 %1787
        %v1790 = vsel %vm1330, %v1436, %v1780
        %vm1791 = vcmask 130048
        %v1792 = vsel %vm1791, %v1790, %v1784
        %vm1793 = vcmask 195584
        %v1794 = vsel %vm1793, %v1792, %v1788
        %v1795 = vpack.c.bf16 %v1262, %v1262
        %v1796 = vpack.c.bf16 %v1321, %v1321
        %v1798 = vsel %vm1330, %v1795, 0
        %v1801 = vsel %vm1330, %v1796, 0
        %1803 = vmatprep.subr.bf16.mxu0 0
        %1804 = vmatpush1.bf16.xpose.msra.mxu0 0
        %1805 = vmatprep.subr.bf16.mxu0 0
        %1806 = vmatpush1.bf16.xpose.msra.mxu0 0
        %1807 = vmatprep.subr.bf16.mxu0 0
        %1808 = vmatpush1.bf16.xpose.msra.mxu0 0
        %1809 = vmatprep.subr.bf16.mxu0 0
        %1810 = vmatpush1.bf16.xpose.msra.mxu0 0
        %1811 = vmatprep.subr.bf16.mxu0 0
        %1812 = vmatpush1.bf16.xpose.msra.mxu0 0
        %1813 = vmatprep.subr.bf16.mxu0 0
        %1814 = vmatpush1.bf16.xpose.msra.mxu0 0
        %1815 = vmatprep.subr.bf16.mxu0 0
        %1816 = vmatpush1.bf16.xpose.msra.mxu0 0
        %1817 = vmatprep.subr.bf16.mxu0 0
        %1818 = vmatpush1.bf16.xpose.msra.mxu0 %v1801
        %1819 = vmatprep.subr.bf16.mxu0 0
        %1820 = vmatpush2.bf16.xpose.msra.mxu0 0
        %1821 = vmatprep.subr.bf16.mxu0 0
        %1822 = vmatpush2.bf16.xpose.msra.mxu0 0
        %1823 = vmatprep.subr.bf16.mxu0 0
        %1824 = vmatpush2.bf16.xpose.msra.mxu0 0
        %1825 = vmatprep.subr.bf16.mxu0 0
        %1826 = vmatpush2.bf16.xpose.msra.mxu0 0
        %1827 = vmatprep.subr.bf16.mxu0 0
        %1828 = vmatpush2.bf16.xpose.msra.mxu0 0
        %1829 = vmatprep.subr.bf16.mxu0 0
        %1830 = vmatpush2.bf16.xpose.msra.mxu0 0
        %1831 = vmatprep.subr.bf16.mxu0 0
        %1832 = vmatpush2.bf16.xpose.msra.mxu0 0
        %1833 = vmatprep.subr.bf16.mxu0 0
        %1834 = vmatpush2.bf16.xpose.msra.mxu0 0
        %1835 = vmatprep.mubr.bf16.mxu0 0
        %1836 = vmatmul.mubr.bf16.gmra.mxu0 %v1798
        %v1837 = vpop.f32.mrf.mxu0
        %v1838 = vadd.f32 0.0, %v1837
        %v1839 = vpop.f32.mrf.mxu0
        %v1840 = vpop.f32.mrf.mxu0
        %v1841 = vpop.f32.mrf.mxu0
        %1842 = vdwg.mxu0
        %v1843 = vmul.f32 %v1838, %v1183
        %v1844 = vadd.f32 %v1843, %v1327
        %v1845 = vsel %vm1330, %v1844, -inf
        %1846 = vmax.xlane.f32.xlu0 %v1845
        %v1847 = vpop.xlane.xlu0 %1846
        %v1848 = vsub.f32 %v1844, %v1847
        %v1849 = vmul.f32 %v1848, 1.442695
        %v1850 = vpow.pop %v1849
        %v1851 = vsel %vm1330, %v1850, 0.0
        %1852 = vadd.xlane.f32.xlu0 %v1851
        %v1853 = vpop.xlane.xlu0 %1852
        %v1854 = vrcp.pop %v1853
        %v1855 = vmul.f32 %v1850, %v1854
        %v1856 = vpack.c.bf16 %v1855, %v1855
        %1858 = vrot.lane.b32.xlu0 %v1796, 96
        %v1859 = vpop.permute.xlu0 %1858
        %v1861 = vsel %vm1330, %v1856, 0
        %v1864 = vsel %vm1397, %v1859, 0
        %1866 = vmatprep.subr.bf16.mxu0 0
        %1867 = vmatpush1.bf16.msra.mxu0 0
        %1868 = vmatprep.subr.bf16.mxu0 0
        %1869 = vmatpush1.bf16.msra.mxu0 0
        %1870 = vmatprep.subr.bf16.mxu0 0
        %1871 = vmatpush1.bf16.msra.mxu0 0
        %1872 = vmatprep.subr.bf16.mxu0 0
        %1873 = vmatpush1.bf16.msra.mxu0 0
        %1874 = vmatprep.subr.bf16.mxu0 0
        %1875 = vmatpush1.bf16.msra.mxu0 0
        %1876 = vmatprep.subr.bf16.mxu0 0
        %1877 = vmatpush1.bf16.msra.mxu0 0
        %1878 = vmatprep.subr.bf16.mxu0 0
        %1879 = vmatpush1.bf16.msra.mxu0 0
        %1880 = vmatprep.subr.bf16.mxu0 0
        %1881 = vmatpush1.bf16.msra.mxu0 %v1864
        %1882 = vmatprep.subr.bf16.mxu0 0
        %1883 = vmatpush2.bf16.msra.mxu0 0
        %1884 = vmatprep.subr.bf16.mxu0 0
        %1885 = vmatpush2.bf16.msra.mxu0 0
        %1886 = vmatprep.subr.bf16.mxu0 0
        %1887 = vmatpush2.bf16.msra.mxu0 0
        %1888 = vmatprep.subr.bf16.mxu0 0
        %1889 = vmatpush2.bf16.msra.mxu0 0
        %1890 = vmatprep.subr.bf16.mxu0 0
        %1891 = vmatpush2.bf16.msra.mxu0 0
        %1892 = vmatprep.subr.bf16.mxu0 0
        %1893 = vmatpush2.bf16.msra.mxu0 0
        %1894 = vmatprep.subr.bf16.mxu0 0
        %1895 = vmatpush2.bf16.msra.mxu0 0
        %1896 = vmatprep.subr.bf16.mxu0 0
        %1897 = vmatpush2.bf16.msra.mxu0 0
        %1898 = vmatprep.mubr.bf16.mxu0 0
        %1899 = vmatmul.mubr.bf16.gmra.mxu0 %v1861
        %v1900 = vpop.f32.mrf.mxu0
        %v1901 = vadd.f32 0.0, %v1900
        %v1902 = vpop.f32.mrf.mxu0
        %v1903 = vpop.f32.mrf.mxu0
        %v1904 = vpop.f32.mrf.mxu0
        %1905 = vdwg.mxu0
        %1907 = vrot.lane.b32.xlu0 %v1795, 120
        %v1908 = vpop.permute.xlu0 %1907
        %1909 = vrot.lane.b32.xlu0 %v1796, 120
        %v1910 = vpop.permute.xlu0 %1909
        %v1912 = vsel %vm1330, %v1908, 0
        %v1915 = vsel %vm1330, %v1910, 0
        %1917 = vmatprep.subr.bf16.mxu0 0
        %1918 = vmatpush1.bf16.xpose.msra.mxu0 0
        %1919 = vmatprep.subr.bf16.mxu0 0
        %1920 = vmatpush1.bf16.xpose.msra.mxu0 0
        %1921 = vmatprep.subr.bf16.mxu0 0
        %1922 = vmatpush1.bf16.xpose.msra.mxu0 0
        %1923 = vmatprep.subr.bf16.mxu0 0
        %1924 = vmatpush1.bf16.xpose.msra.mxu0 0
        %1925 = vmatprep.subr.bf16.mxu0 0
        %1926 = vmatpush1.bf16.xpose.msra.mxu0 0
        %1927 = vmatprep.subr.bf16.mxu0 0
        %1928 = vmatpush1.bf16.xpose.msra.mxu0 0
        %1929 = vmatprep.subr.bf16.mxu0 0
        %1930 = vmatpush1.bf16.xpose.msra.mxu0 0
        %1931 = vmatprep.subr.bf16.mxu0 0
        %1932 = vmatpush1.bf16.xpose.msra.mxu0 %v1915
        %1933 = vmatprep.subr.bf16.mxu0 0
        %1934 = vmatpush2.bf16.xpose.msra.mxu0 0
        %1935 = vmatprep.subr.bf16.mxu0 0
        %1936 = vmatpush2.bf16.xpose.msra.mxu0 0
        %1937 = vmatprep.subr.bf16.mxu0 0
        %1938 = vmatpush2.bf16.xpose.msra.mxu0 0
        %1939 = vmatprep.subr.bf16.mxu0 0
        %1940 = vmatpush2.bf16.xpose.msra.mxu0 0
        %1941 = vmatprep.subr.bf16.mxu0 0
        %1942 = vmatpush2.bf16.xpose.msra.mxu0 0
        %1943 = vmatprep.subr.bf16.mxu0 0
        %1944 = vmatpush2.bf16.xpose.msra.mxu0 0
        %1945 = vmatprep.subr.bf16.mxu0 0
        %1946 = vmatpush2.bf16.xpose.msra.mxu0 0
        %1947 = vmatprep.subr.bf16.mxu0 0
        %1948 = vmatpush2.bf16.xpose.msra.mxu0 0
        %1949 = vmatprep.mubr.bf16.mxu0 0
        %1950 = vmatmul.mubr.bf16.gmra.mxu0 %v1912
        %v1951 = vpop.f32.mrf.mxu0
        %v1952 = vadd.f32 0.0, %v1951
        %v1953 = vpop.f32.mrf.mxu0
        %v1954 = vpop.f32.mrf.mxu0
        %v1955 = vpop.f32.mrf.mxu0
        %1956 = vdwg.mxu0
        %v1957 = vmul.f32 %v1952, %v1183
        %v1958 = vadd.f32 %v1957, %v1327
        %v1959 = vsel %vm1330, %v1958, -inf
        %1960 = vmax.xlane.f32.xlu0 %v1959
        %v1961 = vpop.xlane.xlu0 %1960
        %v1962 = vsub.f32 %v1958, %v1961
        %v1963 = vmul.f32 %v1962, 1.442695
        %v1964 = vpow.pop %v1963
        %v1965 = vsel %vm1330, %v1964, 0.0
        %1966 = vadd.xlane.f32.xlu0 %v1965
        %v1967 = vpop.xlane.xlu0 %1966
        %v1968 = vrcp.pop %v1967
        %v1969 = vmul.f32 %v1964, %v1968
        %v1970 = vpack.c.bf16 %v1969, %v1969
        %1971 = vrot.lane.b32.xlu0 %v1796, 88
        %v1972 = vpop.permute.xlu0 %1971
        %v1974 = vsel %vm1330, %v1970, 0
        %v1977 = vsel %vm1397, %v1972, 0
        %1979 = vmatprep.subr.bf16.mxu0 0
        %1980 = vmatpush1.bf16.msra.mxu0 0
        %1981 = vmatprep.subr.bf16.mxu0 0
        %1982 = vmatpush1.bf16.msra.mxu0 0
        %1983 = vmatprep.subr.bf16.mxu0 0
        %1984 = vmatpush1.bf16.msra.mxu0 0
        %1985 = vmatprep.subr.bf16.mxu0 0
        %1986 = vmatpush1.bf16.msra.mxu0 0
        %1987 = vmatprep.subr.bf16.mxu0 0
        %1988 = vmatpush1.bf16.msra.mxu0 0
        %1989 = vmatprep.subr.bf16.mxu0 0
        %1990 = vmatpush1.bf16.msra.mxu0 0
        %1991 = vmatprep.subr.bf16.mxu0 0
        %1992 = vmatpush1.bf16.msra.mxu0 0
        %1993 = vmatprep.subr.bf16.mxu0 0
        %1994 = vmatpush1.bf16.msra.mxu0 %v1977
        %1995 = vmatprep.subr.bf16.mxu0 0
        %1996 = vmatpush2.bf16.msra.mxu0 0
        %1997 = vmatprep.subr.bf16.mxu0 0
        %1998 = vmatpush2.bf16.msra.mxu0 0
        %1999 = vmatprep.subr.bf16.mxu0 0
        %2000 = vmatpush2.bf16.msra.mxu0 0
        %2001 = vmatprep.subr.bf16.mxu0 0
        %2002 = vmatpush2.bf16.msra.mxu0 0
        %2003 = vmatprep.subr.bf16.mxu0 0
        %2004 = vmatpush2.bf16.msra.mxu0 0
        %2005 = vmatprep.subr.bf16.mxu0 0
        %2006 = vmatpush2.bf16.msra.mxu0 0
        %2007 = vmatprep.subr.bf16.mxu0 0
        %2008 = vmatpush2.bf16.msra.mxu0 0
        %2009 = vmatprep.subr.bf16.mxu0 0
        %2010 = vmatpush2.bf16.msra.mxu0 0
        %2011 = vmatprep.mubr.bf16.mxu0 0
        %2012 = vmatmul.mubr.bf16.gmra.mxu0 %v1974
        %v2013 = vpop.f32.mrf.mxu0
        %v2014 = vadd.f32 0.0, %v2013
        %v2015 = vpop.f32.mrf.mxu0
        %v2016 = vpop.f32.mrf.mxu0
        %v2017 = vpop.f32.mrf.mxu0
        %2018 = vdwg.mxu0
        %2019 = vrot.lane.b32.xlu0 %v1795, 112
        %v2020 = vpop.permute.xlu0 %2019
        %2021 = vrot.lane.b32.xlu0 %v1796, 112
        %v2022 = vpop.permute.xlu0 %2021
        %v2024 = vsel %vm1330, %v2020, 0
        %v2027 = vsel %vm1330, %v2022, 0
        %2029 = vmatprep.subr.bf16.mxu0 0
        %2030 = vmatpush1.bf16.xpose.msra.mxu0 0
        %2031 = vmatprep.subr.bf16.mxu0 0
        %2032 = vmatpush1.bf16.xpose.msra.mxu0 0
        %2033 = vmatprep.subr.bf16.mxu0 0
        %2034 = vmatpush1.bf16.xpose.msra.mxu0 0
        %2035 = vmatprep.subr.bf16.mxu0 0
        %2036 = vmatpush1.bf16.xpose.msra.mxu0 0
        %2037 = vmatprep.subr.bf16.mxu0 0
        %2038 = vmatpush1.bf16.xpose.msra.mxu0 0
        %2039 = vmatprep.subr.bf16.mxu0 0
        %2040 = vmatpush1.bf16.xpose.msra.mxu0 0
        %2041 = vmatprep.subr.bf16.mxu0 0
        %2042 = vmatpush1.bf16.xpose.msra.mxu0 0
        %2043 = vmatprep.subr.bf16.mxu0 0
        %2044 = vmatpush1.bf16.xpose.msra.mxu0 %v2027
        %2045 = vmatprep.subr.bf16.mxu0 0
        %2046 = vmatpush2.bf16.xpose.msra.mxu0 0
        %2047 = vmatprep.subr.bf16.mxu0 0
        %2048 = vmatpush2.bf16.xpose.msra.mxu0 0
        %2049 = vmatprep.subr.bf16.mxu0 0
        %2050 = vmatpush2.bf16.xpose.msra.mxu0 0
        %2051 = vmatprep.subr.bf16.mxu0 0
        %2052 = vmatpush2.bf16.xpose.msra.mxu0 0
        %2053 = vmatprep.subr.bf16.mxu0 0
        %2054 = vmatpush2.bf16.xpose.msra.mxu0 0
        %2055 = vmatprep.subr.bf16.mxu0 0
        %2056 = vmatpush2.bf16.xpose.msra.mxu0 0
        %2057 = vmatprep.subr.bf16.mxu0 0
        %2058 = vmatpush2.bf16.xpose.msra.mxu0 0
        %2059 = vmatprep.subr.bf16.mxu0 0
        %2060 = vmatpush2.bf16.xpose.msra.mxu0 0
        %2061 = vmatprep.mubr.bf16.mxu0 0
        %2062 = vmatmul.mubr.bf16.gmra.mxu0 %v2024
        %v2063 = vpop.f32.mrf.mxu0
        %v2064 = vadd.f32 0.0, %v2063
        %v2065 = vpop.f32.mrf.mxu0
        %v2066 = vpop.f32.mrf.mxu0
        %v2067 = vpop.f32.mrf.mxu0
        %2068 = vdwg.mxu0
        %v2069 = vmul.f32 %v2064, %v1183
        %v2070 = vadd.f32 %v2069, %v1327
        %v2071 = vsel %vm1330, %v2070, -inf
        %2072 = vmax.xlane.f32.xlu0 %v2071
        %v2073 = vpop.xlane.xlu0 %2072
        %v2074 = vsub.f32 %v2070, %v2073
        %v2075 = vmul.f32 %v2074, 1.442695
        %v2076 = vpow.pop %v2075
        %v2077 = vsel %vm1330, %v2076, 0.0
        %2078 = vadd.xlane.f32.xlu0 %v2077
        %v2079 = vpop.xlane.xlu0 %2078
        %v2080 = vrcp.pop %v2079
        %v2081 = vmul.f32 %v2076, %v2080
        %v2082 = vpack.c.bf16 %v2081, %v2081
        %2083 = vrot.lane.b32.xlu0 %v1796, 80
        %v2084 = vpop.permute.xlu0 %2083
        %v2086 = vsel %vm1330, %v2082, 0
        %v2089 = vsel %vm1397, %v2084, 0
        %2091 = vmatprep.subr.bf16.mxu0 0
        %2092 = vmatpush1.bf16.msra.mxu0 0
        %2093 = vmatprep.subr.bf16.mxu0 0
        %2094 = vmatpush1.bf16.msra.mxu0 0
        %2095 = vmatprep.subr.bf16.mxu0 0
        %2096 = vmatpush1.bf16.msra.mxu0 0
        %2097 = vmatprep.subr.bf16.mxu0 0
        %2098 = vmatpush1.bf16.msra.mxu0 0
        %2099 = vmatprep.subr.bf16.mxu0 0
        %2100 = vmatpush1.bf16.msra.mxu0 0
        %2101 = vmatprep.subr.bf16.mxu0 0
        %2102 = vmatpush1.bf16.msra.mxu0 0
        %2103 = vmatprep.subr.bf16.mxu0 0
        %2104 = vmatpush1.bf16.msra.mxu0 0
        %2105 = vmatprep.subr.bf16.mxu0 0
        %2106 = vmatpush1.bf16.msra.mxu0 %v2089
        %2107 = vmatprep.subr.bf16.mxu0 0
        %2108 = vmatpush2.bf16.msra.mxu0 0
        %2109 = vmatprep.subr.bf16.mxu0 0
        %2110 = vmatpush2.bf16.msra.mxu0 0
        %2111 = vmatprep.subr.bf16.mxu0 0
        %2112 = vmatpush2.bf16.msra.mxu0 0
        %2113 = vmatprep.subr.bf16.mxu0 0
        %2114 = vmatpush2.bf16.msra.mxu0 0
        %2115 = vmatprep.subr.bf16.mxu0 0
        %2116 = vmatpush2.bf16.msra.mxu0 0
        %2117 = vmatprep.subr.bf16.mxu0 0
        %2118 = vmatpush2.bf16.msra.mxu0 0
        %2119 = vmatprep.subr.bf16.mxu0 0
        %2120 = vmatpush2.bf16.msra.mxu0 0
        %2121 = vmatprep.subr.bf16.mxu0 0
        %2122 = vmatpush2.bf16.msra.mxu0 0
        %2123 = vmatprep.mubr.bf16.mxu0 0
        %2124 = vmatmul.mubr.bf16.gmra.mxu0 %v2086
        %v2125 = vpop.f32.mrf.mxu0
        %v2126 = vadd.f32 0.0, %v2125
        %v2127 = vpop.f32.mrf.mxu0
        %v2128 = vpop.f32.mrf.mxu0
        %v2129 = vpop.f32.mrf.mxu0
        %2130 = vdwg.mxu0
        %2131 = vrot.lane.b32.xlu0 %v1795, 104
        %v2132 = vpop.permute.xlu0 %2131
        %2133 = vrot.lane.b32.xlu0 %v1796, 104
        %v2134 = vpop.permute.xlu0 %2133
        %v2136 = vsel %vm1330, %v2132, 0
        %v2139 = vsel %vm1330, %v2134, 0
        %2141 = vmatprep.subr.bf16.mxu0 0
        %2142 = vmatpush1.bf16.xpose.msra.mxu0 0
        %2143 = vmatprep.subr.bf16.mxu0 0
        %2144 = vmatpush1.bf16.xpose.msra.mxu0 0
        %2145 = vmatprep.subr.bf16.mxu0 0
        %2146 = vmatpush1.bf16.xpose.msra.mxu0 0
        %2147 = vmatprep.subr.bf16.mxu0 0
        %2148 = vmatpush1.bf16.xpose.msra.mxu0 0
        %2149 = vmatprep.subr.bf16.mxu0 0
        %2150 = vmatpush1.bf16.xpose.msra.mxu0 0
        %2151 = vmatprep.subr.bf16.mxu0 0
        %2152 = vmatpush1.bf16.xpose.msra.mxu0 0
        %2153 = vmatprep.subr.bf16.mxu0 0
        %2154 = vmatpush1.bf16.xpose.msra.mxu0 0
        %2155 = vmatprep.subr.bf16.mxu0 0
        %2156 = vmatpush1.bf16.xpose.msra.mxu0 %v2139
        %2157 = vmatprep.subr.bf16.mxu0 0
        %2158 = vmatpush2.bf16.xpose.msra.mxu0 0
        %2159 = vmatprep.subr.bf16.mxu0 0
        %2160 = vmatpush2.bf16.xpose.msra.mxu0 0
        %2161 = vmatprep.subr.bf16.mxu0 0
        %2162 = vmatpush2.bf16.xpose.msra.mxu0 0
        %2163 = vmatprep.subr.bf16.mxu0 0
        %2164 = vmatpush2.bf16.xpose.msra.mxu0 0
        %2165 = vmatprep.subr.bf16.mxu0 0
        %2166 = vmatpush2.bf16.xpose.msra.mxu0 0
        %2167 = vmatprep.subr.bf16.mxu0 0
        %2168 = vmatpush2.bf16.xpose.msra.mxu0 0
        %2169 = vmatprep.subr.bf16.mxu0 0
        %2170 = vmatpush2.bf16.xpose.msra.mxu0 0
        %2171 = vmatprep.subr.bf16.mxu0 0
        %2172 = vmatpush2.bf16.xpose.msra.mxu0 0
        %2173 = vmatprep.mubr.bf16.mxu0 0
        %2174 = vmatmul.mubr.bf16.gmra.mxu0 %v2136
        %v2175 = vpop.f32.mrf.mxu0
        %v2176 = vadd.f32 0.0, %v2175
        %v2177 = vpop.f32.mrf.mxu0
        %v2178 = vpop.f32.mrf.mxu0
        %v2179 = vpop.f32.mrf.mxu0
        %2180 = vdwg.mxu0
        %v2181 = vmul.f32 %v2176, %v1183
        %v2182 = vadd.f32 %v2181, %v1327
        %v2183 = vsel %vm1330, %v2182, -inf
        %2184 = vmax.xlane.f32.xlu0 %v2183
        %v2185 = vpop.xlane.xlu0 %2184
        %v2186 = vsub.f32 %v2182, %v2185
        %v2187 = vmul.f32 %v2186, 1.442695
        %v2188 = vpow.pop %v2187
        %v2189 = vsel %vm1330, %v2188, 0.0
        %2190 = vadd.xlane.f32.xlu0 %v2189
        %v2191 = vpop.xlane.xlu0 %2190
        %v2192 = vrcp.pop %v2191
        %v2193 = vmul.f32 %v2188, %v2192
        %v2194 = vpack.c.bf16 %v2193, %v2193
        %2195 = vrot.lane.b32.xlu0 %v1796, 72
        %v2196 = vpop.permute.xlu0 %2195
        %v2198 = vsel %vm1330, %v2194, 0
        %v2201 = vsel %vm1397, %v2196, 0
        %2203 = vmatprep.subr.bf16.mxu0 0
        %2204 = vmatpush1.bf16.msra.mxu0 0
        %2205 = vmatprep.subr.bf16.mxu0 0
        %2206 = vmatpush1.bf16.msra.mxu0 0
        %2207 = vmatprep.subr.bf16.mxu0 0
        %2208 = vmatpush1.bf16.msra.mxu0 0
        %2209 = vmatprep.subr.bf16.mxu0 0
        %2210 = vmatpush1.bf16.msra.mxu0 0
        %2211 = vmatprep.subr.bf16.mxu0 0
        %2212 = vmatpush1.bf16.msra.mxu0 0
        %2213 = vmatprep.subr.bf16.mxu0 0
        %2214 = vmatpush1.bf16.msra.mxu0 0
        %2215 = vmatprep.subr.bf16.mxu0 0
        %2216 = vmatpush1.bf16.msra.mxu0 0
        %2217 = vmatprep.subr.bf16.mxu0 0
        %2218 = vmatpush1.bf16.msra.mxu0 %v2201
        %2219 = vmatprep.subr.bf16.mxu0 0
        %2220 = vmatpush2.bf16.msra.mxu0 0
        %2221 = vmatprep.subr.bf16.mxu0 0
        %2222 = vmatpush2.bf16.msra.mxu0 0
        %2223 = vmatprep.subr.bf16.mxu0 0
        %2224 = vmatpush2.bf16.msra.mxu0 0
        %2225 = vmatprep.subr.bf16.mxu0 0
        %2226 = vmatpush2.bf16.msra.mxu0 0
        %2227 = vmatprep.subr.bf16.mxu0 0
        %2228 = vmatpush2.bf16.msra.mxu0 0
        %2229 = vmatprep.subr.bf16.mxu0 0
        %2230 = vmatpush2.bf16.msra.mxu0 0
        %2231 = vmatprep.subr.bf16.mxu0 0
        %2232 = vmatpush2.bf16.msra.mxu0 0
        %2233 = vmatprep.subr.bf16.mxu0 0
        %2234 = vmatpush2.bf16.msra.mxu0 0
        %2235 = vmatprep.mubr.bf16.mxu0 0
        %2236 = vmatmul.mubr.bf16.gmra.mxu0 %v2198
        %v2237 = vpop.f32.mrf.mxu0
        %v2238 = vadd.f32 0.0, %v2237
        %v2239 = vpop.f32.mrf.mxu0
        %v2240 = vpop.f32.mrf.mxu0
        %v2241 = vpop.f32.mrf.mxu0
        %2242 = vdwg.mxu0
        %2244 = vrot.lane.b32.xlu0 %v2014, 8
        %v2245 = vpop.permute.xlu0 %2244
        %2248 = vrot.lane.b32.xlu0 %v2126, 16
        %v2249 = vpop.permute.xlu0 %2248
        %2252 = vrot.lane.b32.xlu0 %v2238, 24
        %v2253 = vpop.permute.xlu0 %2252
        %v2255 = vsel %vm1330, %v1901, %v2245
        %v2256 = vsel %vm1791, %v2255, %v2249
        %v2257 = vsel %vm1793, %v2256, %v2253
        %v2258 = vpack.c.bf16 %v2257, %v1794
        %v2260 = vlaneseq
        %v2261 = vshrl.u32 %v2260, 7
        %v2262 = vsub.s32 0, %v2261
        %v2263 = vrot.slane %v1198, %v2262
        %v2269 = vunpack.c.l.b16 %v1194
        %v2270 = vunpack.c.l.b16 %v1195
        %v2271 = vunpack.c.l.b16 %v1196
        %v2272 = vunpack.c.l.b16 %v1197
        %v2273 = vpack.c.b16 %v2270, %v2269
        %v2274 = vpack.c.b16 %v2272, %v2271
        %v2278 = vsel %vm1220, %v2258, 0
        %2280 = vmatprep.subr.bf16.mxu0 0
        %2281 = vmatpush1.bf16.msra.mxu0 0
        %2282 = vmatprep.subr.bf16.mxu0 0
        %2283 = vmatpush1.bf16.msra.mxu0 0
        %2284 = vmatprep.subr.bf16.mxu0 0
        %2285 = vmatpush1.bf16.msra.mxu0 0
        %2286 = vmatprep.subr.bf16.mxu0 0
        %2287 = vmatpush1.bf16.msra.mxu0 0
        %2288 = vmatprep.subr.bf16.mxu0 0
        %2289 = vmatpush1.bf16.msra.mxu0 0
        %2290 = vmatprep.subr.bf16.mxu0 0
        %2291 = vmatpush1.bf16.msra.mxu0 0
        %2292 = vmatprep.subr.bf16.mxu0 0
        %2293 = vmatpush1.bf16.msra.mxu0 %v2274
        %2294 = vmatprep.subr.bf16.mxu0 0
        %2295 = vmatpush1.bf16.msra.mxu0 %v2273
        %2296 = vmatprep.subr.bf16.mxu0 0
        %2297 = vmatpush2.bf16.msra.mxu0 0
        %2298 = vmatprep.subr.bf16.mxu0 0
        %2299 = vmatpush2.bf16.msra.mxu0 0
        %2300 = vmatprep.subr.bf16.mxu0 0
        %2301 = vmatpush2.bf16.msra.mxu0 0
        %2302 = vmatprep.subr.bf16.mxu0 0
        %2303 = vmatpush2.bf16.msra.mxu0 0
        %2304 = vmatprep.subr.bf16.mxu0 0
        %2305 = vmatpush2.bf16.msra.mxu0 0
        %2306 = vmatprep.subr.bf16.mxu0 0
        %2307 = vmatpush2.bf16.msra.mxu0 0
        %2308 = vmatprep.subr.bf16.mxu0 0
        %2309 = vmatpush2.bf16.msra.mxu0 0
        %2310 = vmatprep.subr.bf16.mxu0 0
        %2311 = vmatpush2.bf16.msra.mxu0 0
        %2312 = vmatprep.mubr.bf16.mxu0 0
        %2313 = vmatmul.mubr.bf16.gmra.mxu0 %v2278
        %v2314 = vpop.f32.mrf.mxu0
        %v2315 = vadd.f32 %v2263, %v2314
        %v2316 = vpop.f32.mrf.mxu0
        %v2317 = vpop.f32.mrf.mxu0
        %v2318 = vadd.f32 %v2263, %v2317
        %v2319 = vpop.f32.mrf.mxu0
        %2320 = vdwg.mxu0
        %v2321 = vadd.f32 %v2315, %v1178
        %v2322 = vadd.f32 %v2318, %v1179
        %v2323 = vsel %vm1220, %v2321, 0.0
        %2324 = vadd.xlane.f32.xlu0 %v2323
        %v2325 = vpop.xlane.xlu0 %2324
        %v2326 = vsel %vm1220, %v2322, 0.0
        %2327 = vadd.xlane.f32.xlu0 %v2326
        %v2328 = vpop.xlane.xlu0 %2327
        %v2329 = vrcp.pop 32.0
        %v2330 = vmul.f32 %v2325, %v2329
        %v2331 = vmul.f32 %v2328, %v2329
        %v2332 = vsub.f32 %v2321, %v2330
        %v2333 = vsub.f32 %v2322, %v2331
        %v2334 = vmul.f32 %v2332, %v2332
        %v2335 = vmul.f32 %v2333, %v2333
        %v2336 = vsel %vm1220, %v2334, 0.0
        %2337 = vadd.xlane.f32.xlu0 %v2336
        %v2338 = vpop.xlane.xlu0 %2337
        %v2339 = vsel %vm1220, %v2335, 0.0
        %2340 = vadd.xlane.f32.xlu0 %v2339
        %v2341 = vpop.xlane.xlu0 %2340
        %v2342 = vmul.f32 %v2338, %v2329
        %v2343 = vmul.f32 %v2341, %v2329
        %v2344 = vadd.f32 %v2342, 1e-12
        %v2345 = vadd.f32 %v2343, 1e-12
        %v2346 = vrsqrt.pop %v2344
        %v2347 = vrsqrt.pop %v2345
        %v2348 = vmul.f32 %v2332, %v2346
        %v2349 = vmul.f32 %v2333, %v2347
        %v2351 = vlaneseq
        %v2352 = vshrl.u32 %v2351, 7
        %v2353 = vsub.s32 0, %v2352
        %v2354 = vrot.slane %v1199, %v2353
        %v2356 = vmul.f32 %v2348, %v2354
        %v2357 = vmul.f32 %v2349, %v2354
        %v2359 = vlaneseq
        %v2360 = vshrl.u32 %v2359, 7
        %v2361 = vsub.s32 0, %v2360
        %v2362 = vrot.slane %v1200, %v2361
        %v2364 = vadd.f32 %v2356, %v2362
        %v2365 = vadd.f32 %v2357, %v2362
        %v2366 = vld [vmem:[%s3] sm:$0xff]
        %v2367 = vld [vmem:[%s3 + $0x8] sm:$0xff]
        %v2368 = vld [vmem:[%s1120] sm:$0xf]
        %v2369 = vld [vmem:[%s1120 + $0x4] sm:$0xf]
        %v2370 = vld [vmem:[%s1120 + $0x8] sm:$0xf]
        %v2371 = vld [vmem:[%s1120 + $0xc] sm:$0xf]
        %v2372 = vld [vmem:[%s1123] sm:$0x1]
        %v2373 = vld [vmem:[%s1128] sm:$0xf]
        %v2374 = vld [vmem:[%s1128 + $0x4] sm:$0xf]
        %v2375 = vld [vmem:[%s1128 + $0x8] sm:$0xf]
        %v2376 = vld [vmem:[%s1128 + $0xc] sm:$0xf]
        %v2377 = vld [vmem:[%s1131] sm:$0x1]
        %v2378 = vld [vmem:[%s1136] sm:$0xf]
        %v2379 = vld [vmem:[%s1136 + $0x4] sm:$0xf]
        %v2380 = vld [vmem:[%s1136 + $0x8] sm:$0xf]
        %v2381 = vld [vmem:[%s1136 + $0xc] sm:$0xf]
        %v2382 = vld [vmem:[%s1139] sm:$0x1]
        %v2383 = vld [vmem:[%s1142] sm:$0x1]
        %v2384 = vld [vmem:[%s1145] sm:$0x1]
        %v2385 = vpack.c.bf16 %v2365, %v2364
        %v2386 = vpack.c.bf16 %v1181, %v1180
        %v2388 = vlaneseq
        %v2389 = vshrl.u32 %v2388, 7
        %v2390 = vsub.s32 0, %v2389
        %v2391 = vrot.slane %v2372, %v2390
        %v2397 = vunpack.c.l.b16 %v2368
        %v2398 = vunpack.c.l.b16 %v2369
        %v2399 = vunpack.c.l.b16 %v2370
        %v2400 = vunpack.c.l.b16 %v2371
        %v2401 = vpack.c.b16 %v2398, %v2397
        %v2402 = vpack.c.b16 %v2400, %v2399
        %v2406 = vsel %vm1220, %v2385, 0
        %2408 = vmatprep.subr.bf16.mxu0 0
        %2409 = vmatpush1.bf16.msra.mxu0 0
        %2410 = vmatprep.subr.bf16.mxu0 0
        %2411 = vmatpush1.bf16.msra.mxu0 0
        %2412 = vmatprep.subr.bf16.mxu0 0
        %2413 = vmatpush1.bf16.msra.mxu0 0
        %2414 = vmatprep.subr.bf16.mxu0 0
        %2415 = vmatpush1.bf16.msra.mxu0 0
        %2416 = vmatprep.subr.bf16.mxu0 0
        %2417 = vmatpush1.bf16.msra.mxu0 0
        %2418 = vmatprep.subr.bf16.mxu0 0
        %2419 = vmatpush1.bf16.msra.mxu0 0
        %2420 = vmatprep.subr.bf16.mxu0 0
        %2421 = vmatpush1.bf16.msra.mxu0 %v2402
        %2422 = vmatprep.subr.bf16.mxu0 0
        %2423 = vmatpush1.bf16.msra.mxu0 %v2401
        %2424 = vmatprep.subr.bf16.mxu0 0
        %2425 = vmatpush2.bf16.msra.mxu0 0
        %2426 = vmatprep.subr.bf16.mxu0 0
        %2427 = vmatpush2.bf16.msra.mxu0 0
        %2428 = vmatprep.subr.bf16.mxu0 0
        %2429 = vmatpush2.bf16.msra.mxu0 0
        %2430 = vmatprep.subr.bf16.mxu0 0
        %2431 = vmatpush2.bf16.msra.mxu0 0
        %2432 = vmatprep.subr.bf16.mxu0 0
        %2433 = vmatpush2.bf16.msra.mxu0 0
        %2434 = vmatprep.subr.bf16.mxu0 0
        %2435 = vmatpush2.bf16.msra.mxu0 0
        %2436 = vmatprep.subr.bf16.mxu0 0
        %2437 = vmatpush2.bf16.msra.mxu0 0
        %2438 = vmatprep.subr.bf16.mxu0 0
        %2439 = vmatpush2.bf16.msra.mxu0 0
        %2440 = vmatprep.mubr.bf16.mxu0 0
        %2441 = vmatmul.mubr.bf16.gmra.mxu0 %v2406
        %v2442 = vpop.f32.mrf.mxu0
        %v2443 = vadd.f32 %v2391, %v2442
        %v2444 = vpop.f32.mrf.mxu0
        %v2445 = vpop.f32.mrf.mxu0
        %v2446 = vadd.f32 %v2391, %v2445
        %v2447 = vpop.f32.mrf.mxu0
        %2448 = vdwg.mxu0
        %v2450 = vlaneseq
        %v2451 = vshrl.u32 %v2450, 7
        %v2452 = vsub.s32 0, %v2451
        %v2453 = vrot.slane %v2377, %v2452
        %v2459 = vunpack.c.l.b16 %v2373
        %v2460 = vunpack.c.l.b16 %v2374
        %v2461 = vunpack.c.l.b16 %v2375
        %v2462 = vunpack.c.l.b16 %v2376
        %v2463 = vpack.c.b16 %v2460, %v2459
        %v2464 = vpack.c.b16 %v2462, %v2461
        %v2468 = vsel %vm1220, %v2386, 0
        %2470 = vmatprep.subr.bf16.mxu0 0
        %2471 = vmatpush1.bf16.msra.mxu0 0
        %2472 = vmatprep.subr.bf16.mxu0 0
        %2473 = vmatpush1.bf16.msra.mxu0 0
        %2474 = vmatprep.subr.bf16.mxu0 0
        %2475 = vmatpush1.bf16.msra.mxu0 0
        %2476 = vmatprep.subr.bf16.mxu0 0
        %2477 = vmatpush1.bf16.msra.mxu0 0
        %2478 = vmatprep.subr.bf16.mxu0 0
        %2479 = vmatpush1.bf16.msra.mxu0 0
        %2480 = vmatprep.subr.bf16.mxu0 0
        %2481 = vmatpush1.bf16.msra.mxu0 0
        %2482 = vmatprep.subr.bf16.mxu0 0
        %2483 = vmatpush1.bf16.msra.mxu0 %v2464
        %2484 = vmatprep.subr.bf16.mxu0 0
        %2485 = vmatpush1.bf16.msra.mxu0 %v2463
        %2486 = vmatprep.subr.bf16.mxu0 0
        %2487 = vmatpush2.bf16.msra.mxu0 0
        %2488 = vmatprep.subr.bf16.mxu0 0
        %2489 = vmatpush2.bf16.msra.mxu0 0
        %2490 = vmatprep.subr.bf16.mxu0 0
        %2491 = vmatpush2.bf16.msra.mxu0 0
        %2492 = vmatprep.subr.bf16.mxu0 0
        %2493 = vmatpush2.bf16.msra.mxu0 0
        %2494 = vmatprep.subr.bf16.mxu0 0
        %2495 = vmatpush2.bf16.msra.mxu0 0
        %2496 = vmatprep.subr.bf16.mxu0 0
        %2497 = vmatpush2.bf16.msra.mxu0 0
        %2498 = vmatprep.subr.bf16.mxu0 0
        %2499 = vmatpush2.bf16.msra.mxu0 0
        %2500 = vmatprep.subr.bf16.mxu0 0
        %2501 = vmatpush2.bf16.msra.mxu0 0
        %2502 = vmatprep.mubr.bf16.mxu0 0
        %2503 = vmatmul.mubr.bf16.gmra.mxu0 %v2468
        %v2504 = vpop.f32.mrf.mxu0
        %v2505 = vadd.f32 %v2453, %v2504
        %v2506 = vpop.f32.mrf.mxu0
        %v2507 = vpop.f32.mrf.mxu0
        %v2508 = vadd.f32 %v2453, %v2507
        %v2509 = vpop.f32.mrf.mxu0
        %2510 = vdwg.mxu0
        %v2511 = vsub.f32 %v2366, 1.0
        %v2512 = vsub.f32 %v2367, 1.0
        %v2513 = vmul.f32 %v2511, 10000.0
        %v2514 = vmul.f32 %v2512, 10000.0
        %v2515 = vpack.c.bf16 %v2443, %v2443
        %v2516 = vpack.c.bf16 %v2505, %v2505
        %v2518 = vsel %vm1330, %v2515, 0
        %v2521 = vsel %vm1330, %v2516, 0
        %2523 = vmatprep.subr.bf16.mxu0 0
        %2524 = vmatpush1.bf16.xpose.msra.mxu0 0
        %2525 = vmatprep.subr.bf16.mxu0 0
        %2526 = vmatpush1.bf16.xpose.msra.mxu0 0
        %2527 = vmatprep.subr.bf16.mxu0 0
        %2528 = vmatpush1.bf16.xpose.msra.mxu0 0
        %2529 = vmatprep.subr.bf16.mxu0 0
        %2530 = vmatpush1.bf16.xpose.msra.mxu0 0
        %2531 = vmatprep.subr.bf16.mxu0 0
        %2532 = vmatpush1.bf16.xpose.msra.mxu0 0
        %2533 = vmatprep.subr.bf16.mxu0 0
        %2534 = vmatpush1.bf16.xpose.msra.mxu0 0
        %2535 = vmatprep.subr.bf16.mxu0 0
        %2536 = vmatpush1.bf16.xpose.msra.mxu0 0
        %2537 = vmatprep.subr.bf16.mxu0 0
        %2538 = vmatpush1.bf16.xpose.msra.mxu0 %v2521
        %2539 = vmatprep.subr.bf16.mxu0 0
        %2540 = vmatpush2.bf16.xpose.msra.mxu0 0
        %2541 = vmatprep.subr.bf16.mxu0 0
        %2542 = vmatpush2.bf16.xpose.msra.mxu0 0
        %2543 = vmatprep.subr.bf16.mxu0 0
        %2544 = vmatpush2.bf16.xpose.msra.mxu0 0
        %2545 = vmatprep.subr.bf16.mxu0 0
        %2546 = vmatpush2.bf16.xpose.msra.mxu0 0
        %2547 = vmatprep.subr.bf16.mxu0 0
        %2548 = vmatpush2.bf16.xpose.msra.mxu0 0
        %2549 = vmatprep.subr.bf16.mxu0 0
        %2550 = vmatpush2.bf16.xpose.msra.mxu0 0
        %2551 = vmatprep.subr.bf16.mxu0 0
        %2552 = vmatpush2.bf16.xpose.msra.mxu0 0
        %2553 = vmatprep.subr.bf16.mxu0 0
        %2554 = vmatpush2.bf16.xpose.msra.mxu0 0
        %2555 = vmatprep.mubr.bf16.mxu0 0
        %2556 = vmatmul.mubr.bf16.gmra.mxu0 %v2518
        %v2557 = vpop.f32.mrf.mxu0
        %v2558 = vadd.f32 0.0, %v2557
        %v2559 = vpop.f32.mrf.mxu0
        %v2560 = vpop.f32.mrf.mxu0
        %v2561 = vpop.f32.mrf.mxu0
        %2562 = vdwg.mxu0
        %v2563 = vmul.f32 %v2558, %v2366
        %v2564 = vadd.f32 %v2563, %v2513
        %v2565 = vsel %vm1330, %v2564, -inf
        %2566 = vmax.xlane.f32.xlu0 %v2565
        %v2567 = vpop.xlane.xlu0 %2566
        %v2568 = vsub.f32 %v2564, %v2567
        %v2569 = vmul.f32 %v2568, 1.442695
        %v2570 = vpow.pop %v2569
        %v2571 = vsel %vm1330, %v2570, 0.0
        %2572 = vadd.xlane.f32.xlu0 %v2571
        %v2573 = vpop.xlane.xlu0 %2572
        %v2574 = vrcp.pop %v2573
        %v2575 = vmul.f32 %v2570, %v2574
        %v2576 = vpack.c.bf16 %v2575, %v2575
        %2578 = vrot.lane.b32.xlu0 %v2516, 96
        %v2579 = vpop.permute.xlu0 %2578
        %v2581 = vsel %vm1330, %v2576, 0
        %v2584 = vsel %vm1397, %v2579, 0
        %2586 = vmatprep.subr.bf16.mxu0 0
        %2587 = vmatpush1.bf16.msra.mxu0 0
        %2588 = vmatprep.subr.bf16.mxu0 0
        %2589 = vmatpush1.bf16.msra.mxu0 0
        %2590 = vmatprep.subr.bf16.mxu0 0
        %2591 = vmatpush1.bf16.msra.mxu0 0
        %2592 = vmatprep.subr.bf16.mxu0 0
        %2593 = vmatpush1.bf16.msra.mxu0 0
        %2594 = vmatprep.subr.bf16.mxu0 0
        %2595 = vmatpush1.bf16.msra.mxu0 0
        %2596 = vmatprep.subr.bf16.mxu0 0
        %2597 = vmatpush1.bf16.msra.mxu0 0
        %2598 = vmatprep.subr.bf16.mxu0 0
        %2599 = vmatpush1.bf16.msra.mxu0 0
        %2600 = vmatprep.subr.bf16.mxu0 0
        %2601 = vmatpush1.bf16.msra.mxu0 %v2584
        %2602 = vmatprep.subr.bf16.mxu0 0
        %2603 = vmatpush2.bf16.msra.mxu0 0
        %2604 = vmatprep.subr.bf16.mxu0 0
        %2605 = vmatpush2.bf16.msra.mxu0 0
        %2606 = vmatprep.subr.bf16.mxu0 0
        %2607 = vmatpush2.bf16.msra.mxu0 0
        %2608 = vmatprep.subr.bf16.mxu0 0
        %2609 = vmatpush2.bf16.msra.mxu0 0
        %2610 = vmatprep.subr.bf16.mxu0 0
        %2611 = vmatpush2.bf16.msra.mxu0 0
        %2612 = vmatprep.subr.bf16.mxu0 0
        %2613 = vmatpush2.bf16.msra.mxu0 0
        %2614 = vmatprep.subr.bf16.mxu0 0
        %2615 = vmatpush2.bf16.msra.mxu0 0
        %2616 = vmatprep.subr.bf16.mxu0 0
        %2617 = vmatpush2.bf16.msra.mxu0 0
        %2618 = vmatprep.mubr.bf16.mxu0 0
        %2619 = vmatmul.mubr.bf16.gmra.mxu0 %v2581
        %v2620 = vpop.f32.mrf.mxu0
        %v2621 = vadd.f32 0.0, %v2620
        %v2622 = vpop.f32.mrf.mxu0
        %v2623 = vpop.f32.mrf.mxu0
        %v2624 = vpop.f32.mrf.mxu0
        %2625 = vdwg.mxu0
        %2627 = vrot.lane.b32.xlu0 %v2515, 120
        %v2628 = vpop.permute.xlu0 %2627
        %2629 = vrot.lane.b32.xlu0 %v2516, 120
        %v2630 = vpop.permute.xlu0 %2629
        %v2632 = vsel %vm1330, %v2628, 0
        %v2635 = vsel %vm1330, %v2630, 0
        %2637 = vmatprep.subr.bf16.mxu0 0
        %2638 = vmatpush1.bf16.xpose.msra.mxu0 0
        %2639 = vmatprep.subr.bf16.mxu0 0
        %2640 = vmatpush1.bf16.xpose.msra.mxu0 0
        %2641 = vmatprep.subr.bf16.mxu0 0
        %2642 = vmatpush1.bf16.xpose.msra.mxu0 0
        %2643 = vmatprep.subr.bf16.mxu0 0
        %2644 = vmatpush1.bf16.xpose.msra.mxu0 0
        %2645 = vmatprep.subr.bf16.mxu0 0
        %2646 = vmatpush1.bf16.xpose.msra.mxu0 0
        %2647 = vmatprep.subr.bf16.mxu0 0
        %2648 = vmatpush1.bf16.xpose.msra.mxu0 0
        %2649 = vmatprep.subr.bf16.mxu0 0
        %2650 = vmatpush1.bf16.xpose.msra.mxu0 0
        %2651 = vmatprep.subr.bf16.mxu0 0
        %2652 = vmatpush1.bf16.xpose.msra.mxu0 %v2635
        %2653 = vmatprep.subr.bf16.mxu0 0
        %2654 = vmatpush2.bf16.xpose.msra.mxu0 0
        %2655 = vmatprep.subr.bf16.mxu0 0
        %2656 = vmatpush2.bf16.xpose.msra.mxu0 0
        %2657 = vmatprep.subr.bf16.mxu0 0
        %2658 = vmatpush2.bf16.xpose.msra.mxu0 0
        %2659 = vmatprep.subr.bf16.mxu0 0
        %2660 = vmatpush2.bf16.xpose.msra.mxu0 0
        %2661 = vmatprep.subr.bf16.mxu0 0
        %2662 = vmatpush2.bf16.xpose.msra.mxu0 0
        %2663 = vmatprep.subr.bf16.mxu0 0
        %2664 = vmatpush2.bf16.xpose.msra.mxu0 0
        %2665 = vmatprep.subr.bf16.mxu0 0
        %2666 = vmatpush2.bf16.xpose.msra.mxu0 0
        %2667 = vmatprep.subr.bf16.mxu0 0
        %2668 = vmatpush2.bf16.xpose.msra.mxu0 0
        %2669 = vmatprep.mubr.bf16.mxu0 0
        %2670 = vmatmul.mubr.bf16.gmra.mxu0 %v2632
        %v2671 = vpop.f32.mrf.mxu0
        %v2672 = vadd.f32 0.0, %v2671
        %v2673 = vpop.f32.mrf.mxu0
        %v2674 = vpop.f32.mrf.mxu0
        %v2675 = vpop.f32.mrf.mxu0
        %2676 = vdwg.mxu0
        %v2677 = vmul.f32 %v2672, %v2366
        %v2678 = vadd.f32 %v2677, %v2513
        %v2679 = vsel %vm1330, %v2678, -inf
        %2680 = vmax.xlane.f32.xlu0 %v2679
        %v2681 = vpop.xlane.xlu0 %2680
        %v2682 = vsub.f32 %v2678, %v2681
        %v2683 = vmul.f32 %v2682, 1.442695
        %v2684 = vpow.pop %v2683
        %v2685 = vsel %vm1330, %v2684, 0.0
        %2686 = vadd.xlane.f32.xlu0 %v2685
        %v2687 = vpop.xlane.xlu0 %2686
        %v2688 = vrcp.pop %v2687
        %v2689 = vmul.f32 %v2684, %v2688
        %v2690 = vpack.c.bf16 %v2689, %v2689
        %2691 = vrot.lane.b32.xlu0 %v2516, 88
        %v2692 = vpop.permute.xlu0 %2691
        %v2694 = vsel %vm1330, %v2690, 0
        %v2697 = vsel %vm1397, %v2692, 0
        %2699 = vmatprep.subr.bf16.mxu0 0
        %2700 = vmatpush1.bf16.msra.mxu0 0
        %2701 = vmatprep.subr.bf16.mxu0 0
        %2702 = vmatpush1.bf16.msra.mxu0 0
        %2703 = vmatprep.subr.bf16.mxu0 0
        %2704 = vmatpush1.bf16.msra.mxu0 0
        %2705 = vmatprep.subr.bf16.mxu0 0
        %2706 = vmatpush1.bf16.msra.mxu0 0
        %2707 = vmatprep.subr.bf16.mxu0 0
        %2708 = vmatpush1.bf16.msra.mxu0 0
        %2709 = vmatprep.subr.bf16.mxu0 0
        %2710 = vmatpush1.bf16.msra.mxu0 0
        %2711 = vmatprep.subr.bf16.mxu0 0
        %2712 = vmatpush1.bf16.msra.mxu0 0
        %2713 = vmatprep.subr.bf16.mxu0 0
        %2714 = vmatpush1.bf16.msra.mxu0 %v2697
        %2715 = vmatprep.subr.bf16.mxu0 0
        %2716 = vmatpush2.bf16.msra.mxu0 0
        %2717 = vmatprep.subr.bf16.mxu0 0
        %2718 = vmatpush2.bf16.msra.mxu0 0
        %2719 = vmatprep.subr.bf16.mxu0 0
        %2720 = vmatpush2.bf16.msra.mxu0 0
        %2721 = vmatprep.subr.bf16.mxu0 0
        %2722 = vmatpush2.bf16.msra.mxu0 0
        %2723 = vmatprep.subr.bf16.mxu0 0
        %2724 = vmatpush2.bf16.msra.mxu0 0
        %2725 = vmatprep.subr.bf16.mxu0 0
        %2726 = vmatpush2.bf16.msra.mxu0 0
        %2727 = vmatprep.subr.bf16.mxu0 0
        %2728 = vmatpush2.bf16.msra.mxu0 0
        %2729 = vmatprep.subr.bf16.mxu0 0
        %2730 = vmatpush2.bf16.msra.mxu0 0
        %2731 = vmatprep.mubr.bf16.mxu0 0
        %2732 = vmatmul.mubr.bf16.gmra.mxu0 %v2694
        %v2733 = vpop.f32.mrf.mxu0
        %v2734 = vadd.f32 0.0, %v2733
        %v2735 = vpop.f32.mrf.mxu0
        %v2736 = vpop.f32.mrf.mxu0
        %v2737 = vpop.f32.mrf.mxu0
        %2738 = vdwg.mxu0
        %2739 = vrot.lane.b32.xlu0 %v2515, 112
        %v2740 = vpop.permute.xlu0 %2739
        %2741 = vrot.lane.b32.xlu0 %v2516, 112
        %v2742 = vpop.permute.xlu0 %2741
        %v2744 = vsel %vm1330, %v2740, 0
        %v2747 = vsel %vm1330, %v2742, 0
        %2749 = vmatprep.subr.bf16.mxu0 0
        %2750 = vmatpush1.bf16.xpose.msra.mxu0 0
        %2751 = vmatprep.subr.bf16.mxu0 0
        %2752 = vmatpush1.bf16.xpose.msra.mxu0 0
        %2753 = vmatprep.subr.bf16.mxu0 0
        %2754 = vmatpush1.bf16.xpose.msra.mxu0 0
        %2755 = vmatprep.subr.bf16.mxu0 0
        %2756 = vmatpush1.bf16.xpose.msra.mxu0 0
        %2757 = vmatprep.subr.bf16.mxu0 0
        %2758 = vmatpush1.bf16.xpose.msra.mxu0 0
        %2759 = vmatprep.subr.bf16.mxu0 0
        %2760 = vmatpush1.bf16.xpose.msra.mxu0 0
        %2761 = vmatprep.subr.bf16.mxu0 0
        %2762 = vmatpush1.bf16.xpose.msra.mxu0 0
        %2763 = vmatprep.subr.bf16.mxu0 0
        %2764 = vmatpush1.bf16.xpose.msra.mxu0 %v2747
        %2765 = vmatprep.subr.bf16.mxu0 0
        %2766 = vmatpush2.bf16.xpose.msra.mxu0 0
        %2767 = vmatprep.subr.bf16.mxu0 0
        %2768 = vmatpush2.bf16.xpose.msra.mxu0 0
        %2769 = vmatprep.subr.bf16.mxu0 0
        %2770 = vmatpush2.bf16.xpose.msra.mxu0 0
        %2771 = vmatprep.subr.bf16.mxu0 0
        %2772 = vmatpush2.bf16.xpose.msra.mxu0 0
        %2773 = vmatprep.subr.bf16.mxu0 0
        %2774 = vmatpush2.bf16.xpose.msra.mxu0 0
        %2775 = vmatprep.subr.bf16.mxu0 0
        %2776 = vmatpush2.bf16.xpose.msra.mxu0 0
        %2777 = vmatprep.subr.bf16.mxu0 0
        %2778 = vmatpush2.bf16.xpose.msra.mxu0 0
        %2779 = vmatprep.subr.bf16.mxu0 0
        %2780 = vmatpush2.bf16.xpose.msra.mxu0 0
        %2781 = vmatprep.mubr.bf16.mxu0 0
        %2782 = vmatmul.mubr.bf16.gmra.mxu0 %v2744
        %v2783 = vpop.f32.mrf.mxu0
        %v2784 = vadd.f32 0.0, %v2783
        %v2785 = vpop.f32.mrf.mxu0
        %v2786 = vpop.f32.mrf.mxu0
        %v2787 = vpop.f32.mrf.mxu0
        %2788 = vdwg.mxu0
        %v2789 = vmul.f32 %v2784, %v2366
        %v2790 = vadd.f32 %v2789, %v2513
        %v2791 = vsel %vm1330, %v2790, -inf
        %2792 = vmax.xlane.f32.xlu0 %v2791
        %v2793 = vpop.xlane.xlu0 %2792
        %v2794 = vsub.f32 %v2790, %v2793
        %v2795 = vmul.f32 %v2794, 1.442695
        %v2796 = vpow.pop %v2795
        %v2797 = vsel %vm1330, %v2796, 0.0
        %2798 = vadd.xlane.f32.xlu0 %v2797
        %v2799 = vpop.xlane.xlu0 %2798
        %v2800 = vrcp.pop %v2799
        %v2801 = vmul.f32 %v2796, %v2800
        %v2802 = vpack.c.bf16 %v2801, %v2801
        %2803 = vrot.lane.b32.xlu0 %v2516, 80
        %v2804 = vpop.permute.xlu0 %2803
        %v2806 = vsel %vm1330, %v2802, 0
        %v2809 = vsel %vm1397, %v2804, 0
        %2811 = vmatprep.subr.bf16.mxu0 0
        %2812 = vmatpush1.bf16.msra.mxu0 0
        %2813 = vmatprep.subr.bf16.mxu0 0
        %2814 = vmatpush1.bf16.msra.mxu0 0
        %2815 = vmatprep.subr.bf16.mxu0 0
        %2816 = vmatpush1.bf16.msra.mxu0 0
        %2817 = vmatprep.subr.bf16.mxu0 0
        %2818 = vmatpush1.bf16.msra.mxu0 0
        %2819 = vmatprep.subr.bf16.mxu0 0
        %2820 = vmatpush1.bf16.msra.mxu0 0
        %2821 = vmatprep.subr.bf16.mxu0 0
        %2822 = vmatpush1.bf16.msra.mxu0 0
        %2823 = vmatprep.subr.bf16.mxu0 0
        %2824 = vmatpush1.bf16.msra.mxu0 0
        %2825 = vmatprep.subr.bf16.mxu0 0
        %2826 = vmatpush1.bf16.msra.mxu0 %v2809
        %2827 = vmatprep.subr.bf16.mxu0 0
        %2828 = vmatpush2.bf16.msra.mxu0 0
        %2829 = vmatprep.subr.bf16.mxu0 0
        %2830 = vmatpush2.bf16.msra.mxu0 0
        %2831 = vmatprep.subr.bf16.mxu0 0
        %2832 = vmatpush2.bf16.msra.mxu0 0
        %2833 = vmatprep.subr.bf16.mxu0 0
        %2834 = vmatpush2.bf16.msra.mxu0 0
        %2835 = vmatprep.subr.bf16.mxu0 0
        %2836 = vmatpush2.bf16.msra.mxu0 0
        %2837 = vmatprep.subr.bf16.mxu0 0
        %2838 = vmatpush2.bf16.msra.mxu0 0
        %2839 = vmatprep.subr.bf16.mxu0 0
        %2840 = vmatpush2.bf16.msra.mxu0 0
        %2841 = vmatprep.subr.bf16.mxu0 0
        %2842 = vmatpush2.bf16.msra.mxu0 0
        %2843 = vmatprep.mubr.bf16.mxu0 0
        %2844 = vmatmul.mubr.bf16.gmra.mxu0 %v2806
        %v2845 = vpop.f32.mrf.mxu0
        %v2846 = vadd.f32 0.0, %v2845
        %v2847 = vpop.f32.mrf.mxu0
        %v2848 = vpop.f32.mrf.mxu0
        %v2849 = vpop.f32.mrf.mxu0
        %2850 = vdwg.mxu0
        %2851 = vrot.lane.b32.xlu0 %v2515, 104
        %v2852 = vpop.permute.xlu0 %2851
        %2853 = vrot.lane.b32.xlu0 %v2516, 104
        %v2854 = vpop.permute.xlu0 %2853
        %v2856 = vsel %vm1330, %v2852, 0
        %v2859 = vsel %vm1330, %v2854, 0
        %2861 = vmatprep.subr.bf16.mxu0 0
        %2862 = vmatpush1.bf16.xpose.msra.mxu0 0
        %2863 = vmatprep.subr.bf16.mxu0 0
        %2864 = vmatpush1.bf16.xpose.msra.mxu0 0
        %2865 = vmatprep.subr.bf16.mxu0 0
        %2866 = vmatpush1.bf16.xpose.msra.mxu0 0
        %2867 = vmatprep.subr.bf16.mxu0 0
        %2868 = vmatpush1.bf16.xpose.msra.mxu0 0
        %2869 = vmatprep.subr.bf16.mxu0 0
        %2870 = vmatpush1.bf16.xpose.msra.mxu0 0
        %2871 = vmatprep.subr.bf16.mxu0 0
        %2872 = vmatpush1.bf16.xpose.msra.mxu0 0
        %2873 = vmatprep.subr.bf16.mxu0 0
        %2874 = vmatpush1.bf16.xpose.msra.mxu0 0
        %2875 = vmatprep.subr.bf16.mxu0 0
        %2876 = vmatpush1.bf16.xpose.msra.mxu0 %v2859
        %2877 = vmatprep.subr.bf16.mxu0 0
        %2878 = vmatpush2.bf16.xpose.msra.mxu0 0
        %2879 = vmatprep.subr.bf16.mxu0 0
        %2880 = vmatpush2.bf16.xpose.msra.mxu0 0
        %2881 = vmatprep.subr.bf16.mxu0 0
        %2882 = vmatpush2.bf16.xpose.msra.mxu0 0
        %2883 = vmatprep.subr.bf16.mxu0 0
        %2884 = vmatpush2.bf16.xpose.msra.mxu0 0
        %2885 = vmatprep.subr.bf16.mxu0 0
        %2886 = vmatpush2.bf16.xpose.msra.mxu0 0
        %2887 = vmatprep.subr.bf16.mxu0 0
        %2888 = vmatpush2.bf16.xpose.msra.mxu0 0
        %2889 = vmatprep.subr.bf16.mxu0 0
        %2890 = vmatpush2.bf16.xpose.msra.mxu0 0
        %2891 = vmatprep.subr.bf16.mxu0 0
        %2892 = vmatpush2.bf16.xpose.msra.mxu0 0
        %2893 = vmatprep.mubr.bf16.mxu0 0
        %2894 = vmatmul.mubr.bf16.gmra.mxu0 %v2856
        %v2895 = vpop.f32.mrf.mxu0
        %v2896 = vadd.f32 0.0, %v2895
        %v2897 = vpop.f32.mrf.mxu0
        %v2898 = vpop.f32.mrf.mxu0
        %v2899 = vpop.f32.mrf.mxu0
        %2900 = vdwg.mxu0
        %v2901 = vmul.f32 %v2896, %v2366
        %v2902 = vadd.f32 %v2901, %v2513
        %v2903 = vsel %vm1330, %v2902, -inf
        %2904 = vmax.xlane.f32.xlu0 %v2903
        %v2905 = vpop.xlane.xlu0 %2904
        %v2906 = vsub.f32 %v2902, %v2905
        %v2907 = vmul.f32 %v2906, 1.442695
        %v2908 = vpow.pop %v2907
        %v2909 = vsel %vm1330, %v2908, 0.0
        %2910 = vadd.xlane.f32.xlu0 %v2909
        %v2911 = vpop.xlane.xlu0 %2910
        %v2912 = vrcp.pop %v2911
        %v2913 = vmul.f32 %v2908, %v2912
        %v2914 = vpack.c.bf16 %v2913, %v2913
        %2915 = vrot.lane.b32.xlu0 %v2516, 72
        %v2916 = vpop.permute.xlu0 %2915
        %v2918 = vsel %vm1330, %v2914, 0
        %v2921 = vsel %vm1397, %v2916, 0
        %2923 = vmatprep.subr.bf16.mxu0 0
        %2924 = vmatpush1.bf16.msra.mxu0 0
        %2925 = vmatprep.subr.bf16.mxu0 0
        %2926 = vmatpush1.bf16.msra.mxu0 0
        %2927 = vmatprep.subr.bf16.mxu0 0
        %2928 = vmatpush1.bf16.msra.mxu0 0
        %2929 = vmatprep.subr.bf16.mxu0 0
        %2930 = vmatpush1.bf16.msra.mxu0 0
        %2931 = vmatprep.subr.bf16.mxu0 0
        %2932 = vmatpush1.bf16.msra.mxu0 0
        %2933 = vmatprep.subr.bf16.mxu0 0
        %2934 = vmatpush1.bf16.msra.mxu0 0
        %2935 = vmatprep.subr.bf16.mxu0 0
        %2936 = vmatpush1.bf16.msra.mxu0 0
        %2937 = vmatprep.subr.bf16.mxu0 0
        %2938 = vmatpush1.bf16.msra.mxu0 %v2921
        %2939 = vmatprep.subr.bf16.mxu0 0
        %2940 = vmatpush2.bf16.msra.mxu0 0
        %2941 = vmatprep.subr.bf16.mxu0 0
        %2942 = vmatpush2.bf16.msra.mxu0 0
        %2943 = vmatprep.subr.bf16.mxu0 0
        %2944 = vmatpush2.bf16.msra.mxu0 0
        %2945 = vmatprep.subr.bf16.mxu0 0
        %2946 = vmatpush2.bf16.msra.mxu0 0
        %2947 = vmatprep.subr.bf16.mxu0 0
        %2948 = vmatpush2.bf16.msra.mxu0 0
        %2949 = vmatprep.subr.bf16.mxu0 0
        %2950 = vmatpush2.bf16.msra.mxu0 0
        %2951 = vmatprep.subr.bf16.mxu0 0
        %2952 = vmatpush2.bf16.msra.mxu0 0
        %2953 = vmatprep.subr.bf16.mxu0 0
        %2954 = vmatpush2.bf16.msra.mxu0 0
        %2955 = vmatprep.mubr.bf16.mxu0 0
        %2956 = vmatmul.mubr.bf16.gmra.mxu0 %v2918
        %v2957 = vpop.f32.mrf.mxu0
        %v2958 = vadd.f32 0.0, %v2957
        %v2959 = vpop.f32.mrf.mxu0
        %v2960 = vpop.f32.mrf.mxu0
        %v2961 = vpop.f32.mrf.mxu0
        %2962 = vdwg.mxu0
        %2964 = vrot.lane.b32.xlu0 %v2734, 8
        %v2965 = vpop.permute.xlu0 %2964
        %2968 = vrot.lane.b32.xlu0 %v2846, 16
        %v2969 = vpop.permute.xlu0 %2968
        %2972 = vrot.lane.b32.xlu0 %v2958, 24
        %v2973 = vpop.permute.xlu0 %2972
        %v2975 = vsel %vm1330, %v2621, %v2965
        %v2976 = vsel %vm1791, %v2975, %v2969
        %v2977 = vsel %vm1793, %v2976, %v2973
        %v2978 = vpack.c.bf16 %v2446, %v2446
        %v2979 = vpack.c.bf16 %v2508, %v2508
        %v2981 = vsel %vm1330, %v2978, 0
        %v2984 = vsel %vm1330, %v2979, 0
        %2986 = vmatprep.subr.bf16.mxu0 0
        %2987 = vmatpush1.bf16.xpose.msra.mxu0 0
        %2988 = vmatprep.subr.bf16.mxu0 0
        %2989 = vmatpush1.bf16.xpose.msra.mxu0 0
        %2990 = vmatprep.subr.bf16.mxu0 0
        %2991 = vmatpush1.bf16.xpose.msra.mxu0 0
        %2992 = vmatprep.subr.bf16.mxu0 0
        %2993 = vmatpush1.bf16.xpose.msra.mxu0 0
        %2994 = vmatprep.subr.bf16.mxu0 0
        %2995 = vmatpush1.bf16.xpose.msra.mxu0 0
        %2996 = vmatprep.subr.bf16.mxu0 0
        %2997 = vmatpush1.bf16.xpose.msra.mxu0 0
        %2998 = vmatprep.subr.bf16.mxu0 0
        %2999 = vmatpush1.bf16.xpose.msra.mxu0 0
        %3000 = vmatprep.subr.bf16.mxu0 0
        %3001 = vmatpush1.bf16.xpose.msra.mxu0 %v2984
        %3002 = vmatprep.subr.bf16.mxu0 0
        %3003 = vmatpush2.bf16.xpose.msra.mxu0 0
        %3004 = vmatprep.subr.bf16.mxu0 0
        %3005 = vmatpush2.bf16.xpose.msra.mxu0 0
        %3006 = vmatprep.subr.bf16.mxu0 0
        %3007 = vmatpush2.bf16.xpose.msra.mxu0 0
        %3008 = vmatprep.subr.bf16.mxu0 0
        %3009 = vmatpush2.bf16.xpose.msra.mxu0 0
        %3010 = vmatprep.subr.bf16.mxu0 0
        %3011 = vmatpush2.bf16.xpose.msra.mxu0 0
        %3012 = vmatprep.subr.bf16.mxu0 0
        %3013 = vmatpush2.bf16.xpose.msra.mxu0 0
        %3014 = vmatprep.subr.bf16.mxu0 0
        %3015 = vmatpush2.bf16.xpose.msra.mxu0 0
        %3016 = vmatprep.subr.bf16.mxu0 0
        %3017 = vmatpush2.bf16.xpose.msra.mxu0 0
        %3018 = vmatprep.mubr.bf16.mxu0 0
        %3019 = vmatmul.mubr.bf16.gmra.mxu0 %v2981
        %v3020 = vpop.f32.mrf.mxu0
        %v3021 = vadd.f32 0.0, %v3020
        %v3022 = vpop.f32.mrf.mxu0
        %v3023 = vpop.f32.mrf.mxu0
        %v3024 = vpop.f32.mrf.mxu0
        %3025 = vdwg.mxu0
        %v3026 = vmul.f32 %v3021, %v2367
        %v3027 = vadd.f32 %v3026, %v2514
        %v3028 = vsel %vm1330, %v3027, -inf
        %3029 = vmax.xlane.f32.xlu0 %v3028
        %v3030 = vpop.xlane.xlu0 %3029
        %v3031 = vsub.f32 %v3027, %v3030
        %v3032 = vmul.f32 %v3031, 1.442695
        %v3033 = vpow.pop %v3032
        %v3034 = vsel %vm1330, %v3033, 0.0
        %3035 = vadd.xlane.f32.xlu0 %v3034
        %v3036 = vpop.xlane.xlu0 %3035
        %v3037 = vrcp.pop %v3036
        %v3038 = vmul.f32 %v3033, %v3037
        %v3039 = vpack.c.bf16 %v3038, %v3038
        %3041 = vrot.lane.b32.xlu0 %v2979, 96
        %v3042 = vpop.permute.xlu0 %3041
        %v3044 = vsel %vm1330, %v3039, 0
        %v3047 = vsel %vm1397, %v3042, 0
        %3049 = vmatprep.subr.bf16.mxu0 0
        %3050 = vmatpush1.bf16.msra.mxu0 0
        %3051 = vmatprep.subr.bf16.mxu0 0
        %3052 = vmatpush1.bf16.msra.mxu0 0
        %3053 = vmatprep.subr.bf16.mxu0 0
        %3054 = vmatpush1.bf16.msra.mxu0 0
        %3055 = vmatprep.subr.bf16.mxu0 0
        %3056 = vmatpush1.bf16.msra.mxu0 0
        %3057 = vmatprep.subr.bf16.mxu0 0
        %3058 = vmatpush1.bf16.msra.mxu0 0
        %3059 = vmatprep.subr.bf16.mxu0 0
        %3060 = vmatpush1.bf16.msra.mxu0 0
        %3061 = vmatprep.subr.bf16.mxu0 0
        %3062 = vmatpush1.bf16.msra.mxu0 0
        %3063 = vmatprep.subr.bf16.mxu0 0
        %3064 = vmatpush1.bf16.msra.mxu0 %v3047
        %3065 = vmatprep.subr.bf16.mxu0 0
        %3066 = vmatpush2.bf16.msra.mxu0 0
        %3067 = vmatprep.subr.bf16.mxu0 0
        %3068 = vmatpush2.bf16.msra.mxu0 0
        %3069 = vmatprep.subr.bf16.mxu0 0
        %3070 = vmatpush2.bf16.msra.mxu0 0
        %3071 = vmatprep.subr.bf16.mxu0 0
        %3072 = vmatpush2.bf16.msra.mxu0 0
        %3073 = vmatprep.subr.bf16.mxu0 0
        %3074 = vmatpush2.bf16.msra.mxu0 0
        %3075 = vmatprep.subr.bf16.mxu0 0
        %3076 = vmatpush2.bf16.msra.mxu0 0
        %3077 = vmatprep.subr.bf16.mxu0 0
        %3078 = vmatpush2.bf16.msra.mxu0 0
        %3079 = vmatprep.subr.bf16.mxu0 0
        %3080 = vmatpush2.bf16.msra.mxu0 0
        %3081 = vmatprep.mubr.bf16.mxu0 0
        %3082 = vmatmul.mubr.bf16.gmra.mxu0 %v3044
        %v3083 = vpop.f32.mrf.mxu0
        %v3084 = vadd.f32 0.0, %v3083
        %v3085 = vpop.f32.mrf.mxu0
        %v3086 = vpop.f32.mrf.mxu0
        %v3087 = vpop.f32.mrf.mxu0
        %3088 = vdwg.mxu0
        %3090 = vrot.lane.b32.xlu0 %v2978, 120
        %v3091 = vpop.permute.xlu0 %3090
        %3092 = vrot.lane.b32.xlu0 %v2979, 120
        %v3093 = vpop.permute.xlu0 %3092
        %v3095 = vsel %vm1330, %v3091, 0
        %v3098 = vsel %vm1330, %v3093, 0
        %3100 = vmatprep.subr.bf16.mxu0 0
        %3101 = vmatpush1.bf16.xpose.msra.mxu0 0
        %3102 = vmatprep.subr.bf16.mxu0 0
        %3103 = vmatpush1.bf16.xpose.msra.mxu0 0
        %3104 = vmatprep.subr.bf16.mxu0 0
        %3105 = vmatpush1.bf16.xpose.msra.mxu0 0
        %3106 = vmatprep.subr.bf16.mxu0 0
        %3107 = vmatpush1.bf16.xpose.msra.mxu0 0
        %3108 = vmatprep.subr.bf16.mxu0 0
        %3109 = vmatpush1.bf16.xpose.msra.mxu0 0
        %3110 = vmatprep.subr.bf16.mxu0 0
        %3111 = vmatpush1.bf16.xpose.msra.mxu0 0
        %3112 = vmatprep.subr.bf16.mxu0 0
        %3113 = vmatpush1.bf16.xpose.msra.mxu0 0
        %3114 = vmatprep.subr.bf16.mxu0 0
        %3115 = vmatpush1.bf16.xpose.msra.mxu0 %v3098
        %3116 = vmatprep.subr.bf16.mxu0 0
        %3117 = vmatpush2.bf16.xpose.msra.mxu0 0
        %3118 = vmatprep.subr.bf16.mxu0 0
        %3119 = vmatpush2.bf16.xpose.msra.mxu0 0
        %3120 = vmatprep.subr.bf16.mxu0 0
        %3121 = vmatpush2.bf16.xpose.msra.mxu0 0
        %3122 = vmatprep.subr.bf16.mxu0 0
        %3123 = vmatpush2.bf16.xpose.msra.mxu0 0
        %3124 = vmatprep.subr.bf16.mxu0 0
        %3125 = vmatpush2.bf16.xpose.msra.mxu0 0
        %3126 = vmatprep.subr.bf16.mxu0 0
        %3127 = vmatpush2.bf16.xpose.msra.mxu0 0
        %3128 = vmatprep.subr.bf16.mxu0 0
        %3129 = vmatpush2.bf16.xpose.msra.mxu0 0
        %3130 = vmatprep.subr.bf16.mxu0 0
        %3131 = vmatpush2.bf16.xpose.msra.mxu0 0
        %3132 = vmatprep.mubr.bf16.mxu0 0
        %3133 = vmatmul.mubr.bf16.gmra.mxu0 %v3095
        %v3134 = vpop.f32.mrf.mxu0
        %v3135 = vadd.f32 0.0, %v3134
        %v3136 = vpop.f32.mrf.mxu0
        %v3137 = vpop.f32.mrf.mxu0
        %v3138 = vpop.f32.mrf.mxu0
        %3139 = vdwg.mxu0
        %v3140 = vmul.f32 %v3135, %v2367
        %v3141 = vadd.f32 %v3140, %v2514
        %v3142 = vsel %vm1330, %v3141, -inf
        %3143 = vmax.xlane.f32.xlu0 %v3142
        %v3144 = vpop.xlane.xlu0 %3143
        %v3145 = vsub.f32 %v3141, %v3144
        %v3146 = vmul.f32 %v3145, 1.442695
        %v3147 = vpow.pop %v3146
        %v3148 = vsel %vm1330, %v3147, 0.0
        %3149 = vadd.xlane.f32.xlu0 %v3148
        %v3150 = vpop.xlane.xlu0 %3149
        %v3151 = vrcp.pop %v3150
        %v3152 = vmul.f32 %v3147, %v3151
        %v3153 = vpack.c.bf16 %v3152, %v3152
        %3154 = vrot.lane.b32.xlu0 %v2979, 88
        %v3155 = vpop.permute.xlu0 %3154
        %v3157 = vsel %vm1330, %v3153, 0
        %v3160 = vsel %vm1397, %v3155, 0
        %3162 = vmatprep.subr.bf16.mxu0 0
        %3163 = vmatpush1.bf16.msra.mxu0 0
        %3164 = vmatprep.subr.bf16.mxu0 0
        %3165 = vmatpush1.bf16.msra.mxu0 0
        %3166 = vmatprep.subr.bf16.mxu0 0
        %3167 = vmatpush1.bf16.msra.mxu0 0
        %3168 = vmatprep.subr.bf16.mxu0 0
        %3169 = vmatpush1.bf16.msra.mxu0 0
        %3170 = vmatprep.subr.bf16.mxu0 0
        %3171 = vmatpush1.bf16.msra.mxu0 0
        %3172 = vmatprep.subr.bf16.mxu0 0
        %3173 = vmatpush1.bf16.msra.mxu0 0
        %3174 = vmatprep.subr.bf16.mxu0 0
        %3175 = vmatpush1.bf16.msra.mxu0 0
        %3176 = vmatprep.subr.bf16.mxu0 0
        %3177 = vmatpush1.bf16.msra.mxu0 %v3160
        %3178 = vmatprep.subr.bf16.mxu0 0
        %3179 = vmatpush2.bf16.msra.mxu0 0
        %3180 = vmatprep.subr.bf16.mxu0 0
        %3181 = vmatpush2.bf16.msra.mxu0 0
        %3182 = vmatprep.subr.bf16.mxu0 0
        %3183 = vmatpush2.bf16.msra.mxu0 0
        %3184 = vmatprep.subr.bf16.mxu0 0
        %3185 = vmatpush2.bf16.msra.mxu0 0
        %3186 = vmatprep.subr.bf16.mxu0 0
        %3187 = vmatpush2.bf16.msra.mxu0 0
        %3188 = vmatprep.subr.bf16.mxu0 0
        %3189 = vmatpush2.bf16.msra.mxu0 0
        %3190 = vmatprep.subr.bf16.mxu0 0
        %3191 = vmatpush2.bf16.msra.mxu0 0
        %3192 = vmatprep.subr.bf16.mxu0 0
        %3193 = vmatpush2.bf16.msra.mxu0 0
        %3194 = vmatprep.mubr.bf16.mxu0 0
        %3195 = vmatmul.mubr.bf16.gmra.mxu0 %v3157
        %v3196 = vpop.f32.mrf.mxu0
        %v3197 = vadd.f32 0.0, %v3196
        %v3198 = vpop.f32.mrf.mxu0
        %v3199 = vpop.f32.mrf.mxu0
        %v3200 = vpop.f32.mrf.mxu0
        %3201 = vdwg.mxu0
        %3202 = vrot.lane.b32.xlu0 %v2978, 112
        %v3203 = vpop.permute.xlu0 %3202
        %3204 = vrot.lane.b32.xlu0 %v2979, 112
        %v3205 = vpop.permute.xlu0 %3204
        %v3207 = vsel %vm1330, %v3203, 0
        %v3210 = vsel %vm1330, %v3205, 0
        %3212 = vmatprep.subr.bf16.mxu0 0
        %3213 = vmatpush1.bf16.xpose.msra.mxu0 0
        %3214 = vmatprep.subr.bf16.mxu0 0
        %3215 = vmatpush1.bf16.xpose.msra.mxu0 0
        %3216 = vmatprep.subr.bf16.mxu0 0
        %3217 = vmatpush1.bf16.xpose.msra.mxu0 0
        %3218 = vmatprep.subr.bf16.mxu0 0
        %3219 = vmatpush1.bf16.xpose.msra.mxu0 0
        %3220 = vmatprep.subr.bf16.mxu0 0
        %3221 = vmatpush1.bf16.xpose.msra.mxu0 0
        %3222 = vmatprep.subr.bf16.mxu0 0
        %3223 = vmatpush1.bf16.xpose.msra.mxu0 0
        %3224 = vmatprep.subr.bf16.mxu0 0
        %3225 = vmatpush1.bf16.xpose.msra.mxu0 0
        %3226 = vmatprep.subr.bf16.mxu0 0
        %3227 = vmatpush1.bf16.xpose.msra.mxu0 %v3210
        %3228 = vmatprep.subr.bf16.mxu0 0
        %3229 = vmatpush2.bf16.xpose.msra.mxu0 0
        %3230 = vmatprep.subr.bf16.mxu0 0
        %3231 = vmatpush2.bf16.xpose.msra.mxu0 0
        %3232 = vmatprep.subr.bf16.mxu0 0
        %3233 = vmatpush2.bf16.xpose.msra.mxu0 0
        %3234 = vmatprep.subr.bf16.mxu0 0
        %3235 = vmatpush2.bf16.xpose.msra.mxu0 0
        %3236 = vmatprep.subr.bf16.mxu0 0
        %3237 = vmatpush2.bf16.xpose.msra.mxu0 0
        %3238 = vmatprep.subr.bf16.mxu0 0
        %3239 = vmatpush2.bf16.xpose.msra.mxu0 0
        %3240 = vmatprep.subr.bf16.mxu0 0
        %3241 = vmatpush2.bf16.xpose.msra.mxu0 0
        %3242 = vmatprep.subr.bf16.mxu0 0
        %3243 = vmatpush2.bf16.xpose.msra.mxu0 0
        %3244 = vmatprep.mubr.bf16.mxu0 0
        %3245 = vmatmul.mubr.bf16.gmra.mxu0 %v3207
        %v3246 = vpop.f32.mrf.mxu0
        %v3247 = vadd.f32 0.0, %v3246
        %v3248 = vpop.f32.mrf.mxu0
        %v3249 = vpop.f32.mrf.mxu0
        %v3250 = vpop.f32.mrf.mxu0
        %3251 = vdwg.mxu0
        %v3252 = vmul.f32 %v3247, %v2367
        %v3253 = vadd.f32 %v3252, %v2514
        %v3254 = vsel %vm1330, %v3253, -inf
        %3255 = vmax.xlane.f32.xlu0 %v3254
        %v3256 = vpop.xlane.xlu0 %3255
        %v3257 = vsub.f32 %v3253, %v3256
        %v3258 = vmul.f32 %v3257, 1.442695
        %v3259 = vpow.pop %v3258
        %v3260 = vsel %vm1330, %v3259, 0.0
        %3261 = vadd.xlane.f32.xlu0 %v3260
        %v3262 = vpop.xlane.xlu0 %3261
        %v3263 = vrcp.pop %v3262
        %v3264 = vmul.f32 %v3259, %v3263
        %v3265 = vpack.c.bf16 %v3264, %v3264
        %3266 = vrot.lane.b32.xlu0 %v2979, 80
        %v3267 = vpop.permute.xlu0 %3266
        %v3269 = vsel %vm1330, %v3265, 0
        %v3272 = vsel %vm1397, %v3267, 0
        %3274 = vmatprep.subr.bf16.mxu0 0
        %3275 = vmatpush1.bf16.msra.mxu0 0
        %3276 = vmatprep.subr.bf16.mxu0 0
        %3277 = vmatpush1.bf16.msra.mxu0 0
        %3278 = vmatprep.subr.bf16.mxu0 0
        %3279 = vmatpush1.bf16.msra.mxu0 0
        %3280 = vmatprep.subr.bf16.mxu0 0
        %3281 = vmatpush1.bf16.msra.mxu0 0
        %3282 = vmatprep.subr.bf16.mxu0 0
        %3283 = vmatpush1.bf16.msra.mxu0 0
        %3284 = vmatprep.subr.bf16.mxu0 0
        %3285 = vmatpush1.bf16.msra.mxu0 0
        %3286 = vmatprep.subr.bf16.mxu0 0
        %3287 = vmatpush1.bf16.msra.mxu0 0
        %3288 = vmatprep.subr.bf16.mxu0 0
        %3289 = vmatpush1.bf16.msra.mxu0 %v3272
        %3290 = vmatprep.subr.bf16.mxu0 0
        %3291 = vmatpush2.bf16.msra.mxu0 0
        %3292 = vmatprep.subr.bf16.mxu0 0
        %3293 = vmatpush2.bf16.msra.mxu0 0
        %3294 = vmatprep.subr.bf16.mxu0 0
        %3295 = vmatpush2.bf16.msra.mxu0 0
        %3296 = vmatprep.subr.bf16.mxu0 0
        %3297 = vmatpush2.bf16.msra.mxu0 0
        %3298 = vmatprep.subr.bf16.mxu0 0
        %3299 = vmatpush2.bf16.msra.mxu0 0
        %3300 = vmatprep.subr.bf16.mxu0 0
        %3301 = vmatpush2.bf16.msra.mxu0 0
        %3302 = vmatprep.subr.bf16.mxu0 0
        %3303 = vmatpush2.bf16.msra.mxu0 0
        %3304 = vmatprep.subr.bf16.mxu0 0
        %3305 = vmatpush2.bf16.msra.mxu0 0
        %3306 = vmatprep.mubr.bf16.mxu0 0
        %3307 = vmatmul.mubr.bf16.gmra.mxu0 %v3269
        %v3308 = vpop.f32.mrf.mxu0
        %v3309 = vadd.f32 0.0, %v3308
        %v3310 = vpop.f32.mrf.mxu0
        %v3311 = vpop.f32.mrf.mxu0
        %v3312 = vpop.f32.mrf.mxu0
        %3313 = vdwg.mxu0
        %3314 = vrot.lane.b32.xlu0 %v2978, 104
        %v3315 = vpop.permute.xlu0 %3314
        %3316 = vrot.lane.b32.xlu0 %v2979, 104
        %v3317 = vpop.permute.xlu0 %3316
        %v3319 = vsel %vm1330, %v3315, 0
        %v3322 = vsel %vm1330, %v3317, 0
        %3324 = vmatprep.subr.bf16.mxu0 0
        %3325 = vmatpush1.bf16.xpose.msra.mxu0 0
        %3326 = vmatprep.subr.bf16.mxu0 0
        %3327 = vmatpush1.bf16.xpose.msra.mxu0 0
        %3328 = vmatprep.subr.bf16.mxu0 0
        %3329 = vmatpush1.bf16.xpose.msra.mxu0 0
        %3330 = vmatprep.subr.bf16.mxu0 0
        %3331 = vmatpush1.bf16.xpose.msra.mxu0 0
        %3332 = vmatprep.subr.bf16.mxu0 0
        %3333 = vmatpush1.bf16.xpose.msra.mxu0 0
        %3334 = vmatprep.subr.bf16.mxu0 0
        %3335 = vmatpush1.bf16.xpose.msra.mxu0 0
        %3336 = vmatprep.subr.bf16.mxu0 0
        %3337 = vmatpush1.bf16.xpose.msra.mxu0 0
        %3338 = vmatprep.subr.bf16.mxu0 0
        %3339 = vmatpush1.bf16.xpose.msra.mxu0 %v3322
        %3340 = vmatprep.subr.bf16.mxu0 0
        %3341 = vmatpush2.bf16.xpose.msra.mxu0 0
        %3342 = vmatprep.subr.bf16.mxu0 0
        %3343 = vmatpush2.bf16.xpose.msra.mxu0 0
        %3344 = vmatprep.subr.bf16.mxu0 0
        %3345 = vmatpush2.bf16.xpose.msra.mxu0 0
        %3346 = vmatprep.subr.bf16.mxu0 0
        %3347 = vmatpush2.bf16.xpose.msra.mxu0 0
        %3348 = vmatprep.subr.bf16.mxu0 0
        %3349 = vmatpush2.bf16.xpose.msra.mxu0 0
        %3350 = vmatprep.subr.bf16.mxu0 0
        %3351 = vmatpush2.bf16.xpose.msra.mxu0 0
        %3352 = vmatprep.subr.bf16.mxu0 0
        %3353 = vmatpush2.bf16.xpose.msra.mxu0 0
        %3354 = vmatprep.subr.bf16.mxu0 0
        %3355 = vmatpush2.bf16.xpose.msra.mxu0 0
        %3356 = vmatprep.mubr.bf16.mxu0 0
        %3357 = vmatmul.mubr.bf16.gmra.mxu0 %v3319
        %v3358 = vpop.f32.mrf.mxu0
        %v3359 = vadd.f32 0.0, %v3358
        %v3360 = vpop.f32.mrf.mxu0
        %v3361 = vpop.f32.mrf.mxu0
        %v3362 = vpop.f32.mrf.mxu0
        %3363 = vdwg.mxu0
        %v3364 = vmul.f32 %v3359, %v2367
        %v3365 = vadd.f32 %v3364, %v2514
        %v3366 = vsel %vm1330, %v3365, -inf
        %3367 = vmax.xlane.f32.xlu0 %v3366
        %v3368 = vpop.xlane.xlu0 %3367
        %v3369 = vsub.f32 %v3365, %v3368
        %v3370 = vmul.f32 %v3369, 1.442695
        %v3371 = vpow.pop %v3370
        %v3372 = vsel %vm1330, %v3371, 0.0
        %3373 = vadd.xlane.f32.xlu0 %v3372
        %v3374 = vpop.xlane.xlu0 %3373
        %v3375 = vrcp.pop %v3374
        %v3376 = vmul.f32 %v3371, %v3375
        %v3377 = vpack.c.bf16 %v3376, %v3376
        %3378 = vrot.lane.b32.xlu0 %v2979, 72
        %v3379 = vpop.permute.xlu0 %3378
        %v3381 = vsel %vm1330, %v3377, 0
        %v3384 = vsel %vm1397, %v3379, 0
        %3386 = vmatprep.subr.bf16.mxu0 0
        %3387 = vmatpush1.bf16.msra.mxu0 0
        %3388 = vmatprep.subr.bf16.mxu0 0
        %3389 = vmatpush1.bf16.msra.mxu0 0
        %3390 = vmatprep.subr.bf16.mxu0 0
        %3391 = vmatpush1.bf16.msra.mxu0 0
        %3392 = vmatprep.subr.bf16.mxu0 0
        %3393 = vmatpush1.bf16.msra.mxu0 0
        %3394 = vmatprep.subr.bf16.mxu0 0
        %3395 = vmatpush1.bf16.msra.mxu0 0
        %3396 = vmatprep.subr.bf16.mxu0 0
        %3397 = vmatpush1.bf16.msra.mxu0 0
        %3398 = vmatprep.subr.bf16.mxu0 0
        %3399 = vmatpush1.bf16.msra.mxu0 0
        %3400 = vmatprep.subr.bf16.mxu0 0
        %3401 = vmatpush1.bf16.msra.mxu0 %v3384
        %3402 = vmatprep.subr.bf16.mxu0 0
        %3403 = vmatpush2.bf16.msra.mxu0 0
        %3404 = vmatprep.subr.bf16.mxu0 0
        %3405 = vmatpush2.bf16.msra.mxu0 0
        %3406 = vmatprep.subr.bf16.mxu0 0
        %3407 = vmatpush2.bf16.msra.mxu0 0
        %3408 = vmatprep.subr.bf16.mxu0 0
        %3409 = vmatpush2.bf16.msra.mxu0 0
        %3410 = vmatprep.subr.bf16.mxu0 0
        %3411 = vmatpush2.bf16.msra.mxu0 0
        %3412 = vmatprep.subr.bf16.mxu0 0
        %3413 = vmatpush2.bf16.msra.mxu0 0
        %3414 = vmatprep.subr.bf16.mxu0 0
        %3415 = vmatpush2.bf16.msra.mxu0 0
        %3416 = vmatprep.subr.bf16.mxu0 0
        %3417 = vmatpush2.bf16.msra.mxu0 0
        %3418 = vmatprep.mubr.bf16.mxu0 0
        %3419 = vmatmul.mubr.bf16.gmra.mxu0 %v3381
        %v3420 = vpop.f32.mrf.mxu0
        %v3421 = vadd.f32 0.0, %v3420
        %v3422 = vpop.f32.mrf.mxu0
        %v3423 = vpop.f32.mrf.mxu0
        %v3424 = vpop.f32.mrf.mxu0
        %3425 = vdwg.mxu0
        %3427 = vrot.lane.b32.xlu0 %v3197, 8
        %v3428 = vpop.permute.xlu0 %3427
        %3431 = vrot.lane.b32.xlu0 %v3309, 16
        %v3432 = vpop.permute.xlu0 %3431
        %3435 = vrot.lane.b32.xlu0 %v3421, 24
        %v3436 = vpop.permute.xlu0 %3435
        %v3438 = vsel %vm1330, %v3084, %v3428
        %v3439 = vsel %vm1791, %v3438, %v3432
        %v3440 = vsel %vm1793, %v3439, %v3436
        %v3441 = vpack.c.bf16 %v3440, %v2977
        %v3443 = vlaneseq
        %v3444 = vshrl.u32 %v3443, 7
        %v3445 = vsub.s32 0, %v3444
        %v3446 = vrot.slane %v2382, %v3445
        %v3452 = vunpack.c.l.b16 %v2378
        %v3453 = vunpack.c.l.b16 %v2379
        %v3454 = vunpack.c.l.b16 %v2380
        %v3455 = vunpack.c.l.b16 %v2381
        %v3456 = vpack.c.b16 %v3453, %v3452
        %v3457 = vpack.c.b16 %v3455, %v3454
        %v3461 = vsel %vm1220, %v3441, 0
        %3463 = vmatprep.subr.bf16.mxu0 0
        %3464 = vmatpush1.bf16.msra.mxu0 0
        %3465 = vmatprep.subr.bf16.mxu0 0
        %3466 = vmatpush1.bf16.msra.mxu0 0
        %3467 = vmatprep.subr.bf16.mxu0 0
        %3468 = vmatpush1.bf16.msra.mxu0 0
        %3469 = vmatprep.subr.bf16.mxu0 0
        %3470 = vmatpush1.bf16.msra.mxu0 0
        %3471 = vmatprep.subr.bf16.mxu0 0
        %3472 = vmatpush1.bf16.msra.mxu0 0
        %3473 = vmatprep.subr.bf16.mxu0 0
        %3474 = vmatpush1.bf16.msra.mxu0 0
        %3475 = vmatprep.subr.bf16.mxu0 0
        %3476 = vmatpush1.bf16.msra.mxu0 %v3457
        %3477 = vmatprep.subr.bf16.mxu0 0
        %3478 = vmatpush1.bf16.msra.mxu0 %v3456
        %3479 = vmatprep.subr.bf16.mxu0 0
        %3480 = vmatpush2.bf16.msra.mxu0 0
        %3481 = vmatprep.subr.bf16.mxu0 0
        %3482 = vmatpush2.bf16.msra.mxu0 0
        %3483 = vmatprep.subr.bf16.mxu0 0
        %3484 = vmatpush2.bf16.msra.mxu0 0
        %3485 = vmatprep.subr.bf16.mxu0 0
        %3486 = vmatpush2.bf16.msra.mxu0 0
        %3487 = vmatprep.subr.bf16.mxu0 0
        %3488 = vmatpush2.bf16.msra.mxu0 0
        %3489 = vmatprep.subr.bf16.mxu0 0
        %3490 = vmatpush2.bf16.msra.mxu0 0
        %3491 = vmatprep.subr.bf16.mxu0 0
        %3492 = vmatpush2.bf16.msra.mxu0 0
        %3493 = vmatprep.subr.bf16.mxu0 0
        %3494 = vmatpush2.bf16.msra.mxu0 0
        %3495 = vmatprep.mubr.bf16.mxu0 0
        %3496 = vmatmul.mubr.bf16.gmra.mxu0 %v3461
        %v3497 = vpop.f32.mrf.mxu0
        %v3498 = vadd.f32 %v3446, %v3497
        %v3499 = vpop.f32.mrf.mxu0
        %v3500 = vpop.f32.mrf.mxu0
        %v3501 = vadd.f32 %v3446, %v3500
        %v3502 = vpop.f32.mrf.mxu0
        %3503 = vdwg.mxu0
        %v3504 = vadd.f32 %v3498, %v2364
        %v3505 = vadd.f32 %v3501, %v2365
        %v3506 = vsel %vm1220, %v3504, 0.0
        %3507 = vadd.xlane.f32.xlu0 %v3506
        %v3508 = vpop.xlane.xlu0 %3507
        %v3509 = vsel %vm1220, %v3505, 0.0
        %3510 = vadd.xlane.f32.xlu0 %v3509
        %v3511 = vpop.xlane.xlu0 %3510
        %v3512 = vmul.f32 %v3508, %v2329
        %v3513 = vmul.f32 %v3511, %v2329
        %v3514 = vsub.f32 %v3504, %v3512
        %v3515 = vsub.f32 %v3505, %v3513
        %v3516 = vmul.f32 %v3514, %v3514
        %v3517 = vmul.f32 %v3515, %v3515
        %v3518 = vsel %vm1220, %v3516, 0.0
        %3519 = vadd.xlane.f32.xlu0 %v3518
        %v3520 = vpop.xlane.xlu0 %3519
        %v3521 = vsel %vm1220, %v3517, 0.0
        %3522 = vadd.xlane.f32.xlu0 %v3521
        %v3523 = vpop.xlane.xlu0 %3522
        %v3524 = vmul.f32 %v3520, %v2329
        %v3525 = vmul.f32 %v3523, %v2329
        %v3526 = vadd.f32 %v3524, 1e-12
        %v3527 = vadd.f32 %v3525, 1e-12
        %v3528 = vrsqrt.pop %v3526
        %v3529 = vrsqrt.pop %v3527
        %v3530 = vmul.f32 %v3514, %v3528
        %v3531 = vmul.f32 %v3515, %v3529
        %v3533 = vlaneseq
        %v3534 = vshrl.u32 %v3533, 7
        %v3535 = vsub.s32 0, %v3534
        %v3536 = vrot.slane %v2383, %v3535
        %v3538 = vmul.f32 %v3530, %v3536
        %v3539 = vmul.f32 %v3531, %v3536
        %v3541 = vlaneseq
        %v3542 = vshrl.u32 %v3541, 7
        %v3543 = vsub.s32 0, %v3542
        %v3544 = vrot.slane %v2384, %v3543
        %v3546 = vadd.f32 %v3538, %v3544
        %v3547 = vadd.f32 %v3539, %v3544
        %v3548 = vld [vmem:[%s1150] sm:$0xf]
        %v3549 = vld [vmem:[%s1150 + $0x4] sm:$0xf]
        %v3550 = vld [vmem:[%s1150 + $0x8] sm:$0xf]
        %v3551 = vld [vmem:[%s1150 + $0xc] sm:$0xf]
        %v3552 = vld [vmem:[%s1153] sm:$0x1]
        %v3553 = vld [vmem:[%s1158] sm:$0xf]
        %v3554 = vld [vmem:[%s1158 + $0x4] sm:$0xf]
        %v3555 = vld [vmem:[%s1158 + $0x8] sm:$0xf]
        %v3556 = vld [vmem:[%s1158 + $0xc] sm:$0xf]
        %v3557 = vld [vmem:[%s1158 + $0x10] sm:$0xf]
        %v3558 = vld [vmem:[%s1158 + $0x14] sm:$0xf]
        %v3559 = vld [vmem:[%s1158 + $0x18] sm:$0xf]
        %v3560 = vld [vmem:[%s1158 + $0x1c] sm:$0xf]
        %v3561 = vld [vmem:[%s1161] sm:$0x1]
        %v3562 = vld [vmem:[%s1164] sm:$0x1]
        %v3563 = vld [vmem:[%s1167] sm:$0x1]
        %v3564 = vpack.c.bf16 %v3547, %v3546
        %v3566 = vlaneseq
        %v3567 = vshrl.u32 %v3566, 7
        %v3568 = vsub.s32 0, %v3567
        %v3569 = vrot.slane %v3552, %v3568
        %v3575 = vunpack.c.l.b16 %v3548
        %v3576 = vunpack.c.l.b16 %v3549
        %v3577 = vunpack.c.l.b16 %v3550
        %v3578 = vunpack.c.l.b16 %v3551
        %v3579 = vpack.c.b16 %v3576, %v3575
        %v3580 = vpack.c.b16 %v3578, %v3577
        %v3584 = vsel %vm1220, %v3564, 0
        %3586 = vmatprep.subr.bf16.mxu0 0
        %3587 = vmatpush1.bf16.msra.mxu0 0
        %3588 = vmatprep.subr.bf16.mxu0 0
        %3589 = vmatpush1.bf16.msra.mxu0 0
        %3590 = vmatprep.subr.bf16.mxu0 0
        %3591 = vmatpush1.bf16.msra.mxu0 0
        %3592 = vmatprep.subr.bf16.mxu0 0
        %3593 = vmatpush1.bf16.msra.mxu0 0
        %3594 = vmatprep.subr.bf16.mxu0 0
        %3595 = vmatpush1.bf16.msra.mxu0 0
        %3596 = vmatprep.subr.bf16.mxu0 0
        %3597 = vmatpush1.bf16.msra.mxu0 0
        %3598 = vmatprep.subr.bf16.mxu0 0
        %3599 = vmatpush1.bf16.msra.mxu0 %v3580
        %3600 = vmatprep.subr.bf16.mxu0 0
        %3601 = vmatpush1.bf16.msra.mxu0 %v3579
        %3602 = vmatprep.subr.bf16.mxu0 0
        %3603 = vmatpush2.bf16.msra.mxu0 0
        %3604 = vmatprep.subr.bf16.mxu0 0
        %3605 = vmatpush2.bf16.msra.mxu0 0
        %3606 = vmatprep.subr.bf16.mxu0 0
        %3607 = vmatpush2.bf16.msra.mxu0 0
        %3608 = vmatprep.subr.bf16.mxu0 0
        %3609 = vmatpush2.bf16.msra.mxu0 0
        %3610 = vmatprep.subr.bf16.mxu0 0
        %3611 = vmatpush2.bf16.msra.mxu0 0
        %3612 = vmatprep.subr.bf16.mxu0 0
        %3613 = vmatpush2.bf16.msra.mxu0 0
        %3614 = vmatprep.subr.bf16.mxu0 0
        %3615 = vmatpush2.bf16.msra.mxu0 0
        %3616 = vmatprep.subr.bf16.mxu0 0
        %3617 = vmatpush2.bf16.msra.mxu0 0
        %3618 = vmatprep.mubr.bf16.mxu0 0
        %3619 = vmatmul.mubr.bf16.gmra.mxu0 %v3584
        %v3620 = vpop.f32.mrf.mxu0
        %v3621 = vadd.f32 %v3569, %v3620
        %v3622 = vpop.f32.mrf.mxu0
        %v3623 = vpop.f32.mrf.mxu0
        %v3624 = vadd.f32 %v3569, %v3623
        %v3625 = vpop.f32.mrf.mxu0
        %3626 = vdwg.mxu0
        %v3627 = vmax.f32 %v3621, 0.0
        %v3628 = vmax.f32 %v3624, 0.0
        %v3629 = vpack.c.bf16 %v3628, %v3627
        %v3631 = vlaneseq
        %v3632 = vshrl.u32 %v3631, 7
        %v3633 = vsub.s32 0, %v3632
        %v3634 = vrot.slane %v3561, %v3633
        %v3644 = vunpack.c.l.b16 %v3553
        %v3645 = vunpack.c.l.b16 %v3554
        %v3646 = vunpack.c.l.b16 %v3555
        %v3647 = vunpack.c.l.b16 %v3556
        %v3648 = vunpack.c.l.b16 %v3557
        %v3649 = vunpack.c.l.b16 %v3558
        %v3650 = vunpack.c.l.b16 %v3559
        %v3651 = vunpack.c.l.b16 %v3560
        %v3652 = vpack.c.b16 %v3645, %v3644
        %v3653 = vpack.c.b16 %v3647, %v3646
        %v3654 = vpack.c.b16 %v3649, %v3648
        %v3655 = vpack.c.b16 %v3651, %v3650
        %vm3660 = vcmask 523264
        %v3662 = vsel %vm3660, %v3629, 0
        %3664 = vmatprep.subr.bf16.mxu0 0
        %3665 = vmatpush1.bf16.msra.mxu0 0
        %3666 = vmatprep.subr.bf16.mxu0 0
        %3667 = vmatpush1.bf16.msra.mxu0 0
        %3668 = vmatprep.subr.bf16.mxu0 0
        %3669 = vmatpush1.bf16.msra.mxu0 0
        %3670 = vmatprep.subr.bf16.mxu0 0
        %3671 = vmatpush1.bf16.msra.mxu0 0
        %3672 = vmatprep.subr.bf16.mxu0 0
        %3673 = vmatpush1.bf16.msra.mxu0 %v3655
        %3674 = vmatprep.subr.bf16.mxu0 0
        %3675 = vmatpush1.bf16.msra.mxu0 %v3654
        %3676 = vmatprep.subr.bf16.mxu0 0
        %3677 = vmatpush1.bf16.msra.mxu0 %v3653
        %3678 = vmatprep.subr.bf16.mxu0 0
        %3679 = vmatpush1.bf16.msra.mxu0 %v3652
        %3680 = vmatprep.subr.bf16.mxu0 0
        %3681 = vmatpush2.bf16.msra.mxu0 0
        %3682 = vmatprep.subr.bf16.mxu0 0
        %3683 = vmatpush2.bf16.msra.mxu0 0
        %3684 = vmatprep.subr.bf16.mxu0 0
        %3685 = vmatpush2.bf16.msra.mxu0 0
        %3686 = vmatprep.subr.bf16.mxu0 0
        %3687 = vmatpush2.bf16.msra.mxu0 0
        %3688 = vmatprep.subr.bf16.mxu0 0
        %3689 = vmatpush2.bf16.msra.mxu0 0
        %3690 = vmatprep.subr.bf16.mxu0 0
        %3691 = vmatpush2.bf16.msra.mxu0 0
        %3692 = vmatprep.subr.bf16.mxu0 0
        %3693 = vmatpush2.bf16.msra.mxu0 0
        %3694 = vmatprep.subr.bf16.mxu0 0
        %3695 = vmatpush2.bf16.msra.mxu0 0
        %3696 = vmatprep.mubr.bf16.mxu0 0
        %3697 = vmatmul.mubr.bf16.gmra.mxu0 %v3662
        %v3698 = vpop.f32.mrf.mxu0
        %v3699 = vadd.f32 %v3634, %v3698
        %v3700 = vpop.f32.mrf.mxu0
        %v3701 = vpop.f32.mrf.mxu0
        %v3702 = vadd.f32 %v3634, %v3701
        %v3703 = vpop.f32.mrf.mxu0
        %3704 = vdwg.mxu0
        %v3705 = vadd.f32 %v3699, %v3546
        %v3706 = vadd.f32 %v3702, %v3547
        %v3707 = vsel %vm1220, %v3705, 0.0
        %3708 = vadd.xlane.f32.xlu0 %v3707
        %v3709 = vpop.xlane.xlu0 %3708
        %v3710 = vsel %vm1220, %v3706, 0.0
        %3711 = vadd.xlane.f32.xlu0 %v3710
        %v3712 = vpop.xlane.xlu0 %3711
        %v3713 = vmul.f32 %v3709, %v2329
        %v3714 = vmul.f32 %v3712, %v2329
        %v3715 = vsub.f32 %v3705, %v3713
        %v3716 = vsub.f32 %v3706, %v3714
        %v3717 = vmul.f32 %v3715, %v3715
        %v3718 = vmul.f32 %v3716, %v3716
        %v3719 = vsel %vm1220, %v3717, 0.0
        %3720 = vadd.xlane.f32.xlu0 %v3719
        %v3721 = vpop.xlane.xlu0 %3720
        %v3722 = vsel %vm1220, %v3718, 0.0
        %3723 = vadd.xlane.f32.xlu0 %v3722
        %v3724 = vpop.xlane.xlu0 %3723
        %v3725 = vmul.f32 %v3721, %v2329
        %v3726 = vmul.f32 %v3724, %v2329
        %v3727 = vadd.f32 %v3725, 1e-12
        %v3728 = vadd.f32 %v3726, 1e-12
        %v3729 = vrsqrt.pop %v3727
        %v3730 = vrsqrt.pop %v3728
        %v3731 = vmul.f32 %v3715, %v3729
        %v3732 = vmul.f32 %v3716, %v3730
        %v3734 = vlaneseq
        %v3735 = vshrl.u32 %v3734, 7
        %v3736 = vsub.s32 0, %v3735
        %v3737 = vrot.slane %v3562, %v3736
        %v3739 = vmul.f32 %v3731, %v3737
        %v3740 = vmul.f32 %v3732, %v3737
        %v3742 = vlaneseq
        %v3743 = vshrl.u32 %v3742, 7
        %v3744 = vsub.s32 0, %v3743
        %v3745 = vrot.slane %v3563, %v3744
        %v3747 = vadd.f32 %v3739, %v3745
        %v3748 = vadd.f32 %v3740, %v3745
        %3749 = vst.msk [vmem:[#allocation2] sm:$0xff] %vm1220, %v3747
        %3750 = vst.msk [vmem:[#allocation2 + $0x8] sm:$0xff] %vm1220, %v3748
        %p3751 = scmp.eq.s32.totalorder %s40, 1
        // Predicated region
        $region137: #{transformer_forward.3} parent=131 // pred_check
          %p3752 = pneg %p3751
        $region138: #{transformer_forward.3} parent=131 // pred_check_branch
          %3754 = sbr.rel (%p3752) target = $region140
        $region139: #{transformer_forward.3} parent=131 // pred_region
          %v3755 = vld [vmem:[#allocation2] sm:$0xff]
          %v3756 = vld [vmem:[#allocation2 + $0x8] sm:$0xff]
          %v3757 = vpack.c.bf16 %v3756, %v3755
          %v3758 = vld [vmem:[%s26] sm:$0xf]
          %v3759 = vld [vmem:[%s26 + $0x4] sm:$0xf]
          %v3760 = vld [vmem:[%s26 + $0x8] sm:$0xf]
          %v3761 = vld [vmem:[%s26 + $0xc] sm:$0xf]
          %v3762 = vld [vmem:[%s27] sm:$0x1]
          %v3764 = vlaneseq
          %v3765 = vshrl.u32 %v3764, 7
          %v3766 = vsub.s32 0, %v3765
          %v3767 = vrot.slane %v3762, %v3766
          %v3773 = vunpack.c.l.b16 %v3758
          %v3774 = vunpack.c.l.b16 %v3759
          %v3775 = vunpack.c.l.b16 %v3760
          %v3776 = vunpack.c.l.b16 %v3761
          %v3777 = vpack.c.b16 %v3774, %v3773
          %v3778 = vpack.c.b16 %v3776, %v3775
          %v3782 = vsel %vm1220, %v3757, 0
          %3784 = vmatprep.subr.bf16.mxu0 0
          %3785 = vmatpush1.bf16.msra.mxu0 0
          %3786 = vmatprep.subr.bf16.mxu0 0
          %3787 = vmatpush1.bf16.msra.mxu0 0
          %3788 = vmatprep.subr.bf16.mxu0 0
          %3789 = vmatpush1.bf16.msra.mxu0 0
          %3790 = vmatprep.subr.bf16.mxu0 0
          %3791 = vmatpush1.bf16.msra.mxu0 0
          %3792 = vmatprep.subr.bf16.mxu0 0
          %3793 = vmatpush1.bf16.msra.mxu0 0
          %3794 = vmatprep.subr.bf16.mxu0 0
          %3795 = vmatpush1.bf16.msra.mxu0 0
          %3796 = vmatprep.subr.bf16.mxu0 0
          %3797 = vmatpush1.bf16.msra.mxu0 %v3778
          %3798 = vmatprep.subr.bf16.mxu0 0
          %3799 = vmatpush1.bf16.msra.mxu0 %v3777
          %3800 = vmatprep.subr.bf16.mxu0 0
          %3801 = vmatpush2.bf16.msra.mxu0 0
          %3802 = vmatprep.subr.bf16.mxu0 0
          %3803 = vmatpush2.bf16.msra.mxu0 0
          %3804 = vmatprep.subr.bf16.mxu0 0
          %3805 = vmatpush2.bf16.msra.mxu0 0
          %3806 = vmatprep.subr.bf16.mxu0 0
          %3807 = vmatpush2.bf16.msra.mxu0 0
          %3808 = vmatprep.subr.bf16.mxu0 0
          %3809 = vmatpush2.bf16.msra.mxu0 0
          %3810 = vmatprep.subr.bf16.mxu0 0
          %3811 = vmatpush2.bf16.msra.mxu0 0
          %3812 = vmatprep.subr.bf16.mxu0 0
          %3813 = vmatpush2.bf16.msra.mxu0 0
          %3814 = vmatprep.subr.bf16.mxu0 0
          %3815 = vmatpush2.bf16.msra.mxu0 0
          %3816 = vmatprep.mubr.bf16.mxu0 0
          %3817 = vmatmul.mubr.bf16.gmra.mxu0 %v3782
          %v3818 = vpop.f32.mrf.mxu0
          %v3819 = vadd.f32 %v3767, %v3818
          %v3820 = vpop.f32.mrf.mxu0
          %v3821 = vpop.f32.mrf.mxu0
          %v3822 = vadd.f32 %v3767, %v3821
          %v3823 = vpop.f32.mrf.mxu0
          %3824 = vdwg.mxu0
          %3825 = vst [vmem:[#allocation3] sm:$0xff] %v3819
          %3826 = vst [vmem:[#allocation3 + $0x8] sm:$0xff] %v3822
        $region140: #{transformer_forward.3} parent=131 // pred_fallthru
          _
        // Predicated region
        $region141: #{transformer_forward.3} parent=131 // pred_check
          %p3827 = pneg %p751
        $region142: #{transformer_forward.3} parent=131 // pred_check_branch
          %3829 = sbr.rel (%p3827) target = $region144
        $region143: #{transformer_forward.3} parent=131 // pred_region
          %s3831 = ssub.s32 256, 256
          %3832 = vsyncadd [#allocation4], %s3831
          %s3833 = sshll.u32 [#allocation3], 4
          %s3834 = int_to_ptr.vmem [resolvable:$true] %s3833
          %3839 = dma.vmem_to_hbm [thread:$0]  %s3834, 256, %s28, [#allocation4], 128, 128, 8
        $region144: #{transformer_forward.3} parent=131 // pred_fallthru
          _
        // Predicated region
        $region145: #{transformer_forward.3} parent=131 // pred_check
          %p3840 = pneg %p751
        $region146: #{transformer_forward.3} parent=131 // pred_check_branch
          %3842 = sbr.rel (%p3840) target = $region148
        $region147: #{transformer_forward.3} parent=131 // pred_region
          %3843 = dma.done [#allocation4], 256
        $region148: #{transformer_forward.3} parent=131 // pred_fallthru
          _
      $region132: #{transformer_forward.3} parent=5 // pred_fallthru
        _
      %p3844 = scmp.le.s32.totalorder 2, %s35
      // Predicated region
      $region149: #{transformer_forward.3} parent=5 // pred_check
        %p3845 = pneg %p3844
      $region150: #{transformer_forward.3} parent=5 // pred_check_branch
        %3847 = sbr.rel (%p3845) target = $region152
      $region151: #{transformer_forward.3} parent=5 // pred_region
        %s3848 = ssub.s32 %s35, 2
      $region152: #{transformer_forward.3} parent=5 // pred_fallthru
        _
    $region6: #{transformer_forward.3} parent=1 // loop_footer
      %s39 = sadd.s32 1, %s35
    $region7: #{transformer_forward.3} parent=1 // loop_footer_branch
      %34 = sbr.rel target = $region3
    $region8: #{transformer_forward.3} parent=1 // loop_exit
      _
    %3849 = vsyncpa [#allocation4], 1
    %s3850 = scalar_lea.sflag [#allocation4], 1
    %3851 = vsyncpa %s3850, 1

</llo_original>
